<compile_context>
chip_gen: v7x
topology: tpu7x:2x2x1
jax: 0.10.0
libtpu: 0.0.40
codegen_flags: <defaults>
</compile_context>

<pallas_src>
import functools

import jax
import jax.numpy as jnp
from jax import lax
from jax.experimental import pallas as pl
from jax.experimental.pallas import tpu as pltpu

LN_EPS = 1e-5  # nn.LayerNorm / nn.TransformerEncoderLayer default


def _round_up(v, m):
    return (v + m - 1) // m * m


def _vmem_limit_bytes():
    """Gen-aware scoped-VMEM budget (v5e/v6e: ~96MiB, v7x: ~48MiB)."""
    try:
        cap = int(pltpu.get_tpu_info().vmem_capacity_bytes)
    except Exception:
        cap = 64 * 1024 * 1024
    return max(32 * 1024 * 1024, min((cap * 3) // 4, 100 * 1024 * 1024))


# ---------------------------------------------------------------------------
# Tiled linear kernel (patch embedding, classifier head)
# ---------------------------------------------------------------------------
def _linear_kernel(x_ref, w_ref, b_ref, o_ref):
    o_ref[...] = (
        jnp.dot(x_ref[...], w_ref[...], preferred_element_type=jnp.float32)
        + b_ref[...]
    ).astype(o_ref.dtype)


def linear_tiled(x, w, b, block_rows=512, out_dtype=jnp.float32):
    """x: (M, K), w: (K, N), b: (N,) -> (M, N) in out_dtype.

    Row-tiled (512 rows: ~85% of HBM roofline for mem-bound tiles), bf16 MXU
    operands with f32 accumulation; output lanes padded to a multiple of 128
    (lane-dense stores) and sliced back outside the kernel.
    """
    M, K = x.shape
    N = w.shape[1]
    tm = min(block_rows, _round_up(M, 8))
    Mp = _round_up(M, tm)
    Np = _round_up(N, 128)

    xb = x.astype(jnp.bfloat16)
    if Mp != M:
        xb = jnp.pad(xb, ((0, Mp - M), (0, 0)))
    wb = w.astype(jnp.bfloat16)
    bf = b.astype(jnp.float32)
    if Np != N:
        wb = jnp.pad(wb, ((0, 0), (0, Np - N)))
        bf = jnp.pad(bf, ((0, Np - N),))

    out = pl.pallas_call(
        _linear_kernel,
        out_shape=jax.ShapeDtypeStruct((Mp, Np), out_dtype),
        grid=(Mp // tm,),
        in_specs=[pl.BlockSpec((tm, K), lambda i: (i, 0)),
                  pl.BlockSpec((K, Np), lambda i: (0, 0)),
                  pl.BlockSpec((1, Np), lambda i: (0, 0))],
        out_specs=pl.BlockSpec((tm, Np), lambda i: (i, 0)),
        compiler_params=pltpu.CompilerParams(
            dimension_semantics=("parallel",)),
    )(xb, wb, bf.reshape(1, Np))
    return out[:M, :N]


# ---------------------------------------------------------------------------
# Fused TransformerEncoder stack kernel
# ---------------------------------------------------------------------------
def _ln(x, g, b):
    mu = jnp.mean(x, axis=-1, keepdims=True)
    var = jnp.mean((x - mu) ** 2, axis=-1, keepdims=True)
    return (x - mu) * lax.rsqrt(var + LN_EPS) * g + b


def _encoder_stack_kernel(x_ref, mask_ref,
                          wq_ref, bq_ref, wk_ref, bk_ref, wv_ref, bv_ref,
                          wo_ref, bo_ref, ln1g_ref, ln1b_ref,
                          w1_ref, b1_ref, w2_ref, b2_ref, ln2g_ref, ln2b_ref,
                          lnfg_ref, lnfb_ref,
                          o_ref, act_ref, *, num_heads):
    """Post-LN TransformerEncoderLayer stack (eval mode, relu activation).

    Grid = (batch_block, layer).  The residual stream for the current NB
    sequences is resident in `act_ref` (VMEM scratch) across the layer axis;
    per-layer weights stream through the BlockSpec pipeline (layer l+1 weight
    DMA overlaps layer l compute).  Only the CLS rows are emitted, with the
    surrounding module's final LayerNorm fused into the last layer step.
    """
    layer = pl.program_id(1)

    @pl.when(layer == 0)
    def _():
        act_ref[...] = x_ref[...].astype(jnp.float32)

    NB, S, D = act_ref.shape
    H = num_heads
    dh = D // H
    M = NB * S

    x = act_ref[...]                                   # (NB, S, D) f32 residual
    x2d = x.reshape(M, D)
    xb = x2d.astype(jnp.bfloat16)
    mask = mask_ref[...]                               # (NB, 1, S) additive key mask

    # --- attention: full-width lane-dense projections (K = N = D on the MXU) ---
    q = jnp.dot(xb, wq_ref[0], preferred_element_type=jnp.float32) + bq_ref[0]
    k = jnp.dot(xb, wk_ref[0], preferred_element_type=jnp.float32) + bk_ref[0]
    v = jnp.dot(xb, wv_ref[0], preferred_element_type=jnp.float32) + bv_ref[0]

    scale = 1.0 / float(dh) ** 0.5
    q3 = (q * scale).reshape(NB, S, D)
    k3 = k.reshape(NB, S, D)
    v3 = v.reshape(NB, S, D)

    # Heads are split only here, via static lane slices of the projections.
    ctx_parts = []
    for h in range(H):
        lo = h * dh
        qh = q3[:, :, lo:lo + dh].astype(jnp.bfloat16)      # (NB, S, dh)
        kh = k3[:, :, lo:lo + dh].astype(jnp.bfloat16)
        vh = v3[:, :, lo:lo + dh].astype(jnp.bfloat16)
        s = jnp.einsum('bqd,bkd->bqk', qh, kh,
                       preferred_element_type=jnp.float32)   # (NB, S, S)
        s = s + mask                                         # broadcast over queries
        s = s - jnp.max(s, axis=-1, keepdims=True)
        p = jnp.exp(s)
        # EUP approx reciprocal instead of a VALU divide.
        p = p * pl.reciprocal(jnp.sum(p, axis=-1, keepdims=True), approx=True)
        ctx_parts.append(
            jnp.einsum('bqk,bkd->bqd', p.astype(jnp.bfloat16), vh,
                       preferred_element_type=jnp.float32))  # (NB, S, dh)
    ctx = jnp.concatenate(ctx_parts, axis=-1).reshape(M, D)   # (M, D) f32

    # Single full-depth output projection (K = D): no per-head reduction.
    attn = jnp.dot(ctx.astype(jnp.bfloat16), wo_ref[0],
                   preferred_element_type=jnp.float32) + bo_ref[0]

    x1 = _ln(x2d + attn, ln1g_ref[0], ln1b_ref[0])            # (M, D)

    # --- feed-forward (relu) ---
    h1 = jnp.dot(x1.astype(jnp.bfloat16), w1_ref[0],
                 preferred_element_type=jnp.float32) + b1_ref[0]
    h1 = jnp.maximum(h1, 0.0)
    h2 = jnp.dot(h1.astype(jnp.bfloat16), w2_ref[0],
                 preferred_element_type=jnp.float32) + b2_ref[0]
    x2n = _ln(x1 + h2, ln2g_ref[0], ln2b_ref[0])

    act_ref[...] = x2n.reshape(NB, S, D)

    @pl.when(layer == pl.num_programs(1) - 1)
    def _():
        # Emit only the CLS rows (first 8 sublanes), final LayerNorm fused.
        rows = o_ref.shape[1]
        cls = x2n.reshape(NB, S, D)[:, :rows, :]
        o_ref[...] = _ln(cls, lnfg_ref[...], lnfb_ref[...])


def _stacked_spec(arr):
    """BlockSpec for a weight stacked along a leading layer axis."""
    nd = arr.ndim - 1
    return pl.BlockSpec((1,) + arr.shape[1:],
                        lambda n, l, _z=(0,) * nd: (l,) + _z)


def _encoder_vmem_estimate(nb, S, D, F, per_layer_w_bytes):
    """Rough per-grid-step VMEM footprint (bytes) for batch-block size nb."""
    f32 = 4
    m = nb * S
    act = m * D * f32                                 # residual scratch
    io = 2 * m * D * f32 + 2 * nb * S * f32 + 2 * nb * 8 * D * f32
    qkv = 3 * m * D * f32
    scores = 3 * nb * S * S * f32                     # one head live at a time
    ctx = m * D * f32
    ffn = m * F * (f32 + 2)                           # h1 f32 + bf16 copy
    return 2 * per_layer_w_bytes + act + io + qkv + scores + ctx + ffn + (2 << 20)


def encoder_stack(x, mask_add, lw, ln_g, ln_b, num_heads, *, cls_rows=8):
    """Whole encoder stack + final LayerNorm as one pallas_call.

    x: (N, S, D) float32; mask_add: (N, S) float32 additive key mask.
    Returns (N, cls_rows, D) float32 (final LayerNorm already applied); only
    row 0 (CLS) is meaningful downstream.
    """
    N, S, D = x.shape
    H = num_heads
    assert D % H == 0, "embed_dim must be divisible by num_heads"
    assert S % 8 == 0, "sequence length must be padded to a multiple of 8"
    L = lw['wq'].shape[0]
    F = lw['w1'].shape[2]

    weights = [
        lw['wq'], lw['bq'].reshape(L, 1, D),
        lw['wk'], lw['bk'].reshape(L, 1, D),
        lw['wv'], lw['bv'].reshape(L, 1, D),
        lw['wo'], lw['bo'].reshape(L, 1, D),
        lw['ln1g'].reshape(L, 1, D), lw['ln1b'].reshape(L, 1, D),
        lw['w1'], lw['b1'].reshape(L, 1, F),
        lw['w2'], lw['b2'].reshape(L, 1, D),
        lw['ln2g'].reshape(L, 1, D), lw['ln2b'].reshape(L, 1, D),
    ]
    per_layer_bytes = sum(int(wt.nbytes) for wt in weights) // L

    vmem_limit = _vmem_limit_bytes()
    # Batch-block NB sequences per grid step: divides per-layer weight HBM
    # traffic by NB and fattens the matmul M-dim to NB*S.
    nb = 1
    for cand in (16, 8, 4, 2):
        if _encoder_vmem_estimate(cand, S, D, F, per_layer_bytes) <= int(vmem_limit * 0.85):
            nb = cand
            break
    nb = max(1, min(nb, N))
    Np = _round_up(N, nb)
    if Np != N:
        # Zero-padded dummy sequences (independent rows; outputs discarded).
        x = jnp.pad(x, ((0, Np - N), (0, 0), (0, 0)))
        mask_add = jnp.pad(mask_add, ((0, Np - N), (0, 0)))

    mask3 = mask_add.reshape(Np, 1, S).astype(jnp.float32)
    kernel = functools.partial(_encoder_stack_kernel, num_heads=H)

    in_specs = [pl.BlockSpec((nb, S, D), lambda n, l: (n, 0, 0)),
                pl.BlockSpec((nb, 1, S), lambda n, l: (n, 0, 0))]
    in_specs += [_stacked_spec(wt) for wt in weights]
    in_specs += [pl.BlockSpec((1, D), lambda n, l: (0, 0)),
                 pl.BlockSpec((1, D), lambda n, l: (0, 0))]

    out = pl.pallas_call(
        kernel,
        out_shape=jax.ShapeDtypeStruct((Np, cls_rows, D), jnp.float32),
        grid=(Np // nb, L),
        in_specs=in_specs,
        out_specs=pl.BlockSpec((nb, cls_rows, D), lambda n, l: (n, 0, 0)),
        scratch_shapes=[pltpu.VMEM((nb, S, D), jnp.float32)],
        compiler_params=pltpu.CompilerParams(
            dimension_semantics=("parallel", "arbitrary"),
            vmem_limit_bytes=vmem_limit),
    )(x.astype(jnp.float32), mask3, *weights,
      ln_g.reshape(1, D).astype(jnp.float32),
      ln_b.reshape(1, D).astype(jnp.float32))
    return out[:N]


# ---------------------------------------------------------------------------
# Model forward (layout glue in JAX, compute in the Pallas kernels above)
# ---------------------------------------------------------------------------
def spatial_transformer_fwd(x, p, cfg):
    b, t, c, h, w = x.shape
    ps, tub, d = cfg['patch_size'], cfg['tubelet_size'], cfg['embed_dim']
    assert h == cfg['image_size'] and w == cfg['image_size'] and t % tub == 0
    T_ = t // tub
    n_h, n_w = h // ps, w // ps

    # Conv3d with kernel == stride == (tub, ps, ps) -> patch-embedding matmul.
    # Cast to bf16 BEFORE the big layout shuffle: halves its HBM traffic.
    xb = x.astype(jnp.bfloat16)
    xp = xb.reshape(b, T_, tub, c, n_h, ps, n_w, ps)
    xp = xp.transpose(0, 1, 4, 6, 3, 2, 5, 7)        # b, T', i, j, c, dt, dh, dw
    patches = xp.reshape(b * T_ * n_h * n_w, c * tub * ps * ps)
    w_flat = p['conv_w'].reshape(d, -1).T            # (patch_dim, d)
    tok = linear_tiled(patches, w_flat, p['conv_b'],
                       out_dtype=jnp.bfloat16)       # bf16 token write-back
    tok = tok.reshape(b * T_, n_h * n_w, d)

    N = b * T_
    S_real = n_h * n_w + 1
    cls = jnp.broadcast_to(p['cls_token'], (N, 1, d)).astype(jnp.float32)
    seq = (jnp.concatenate([cls, tok.astype(jnp.float32)], axis=1)
           + p['pos_embed'][:, :S_real])

    S = _round_up(S_real, 8)                          # pad to full sublanes
    seq = jnp.pad(seq, ((0, 0), (0, S - S_real), (0, 0)))
    key_pad = jnp.arange(S) >= S_real                 # padded keys masked out
    mask_add = jnp.broadcast_to(jnp.where(key_pad, -1e9, 0.0),
                                (N, S)).astype(jnp.float32)

    out = encoder_stack(seq, mask_add, p['layers'], p['ln_g'], p['ln_b'],
                        cfg['spatial_num_heads'])     # final LN fused inside
    return out[:, 0].reshape(b, T_, d)


def temporal_transformer_fwd(x, padding_mask, p, cfg):
    b, t, d = x.shape
    S_real = t + 1
    cls = jnp.broadcast_to(p['cls_token'], (b, 1, d))
    seq = jnp.concatenate([cls, x], axis=1) + p['pos_embed'][:, :S_real]
    pm = jnp.concatenate([jnp.zeros((b, 1), dtype=bool), padding_mask], axis=1)

    S = _round_up(S_real, 8)
    seq = jnp.pad(seq, ((0, 0), (0, S - S_real), (0, 0)))
    pm = jnp.pad(pm, ((0, 0), (0, S - S_real)), constant_values=True)
    # -1e9 (not -inf): fully padded query rows get a uniform softmax instead of
    # NaN; harmless since only the (never-masked) CLS row is consumed.
    mask_add = jnp.where(pm, -1e9, 0.0).astype(jnp.float32)

    out = encoder_stack(seq, mask_add, p['layers'], p['ln_g'], p['ln_b'],
                        cfg['temporal_num_heads'])    # final LN fused inside
    return out[:, 0]


def vivit_forward(x, padding_mask, params, cfg):
    step = cfg['tubelet_size']
    pm = padding_mask[:, ::step]
    spatial_embeddings = spatial_transformer_fwd(x, params['spatial'], cfg)
    video_embedding = temporal_transformer_fwd(spatial_embeddings, pm,
                                               params['temporal'], cfg)
    logits = linear_tiled(video_embedding, params['classifier']['w'],
                          params['classifier']['b'])
    return logits


# ---------------------------------------------------------------------------
# Deterministic parameter initialization (shapes follow the nn.Module __init__)
# ---------------------------------------------------------------------------
def init_stacked_layers(key, num_layers, d, f):
    """Per-layer weights stacked along a leading L axis; matmul weights bf16."""
    L = num_layers
    ks = jax.random.split(key, 6)
    s = 0.02
    rn = lambda k, *sh: (s * jax.random.normal(k, sh)).astype(jnp.bfloat16)
    zeros = lambda *sh: jnp.zeros(sh, jnp.float32)
    ones = lambda *sh: jnp.ones(sh, jnp.float32)
    return dict(
        wq=rn(ks[0], L, d, d), wk=rn(ks[1], L, d, d), wv=rn(ks[2], L, d, d),
        bq=zeros(L, d), bk=zeros(L, d), bv=zeros(L, d),
        wo=rn(ks[3], L, d, d), bo=zeros(L, d),
        ln1g=ones(L, d), ln1b=zeros(L, d),
        w1=rn(ks[4], L, d, f), b1=zeros(L, f),
        w2=rn(ks[5], L, f, d), b2=zeros(L, d),
        ln2g=ones(L, d), ln2b=zeros(L, d),
    )


def init_params(key, cfg):
    d, ps, tub = cfg['embed_dim'], cfg['patch_size'], cfg['tubelet_size']
    nhw = (cfg['image_size'] // ps) ** 2
    keys = jax.random.split(key, 8)
    s = 0.02
    spatial = dict(
        conv_w=(s * jax.random.normal(keys[0], (d, 3, tub, ps, ps))
                ).astype(jnp.float32),
        conv_b=jnp.zeros((d,), jnp.float32),
        cls_token=jax.random.normal(keys[1], (1, 1, d), dtype=jnp.float32),
        pos_embed=(s * jax.random.normal(keys[2], (1, nhw + 1, d))
                   ).astype(jnp.float32),
        layers=init_stacked_layers(keys[3], cfg['spatial_num_layers'], d,
                                   cfg['spatial_mlp_dim']),
        ln_g=jnp.ones((d,), jnp.float32), ln_b=jnp.zeros((d,), jnp.float32),
    )
    temporal = dict(
        cls_token=jax.random.normal(keys[4], (1, 1, d), dtype=jnp.float32),
        pos_embed=(s * jax.random.normal(keys[5],
                                         (1, cfg['max_seq_length'] + 1, d))
                   ).astype(jnp.float32),
        layers=init_stacked_layers(keys[6], cfg['temporal_num_layers'], d,
                                   cfg['temporal_mlp_dim']),
        ln_g=jnp.ones((d,), jnp.float32), ln_b=jnp.zeros((d,), jnp.float32),
    )
    classifier = dict(
        w=(s * jax.random.normal(keys[7], (d, cfg['num_classes']))
           ).astype(jnp.float32),
        b=jnp.zeros((cfg['num_classes'],), jnp.float32),
    )
    return dict(spatial=spatial, temporal=temporal, classifier=classifier)


# TODO(synk): dropout inside nn.TransformerEncoderLayer is identity in eval
# mode, so it is intentionally omitted (inference semantics).

if __name__ == "__main__":
    cfg = dict(use_vit=False, embed_dim=32,
               spatial_num_heads=4, spatial_mlp_dim=64, spatial_num_layers=2,
               patch_size=8, tubelet_size=2, image_size=16,
               temporal_num_heads=4, temporal_mlp_dim=64, temporal_num_layers=2,
               max_seq_length=8, num_classes=10)

    key = jax.random.PRNGKey(0)
    k_param, k_x = jax.random.split(key)
    params = init_params(k_param, cfg)

    b, t = 2, 4
    x = jax.random.normal(k_x, (b, t, 3, cfg['image_size'], cfg['image_size']),
                          dtype=jnp.float32)
    padding_mask = jnp.array([[False, False, False, False],
                              [False, False, True, True]], dtype=bool)

    fwd = jax.jit(functools.partial(vivit_forward, cfg=cfg))
    logits = fwd(x, padding_mask, params)
    jax.block_until_ready(logits)
    assert logits.shape == (b, cfg['num_classes'])
    assert bool(jnp.all(jnp.isfinite(logits)))
    print("KERNEL_OK")
</pallas_src>

<mosaic_0001>
module attributes {stable_mosaic.version = 11 : i64} {
  func.func @_linear_kernel(%arg0: i32, %arg1: memref<16x384xbf16, #tpu.memory_space<vmem>>, %arg2: memref<384x128xbf16, #tpu.memory_space<vmem>>, %arg3: memref<1x128xf32, #tpu.memory_space<vmem>>, %arg4: memref<16x128xbf16, #tpu.memory_space<vmem>>) attributes {dimension_semantics = [#tpu.dimension_semantics<parallel>], iteration_bounds = array<i64: 1>, scalar_prefetch = 0 : i64, scratch_operands = 0 : i64, tpu.core_type = #tpu.core_type<tc>, window_params = [{transform_indices = @transform_0, window_bounds = array<i64: 16, 384>}, {pipeline_mode = #tpu.pipeline_mode<synchronous>, transform_indices = @transform_1, window_bounds = array<i64: 384, 128>}, {pipeline_mode = #tpu.pipeline_mode<synchronous>, transform_indices = @transform_2, window_bounds = array<i64: 1, 128>}, {transform_indices = @transform_3, window_bounds = array<i64: 16, 128>}]} {
    %c0 = arith.constant 0 : index
    %c0_0 = arith.constant 0 : index
    %0 = vector.load %arg1[%c0, %c0_0] : memref<16x384xbf16, #tpu.memory_space<vmem>>, vector<16x384xbf16>
    %c0_1 = arith.constant 0 : index
    %c0_2 = arith.constant 0 : index
    %1 = vector.load %arg2[%c0_1, %c0_2] : memref<384x128xbf16, #tpu.memory_space<vmem>>, vector<384x128xbf16>
    %cst = arith.constant dense<0.000000e+00> : vector<16x128xf32>
    %2 = tpu.matmul %0, %1, %cst {dimension_numbers = #tpu.dot_dimension_numbers<[1], [0], [0], [1], [0, 0, 1, 1], [], []>} : vector<16x384xbf16>, vector<384x128xbf16>, vector<16x128xf32> -> vector<16x128xf32>
    %c0_3 = arith.constant 0 : index
    %c0_4 = arith.constant 0 : index
    %3 = vector.load %arg3[%c0_3, %c0_4] : memref<1x128xf32, #tpu.memory_space<vmem>>, vector<1x128xf32>
    %4 = vector.broadcast %3 : vector<1x128xf32> to vector<16x128xf32>
    %5 = arith.addf %2, %4 : vector<16x128xf32>
    %6 = arith.truncf %5 : vector<16x128xf32> to vector<16x128xbf16>
    %c0_5 = arith.constant 0 : index
    %c0_6 = arith.constant 0 : index
    %7 = vector.load %arg4[%c0_5, %c0_6] : memref<16x128xbf16, #tpu.memory_space<vmem>>, vector<16x128xbf16>
    tpu.vector_store %arg4[%c0_5, %c0_6], %6 {strides = array<i32>} : memref<16x128xbf16, #tpu.memory_space<vmem>>, vector<16x128xbf16>,
    return
  }
  func.func @transform_0(%arg0: i32) -> (i32, i32) {
    %c0_i32 = arith.constant 0 : i32
    %c0_i32_0 = arith.constant 0 : i32
    return %arg0, %c0_i32 : i32, i32
  }
  func.func @transform_1(%arg0: i32) -> (i32, i32) {
    %c0_i32 = arith.constant 0 : i32
    %c0_i32_0 = arith.constant 0 : i32
    %c0_i32_1 = arith.constant 0 : i32
    return %c0_i32, %c0_i32_0 : i32, i32
  }
  func.func @transform_2(%arg0: i32) -> (i32, i32) {
    %c0_i32 = arith.constant 0 : i32
    %c0_i32_0 = arith.constant 0 : i32
    %c0_i32_1 = arith.constant 0 : i32
    return %c0_i32, %c0_i32_0 : i32, i32
  }
  func.func @transform_3(%arg0: i32) -> (i32, i32) {
    %c0_i32 = arith.constant 0 : i32
    %c0_i32_0 = arith.constant 0 : i32
    return %arg0, %c0_i32 : i32, i32
  }
}

module attributes {stable_mosaic.version = 11 : i64} {
  func.func @_encoder_stack_kernel(%arg0: i32, %arg1: i32, %arg2: memref<4x8x32xf32, #tpu.memory_space<vmem>>, %arg3: memref<4x1x8xf32, #tpu.memory_space<vmem>>, %arg4: memref<1x32x32xbf16, #tpu.memory_space<vmem>>, %arg5: memref<1x1x32xf32, #tpu.memory_space<vmem>>, %arg6: memref<1x32x32xbf16, #tpu.memory_space<vmem>>, %arg7: memref<1x1x32xf32, #tpu.memory_space<vmem>>, %arg8: memref<1x32x32xbf16, #tpu.memory_space<vmem>>, %arg9: memref<1x1x32xf32, #tpu.memory_space<vmem>>, %arg10: memref<1x32x32xbf16, #tpu.memory_space<vmem>>, %arg11: memref<1x1x32xf32, #tpu.memory_space<vmem>>, %arg12: memref<1x1x32xf32, #tpu.memory_space<vmem>>, %arg13: memref<1x1x32xf32, #tpu.memory_space<vmem>>, %arg14: memref<1x32x64xbf16, #tpu.memory_space<vmem>>, %arg15: memref<1x1x64xf32, #tpu.memory_space<vmem>>, %arg16: memref<1x64x32xbf16, #tpu.memory_space<vmem>>, %arg17: memref<1x1x32xf32, #tpu.memory_space<vmem>>, %arg18: memref<1x1x32xf32, #tpu.memory_space<vmem>>, %arg19: memref<1x1x32xf32, #tpu.memory_space<vmem>>, %arg20: memref<1x32xf32, #tpu.memory_space<vmem>>, %arg21: memref<1x32xf32, #tpu.memory_space<vmem>>, %arg22: memref<4x8x32xf32, #tpu.memory_space<vmem>>, %arg23: memref<4x8x32xf32, #tpu.memory_space<vmem>>) attributes {dimension_semantics = [#tpu.dimension_semantics<parallel>, #tpu.dimension_semantics<arbitrary>], iteration_bounds = array<i64: 1, 2>, scalar_prefetch = 0 : i64, scratch_operands = 1 : i64, tpu.core_type = #tpu.core_type<tc>, window_params = [{transform_indices = @transform_0, window_bounds = array<i64: 4, 8, 32>}, {transform_indices = @transform_1, window_bounds = array<i64: 4, 1, 8>}, {transform_indices = @transform_2, window_bounds = array<i64: 1, 32, 32>}, {transform_indices = @transform_3, window_bounds = array<i64: 1, 1, 32>}, {transform_indices = @transform_4, window_bounds = array<i64: 1, 32, 32>}, {transform_indices = @transform_5, window_bounds = array<i64: 1, 1, 32>}, {transform_indices = @transform_6, window_bounds = array<i64: 1, 32, 32>}, {transform_indices = @transform_7, window_bounds = array<i64: 1, 1, 32>}, {transform_indices = @transform_8, window_bounds = array<i64: 1, 32, 32>}, {transform_indices = @transform_9, window_bounds = array<i64: 1, 1, 32>}, {transform_indices = @transform_10, window_bounds = array<i64: 1, 1, 32>}, {transform_indices = @transform_11, window_bounds = array<i64: 1, 1, 32>}, {transform_indices = @transform_12, window_bounds = array<i64: 1, 32, 64>}, {transform_indices = @transform_13, window_bounds = array<i64: 1, 1, 64>}, {transform_indices = @transform_14, window_bounds = array<i64: 1, 64, 32>}, {transform_indices = @transform_15, window_bounds = array<i64: 1, 1, 32>}, {transform_indices = @transform_16, window_bounds = array<i64: 1, 1, 32>}, {transform_indices = @transform_17, window_bounds = array<i64: 1, 1, 32>}, {pipeline_mode = #tpu.pipeline_mode<synchronous>, transform_indices = @transform_18, window_bounds = array<i64: 1, 32>}, {pipeline_mode = #tpu.pipeline_mode<synchronous>, transform_indices = @transform_19, window_bounds = array<i64: 1, 32>}, {transform_indices = @transform_20, window_bounds = array<i64: 4, 8, 32>}]} {
    %c0_i32 = arith.constant 0 : i32
    %0 = arith.cmpi eq, %arg1, %c0_i32 : i32
    %1 = arith.extui %0 : i1 to i32
    %c0_i32_0 = arith.constant 0 : i32
    %2 = arith.cmpi ne, %1, %c0_i32_0 : i32
    scf.if %2 {
      %c0_91 = arith.constant 0 : index
      %c0_92 = arith.constant 0 : index
      %c0_93 = arith.constant 0 : index
      %204 = vector.load %arg2[%c0_91, %c0_92, %c0_93] : memref<4x8x32xf32, #tpu.memory_space<vmem>>, vector<4x8x32xf32>
      %c0_94 = arith.constant 0 : index
      %c0_95 = arith.constant 0 : index
      %c0_96 = arith.constant 0 : index
      %205 = vector.load %arg23[%c0_94, %c0_95, %c0_96] : memref<4x8x32xf32, #tpu.memory_space<vmem>>, vector<4x8x32xf32>
      tpu.vector_store %arg23[%c0_94, %c0_95, %c0_96], %204 {strides = array<i32>} : memref<4x8x32xf32, #tpu.memory_space<vmem>>, vector<4x8x32xf32>,
    } else {
    }
    %c0 = arith.constant 0 : index
    %c0_1 = arith.constant 0 : index
    %c0_2 = arith.constant 0 : index
    %3 = vector.load %arg23[%c0, %c0_1, %c0_2] : memref<4x8x32xf32, #tpu.memory_space<vmem>>, vector<4x8x32xf32>
    %4 = vector.shape_cast %3 : vector<4x8x32xf32> to vector<32x32xf32>
    %5 = arith.truncf %4 : vector<32x32xf32> to vector<32x32xbf16>
    %c0_3 = arith.constant 0 : index
    %c0_4 = arith.constant 0 : index
    %c0_5 = arith.constant 0 : index
    %6 = vector.load %arg3[%c0_3, %c0_4, %c0_5] : memref<4x1x8xf32, #tpu.memory_space<vmem>>, vector<4x1x8xf32>
    %c0_6 = arith.constant 0 : index
    %c0_7 = arith.constant 0 : index
    %c0_8 = arith.constant 0 : index
    %7 = vector.load %arg4[%c0_6, %c0_7, %c0_8] : memref<1x32x32xbf16, #tpu.memory_space<vmem>>, vector<1x32x32xbf16>
    %8 = vector.shape_cast %7 : vector<1x32x32xbf16> to vector<32x32xbf16>
    %cst = arith.constant dense<0.000000e+00> : vector<32x32xf32>
    %9 = tpu.matmul %5, %8, %cst {dimension_numbers = #tpu.dot_dimension_numbers<[1], [0], [0], [1], [0, 0, 1, 1], [], []>} : vector<32x32xbf16>, vector<32x32xbf16>, vector<32x32xf32> -> vector<32x32xf32>
    %c0_9 = arith.constant 0 : index
    %c0_10 = arith.constant 0 : index
    %c0_11 = arith.constant 0 : index
    %10 = vector.load %arg5[%c0_9, %c0_10, %c0_11] : memref<1x1x32xf32, #tpu.memory_space<vmem>>, vector<1x1x32xf32>
    %11 = vector.shape_cast %10 : vector<1x1x32xf32> to vector<1x32xf32>
    %12 = vector.broadcast %11 : vector<1x32xf32> to vector<32x32xf32>
    %13 = arith.addf %9, %12 : vector<32x32xf32>
    %c0_12 = arith.constant 0 : index
    %c0_13 = arith.constant 0 : index
    %c0_14 = arith.constant 0 : index
    %14 = vector.load %arg6[%c0_12, %c0_13, %c0_14] : memref<1x32x32xbf16, #tpu.memory_space<vmem>>, vector<1x32x32xbf16>
    %15 = vector.shape_cast %14 : vector<1x32x32xbf16> to vector<32x32xbf16>
    %cst_15 = arith.constant dense<0.000000e+00> : vector<32x32xf32>
    %16 = tpu.matmul %5, %15, %cst_15 {dimension_numbers = #tpu.dot_dimension_numbers<[1], [0], [0], [1], [0, 0, 1, 1], [], []>} : vector<32x32xbf16>, vector<32x32xbf16>, vector<32x32xf32> -> vector<32x32xf32>
    %c0_16 = arith.constant 0 : index
    %c0_17 = arith.constant 0 : index
    %c0_18 = arith.constant 0 : index
    %17 = vector.load %arg7[%c0_16, %c0_17, %c0_18] : memref<1x1x32xf32, #tpu.memory_space<vmem>>, vector<1x1x32xf32>
    %18 = vector.shape_cast %17 : vector<1x1x32xf32> to vector<1x32xf32>
    %19 = vector.broadcast %18 : vector<1x32xf32> to vector<32x32xf32>
    %20 = arith.addf %16, %19 : vector<32x32xf32>
    %c0_19 = arith.constant 0 : index
    %c0_20 = arith.constant 0 : index
    %c0_21 = arith.constant 0 : index
    %21 = vector.load %arg8[%c0_19, %c0_20, %c0_21] : memref<1x32x32xbf16, #tpu.memory_space<vmem>>, vector<1x32x32xbf16>
    %22 = vector.shape_cast %21 : vector<1x32x32xbf16> to vector<32x32xbf16>
    %cst_22 = arith.constant dense<0.000000e+00> : vector<32x32xf32>
    %23 = tpu.matmul %5, %22, %cst_22 {dimension_numbers = #tpu.dot_dimension_numbers<[1], [0], [0], [1], [0, 0, 1, 1], [], []>} : vector<32x32xbf16>, vector<32x32xbf16>, vector<32x32xf32> -> vector<32x32xf32>
    %c0_23 = arith.constant 0 : index
    %c0_24 = arith.constant 0 : index
    %c0_25 = arith.constant 0 : index
    %24 = vector.load %arg9[%c0_23, %c0_24, %c0_25] : memref<1x1x32xf32, #tpu.memory_space<vmem>>, vector<1x1x32xf32>
    %25 = vector.shape_cast %24 : vector<1x1x32xf32> to vector<1x32xf32>
    %26 = vector.broadcast %25 : vector<1x32xf32> to vector<32x32xf32>
    %27 = arith.addf %23, %26 : vector<32x32xf32>
    %cst_26 = arith.constant 0.353553385 : f32
    %28 = vector.broadcast %cst_26 : f32 to vector<32x32xf32>
    %29 = arith.mulf %13, %28 : vector<32x32xf32>
    %30 = vector.shape_cast %29 : vector<32x32xf32> to vector<4x8x32xf32>
    %31 = vector.shape_cast %20 : vector<32x32xf32> to vector<4x8x32xf32>
    %32 = vector.shape_cast %27 : vector<32x32xf32> to vector<4x8x32xf32>
    %33 = vector.extract_strided_slice %30 {offsets = [0, 0, 0], sizes = [4, 8, 8], strides = [1, 1, 1]} : vector<4x8x32xf32> to vector<4x8x8xf32>
    %34 = arith.truncf %33 : vector<4x8x8xf32> to vector<4x8x8xbf16>
    %35 = vector.extract_strided_slice %31 {offsets = [0, 0, 0], sizes = [4, 8, 8], strides = [1, 1, 1]} : vector<4x8x32xf32> to vector<4x8x8xf32>
    %36 = arith.truncf %35 : vector<4x8x8xf32> to vector<4x8x8xbf16>
    %37 = vector.extract_strided_slice %32 {offsets = [0, 0, 0], sizes = [4, 8, 8], strides = [1, 1, 1]} : vector<4x8x32xf32> to vector<4x8x8xf32>
    %38 = arith.truncf %37 : vector<4x8x8xf32> to vector<4x8x8xbf16>
    "tpu.trace_start"() <{level = 10 : i32, message = "bqd,bkd->bqk"}> : () -> ()
    %cst_27 = arith.constant dense<0.000000e+00> : vector<4x8x8xf32>
    %39 = tpu.matmul %34, %36, %cst_27 {dimension_numbers = #tpu.dot_dimension_numbers<[2], [2], [1], [1], [0, 0, 0, 1, 1, 1], [0], [0]>} : vector<4x8x8xbf16>, vector<4x8x8xbf16>, vector<4x8x8xf32> -> vector<4x8x8xf32>
    "tpu.trace_stop"() : () -> ()
    %40 = vector.broadcast %6 : vector<4x1x8xf32> to vector<4x8x8xf32>
    %41 = arith.addf %39, %40 : vector<4x8x8xf32>
    %cst_28 = arith.constant dense<0xFF800000> : vector<4x8xf32>
    %42 = vector.multi_reduction <maximumf>, %41, %cst_28 [2] : vector<4x8x8xf32> to vector<4x8xf32>
    %43 = vector.shape_cast %42 : vector<4x8xf32> to vector<4x8x1xf32>
    %44 = vector.broadcast %43 : vector<4x8x1xf32> to vector<4x8x8xf32>
    %45 = arith.subf %41, %44 : vector<4x8x8xf32>
    %46 = math.exp %45 : vector<4x8x8xf32>
    %cst_29 = arith.constant dense<0.000000e+00> : vector<4x8xf32>
    %47 = vector.multi_reduction <add>, %46, %cst_29 [2] : vector<4x8x8xf32> to vector<4x8xf32>
    %48 = vector.shape_cast %47 : vector<4x8xf32> to vector<4x8x1xf32>
    %49 = tpu.reciprocal %48 {approx = true} : vector<4x8x1xf32> -> vector<4x8x1xf32>
    %50 = vector.broadcast %49 : vector<4x8x1xf32> to vector<4x8x8xf32>
    %51 = arith.mulf %46, %50 : vector<4x8x8xf32>
    %52 = arith.truncf %51 : vector<4x8x8xf32> to vector<4x8x8xbf16>
    "tpu.trace_start"() <{level = 10 : i32, message = "bqk,bkd->bqd"}> : () -> ()
    %cst_30 = arith.constant dense<0.000000e+00> : vector<4x8x8xf32>
    %53 = tpu.matmul %52, %38, %cst_30 {dimension_numbers = #tpu.dot_dimension_numbers<[2], [1], [1], [2], [0, 0, 0, 1, 1, 2], [0], [0]>} : vector<4x8x8xbf16>, vector<4x8x8xbf16>, vector<4x8x8xf32> -> vector<4x8x8xf32>
    "tpu.trace_stop"() : () -> ()
    %54 = vector.extract_strided_slice %30 {offsets = [0, 0, 8], sizes = [4, 8, 8], strides = [1, 1, 1]} : vector<4x8x32xf32> to vector<4x8x8xf32>
    %55 = arith.truncf %54 : vector<4x8x8xf32> to vector<4x8x8xbf16>
    %56 = vector.extract_strided_slice %31 {offsets = [0, 0, 8], sizes = [4, 8, 8], strides = [1, 1, 1]} : vector<4x8x32xf32> to vector<4x8x8xf32>
    %57 = arith.truncf %56 : vector<4x8x8xf32> to vector<4x8x8xbf16>
    %58 = vector.extract_strided_slice %32 {offsets = [0, 0, 8], sizes = [4, 8, 8], strides = [1, 1, 1]} : vector<4x8x32xf32> to vector<4x8x8xf32>
    %59 = arith.truncf %58 : vector<4x8x8xf32> to vector<4x8x8xbf16>
    "tpu.trace_start"() <{level = 10 : i32, message = "bqd,bkd->bqk"}> : () -> ()
    %cst_31 = arith.constant dense<0.000000e+00> : vector<4x8x8xf32>
    %60 = tpu.matmul %55, %57, %cst_31 {dimension_numbers = #tpu.dot_dimension_numbers<[2], [2], [1], [1], [0, 0, 0, 1, 1, 1], [0], [0]>} : vector<4x8x8xbf16>, vector<4x8x8xbf16>, vector<4x8x8xf32> -> vector<4x8x8xf32>
    "tpu.trace_stop"() : () -> ()
    %61 = vector.broadcast %6 : vector<4x1x8xf32> to vector<4x8x8xf32>
    %62 = arith.addf %60, %61 : vector<4x8x8xf32>
    %cst_32 = arith.constant dense<0xFF800000> : vector<4x8xf32>
    %63 = vector.multi_reduction <maximumf>, %62, %cst_32 [2] : vector<4x8x8xf32> to vector<4x8xf32>
    %64 = vector.shape_cast %63 : vector<4x8xf32> to vector<4x8x1xf32>
    %65 = vector.broadcast %64 : vector<4x8x1xf32> to vector<4x8x8xf32>
    %66 = arith.subf %62, %65 : vector<4x8x8xf32>
    %67 = math.exp %66 : vector<4x8x8xf32>
    %cst_33 = arith.constant dense<0.000000e+00> : vector<4x8xf32>
    %68 = vector.multi_reduction <add>, %67, %cst_33 [2] : vector<4x8x8xf32> to vector<4x8xf32>
    %69 = vector.shape_cast %68 : vector<4x8xf32> to vector<4x8x1xf32>
    %70 = tpu.reciprocal %69 {approx = true} : vector<4x8x1xf32> -> vector<4x8x1xf32>
    %71 = vector.broadcast %70 : vector<4x8x1xf32> to vector<4x8x8xf32>
    %72 = arith.mulf %67, %71 : vector<4x8x8xf32>
    %73 = arith.truncf %72 : vector<4x8x8xf32> to vector<4x8x8xbf16>
    "tpu.trace_start"() <{level = 10 : i32, message = "bqk,bkd->bqd"}> : () -> ()
    %cst_34 = arith.constant dense<0.000000e+00> : vector<4x8x8xf32>
    %74 = tpu.matmul %73, %59, %cst_34 {dimension_numbers = #tpu.dot_dimension_numbers<[2], [1], [1], [2], [0, 0, 0, 1, 1, 2], [0], [0]>} : vector<4x8x8xbf16>, vector<4x8x8xbf16>, vector<4x8x8xf32> -> vector<4x8x8xf32>
    "tpu.trace_stop"() : () -> ()
    %75 = vector.extract_strided_slice %30 {offsets = [0, 0, 16], sizes = [4, 8, 8], strides = [1, 1, 1]} : vector<4x8x32xf32> to vector<4x8x8xf32>
    %76 = arith.truncf %75 : vector<4x8x8xf32> to vector<4x8x8xbf16>
    %77 = vector.extract_strided_slice %31 {offsets = [0, 0, 16], sizes = [4, 8, 8], strides = [1, 1, 1]} : vector<4x8x32xf32> to vector<4x8x8xf32>
    %78 = arith.truncf %77 : vector<4x8x8xf32> to vector<4x8x8xbf16>
    %79 = vector.extract_strided_slice %32 {offsets = [0, 0, 16], sizes = [4, 8, 8], strides = [1, 1, 1]} : vector<4x8x32xf32> to vector<4x8x8xf32>
    %80 = arith.truncf %79 : vector<4x8x8xf32> to vector<4x8x8xbf16>
    "tpu.trace_start"() <{level = 10 : i32, message = "bqd,bkd->bqk"}> : () -> ()
    %cst_35 = arith.constant dense<0.000000e+00> : vector<4x8x8xf32>
    %81 = tpu.matmul %76, %78, %cst_35 {dimension_numbers = #tpu.dot_dimension_numbers<[2], [2], [1], [1], [0, 0, 0, 1, 1, 1], [0], [0]>} : vector<4x8x8xbf16>, vector<4x8x8xbf16>, vector<4x8x8xf32> -> vector<4x8x8xf32>
    "tpu.trace_stop"() : () -> ()
    %82 = vector.broadcast %6 : vector<4x1x8xf32> to vector<4x8x8xf32>
    %83 = arith.addf %81, %82 : vector<4x8x8xf32>
    %cst_36 = arith.constant dense<0xFF800000> : vector<4x8xf32>
    %84 = vector.multi_reduction <maximumf>, %83, %cst_36 [2] : vector<4x8x8xf32> to vector<4x8xf32>
    %85 = vector.shape_cast %84 : vector<4x8xf32> to vector<4x8x1xf32>
    %86 = vector.broadcast %85 : vector<4x8x1xf32> to vector<4x8x8xf32>
    %87 = arith.subf %83, %86 : vector<4x8x8xf32>
    %88 = math.exp %87 : vector<4x8x8xf32>
    %cst_37 = arith.constant dense<0.000000e+00> : vector<4x8xf32>
    %89 = vector.multi_reduction <add>, %88, %cst_37 [2] : vector<4x8x8xf32> to vector<4x8xf32>
    %90 = vector.shape_cast %89 : vector<4x8xf32> to vector<4x8x1xf32>
    %91 = tpu.reciprocal %90 {approx = true} : vector<4x8x1xf32> -> vector<4x8x1xf32>
    %92 = vector.broadcast %91 : vector<4x8x1xf32> to vector<4x8x8xf32>
    %93 = arith.mulf %88, %92 : vector<4x8x8xf32>
    %94 = arith.truncf %93 : vector<4x8x8xf32> to vector<4x8x8xbf16>
    "tpu.trace_start"() <{level = 10 : i32, message = "bqk,bkd->bqd"}> : () -> ()
    %cst_38 = arith.constant dense<0.000000e+00> : vector<4x8x8xf32>
    %95 = tpu.matmul %94, %80, %cst_38 {dimension_numbers = #tpu.dot_dimension_numbers<[2], [1], [1], [2], [0, 0, 0, 1, 1, 2], [0], [0]>} : vector<4x8x8xbf16>, vector<4x8x8xbf16>, vector<4x8x8xf32> -> vector<4x8x8xf32>
    "tpu.trace_stop"() : () -> ()
    %96 = vector.extract_strided_slice %30 {offsets = [0, 0, 24], sizes = [4, 8, 8], strides = [1, 1, 1]} : vector<4x8x32xf32> to vector<4x8x8xf32>
    %97 = arith.truncf %96 : vector<4x8x8xf32> to vector<4x8x8xbf16>
    %98 = vector.extract_strided_slice %31 {offsets = [0, 0, 24], sizes = [4, 8, 8], strides = [1, 1, 1]} : vector<4x8x32xf32> to vector<4x8x8xf32>
    %99 = arith.truncf %98 : vector<4x8x8xf32> to vector<4x8x8xbf16>
    %100 = vector.extract_strided_slice %32 {offsets = [0, 0, 24], sizes = [4, 8, 8], strides = [1, 1, 1]} : vector<4x8x32xf32> to vector<4x8x8xf32>
    %101 = arith.truncf %100 : vector<4x8x8xf32> to vector<4x8x8xbf16>
    "tpu.trace_start"() <{level = 10 : i32, message = "bqd,bkd->bqk"}> : () -> ()
    %cst_39 = arith.constant dense<0.000000e+00> : vector<4x8x8xf32>
    %102 = tpu.matmul %97, %99, %cst_39 {dimension_numbers = #tpu.dot_dimension_numbers<[2], [2], [1], [1], [0, 0, 0, 1, 1, 1], [0], [0]>} : vector<4x8x8xbf16>, vector<4x8x8xbf16>, vector<4x8x8xf32> -> vector<4x8x8xf32>
    "tpu.trace_stop"() : () -> ()
    %103 = vector.broadcast %6 : vector<4x1x8xf32> to vector<4x8x8xf32>
    %104 = arith.addf %102, %103 : vector<4x8x8xf32>
    %cst_40 = arith.constant dense<0xFF800000> : vector<4x8xf32>
    %105 = vector.multi_reduction <maximumf>, %104, %cst_40 [2] : vector<4x8x8xf32> to vector<4x8xf32>
    %106 = vector.shape_cast %105 : vector<4x8xf32> to vector<4x8x1xf32>
    %107 = vector.broadcast %106 : vector<4x8x1xf32> to vector<4x8x8xf32>
    %108 = arith.subf %104, %107 : vector<4x8x8xf32>
    %109 = math.exp %108 : vector<4x8x8xf32>
    %cst_41 = arith.constant dense<0.000000e+00> : vector<4x8xf32>
    %110 = vector.multi_reduction <add>, %109, %cst_41 [2] : vector<4x8x8xf32> to vector<4x8xf32>
    %111 = vector.shape_cast %110 : vector<4x8xf32> to vector<4x8x1xf32>
    %112 = tpu.reciprocal %111 {approx = true} : vector<4x8x1xf32> -> vector<4x8x1xf32>
    %113 = vector.broadcast %112 : vector<4x8x1xf32> to vector<4x8x8xf32>
    %114 = arith.mulf %109, %113 : vector<4x8x8xf32>
    %115 = arith.truncf %114 : vector<4x8x8xf32> to vector<4x8x8xbf16>
    "tpu.trace_start"() <{level = 10 : i32, message = "bqk,bkd->bqd"}> : () -> ()
    %cst_42 = arith.constant dense<0.000000e+00> : vector<4x8x8xf32>
    %116 = tpu.matmul %115, %101, %cst_42 {dimension_numbers = #tpu.dot_dimension_numbers<[2], [1], [1], [2], [0, 0, 0, 1, 1, 2], [0], [0]>} : vector<4x8x8xbf16>, vector<4x8x8xbf16>, vector<4x8x8xf32> -> vector<4x8x8xf32>
    "tpu.trace_stop"() : () -> ()
    %117 = tpu.concatenate %53, %74, %95, %116 in 2 : vector<4x8x8xf32>, vector<4x8x8xf32>, vector<4x8x8xf32>, vector<4x8x8xf32> -> vector<4x8x32xf32>
    %118 = vector.shape_cast %117 : vector<4x8x32xf32> to vector<32x32xf32>
    %119 = arith.truncf %118 : vector<32x32xf32> to vector<32x32xbf16>
    %c0_43 = arith.constant 0 : index
    %c0_44 = arith.constant 0 : index
    %c0_45 = arith.constant 0 : index
    %120 = vector.load %arg10[%c0_43, %c0_44, %c0_45] : memref<1x32x32xbf16, #tpu.memory_space<vmem>>, vector<1x32x32xbf16>
    %121 = vector.shape_cast %120 : vector<1x32x32xbf16> to vector<32x32xbf16>
    %cst_46 = arith.constant dense<0.000000e+00> : vector<32x32xf32>
    %122 = tpu.matmul %119, %121, %cst_46 {dimension_numbers = #tpu.dot_dimension_numbers<[1], [0], [0], [1], [0, 0, 1, 1], [], []>} : vector<32x32xbf16>, vector<32x32xbf16>, vector<32x32xf32> -> vector<32x32xf32>
    %c0_47 = arith.constant 0 : index
    %c0_48 = arith.constant 0 : index
    %c0_49 = arith.constant 0 : index
    %123 = vector.load %arg11[%c0_47, %c0_48, %c0_49] : memref<1x1x32xf32, #tpu.memory_space<vmem>>, vector<1x1x32xf32>
    %124 = vector.shape_cast %123 : vector<1x1x32xf32> to vector<1x32xf32>
    %125 = vector.broadcast %124 : vector<1x32xf32> to vector<32x32xf32>
    %126 = arith.addf %122, %125 : vector<32x32xf32>
    %127 = arith.addf %4, %126 : vector<32x32xf32>
    %c0_50 = arith.constant 0 : index
    %c0_51 = arith.constant 0 : index
    %c0_52 = arith.constant 0 : index
    %128 = vector.load %arg12[%c0_50, %c0_51, %c0_52] : memref<1x1x32xf32, #tpu.memory_space<vmem>>, vector<1x1x32xf32>
    %129 = vector.shape_cast %128 : vector<1x1x32xf32> to vector<1x32xf32>
    %c0_53 = arith.constant 0 : index
    %c0_54 = arith.constant 0 : index
    %c0_55 = arith.constant 0 : index
    %130 = vector.load %arg13[%c0_53, %c0_54, %c0_55] : memref<1x1x32xf32, #tpu.memory_space<vmem>>, vector<1x1x32xf32>
    %131 = vector.shape_cast %130 : vector<1x1x32xf32> to vector<1x32xf32>
    %cst_56 = arith.constant dense<0.000000e+00> : vector<32xf32>
    %132 = vector.multi_reduction <add>, %127, %cst_56 [1] : vector<32x32xf32> to vector<32xf32>
    %133 = vector.shape_cast %132 : vector<32xf32> to vector<32x1xf32>
    %cst_57 = arith.constant 3.200000e+01 : f32
    %134 = vector.broadcast %cst_57 : f32 to vector<32x1xf32>
    %135 = arith.divf %133, %134 : vector<32x1xf32>
    %136 = vector.broadcast %135 : vector<32x1xf32> to vector<32x32xf32>
    %137 = arith.subf %127, %136 : vector<32x32xf32>
    %138 = arith.mulf %137, %137 : vector<32x32xf32>
    %cst_58 = arith.constant dense<0.000000e+00> : vector<32xf32>
    %139 = vector.multi_reduction <add>, %138, %cst_58 [1] : vector<32x32xf32> to vector<32xf32>
    %140 = vector.shape_cast %139 : vector<32xf32> to vector<32x1xf32>
    %cst_59 = arith.constant 3.200000e+01 : f32
    %141 = vector.broadcast %cst_59 : f32 to vector<32x1xf32>
    %142 = arith.divf %140, %141 : vector<32x1xf32>
    %143 = vector.broadcast %135 : vector<32x1xf32> to vector<32x32xf32>
    %144 = arith.subf %127, %143 : vector<32x32xf32>
    %cst_60 = arith.constant 9.99999974E-6 : f32
    %145 = vector.broadcast %cst_60 : f32 to vector<32x1xf32>
    %146 = arith.addf %142, %145 : vector<32x1xf32>
    %147 = math.rsqrt %146 : vector<32x1xf32>
    %148 = vector.broadcast %147 : vector<32x1xf32> to vector<32x32xf32>
    %149 = arith.mulf %144, %148 : vector<32x32xf32>
    %150 = vector.broadcast %129 : vector<1x32xf32> to vector<32x32xf32>
    %151 = arith.mulf %149, %150 : vector<32x32xf32>
    %152 = vector.broadcast %131 : vector<1x32xf32> to vector<32x32xf32>
    %153 = arith.addf %151, %152 : vector<32x32xf32>
    %154 = arith.truncf %153 : vector<32x32xf32> to vector<32x32xbf16>
    %c0_61 = arith.constant 0 : index
    %c0_62 = arith.constant 0 : index
    %c0_63 = arith.constant 0 : index
    %155 = vector.load %arg14[%c0_61, %c0_62, %c0_63] : memref<1x32x64xbf16, #tpu.memory_space<vmem>>, vector<1x32x64xbf16>
    %156 = vector.shape_cast %155 : vector<1x32x64xbf16> to vector<32x64xbf16>
    %cst_64 = arith.constant dense<0.000000e+00> : vector<32x64xf32>
    %157 = tpu.matmul %154, %156, %cst_64 {dimension_numbers = #tpu.dot_dimension_numbers<[1], [0], [0], [1], [0, 0, 1, 1], [], []>} : vector<32x32xbf16>, vector<32x64xbf16>, vector<32x64xf32> -> vector<32x64xf32>
    %c0_65 = arith.constant 0 : index
    %c0_66 = arith.constant 0 : index
    %c0_67 = arith.constant 0 : index
    %158 = vector.load %arg15[%c0_65, %c0_66, %c0_67] : memref<1x1x64xf32, #tpu.memory_space<vmem>>, vector<1x1x64xf32>
    %159 = vector.shape_cast %158 : vector<1x1x64xf32> to vector<1x64xf32>
    %160 = vector.broadcast %159 : vector<1x64xf32> to vector<32x64xf32>
    %161 = arith.addf %157, %160 : vector<32x64xf32>
    %cst_68 = arith.constant 0.000000e+00 : f32
    %162 = vector.broadcast %cst_68 : f32 to vector<32x64xf32>
    %163 = arith.maximumf %161, %162 : vector<32x64xf32>
    %164 = arith.truncf %163 : vector<32x64xf32> to vector<32x64xbf16>
    %c0_69 = arith.constant 0 : index
    %c0_70 = arith.constant 0 : index
    %c0_71 = arith.constant 0 : index
    %165 = vector.load %arg16[%c0_69, %c0_70, %c0_71] : memref<1x64x32xbf16, #tpu.memory_space<vmem>>, vector<1x64x32xbf16>
    %166 = vector.shape_cast %165 : vector<1x64x32xbf16> to vector<64x32xbf16>
    %cst_72 = arith.constant dense<0.000000e+00> : vector<32x32xf32>
    %167 = tpu.matmul %164, %166, %cst_72 {dimension_numbers = #tpu.dot_dimension_numbers<[1], [0], [0], [1], [0, 0, 1, 1], [], []>} : vector<32x64xbf16>, vector<64x32xbf16>, vector<32x32xf32> -> vector<32x32xf32>
    %c0_73 = arith.constant 0 : index
    %c0_74 = arith.constant 0 : index
    %c0_75 = arith.constant 0 : index
    %168 = vector.load %arg17[%c0_73, %c0_74, %c0_75] : memref<1x1x32xf32, #tpu.memory_space<vmem>>, vector<1x1x32xf32>
    %169 = vector.shape_cast %168 : vector<1x1x32xf32> to vector<1x32xf32>
    %170 = vector.broadcast %169 : vector<1x32xf32> to vector<32x32xf32>
    %171 = arith.addf %167, %170 : vector<32x32xf32>
    %172 = arith.addf %153, %171 : vector<32x32xf32>
    %c0_76 = arith.constant 0 : index
    %c0_77 = arith.constant 0 : index
    %c0_78 = arith.constant 0 : index
    %173 = vector.load %arg18[%c0_76, %c0_77, %c0_78] : memref<1x1x32xf32, #tpu.memory_space<vmem>>, vector<1x1x32xf32>
    %174 = vector.shape_cast %173 : vector<1x1x32xf32> to vector<1x32xf32>
    %c0_79 = arith.constant 0 : index
    %c0_80 = arith.constant 0 : index
    %c0_81 = arith.constant 0 : index
    %175 = vector.load %arg19[%c0_79, %c0_80, %c0_81] : memref<1x1x32xf32, #tpu.memory_space<vmem>>, vector<1x1x32xf32>
    %176 = vector.shape_cast %175 : vector<1x1x32xf32> to vector<1x32xf32>
    %cst_82 = arith.constant dense<0.000000e+00> : vector<32xf32>
    %177 = vector.multi_reduction <add>, %172, %cst_82 [1] : vector<32x32xf32> to vector<32xf32>
    %178 = vector.shape_cast %177 : vector<32xf32> to vector<32x1xf32>
    %cst_83 = arith.constant 3.200000e+01 : f32
    %179 = vector.broadcast %cst_83 : f32 to vector<32x1xf32>
    %180 = arith.divf %178, %179 : vector<32x1xf32>
    %181 = vector.broadcast %180 : vector<32x1xf32> to vector<32x32xf32>
    %182 = arith.subf %172, %181 : vector<32x32xf32>
    %183 = arith.mulf %182, %182 : vector<32x32xf32>
    %cst_84 = arith.constant dense<0.000000e+00> : vector<32xf32>
    %184 = vector.multi_reduction <add>, %183, %cst_84 [1] : vector<32x32xf32> to vector<32xf32>
    %185 = vector.shape_cast %184 : vector<32xf32> to vector<32x1xf32>
    %cst_85 = arith.constant 3.200000e+01 : f32
    %186 = vector.broadcast %cst_85 : f32 to vector<32x1xf32>
    %187 = arith.divf %185, %186 : vector<32x1xf32>
    %188 = vector.broadcast %180 : vector<32x1xf32> to vector<32x32xf32>
    %189 = arith.subf %172, %188 : vector<32x32xf32>
    %cst_86 = arith.constant 9.99999974E-6 : f32
    %190 = vector.broadcast %cst_86 : f32 to vector<32x1xf32>
    %191 = arith.addf %187, %190 : vector<32x1xf32>
    %192 = math.rsqrt %191 : vector<32x1xf32>
    %193 = vector.broadcast %192 : vector<32x1xf32> to vector<32x32xf32>
    %194 = arith.mulf %189, %193 : vector<32x32xf32>
    %195 = vector.broadcast %174 : vector<1x32xf32> to vector<32x32xf32>
    %196 = arith.mulf %194, %195 : vector<32x32xf32>
    %197 = vector.broadcast %176 : vector<1x32xf32> to vector<32x32xf32>
    %198 = arith.addf %196, %197 : vector<32x32xf32>
    %199 = vector.shape_cast %198 : vector<32x32xf32> to vector<4x8x32xf32>
    %c0_87 = arith.constant 0 : index
    %c0_88 = arith.constant 0 : index
    %c0_89 = arith.constant 0 : index
    %200 = vector.load %arg23[%c0_87, %c0_88, %c0_89] : memref<4x8x32xf32, #tpu.memory_space<vmem>>, vector<4x8x32xf32>
    tpu.vector_store %arg23[%c0_87, %c0_88, %c0_89], %199 {strides = array<i32>} : memref<4x8x32xf32, #tpu.memory_space<vmem>>, vector<4x8x32xf32>,
    %c1_i32 = arith.constant 1 : i32
    %201 = arith.cmpi eq, %arg1, %c1_i32 : i32
    %202 = arith.extui %201 : i1 to i32
    %c0_i32_90 = arith.constant 0 : i32
    %203 = arith.cmpi ne, %202, %c0_i32_90 : i32
    scf.if %203 {
      %204 = vector.shape_cast %198 : vector<32x32xf32> to vector<4x8x32xf32>
      %c0_91 = arith.constant 0 : index
      %c0_92 = arith.constant 0 : index
      %205 = vector.load %arg20[%c0_91, %c0_92] : memref<1x32xf32, #tpu.memory_space<vmem>>, vector<1x32xf32>
      %c0_93 = arith.constant 0 : index
      %c0_94 = arith.constant 0 : index
      %206 = vector.load %arg21[%c0_93, %c0_94] : memref<1x32xf32, #tpu.memory_space<vmem>>, vector<1x32xf32>
      %cst_95 = arith.constant dense<0.000000e+00> : vector<4x8xf32>
      %207 = vector.multi_reduction <add>, %204, %cst_95 [2] : vector<4x8x32xf32> to vector<4x8xf32>
      %208 = vector.shape_cast %207 : vector<4x8xf32> to vector<4x8x1xf32>
      %cst_96 = arith.constant 3.200000e+01 : f32
      %209 = vector.broadcast %cst_96 : f32 to vector<4x8x1xf32>
      %210 = arith.divf %208, %209 : vector<4x8x1xf32>
      %211 = vector.broadcast %210 : vector<4x8x1xf32> to vector<4x8x32xf32>
      %212 = arith.subf %204, %211 : vector<4x8x32xf32>
      %213 = arith.mulf %212, %212 : vector<4x8x32xf32>
      %cst_97 = arith.constant dense<0.000000e+00> : vector<4x8xf32>
      %214 = vector.multi_reduction <add>, %213, %cst_97 [2] : vector<4x8x32xf32> to vector<4x8xf32>
      %215 = vector.shape_cast %214 : vector<4x8xf32> to vector<4x8x1xf32>
      %cst_98 = arith.constant 3.200000e+01 : f32
      %216 = vector.broadcast %cst_98 : f32 to vector<4x8x1xf32>
      %217 = arith.divf %215, %216 : vector<4x8x1xf32>
      %218 = vector.broadcast %210 : vector<4x8x1xf32> to vector<4x8x32xf32>
      %219 = arith.subf %204, %218 : vector<4x8x32xf32>
      %cst_99 = arith.constant 9.99999974E-6 : f32
      %220 = vector.broadcast %cst_99 : f32 to vector<4x8x1xf32>
      %221 = arith.addf %217, %220 : vector<4x8x1xf32>
      %222 = math.rsqrt %221 : vector<4x8x1xf32>
      %223 = vector.broadcast %222 : vector<4x8x1xf32> to vector<4x8x32xf32>
      %224 = arith.mulf %219, %223 : vector<4x8x32xf32>
      %225 = vector.shape_cast %205 : vector<1x32xf32> to vector<1x1x32xf32>
      %226 = vector.broadcast %225 : vector<1x1x32xf32> to vector<4x8x32xf32>
      %227 = arith.mulf %224, %226 : vector<4x8x32xf32>
      %228 = vector.shape_cast %206 : vector<1x32xf32> to vector<1x1x32xf32>
      %229 = vector.broadcast %228 : vector<1x1x32xf32> to vector<4x8x32xf32>
      %230 = arith.addf %227, %229 : vector<4x8x32xf32>
      %c0_100 = arith.constant 0 : index
      %c0_101 = arith.constant 0 : index
      %c0_102 = arith.constant 0 : index
      %231 = vector.load %arg22[%c0_100, %c0_101, %c0_102] : memref<4x8x32xf32, #tpu.memory_space<vmem>>, vector<4x8x32xf32>
      tpu.vector_store %arg22[%c0_100, %c0_101, %c0_102], %230 {strides = array<i32>} : memref<4x8x32xf32, #tpu.memory_space<vmem>>, vector<4x8x32xf32>,
    } else {
    }
    return
  }
  func.func @transform_0(%arg0: i32, %arg1: i32) -> (i32, i32, i32) {
    %c0_i32 = arith.constant 0 : i32
    %c0_i32_0 = arith.constant 0 : i32
    %c0_i32_1 = arith.constant 0 : i32
    return %arg0, %c0_i32, %c0_i32_0 : i32, i32, i32
  }
  func.func @transform_1(%arg0: i32, %arg1: i32) -> (i32, i32, i32) {
    %c0_i32 = arith.constant 0 : i32
    %c0_i32_0 = arith.constant 0 : i32
    %c0_i32_1 = arith.constant 0 : i32
    return %arg0, %c0_i32, %c0_i32_0 : i32, i32, i32
  }
  func.func @transform_2(%arg0: i32, %arg1: i32) -> (i32, i32, i32) {
    %c0_i32 = arith.constant 0 : i32
    %c0_i32_0 = arith.constant 0 : i32
    %c0_i32_1 = arith.constant 0 : i32
    return %arg1, %c0_i32, %c0_i32_0 : i32, i32, i32
  }
  func.func @transform_3(%arg0: i32, %arg1: i32) -> (i32, i32, i32) {
    %c0_i32 = arith.constant 0 : i32
    %c0_i32_0 = arith.constant 0 : i32
    %c0_i32_1 = arith.constant 0 : i32
    return %arg1, %c0_i32, %c0_i32_0 : i32, i32, i32
  }
  func.func @transform_4(%arg0: i32, %arg1: i32) -> (i32, i32, i32) {
    %c0_i32 = arith.constant 0 : i32
    %c0_i32_0 = arith.constant 0 : i32
    %c0_i32_1 = arith.constant 0 : i32
    return %arg1, %c0_i32, %c0_i32_0 : i32, i32, i32
  }
  func.func @transform_5(%arg0: i32, %arg1: i32) -> (i32, i32, i32) {
    %c0_i32 = arith.constant 0 : i32
    %c0_i32_0 = arith.constant 0 : i32
    %c0_i32_1 = arith.constant 0 : i32
    return %arg1, %c0_i32, %c0_i32_0 : i32, i32, i32
  }
  func.func @transform_6(%arg0: i32, %arg1: i32) -> (i32, i32, i32) {
    %c0_i32 = arith.constant 0 : i32
    %c0_i32_0 = arith.constant 0 : i32
    %c0_i32_1 = arith.constant 0 : i32
    return %arg1, %c0_i32, %c0_i32_0 : i32, i32, i32
  }
  func.func @transform_7(%arg0: i32, %arg1: i32) -> (i32, i32, i32) {
    %c0_i32 = arith.constant 0 : i32
    %c0_i32_0 = arith.constant 0 : i32
    %c0_i32_1 = arith.constant 0 : i32
    return %arg1, %c0_i32, %c0_i32_0 : i32, i32, i32
  }
  func.func @transform_8(%arg0: i32, %arg1: i32) -> (i32, i32, i32) {
    %c0_i32 = arith.constant 0 : i32
    %c0_i32_0 = arith.constant 0 : i32
    %c0_i32_1 = arith.constant 0 : i32
    return %arg1, %c0_i32, %c0_i32_0 : i32, i32, i32
  }
  func.func @transform_9(%arg0: i32, %arg1: i32) -> (i32, i32, i32) {
    %c0_i32 = arith.constant 0 : i32
    %c0_i32_0 = arith.constant 0 : i32
    %c0_i32_1 = arith.constant 0 : i32
    return %arg1, %c0_i32, %c0_i32_0 : i32, i32, i32
  }
  func.func @transform_10(%arg0: i32, %arg1: i32) -> (i32, i32, i32) {
    %c0_i32 = arith.constant 0 : i32
    %c0_i32_0 = arith.constant 0 : i32
    %c0_i32_1 = arith.constant 0 : i32
    return %arg1, %c0_i32, %c0_i32_0 : i32, i32, i32
  }
  func.func @transform_11(%arg0: i32, %arg1: i32) -> (i32, i32, i32) {
    %c0_i32 = arith.constant 0 : i32
    %c0_i32_0 = arith.constant 0 : i32
    %c0_i32_1 = arith.constant 0 : i32
    return %arg1, %c0_i32, %c0_i32_0 : i32, i32, i32
  }
  func.func @transform_12(%arg0: i32, %arg1: i32) -> (i32, i32, i32) {
    %c0_i32 = arith.constant 0 : i32
    %c0_i32_0 = arith.constant 0 : i32
    %c0_i32_1 = arith.constant 0 : i32
    return %arg1, %c0_i32, %c0_i32_0 : i32, i32, i32
  }
  func.func @transform_13(%arg0: i32, %arg1: i32) -> (i32, i32, i32) {
    %c0_i32 = arith.constant 0 : i32
    %c0_i32_0 = arith.constant 0 : i32
    %c0_i32_1 = arith.constant 0 : i32
    return %arg1, %c0_i32, %c0_i32_0 : i32, i32, i32
  }
  func.func @transform_14(%arg0: i32, %arg1: i32) -> (i32, i32, i32) {
    %c0_i32 = arith.constant 0 : i32
    %c0_i32_0 = arith.constant 0 : i32
    %c0_i32_1 = arith.constant 0 : i32
    return %arg1, %c0_i32, %c0_i32_0 : i32, i32, i32
  }
  func.func @transform_15(%arg0: i32, %arg1: i32) -> (i32, i32, i32) {
    %c0_i32 = arith.constant 0 : i32
    %c0_i32_0 = arith.constant 0 : i32
    %c0_i32_1 = arith.constant 0 : i32
    return %arg1, %c0_i32, %c0_i32_0 : i32, i32, i32
  }
  func.func @transform_16(%arg0: i32, %arg1: i32) -> (i32, i32, i32) {
    %c0_i32 = arith.constant 0 : i32
    %c0_i32_0 = arith.constant 0 : i32
    %c0_i32_1 = arith.constant 0 : i32
    return %arg1, %c0_i32, %c0_i32_0 : i32, i32, i32
  }
  func.func @transform_17(%arg0: i32, %arg1: i32) -> (i32, i32, i32) {
    %c0_i32 = arith.constant 0 : i32
    %c0_i32_0 = arith.constant 0 : i32
    %c0_i32_1 = arith.constant 0 : i32
    return %arg1, %c0_i32, %c0_i32_0 : i32, i32, i32
  }
  func.func @transform_18(%arg0: i32, %arg1: i32) -> (i32, i32) {
    %c0_i32 = arith.constant 0 : i32
    %c0_i32_0 = arith.constant 0 : i32
    %c0_i32_1 = arith.constant 0 : i32
    return %c0_i32, %c0_i32_0 : i32, i32
  }
  func.func @transform_19(%arg0: i32, %arg1: i32) -> (i32, i32) {
    %c0_i32 = arith.constant 0 : i32
    %c0_i32_0 = arith.constant 0 : i32
    %c0_i32_1 = arith.constant 0 : i32
    return %c0_i32, %c0_i32_0 : i32, i32
  }
  func.func @transform_20(%arg0: i32, %arg1: i32) -> (i32, i32, i32) {
    %c0_i32 = arith.constant 0 : i32
    %c0_i32_0 = arith.constant 0 : i32
    %c0_i32_1 = arith.constant 0 : i32
    return %arg0, %c0_i32, %c0_i32_0 : i32, i32, i32
  }
}

module attributes {stable_mosaic.version = 11 : i64} {
  func.func @_encoder_stack_kernel(%arg0: i32, %arg1: i32, %arg2: memref<2x8x32xf32, #tpu.memory_space<vmem>>, %arg3: memref<2x1x8xf32, #tpu.memory_space<vmem>>, %arg4: memref<1x32x32xbf16, #tpu.memory_space<vmem>>, %arg5: memref<1x1x32xf32, #tpu.memory_space<vmem>>, %arg6: memref<1x32x32xbf16, #tpu.memory_space<vmem>>, %arg7: memref<1x1x32xf32, #tpu.memory_space<vmem>>, %arg8: memref<1x32x32xbf16, #tpu.memory_space<vmem>>, %arg9: memref<1x1x32xf32, #tpu.memory_space<vmem>>, %arg10: memref<1x32x32xbf16, #tpu.memory_space<vmem>>, %arg11: memref<1x1x32xf32, #tpu.memory_space<vmem>>, %arg12: memref<1x1x32xf32, #tpu.memory_space<vmem>>, %arg13: memref<1x1x32xf32, #tpu.memory_space<vmem>>, %arg14: memref<1x32x64xbf16, #tpu.memory_space<vmem>>, %arg15: memref<1x1x64xf32, #tpu.memory_space<vmem>>, %arg16: memref<1x64x32xbf16, #tpu.memory_space<vmem>>, %arg17: memref<1x1x32xf32, #tpu.memory_space<vmem>>, %arg18: memref<1x1x32xf32, #tpu.memory_space<vmem>>, %arg19: memref<1x1x32xf32, #tpu.memory_space<vmem>>, %arg20: memref<1x32xf32, #tpu.memory_space<vmem>>, %arg21: memref<1x32xf32, #tpu.memory_space<vmem>>, %arg22: memref<2x8x32xf32, #tpu.memory_space<vmem>>, %arg23: memref<2x8x32xf32, #tpu.memory_space<vmem>>) attributes {dimension_semantics = [#tpu.dimension_semantics<parallel>, #tpu.dimension_semantics<arbitrary>], iteration_bounds = array<i64: 1, 2>, scalar_prefetch = 0 : i64, scratch_operands = 1 : i64, tpu.core_type = #tpu.core_type<tc>, window_params = [{transform_indices = @transform_0, window_bounds = array<i64: 2, 8, 32>}, {transform_indices = @transform_1, window_bounds = array<i64: 2, 1, 8>}, {transform_indices = @transform_2, window_bounds = array<i64: 1, 32, 32>}, {transform_indices = @transform_3, window_bounds = array<i64: 1, 1, 32>}, {transform_indices = @transform_4, window_bounds = array<i64: 1, 32, 32>}, {transform_indices = @transform_5, window_bounds = array<i64: 1, 1, 32>}, {transform_indices = @transform_6, window_bounds = array<i64: 1, 32, 32>}, {transform_indices = @transform_7, window_bounds = array<i64: 1, 1, 32>}, {transform_indices = @transform_8, window_bounds = array<i64: 1, 32, 32>}, {transform_indices = @transform_9, window_bounds = array<i64: 1, 1, 32>}, {transform_indices = @transform_10, window_bounds = array<i64: 1, 1, 32>}, {transform_indices = @transform_11, window_bounds = array<i64: 1, 1, 32>}, {transform_indices = @transform_12, window_bounds = array<i64: 1, 32, 64>}, {transform_indices = @transform_13, window_bounds = array<i64: 1, 1, 64>}, {transform_indices = @transform_14, window_bounds = array<i64: 1, 64, 32>}, {transform_indices = @transform_15, window_bounds = array<i64: 1, 1, 32>}, {transform_indices = @transform_16, window_bounds = array<i64: 1, 1, 32>}, {transform_indices = @transform_17, window_bounds = array<i64: 1, 1, 32>}, {pipeline_mode = #tpu.pipeline_mode<synchronous>, transform_indices = @transform_18, window_bounds = array<i64: 1, 32>}, {pipeline_mode = #tpu.pipeline_mode<synchronous>, transform_indices = @transform_19, window_bounds = array<i64: 1, 32>}, {transform_indices = @transform_20, window_bounds = array<i64: 2, 8, 32>}]} {
    %c0_i32 = arith.constant 0 : i32
    %0 = arith.cmpi eq, %arg1, %c0_i32 : i32
    %1 = arith.extui %0 : i1 to i32
    %c0_i32_0 = arith.constant 0 : i32
    %2 = arith.cmpi ne, %1, %c0_i32_0 : i32
    scf.if %2 {
      %c0_91 = arith.constant 0 : index
      %c0_92 = arith.constant 0 : index
      %c0_93 = arith.constant 0 : index
      %204 = vector.load %arg2[%c0_91, %c0_92, %c0_93] : memref<2x8x32xf32, #tpu.memory_space<vmem>>, vector<2x8x32xf32>
      %c0_94 = arith.constant 0 : index
      %c0_95 = arith.constant 0 : index
      %c0_96 = arith.constant 0 : index
      %205 = vector.load %arg23[%c0_94, %c0_95, %c0_96] : memref<2x8x32xf32, #tpu.memory_space<vmem>>, vector<2x8x32xf32>
      tpu.vector_store %arg23[%c0_94, %c0_95, %c0_96], %204 {strides = array<i32>} : memref<2x8x32xf32, #tpu.memory_space<vmem>>, vector<2x8x32xf32>,
    } else {
    }
    %c0 = arith.constant 0 : index
    %c0_1 = arith.constant 0 : index
    %c0_2 = arith.constant 0 : index
    %3 = vector.load %arg23[%c0, %c0_1, %c0_2] : memref<2x8x32xf32, #tpu.memory_space<vmem>>, vector<2x8x32xf32>
    %4 = vector.shape_cast %3 : vector<2x8x32xf32> to vector<16x32xf32>
    %5 = arith.truncf %4 : vector<16x32xf32> to vector<16x32xbf16>
    %c0_3 = arith.constant 0 : index
    %c0_4 = arith.constant 0 : index
    %c0_5 = arith.constant 0 : index
    %6 = vector.load %arg3[%c0_3, %c0_4, %c0_5] : memref<2x1x8xf32, #tpu.memory_space<vmem>>, vector<2x1x8xf32>
    %c0_6 = arith.constant 0 : index
    %c0_7 = arith.constant 0 : index
    %c0_8 = arith.constant 0 : index
    %7 = vector.load %arg4[%c0_6, %c0_7, %c0_8] : memref<1x32x32xbf16, #tpu.memory_space<vmem>>, vector<1x32x32xbf16>
    %8 = vector.shape_cast %7 : vector<1x32x32xbf16> to vector<32x32xbf16>
    %cst = arith.constant dense<0.000000e+00> : vector<16x32xf32>
    %9 = tpu.matmul %5, %8, %cst {dimension_numbers = #tpu.dot_dimension_numbers<[1], [0], [0], [1], [0, 0, 1, 1], [], []>} : vector<16x32xbf16>, vector<32x32xbf16>, vector<16x32xf32> -> vector<16x32xf32>
    %c0_9 = arith.constant 0 : index
    %c0_10 = arith.constant 0 : index
    %c0_11 = arith.constant 0 : index
    %10 = vector.load %arg5[%c0_9, %c0_10, %c0_11] : memref<1x1x32xf32, #tpu.memory_space<vmem>>, vector<1x1x32xf32>
    %11 = vector.shape_cast %10 : vector<1x1x32xf32> to vector<1x32xf32>
    %12 = vector.broadcast %11 : vector<1x32xf32> to vector<16x32xf32>
    %13 = arith.addf %9, %12 : vector<16x32xf32>
    %c0_12 = arith.constant 0 : index
    %c0_13 = arith.constant 0 : index
    %c0_14 = arith.constant 0 : index
    %14 = vector.load %arg6[%c0_12, %c0_13, %c0_14] : memref<1x32x32xbf16, #tpu.memory_space<vmem>>, vector<1x32x32xbf16>
    %15 = vector.shape_cast %14 : vector<1x32x32xbf16> to vector<32x32xbf16>
    %cst_15 = arith.constant dense<0.000000e+00> : vector<16x32xf32>
    %16 = tpu.matmul %5, %15, %cst_15 {dimension_numbers = #tpu.dot_dimension_numbers<[1], [0], [0], [1], [0, 0, 1, 1], [], []>} : vector<16x32xbf16>, vector<32x32xbf16>, vector<16x32xf32> -> vector<16x32xf32>
    %c0_16 = arith.constant 0 : index
    %c0_17 = arith.constant 0 : index
    %c0_18 = arith.constant 0 : index
    %17 = vector.load %arg7[%c0_16, %c0_17, %c0_18] : memref<1x1x32xf32, #tpu.memory_space<vmem>>, vector<1x1x32xf32>
    %18 = vector.shape_cast %17 : vector<1x1x32xf32> to vector<1x32xf32>
    %19 = vector.broadcast %18 : vector<1x32xf32> to vector<16x32xf32>
    %20 = arith.addf %16, %19 : vector<16x32xf32>
    %c0_19 = arith.constant 0 : index
    %c0_20 = arith.constant 0 : index
    %c0_21 = arith.constant 0 : index
    %21 = vector.load %arg8[%c0_19, %c0_20, %c0_21] : memref<1x32x32xbf16, #tpu.memory_space<vmem>>, vector<1x32x32xbf16>
    %22 = vector.shape_cast %21 : vector<1x32x32xbf16> to vector<32x32xbf16>
    %cst_22 = arith.constant dense<0.000000e+00> : vector<16x32xf32>
    %23 = tpu.matmul %5, %22, %cst_22 {dimension_numbers = #tpu.dot_dimension_numbers<[1], [0], [0], [1], [0, 0, 1, 1], [], []>} : vector<16x32xbf16>, vector<32x32xbf16>, vector<16x32xf32> -> vector<16x32xf32>
    %c0_23 = arith.constant 0 : index
    %c0_24 = arith.constant 0 : index
    %c0_25 = arith.constant 0 : index
    %24 = vector.load %arg9[%c0_23, %c0_24, %c0_25] : memref<1x1x32xf32, #tpu.memory_space<vmem>>, vector<1x1x32xf32>
    %25 = vector.shape_cast %24 : vector<1x1x32xf32> to vector<1x32xf32>
    %26 = vector.broadcast %25 : vector<1x32xf32> to vector<16x32xf32>
    %27 = arith.addf %23, %26 : vector<16x32xf32>
    %cst_26 = arith.constant 0.353553385 : f32
    %28 = vector.broadcast %cst_26 : f32 to vector<16x32xf32>
    %29 = arith.mulf %13, %28 : vector<16x32xf32>
    %30 = vector.shape_cast %29 : vector<16x32xf32> to vector<2x8x32xf32>
    %31 = vector.shape_cast %20 : vector<16x32xf32> to vector<2x8x32xf32>
    %32 = vector.shape_cast %27 : vector<16x32xf32> to vector<2x8x32xf32>
    %33 = vector.extract_strided_slice %30 {offsets = [0, 0, 0], sizes = [2, 8, 8], strides = [1, 1, 1]} : vector<2x8x32xf32> to vector<2x8x8xf32>
    %34 = arith.truncf %33 : vector<2x8x8xf32> to vector<2x8x8xbf16>
    %35 = vector.extract_strided_slice %31 {offsets = [0, 0, 0], sizes = [2, 8, 8], strides = [1, 1, 1]} : vector<2x8x32xf32> to vector<2x8x8xf32>
    %36 = arith.truncf %35 : vector<2x8x8xf32> to vector<2x8x8xbf16>
    %37 = vector.extract_strided_slice %32 {offsets = [0, 0, 0], sizes = [2, 8, 8], strides = [1, 1, 1]} : vector<2x8x32xf32> to vector<2x8x8xf32>
    %38 = arith.truncf %37 : vector<2x8x8xf32> to vector<2x8x8xbf16>
    "tpu.trace_start"() <{level = 10 : i32, message = "bqd,bkd->bqk"}> : () -> ()
    %cst_27 = arith.constant dense<0.000000e+00> : vector<2x8x8xf32>
    %39 = tpu.matmul %34, %36, %cst_27 {dimension_numbers = #tpu.dot_dimension_numbers<[2], [2], [1], [1], [0, 0, 0, 1, 1, 1], [0], [0]>} : vector<2x8x8xbf16>, vector<2x8x8xbf16>, vector<2x8x8xf32> -> vector<2x8x8xf32>
    "tpu.trace_stop"() : () -> ()
    %40 = vector.broadcast %6 : vector<2x1x8xf32> to vector<2x8x8xf32>
    %41 = arith.addf %39, %40 : vector<2x8x8xf32>
    %cst_28 = arith.constant dense<0xFF800000> : vector<2x8xf32>
    %42 = vector.multi_reduction <maximumf>, %41, %cst_28 [2] : vector<2x8x8xf32> to vector<2x8xf32>
    %43 = vector.shape_cast %42 : vector<2x8xf32> to vector<2x8x1xf32>
    %44 = vector.broadcast %43 : vector<2x8x1xf32> to vector<2x8x8xf32>
    %45 = arith.subf %41, %44 : vector<2x8x8xf32>
    %46 = math.exp %45 : vector<2x8x8xf32>
    %cst_29 = arith.constant dense<0.000000e+00> : vector<2x8xf32>
    %47 = vector.multi_reduction <add>, %46, %cst_29 [2] : vector<2x8x8xf32> to vector<2x8xf32>
    %48 = vector.shape_cast %47 : vector<2x8xf32> to vector<2x8x1xf32>
    %49 = tpu.reciprocal %48 {approx = true} : vector<2x8x1xf32> -> vector<2x8x1xf32>
    %50 = vector.broadcast %49 : vector<2x8x1xf32> to vector<2x8x8xf32>
    %51 = arith.mulf %46, %50 : vector<2x8x8xf32>
    %52 = arith.truncf %51 : vector<2x8x8xf32> to vector<2x8x8xbf16>
    "tpu.trace_start"() <{level = 10 : i32, message = "bqk,bkd->bqd"}> : () -> ()
    %cst_30 = arith.constant dense<0.000000e+00> : vector<2x8x8xf32>
    %53 = tpu.matmul %52, %38, %cst_30 {dimension_numbers = #tpu.dot_dimension_numbers<[2], [1], [1], [2], [0, 0, 0, 1, 1, 2], [0], [0]>} : vector<2x8x8xbf16>, vector<2x8x8xbf16>, vector<2x8x8xf32> -> vector<2x8x8xf32>
    "tpu.trace_stop"() : () -> ()
    %54 = vector.extract_strided_slice %30 {offsets = [0, 0, 8], sizes = [2, 8, 8], strides = [1, 1, 1]} : vector<2x8x32xf32> to vector<2x8x8xf32>
    %55 = arith.truncf %54 : vector<2x8x8xf32> to vector<2x8x8xbf16>
    %56 = vector.extract_strided_slice %31 {offsets = [0, 0, 8], sizes = [2, 8, 8], strides = [1, 1, 1]} : vector<2x8x32xf32> to vector<2x8x8xf32>
    %57 = arith.truncf %56 : vector<2x8x8xf32> to vector<2x8x8xbf16>
    %58 = vector.extract_strided_slice %32 {offsets = [0, 0, 8], sizes = [2, 8, 8], strides = [1, 1, 1]} : vector<2x8x32xf32> to vector<2x8x8xf32>
    %59 = arith.truncf %58 : vector<2x8x8xf32> to vector<2x8x8xbf16>
    "tpu.trace_start"() <{level = 10 : i32, message = "bqd,bkd->bqk"}> : () -> ()
    %cst_31 = arith.constant dense<0.000000e+00> : vector<2x8x8xf32>
    %60 = tpu.matmul %55, %57, %cst_31 {dimension_numbers = #tpu.dot_dimension_numbers<[2], [2], [1], [1], [0, 0, 0, 1, 1, 1], [0], [0]>} : vector<2x8x8xbf16>, vector<2x8x8xbf16>, vector<2x8x8xf32> -> vector<2x8x8xf32>
    "tpu.trace_stop"() : () -> ()
    %61 = vector.broadcast %6 : vector<2x1x8xf32> to vector<2x8x8xf32>
    %62 = arith.addf %60, %61 : vector<2x8x8xf32>
    %cst_32 = arith.constant dense<0xFF800000> : vector<2x8xf32>
    %63 = vector.multi_reduction <maximumf>, %62, %cst_32 [2] : vector<2x8x8xf32> to vector<2x8xf32>
    %64 = vector.shape_cast %63 : vector<2x8xf32> to vector<2x8x1xf32>
    %65 = vector.broadcast %64 : vector<2x8x1xf32> to vector<2x8x8xf32>
    %66 = arith.subf %62, %65 : vector<2x8x8xf32>
    %67 = math.exp %66 : vector<2x8x8xf32>
    %cst_33 = arith.constant dense<0.000000e+00> : vector<2x8xf32>
    %68 = vector.multi_reduction <add>, %67, %cst_33 [2] : vector<2x8x8xf32> to vector<2x8xf32>
    %69 = vector.shape_cast %68 : vector<2x8xf32> to vector<2x8x1xf32>
    %70 = tpu.reciprocal %69 {approx = true} : vector<2x8x1xf32> -> vector<2x8x1xf32>
    %71 = vector.broadcast %70 : vector<2x8x1xf32> to vector<2x8x8xf32>
    %72 = arith.mulf %67, %71 : vector<2x8x8xf32>
    %73 = arith.truncf %72 : vector<2x8x8xf32> to vector<2x8x8xbf16>
    "tpu.trace_start"() <{level = 10 : i32, message = "bqk,bkd->bqd"}> : () -> ()
    %cst_34 = arith.constant dense<0.000000e+00> : vector<2x8x8xf32>
    %74 = tpu.matmul %73, %59, %cst_34 {dimension_numbers = #tpu.dot_dimension_numbers<[2], [1], [1], [2], [0, 0, 0, 1, 1, 2], [0], [0]>} : vector<2x8x8xbf16>, vector<2x8x8xbf16>, vector<2x8x8xf32> -> vector<2x8x8xf32>
    "tpu.trace_stop"() : () -> ()
    %75 = vector.extract_strided_slice %30 {offsets = [0, 0, 16], sizes = [2, 8, 8], strides = [1, 1, 1]} : vector<2x8x32xf32> to vector<2x8x8xf32>
    %76 = arith.truncf %75 : vector<2x8x8xf32> to vector<2x8x8xbf16>
    %77 = vector.extract_strided_slice %31 {offsets = [0, 0, 16], sizes = [2, 8, 8], strides = [1, 1, 1]} : vector<2x8x32xf32> to vector<2x8x8xf32>
    %78 = arith.truncf %77 : vector<2x8x8xf32> to vector<2x8x8xbf16>
    %79 = vector.extract_strided_slice %32 {offsets = [0, 0, 16], sizes = [2, 8, 8], strides = [1, 1, 1]} : vector<2x8x32xf32> to vector<2x8x8xf32>
    %80 = arith.truncf %79 : vector<2x8x8xf32> to vector<2x8x8xbf16>
    "tpu.trace_start"() <{level = 10 : i32, message = "bqd,bkd->bqk"}> : () -> ()
    %cst_35 = arith.constant dense<0.000000e+00> : vector<2x8x8xf32>
    %81 = tpu.matmul %76, %78, %cst_35 {dimension_numbers = #tpu.dot_dimension_numbers<[2], [2], [1], [1], [0, 0, 0, 1, 1, 1], [0], [0]>} : vector<2x8x8xbf16>, vector<2x8x8xbf16>, vector<2x8x8xf32> -> vector<2x8x8xf32>
    "tpu.trace_stop"() : () -> ()
    %82 = vector.broadcast %6 : vector<2x1x8xf32> to vector<2x8x8xf32>
    %83 = arith.addf %81, %82 : vector<2x8x8xf32>
    %cst_36 = arith.constant dense<0xFF800000> : vector<2x8xf32>
    %84 = vector.multi_reduction <maximumf>, %83, %cst_36 [2] : vector<2x8x8xf32> to vector<2x8xf32>
    %85 = vector.shape_cast %84 : vector<2x8xf32> to vector<2x8x1xf32>
    %86 = vector.broadcast %85 : vector<2x8x1xf32> to vector<2x8x8xf32>
    %87 = arith.subf %83, %86 : vector<2x8x8xf32>
    %88 = math.exp %87 : vector<2x8x8xf32>
    %cst_37 = arith.constant dense<0.000000e+00> : vector<2x8xf32>
    %89 = vector.multi_reduction <add>, %88, %cst_37 [2] : vector<2x8x8xf32> to vector<2x8xf32>
    %90 = vector.shape_cast %89 : vector<2x8xf32> to vector<2x8x1xf32>
    %91 = tpu.reciprocal %90 {approx = true} : vector<2x8x1xf32> -> vector<2x8x1xf32>
    %92 = vector.broadcast %91 : vector<2x8x1xf32> to vector<2x8x8xf32>
    %93 = arith.mulf %88, %92 : vector<2x8x8xf32>
    %94 = arith.truncf %93 : vector<2x8x8xf32> to vector<2x8x8xbf16>
    "tpu.trace_start"() <{level = 10 : i32, message = "bqk,bkd->bqd"}> : () -> ()
    %cst_38 = arith.constant dense<0.000000e+00> : vector<2x8x8xf32>
    %95 = tpu.matmul %94, %80, %cst_38 {dimension_numbers = #tpu.dot_dimension_numbers<[2], [1], [1], [2], [0, 0, 0, 1, 1, 2], [0], [0]>} : vector<2x8x8xbf16>, vector<2x8x8xbf16>, vector<2x8x8xf32> -> vector<2x8x8xf32>
    "tpu.trace_stop"() : () -> ()
    %96 = vector.extract_strided_slice %30 {offsets = [0, 0, 24], sizes = [2, 8, 8], strides = [1, 1, 1]} : vector<2x8x32xf32> to vector<2x8x8xf32>
    %97 = arith.truncf %96 : vector<2x8x8xf32> to vector<2x8x8xbf16>
    %98 = vector.extract_strided_slice %31 {offsets = [0, 0, 24], sizes = [2, 8, 8], strides = [1, 1, 1]} : vector<2x8x32xf32> to vector<2x8x8xf32>
    %99 = arith.truncf %98 : vector<2x8x8xf32> to vector<2x8x8xbf16>
    %100 = vector.extract_strided_slice %32 {offsets = [0, 0, 24], sizes = [2, 8, 8], strides = [1, 1, 1]} : vector<2x8x32xf32> to vector<2x8x8xf32>
    %101 = arith.truncf %100 : vector<2x8x8xf32> to vector<2x8x8xbf16>
    "tpu.trace_start"() <{level = 10 : i32, message = "bqd,bkd->bqk"}> : () -> ()
    %cst_39 = arith.constant dense<0.000000e+00> : vector<2x8x8xf32>
    %102 = tpu.matmul %97, %99, %cst_39 {dimension_numbers = #tpu.dot_dimension_numbers<[2], [2], [1], [1], [0, 0, 0, 1, 1, 1], [0], [0]>} : vector<2x8x8xbf16>, vector<2x8x8xbf16>, vector<2x8x8xf32> -> vector<2x8x8xf32>
    "tpu.trace_stop"() : () -> ()
    %103 = vector.broadcast %6 : vector<2x1x8xf32> to vector<2x8x8xf32>
    %104 = arith.addf %102, %103 : vector<2x8x8xf32>
    %cst_40 = arith.constant dense<0xFF800000> : vector<2x8xf32>
    %105 = vector.multi_reduction <maximumf>, %104, %cst_40 [2] : vector<2x8x8xf32> to vector<2x8xf32>
    %106 = vector.shape_cast %105 : vector<2x8xf32> to vector<2x8x1xf32>
    %107 = vector.broadcast %106 : vector<2x8x1xf32> to vector<2x8x8xf32>
    %108 = arith.subf %104, %107 : vector<2x8x8xf32>
    %109 = math.exp %108 : vector<2x8x8xf32>
    %cst_41 = arith.constant dense<0.000000e+00> : vector<2x8xf32>
    %110 = vector.multi_reduction <add>, %109, %cst_41 [2] : vector<2x8x8xf32> to vector<2x8xf32>
    %111 = vector.shape_cast %110 : vector<2x8xf32> to vector<2x8x1xf32>
    %112 = tpu.reciprocal %111 {approx = true} : vector<2x8x1xf32> -> vector<2x8x1xf32>
    %113 = vector.broadcast %112 : vector<2x8x1xf32> to vector<2x8x8xf32>
    %114 = arith.mulf %109, %113 : vector<2x8x8xf32>
    %115 = arith.truncf %114 : vector<2x8x8xf32> to vector<2x8x8xbf16>
    "tpu.trace_start"() <{level = 10 : i32, message = "bqk,bkd->bqd"}> : () -> ()
    %cst_42 = arith.constant dense<0.000000e+00> : vector<2x8x8xf32>
    %116 = tpu.matmul %115, %101, %cst_42 {dimension_numbers = #tpu.dot_dimension_numbers<[2], [1], [1], [2], [0, 0, 0, 1, 1, 2], [0], [0]>} : vector<2x8x8xbf16>, vector<2x8x8xbf16>, vector<2x8x8xf32> -> vector<2x8x8xf32>
    "tpu.trace_stop"() : () -> ()
    %117 = tpu.concatenate %53, %74, %95, %116 in 2 : vector<2x8x8xf32>, vector<2x8x8xf32>, vector<2x8x8xf32>, vector<2x8x8xf32> -> vector<2x8x32xf32>
    %118 = vector.shape_cast %117 : vector<2x8x32xf32> to vector<16x32xf32>
    %119 = arith.truncf %118 : vector<16x32xf32> to vector<16x32xbf16>
    %c0_43 = arith.constant 0 : index
    %c0_44 = arith.constant 0 : index
    %c0_45 = arith.constant 0 : index
    %120 = vector.load %arg10[%c0_43, %c0_44, %c0_45] : memref<1x32x32xbf16, #tpu.memory_space<vmem>>, vector<1x32x32xbf16>
    %121 = vector.shape_cast %120 : vector<1x32x32xbf16> to vector<32x32xbf16>
    %cst_46 = arith.constant dense<0.000000e+00> : vector<16x32xf32>
    %122 = tpu.matmul %119, %121, %cst_46 {dimension_numbers = #tpu.dot_dimension_numbers<[1], [0], [0], [1], [0, 0, 1, 1], [], []>} : vector<16x32xbf16>, vector<32x32xbf16>, vector<16x32xf32> -> vector<16x32xf32>
    %c0_47 = arith.constant 0 : index
    %c0_48 = arith.constant 0 : index
    %c0_49 = arith.constant 0 : index
    %123 = vector.load %arg11[%c0_47, %c0_48, %c0_49] : memref<1x1x32xf32, #tpu.memory_space<vmem>>, vector<1x1x32xf32>
    %124 = vector.shape_cast %123 : vector<1x1x32xf32> to vector<1x32xf32>
    %125 = vector.broadcast %124 : vector<1x32xf32> to vector<16x32xf32>
    %126 = arith.addf %122, %125 : vector<16x32xf32>
    %127 = arith.addf %4, %126 : vector<16x32xf32>
    %c0_50 = arith.constant 0 : index
    %c0_51 = arith.constant 0 : index
    %c0_52 = arith.constant 0 : index
    %128 = vector.load %arg12[%c0_50, %c0_51, %c0_52] : memref<1x1x32xf32, #tpu.memory_space<vmem>>, vector<1x1x32xf32>
    %129 = vector.shape_cast %128 : vector<1x1x32xf32> to vector<1x32xf32>
    %c0_53 = arith.constant 0 : index
    %c0_54 = arith.constant 0 : index
    %c0_55 = arith.constant 0 : index
    %130 = vector.load %arg13[%c0_53, %c0_54, %c0_55] : memref<1x1x32xf32, #tpu.memory_space<vmem>>, vector<1x1x32xf32>
    %131 = vector.shape_cast %130 : vector<1x1x32xf32> to vector<1x32xf32>
    %cst_56 = arith.constant dense<0.000000e+00> : vector<16xf32>
    %132 = vector.multi_reduction <add>, %127, %cst_56 [1] : vector<16x32xf32> to vector<16xf32>
    %133 = vector.shape_cast %132 : vector<16xf32> to vector<16x1xf32>
    %cst_57 = arith.constant 3.200000e+01 : f32
    %134 = vector.broadcast %cst_57 : f32 to vector<16x1xf32>
    %135 = arith.divf %133, %134 : vector<16x1xf32>
    %136 = vector.broadcast %135 : vector<16x1xf32> to vector<16x32xf32>
    %137 = arith.subf %127, %136 : vector<16x32xf32>
    %138 = arith.mulf %137, %137 : vector<16x32xf32>
    %cst_58 = arith.constant dense<0.000000e+00> : vector<16xf32>
    %139 = vector.multi_reduction <add>, %138, %cst_58 [1] : vector<16x32xf32> to vector<16xf32>
    %140 = vector.shape_cast %139 : vector<16xf32> to vector<16x1xf32>
    %cst_59 = arith.constant 3.200000e+01 : f32
    %141 = vector.broadcast %cst_59 : f32 to vector<16x1xf32>
    %142 = arith.divf %140, %141 : vector<16x1xf32>
    %143 = vector.broadcast %135 : vector<16x1xf32> to vector<16x32xf32>
    %144 = arith.subf %127, %143 : vector<16x32xf32>
    %cst_60 = arith.constant 9.99999974E-6 : f32
    %145 = vector.broadcast %cst_60 : f32 to vector<16x1xf32>
    %146 = arith.addf %142, %145 : vector<16x1xf32>
    %147 = math.rsqrt %146 : vector<16x1xf32>
    %148 = vector.broadcast %147 : vector<16x1xf32> to vector<16x32xf32>
    %149 = arith.mulf %144, %148 : vector<16x32xf32>
    %150 = vector.broadcast %129 : vector<1x32xf32> to vector<16x32xf32>
    %151 = arith.mulf %149, %150 : vector<16x32xf32>
    %152 = vector.broadcast %131 : vector<1x32xf32> to vector<16x32xf32>
    %153 = arith.addf %151, %152 : vector<16x32xf32>
    %154 = arith.truncf %153 : vector<16x32xf32> to vector<16x32xbf16>
    %c0_61 = arith.constant 0 : index
    %c0_62 = arith.constant 0 : index
    %c0_63 = arith.constant 0 : index
    %155 = vector.load %arg14[%c0_61, %c0_62, %c0_63] : memref<1x32x64xbf16, #tpu.memory_space<vmem>>, vector<1x32x64xbf16>
    %156 = vector.shape_cast %155 : vector<1x32x64xbf16> to vector<32x64xbf16>
    %cst_64 = arith.constant dense<0.000000e+00> : vector<16x64xf32>
    %157 = tpu.matmul %154, %156, %cst_64 {dimension_numbers = #tpu.dot_dimension_numbers<[1], [0], [0], [1], [0, 0, 1, 1], [], []>} : vector<16x32xbf16>, vector<32x64xbf16>, vector<16x64xf32> -> vector<16x64xf32>
    %c0_65 = arith.constant 0 : index
    %c0_66 = arith.constant 0 : index
    %c0_67 = arith.constant 0 : index
    %158 = vector.load %arg15[%c0_65, %c0_66, %c0_67] : memref<1x1x64xf32, #tpu.memory_space<vmem>>, vector<1x1x64xf32>
    %159 = vector.shape_cast %158 : vector<1x1x64xf32> to vector<1x64xf32>
    %160 = vector.broadcast %159 : vector<1x64xf32> to vector<16x64xf32>
    %161 = arith.addf %157, %160 : vector<16x64xf32>
    %cst_68 = arith.constant 0.000000e+00 : f32
    %162 = vector.broadcast %cst_68 : f32 to vector<16x64xf32>
    %163 = arith.maximumf %161, %162 : vector<16x64xf32>
    %164 = arith.truncf %163 : vector<16x64xf32> to vector<16x64xbf16>
    %c0_69 = arith.constant 0 : index
    %c0_70 = arith.constant 0 : index
    %c0_71 = arith.constant 0 : index
    %165 = vector.load %arg16[%c0_69, %c0_70, %c0_71] : memref<1x64x32xbf16, #tpu.memory_space<vmem>>, vector<1x64x32xbf16>
    %166 = vector.shape_cast %165 : vector<1x64x32xbf16> to vector<64x32xbf16>
    %cst_72 = arith.constant dense<0.000000e+00> : vector<16x32xf32>
    %167 = tpu.matmul %164, %166, %cst_72 {dimension_numbers = #tpu.dot_dimension_numbers<[1], [0], [0], [1], [0, 0, 1, 1], [], []>} : vector<16x64xbf16>, vector<64x32xbf16>, vector<16x32xf32> -> vector<16x32xf32>
    %c0_73 = arith.constant 0 : index
    %c0_74 = arith.constant 0 : index
    %c0_75 = arith.constant 0 : index
    %168 = vector.load %arg17[%c0_73, %c0_74, %c0_75] : memref<1x1x32xf32, #tpu.memory_space<vmem>>, vector<1x1x32xf32>
    %169 = vector.shape_cast %168 : vector<1x1x32xf32> to vector<1x32xf32>
    %170 = vector.broadcast %169 : vector<1x32xf32> to vector<16x32xf32>
    %171 = arith.addf %167, %170 : vector<16x32xf32>
    %172 = arith.addf %153, %171 : vector<16x32xf32>
    %c0_76 = arith.constant 0 : index
    %c0_77 = arith.constant 0 : index
    %c0_78 = arith.constant 0 : index
    %173 = vector.load %arg18[%c0_76, %c0_77, %c0_78] : memref<1x1x32xf32, #tpu.memory_space<vmem>>, vector<1x1x32xf32>
    %174 = vector.shape_cast %173 : vector<1x1x32xf32> to vector<1x32xf32>
    %c0_79 = arith.constant 0 : index
    %c0_80 = arith.constant 0 : index
    %c0_81 = arith.constant 0 : index
    %175 = vector.load %arg19[%c0_79, %c0_80, %c0_81] : memref<1x1x32xf32, #tpu.memory_space<vmem>>, vector<1x1x32xf32>
    %176 = vector.shape_cast %175 : vector<1x1x32xf32> to vector<1x32xf32>
    %cst_82 = arith.constant dense<0.000000e+00> : vector<16xf32>
    %177 = vector.multi_reduction <add>, %172, %cst_82 [1] : vector<16x32xf32> to vector<16xf32>
    %178 = vector.shape_cast %177 : vector<16xf32> to vector<16x1xf32>
    %cst_83 = arith.constant 3.200000e+01 : f32
    %179 = vector.broadcast %cst_83 : f32 to vector<16x1xf32>
    %180 = arith.divf %178, %179 : vector<16x1xf32>
    %181 = vector.broadcast %180 : vector<16x1xf32> to vector<16x32xf32>
    %182 = arith.subf %172, %181 : vector<16x32xf32>
    %183 = arith.mulf %182, %182 : vector<16x32xf32>
    %cst_84 = arith.constant dense<0.000000e+00> : vector<16xf32>
    %184 = vector.multi_reduction <add>, %183, %cst_84 [1] : vector<16x32xf32> to vector<16xf32>
    %185 = vector.shape_cast %184 : vector<16xf32> to vector<16x1xf32>
    %cst_85 = arith.constant 3.200000e+01 : f32
    %186 = vector.broadcast %cst_85 : f32 to vector<16x1xf32>
    %187 = arith.divf %185, %186 : vector<16x1xf32>
    %188 = vector.broadcast %180 : vector<16x1xf32> to vector<16x32xf32>
    %189 = arith.subf %172, %188 : vector<16x32xf32>
    %cst_86 = arith.constant 9.99999974E-6 : f32
    %190 = vector.broadcast %cst_86 : f32 to vector<16x1xf32>
    %191 = arith.addf %187, %190 : vector<16x1xf32>
    %192 = math.rsqrt %191 : vector<16x1xf32>
    %193 = vector.broadcast %192 : vector<16x1xf32> to vector<16x32xf32>
    %194 = arith.mulf %189, %193 : vector<16x32xf32>
    %195 = vector.broadcast %174 : vector<1x32xf32> to vector<16x32xf32>
    %196 = arith.mulf %194, %195 : vector<16x32xf32>
    %197 = vector.broadcast %176 : vector<1x32xf32> to vector<16x32xf32>
    %198 = arith.addf %196, %197 : vector<16x32xf32>
    %199 = vector.shape_cast %198 : vector<16x32xf32> to vector<2x8x32xf32>
    %c0_87 = arith.constant 0 : index
    %c0_88 = arith.constant 0 : index
    %c0_89 = arith.constant 0 : index
    %200 = vector.load %arg23[%c0_87, %c0_88, %c0_89] : memref<2x8x32xf32, #tpu.memory_space<vmem>>, vector<2x8x32xf32>
    tpu.vector_store %arg23[%c0_87, %c0_88, %c0_89], %199 {strides = array<i32>} : memref<2x8x32xf32, #tpu.memory_space<vmem>>, vector<2x8x32xf32>,
    %c1_i32 = arith.constant 1 : i32
    %201 = arith.cmpi eq, %arg1, %c1_i32 : i32
    %202 = arith.extui %201 : i1 to i32
    %c0_i32_90 = arith.constant 0 : i32
    %203 = arith.cmpi ne, %202, %c0_i32_90 : i32
    scf.if %203 {
      %204 = vector.shape_cast %198 : vector<16x32xf32> to vector<2x8x32xf32>
      %c0_91 = arith.constant 0 : index
      %c0_92 = arith.constant 0 : index
      %205 = vector.load %arg20[%c0_91, %c0_92] : memref<1x32xf32, #tpu.memory_space<vmem>>, vector<1x32xf32>
      %c0_93 = arith.constant 0 : index
      %c0_94 = arith.constant 0 : index
      %206 = vector.load %arg21[%c0_93, %c0_94] : memref<1x32xf32, #tpu.memory_space<vmem>>, vector<1x32xf32>
      %cst_95 = arith.constant dense<0.000000e+00> : vector<2x8xf32>
      %207 = vector.multi_reduction <add>, %204, %cst_95 [2] : vector<2x8x32xf32> to vector<2x8xf32>
      %208 = vector.shape_cast %207 : vector<2x8xf32> to vector<2x8x1xf32>
      %cst_96 = arith.constant 3.200000e+01 : f32
      %209 = vector.broadcast %cst_96 : f32 to vector<2x8x1xf32>
      %210 = arith.divf %208, %209 : vector<2x8x1xf32>
      %211 = vector.broadcast %210 : vector<2x8x1xf32> to vector<2x8x32xf32>
      %212 = arith.subf %204, %211 : vector<2x8x32xf32>
      %213 = arith.mulf %212, %212 : vector<2x8x32xf32>
      %cst_97 = arith.constant dense<0.000000e+00> : vector<2x8xf32>
      %214 = vector.multi_reduction <add>, %213, %cst_97 [2] : vector<2x8x32xf32> to vector<2x8xf32>
      %215 = vector.shape_cast %214 : vector<2x8xf32> to vector<2x8x1xf32>
      %cst_98 = arith.constant 3.200000e+01 : f32
      %216 = vector.broadcast %cst_98 : f32 to vector<2x8x1xf32>
      %217 = arith.divf %215, %216 : vector<2x8x1xf32>
      %218 = vector.broadcast %210 : vector<2x8x1xf32> to vector<2x8x32xf32>
      %219 = arith.subf %204, %218 : vector<2x8x32xf32>
      %cst_99 = arith.constant 9.99999974E-6 : f32
      %220 = vector.broadcast %cst_99 : f32 to vector<2x8x1xf32>
      %221 = arith.addf %217, %220 : vector<2x8x1xf32>
      %222 = math.rsqrt %221 : vector<2x8x1xf32>
      %223 = vector.broadcast %222 : vector<2x8x1xf32> to vector<2x8x32xf32>
      %224 = arith.mulf %219, %223 : vector<2x8x32xf32>
      %225 = vector.shape_cast %205 : vector<1x32xf32> to vector<1x1x32xf32>
      %226 = vector.broadcast %225 : vector<1x1x32xf32> to vector<2x8x32xf32>
      %227 = arith.mulf %224, %226 : vector<2x8x32xf32>
      %228 = vector.shape_cast %206 : vector<1x32xf32> to vector<1x1x32xf32>
      %229 = vector.broadcast %228 : vector<1x1x32xf32> to vector<2x8x32xf32>
      %230 = arith.addf %227, %229 : vector<2x8x32xf32>
      %c0_100 = arith.constant 0 : index
      %c0_101 = arith.constant 0 : index
      %c0_102 = arith.constant 0 : index
      %231 = vector.load %arg22[%c0_100, %c0_101, %c0_102] : memref<2x8x32xf32, #tpu.memory_space<vmem>>, vector<2x8x32xf32>
      tpu.vector_store %arg22[%c0_100, %c0_101, %c0_102], %230 {strides = array<i32>} : memref<2x8x32xf32, #tpu.memory_space<vmem>>, vector<2x8x32xf32>,
    } else {
    }
    return
  }
  func.func @transform_0(%arg0: i32, %arg1: i32) -> (i32, i32, i32) {
    %c0_i32 = arith.constant 0 : i32
    %c0_i32_0 = arith.constant 0 : i32
    %c0_i32_1 = arith.constant 0 : i32
    return %arg0, %c0_i32, %c0_i32_0 : i32, i32, i32
  }
  func.func @transform_1(%arg0: i32, %arg1: i32) -> (i32, i32, i32) {
    %c0_i32 = arith.constant 0 : i32
    %c0_i32_0 = arith.constant 0 : i32
    %c0_i32_1 = arith.constant 0 : i32
    return %arg0, %c0_i32, %c0_i32_0 : i32, i32, i32
  }
  func.func @transform_2(%arg0: i32, %arg1: i32) -> (i32, i32, i32) {
    %c0_i32 = arith.constant 0 : i32
    %c0_i32_0 = arith.constant 0 : i32
    %c0_i32_1 = arith.constant 0 : i32
    return %arg1, %c0_i32, %c0_i32_0 : i32, i32, i32
  }
  func.func @transform_3(%arg0: i32, %arg1: i32) -> (i32, i32, i32) {
    %c0_i32 = arith.constant 0 : i32
    %c0_i32_0 = arith.constant 0 : i32
    %c0_i32_1 = arith.constant 0 : i32
    return %arg1, %c0_i32, %c0_i32_0 : i32, i32, i32
  }
  func.func @transform_4(%arg0: i32, %arg1: i32) -> (i32, i32, i32) {
    %c0_i32 = arith.constant 0 : i32
    %c0_i32_0 = arith.constant 0 : i32
    %c0_i32_1 = arith.constant 0 : i32
    return %arg1, %c0_i32, %c0_i32_0 : i32, i32, i32
  }
  func.func @transform_5(%arg0: i32, %arg1: i32) -> (i32, i32, i32) {
    %c0_i32 = arith.constant 0 : i32
    %c0_i32_0 = arith.constant 0 : i32
    %c0_i32_1 = arith.constant 0 : i32
    return %arg1, %c0_i32, %c0_i32_0 : i32, i32, i32
  }
  func.func @transform_6(%arg0: i32, %arg1: i32) -> (i32, i32, i32) {
    %c0_i32 = arith.constant 0 : i32
    %c0_i32_0 = arith.constant 0 : i32
    %c0_i32_1 = arith.constant 0 : i32
    return %arg1, %c0_i32, %c0_i32_0 : i32, i32, i32
  }
  func.func @transform_7(%arg0: i32, %arg1: i32) -> (i32, i32, i32) {
    %c0_i32 = arith.constant 0 : i32
    %c0_i32_0 = arith.constant 0 : i32
    %c0_i32_1 = arith.constant 0 : i32
    return %arg1, %c0_i32, %c0_i32_0 : i32, i32, i32
  }
  func.func @transform_8(%arg0: i32, %arg1: i32) -> (i32, i32, i32) {
    %c0_i32 = arith.constant 0 : i32
    %c0_i32_0 = arith.constant 0 : i32
    %c0_i32_1 = arith.constant 0 : i32
    return %arg1, %c0_i32, %c0_i32_0 : i32, i32, i32
  }
  func.func @transform_9(%arg0: i32, %arg1: i32) -> (i32, i32, i32) {
    %c0_i32 = arith.constant 0 : i32
    %c0_i32_0 = arith.constant 0 : i32
    %c0_i32_1 = arith.constant 0 : i32
    return %arg1, %c0_i32, %c0_i32_0 : i32, i32, i32
  }
  func.func @transform_10(%arg0: i32, %arg1: i32) -> (i32, i32, i32) {
    %c0_i32 = arith.constant 0 : i32
    %c0_i32_0 = arith.constant 0 : i32
    %c0_i32_1 = arith.constant 0 : i32
    return %arg1, %c0_i32, %c0_i32_0 : i32, i32, i32
  }
  func.func @transform_11(%arg0: i32, %arg1: i32) -> (i32, i32, i32) {
    %c0_i32 = arith.constant 0 : i32
    %c0_i32_0 = arith.constant 0 : i32
    %c0_i32_1 = arith.constant 0 : i32
    return %arg1, %c0_i32, %c0_i32_0 : i32, i32, i32
  }
  func.func @transform_12(%arg0: i32, %arg1: i32) -> (i32, i32, i32) {
    %c0_i32 = arith.constant 0 : i32
    %c0_i32_0 = arith.constant 0 : i32
    %c0_i32_1 = arith.constant 0 : i32
    return %arg1, %c0_i32, %c0_i32_0 : i32, i32, i32
  }
  func.func @transform_13(%arg0: i32, %arg1: i32) -> (i32, i32, i32) {
    %c0_i32 = arith.constant 0 : i32
    %c0_i32_0 = arith.constant 0 : i32
    %c0_i32_1 = arith.constant 0 : i32
    return %arg1, %c0_i32, %c0_i32_0 : i32, i32, i32
  }
  func.func @transform_14(%arg0: i32, %arg1: i32) -> (i32, i32, i32) {
    %c0_i32 = arith.constant 0 : i32
    %c0_i32_0 = arith.constant 0 : i32
    %c0_i32_1 = arith.constant 0 : i32
    return %arg1, %c0_i32, %c0_i32_0 : i32, i32, i32
  }
  func.func @transform_15(%arg0: i32, %arg1: i32) -> (i32, i32, i32) {
    %c0_i32 = arith.constant 0 : i32
    %c0_i32_0 = arith.constant 0 : i32
    %c0_i32_1 = arith.constant 0 : i32
    return %arg1, %c0_i32, %c0_i32_0 : i32, i32, i32
  }
  func.func @transform_16(%arg0: i32, %arg1: i32) -> (i32, i32, i32) {
    %c0_i32 = arith.constant 0 : i32
    %c0_i32_0 = arith.constant 0 : i32
    %c0_i32_1 = arith.constant 0 : i32
    return %arg1, %c0_i32, %c0_i32_0 : i32, i32, i32
  }
  func.func @transform_17(%arg0: i32, %arg1: i32) -> (i32, i32, i32) {
    %c0_i32 = arith.constant 0 : i32
    %c0_i32_0 = arith.constant 0 : i32
    %c0_i32_1 = arith.constant 0 : i32
    return %arg1, %c0_i32, %c0_i32_0 : i32, i32, i32
  }
  func.func @transform_18(%arg0: i32, %arg1: i32) -> (i32, i32) {
    %c0_i32 = arith.constant 0 : i32
    %c0_i32_0 = arith.constant 0 : i32
    %c0_i32_1 = arith.constant 0 : i32
    return %c0_i32, %c0_i32_0 : i32, i32
  }
  func.func @transform_19(%arg0: i32, %arg1: i32) -> (i32, i32) {
    %c0_i32 = arith.constant 0 : i32
    %c0_i32_0 = arith.constant 0 : i32
    %c0_i32_1 = arith.constant 0 : i32
    return %c0_i32, %c0_i32_0 : i32, i32
  }
  func.func @transform_20(%arg0: i32, %arg1: i32) -> (i32, i32, i32) {
    %c0_i32 = arith.constant 0 : i32
    %c0_i32_0 = arith.constant 0 : i32
    %c0_i32_1 = arith.constant 0 : i32
    return %arg0, %c0_i32, %c0_i32_0 : i32, i32, i32
  }
}

module attributes {stable_mosaic.version = 11 : i64} {
  func.func @_linear_kernel(%arg0: i32, %arg1: memref<8x32xbf16, #tpu.memory_space<vmem>>, %arg2: memref<32x128xbf16, #tpu.memory_space<vmem>>, %arg3: memref<1x128xf32, #tpu.memory_space<vmem>>, %arg4: memref<8x128xf32, #tpu.memory_space<vmem>>) attributes {dimension_semantics = [#tpu.dimension_semantics<parallel>], iteration_bounds = array<i64: 1>, scalar_prefetch = 0 : i64, scratch_operands = 0 : i64, tpu.core_type = #tpu.core_type<tc>, window_params = [{transform_indices = @transform_0, window_bounds = array<i64: 8, 32>}, {pipeline_mode = #tpu.pipeline_mode<synchronous>, transform_indices = @transform_1, window_bounds = array<i64: 32, 128>}, {pipeline_mode = #tpu.pipeline_mode<synchronous>, transform_indices = @transform_2, window_bounds = array<i64: 1, 128>}, {transform_indices = @transform_3, window_bounds = array<i64: 8, 128>}]} {
    %c0 = arith.constant 0 : index
    %c0_0 = arith.constant 0 : index
    %0 = vector.load %arg1[%c0, %c0_0] : memref<8x32xbf16, #tpu.memory_space<vmem>>, vector<8x32xbf16>
    %c0_1 = arith.constant 0 : index
    %c0_2 = arith.constant 0 : index
    %1 = vector.load %arg2[%c0_1, %c0_2] : memref<32x128xbf16, #tpu.memory_space<vmem>>, vector<32x128xbf16>
    %cst = arith.constant dense<0.000000e+00> : vector<8x128xf32>
    %2 = tpu.matmul %0, %1, %cst {dimension_numbers = #tpu.dot_dimension_numbers<[1], [0], [0], [1], [0, 0, 1, 1], [], []>} : vector<8x32xbf16>, vector<32x128xbf16>, vector<8x128xf32> -> vector<8x128xf32>
    %c0_3 = arith.constant 0 : index
    %c0_4 = arith.constant 0 : index
    %3 = vector.load %arg3[%c0_3, %c0_4] : memref<1x128xf32, #tpu.memory_space<vmem>>, vector<1x128xf32>
    %4 = vector.broadcast %3 : vector<1x128xf32> to vector<8x128xf32>
    %5 = arith.addf %2, %4 : vector<8x128xf32>
    %c0_5 = arith.constant 0 : index
    %c0_6 = arith.constant 0 : index
    %6 = vector.load %arg4[%c0_5, %c0_6] : memref<8x128xf32, #tpu.memory_space<vmem>>, vector<8x128xf32>
    tpu.vector_store %arg4[%c0_5, %c0_6], %5 {strides = array<i32>} : memref<8x128xf32, #tpu.memory_space<vmem>>, vector<8x128xf32>,
    return
  }
  func.func @transform_0(%arg0: i32) -> (i32, i32) {
    %c0_i32 = arith.constant 0 : i32
    %c0_i32_0 = arith.constant 0 : i32
    return %arg0, %c0_i32 : i32, i32
  }
  func.func @transform_1(%arg0: i32) -> (i32, i32) {
    %c0_i32 = arith.constant 0 : i32
    %c0_i32_0 = arith.constant 0 : i32
    %c0_i32_1 = arith.constant 0 : i32
    return %c0_i32, %c0_i32_0 : i32, i32
  }
  func.func @transform_2(%arg0: i32) -> (i32, i32) {
    %c0_i32 = arith.constant 0 : i32
    %c0_i32_0 = arith.constant 0 : i32
    %c0_i32_1 = arith.constant 0 : i32
    return %c0_i32, %c0_i32_0 : i32, i32
  }
  func.func @transform_3(%arg0: i32) -> (i32, i32) {
    %c0_i32 = arith.constant 0 : i32
    %c0_i32_0 = arith.constant 0 : i32
    return %arg0, %c0_i32 : i32, i32
  }
}

</mosaic_0001>

<llo_original>
// kernel: vivit_forward.4
$region0: #{vivit_forward.4}
  #allocation0 [shape = 'u32[]', space=smem, size = 0x4, offset = 0x4, fixed_abs, tag = 'smem constant byte address 0x4 - core index']
  #allocation1 [shape = 'u32[144,128]{1,0:T(1,128)}', space=vmem, size = 0x12000, scoped, tag = 'internal scratch']
  %s0 = inlined_call_operand.vmem [shape: bf16[16,384], index: 0, kind: input, shape index: {}]
  %s1 = inlined_call_operand.vmem [shape: bf16[384,128], index: 1, kind: input, shape index: {}]
  %s2 = inlined_call_operand.vmem [shape: f32[1,128], index: 2, kind: input, shape index: {}]
  %s3 = inlined_call_operand.vmem [shape: bf16[16,128], index: 3, kind: output, shape index: {}]
  %s4 = sld [smem:[#allocation0]]
  $region22: #{vivit_forward.4} parent=0
    _
  %s6 = ssub.s32 1, %s4
  %s7 = scalar_select 0, %s6, %s4
  // Predicated region
  $region2: #{vivit_forward.4} parent=0 // pred_check
    _
  $region3: #{vivit_forward.4} parent=0 // pred_check_branch
    %9 = sbr.rel (0) target = $region5
  $region4: #{vivit_forward.4} parent=0 // pred_region
    _
  $region5: #{vivit_forward.4} parent=0 // pred_fallthru
    _
  // Predicated region
  $region6: #{vivit_forward.4} parent=0 // pred_check
    _
  $region7: #{vivit_forward.4} parent=0 // pred_check_branch
    %11 = sbr.rel (0) target = $region9
  $region8: #{vivit_forward.4} parent=0 // pred_region
    _
  $region9: #{vivit_forward.4} parent=0 // pred_fallthru
    _
  // Predicated region
  $region10: #{vivit_forward.4} parent=0 // pred_check
    _
  $region11: #{vivit_forward.4} parent=0 // pred_check_branch
    %13 = sbr.rel (0) target = $region13
  $region12: #{vivit_forward.4} parent=0 // pred_region
    _
  $region13: #{vivit_forward.4} parent=0 // pred_fallthru
    _
  %v15 = vld [vmem:[%s0] sm:$0xff]
  %v16 = vld [vmem:[%s0 + $0x8] sm:$0xf]
  %v17 = vld [vmem:[%s0 + $0xc] sm:$0xff]
  %v18 = vld [vmem:[%s0 + $0x14] sm:$0xf]
  %v19 = vld [vmem:[%s1] sm:$0xf]
  %v20 = vld [vmem:[%s1 + $0x4] sm:$0xf]
  %v21 = vld [vmem:[%s1 + $0x8] sm:$0xf]
  %v22 = vld [vmem:[%s1 + $0xc] sm:$0xf]
  %v23 = vld [vmem:[%s1 + $0x10] sm:$0xf]
  %v24 = vld [vmem:[%s1 + $0x14] sm:$0xf]
  %v25 = vld [vmem:[%s1 + $0x18] sm:$0xf]
  %v26 = vld [vmem:[%s1 + $0x1c] sm:$0xf]
  %v27 = vld [vmem:[%s1 + $0x20] sm:$0xf]
  %v28 = vld [vmem:[%s1 + $0x24] sm:$0xf]
  %v29 = vld [vmem:[%s1 + $0x28] sm:$0xf]
  %v30 = vld [vmem:[%s1 + $0x2c] sm:$0xf]
  %v31 = vld [vmem:[%s1 + $0x30] sm:$0xf]
  %v32 = vld [vmem:[%s1 + $0x34] sm:$0xf]
  %v33 = vld [vmem:[%s1 + $0x38] sm:$0xf]
  %v34 = vld [vmem:[%s1 + $0x3c] sm:$0xf]
  %v35 = vld [vmem:[%s1 + $0x40] sm:$0xf]
  %v36 = vld [vmem:[%s1 + $0x44] sm:$0xf]
  %v37 = vld [vmem:[%s1 + $0x48] sm:$0xf]
  %v38 = vld [vmem:[%s1 + $0x4c] sm:$0xf]
  %v39 = vld [vmem:[%s1 + $0x50] sm:$0xf]
  %v40 = vld [vmem:[%s1 + $0x54] sm:$0xf]
  %v41 = vld [vmem:[%s1 + $0x58] sm:$0xf]
  %v42 = vld [vmem:[%s1 + $0x5c] sm:$0xf]
  %v43 = vld [vmem:[%s1 + $0x60] sm:$0xf]
  %v44 = vld [vmem:[%s1 + $0x64] sm:$0xf]
  %v45 = vld [vmem:[%s1 + $0x68] sm:$0xf]
  %v46 = vld [vmem:[%s1 + $0x6c] sm:$0xf]
  %v47 = vld [vmem:[%s1 + $0x70] sm:$0xf]
  %v48 = vld [vmem:[%s1 + $0x74] sm:$0xf]
  %v49 = vld [vmem:[%s1 + $0x78] sm:$0xf]
  %v50 = vld [vmem:[%s1 + $0x7c] sm:$0xf]
  %v51 = vld [vmem:[%s1 + $0x80] sm:$0xf]
  %v52 = vld [vmem:[%s1 + $0x84] sm:$0xf]
  %v53 = vld [vmem:[%s1 + $0x88] sm:$0xf]
  %v54 = vld [vmem:[%s1 + $0x8c] sm:$0xf]
  %v55 = vld [vmem:[%s1 + $0x90] sm:$0xf]
  %v56 = vld [vmem:[%s1 + $0x94] sm:$0xf]
  %v57 = vld [vmem:[%s1 + $0x98] sm:$0xf]
  %v58 = vld [vmem:[%s1 + $0x9c] sm:$0xf]
  %v59 = vld [vmem:[%s1 + $0xa0] sm:$0xf]
  %v60 = vld [vmem:[%s1 + $0xa4] sm:$0xf]
  %v61 = vld [vmem:[%s1 + $0xa8] sm:$0xf]
  %v62 = vld [vmem:[%s1 + $0xac] sm:$0xf]
  %v63 = vld [vmem:[%s1 + $0xb0] sm:$0xf]
  %v64 = vld [vmem:[%s1 + $0xb4] sm:$0xf]
  %v65 = vld [vmem:[%s1 + $0xb8] sm:$0xf]
  %v66 = vld [vmem:[%s1 + $0xbc] sm:$0xf]
  %v67 = vld [vmem:[%s2] sm:$0x1]
  %v69 = vlaneseq
  %v70 = vshrl.u32 %v69, 7
  %v71 = vsub.s32 0, %v70
  %v72 = vrot.slane %v67, %v71
  %v78 = vunpack.c.l.b16 %v15
  %v79 = vunpack.c.h.b16 %v15
  %v80 = vunpack.c.l.b16 %v16
  %v81 = vunpack.c.l.b16 %v17
  %v82 = vunpack.c.h.b16 %v17
  %v83 = vunpack.c.l.b16 %v18
  %v84 = vpack.c.b16 %v81, %v78
  %v85 = vpack.c.b16 %v82, %v79
  %v86 = vpack.c.b16 %v83, %v80
  %v138 = vunpack.c.l.b16 %v19
  %v139 = vunpack.c.l.b16 %v20
  %v140 = vunpack.c.l.b16 %v21
  %v141 = vunpack.c.l.b16 %v22
  %v142 = vunpack.c.l.b16 %v23
  %v143 = vunpack.c.l.b16 %v24
  %v144 = vunpack.c.l.b16 %v25
  %v145 = vunpack.c.l.b16 %v26
  %v146 = vunpack.c.l.b16 %v27
  %v147 = vunpack.c.l.b16 %v28
  %v148 = vunpack.c.l.b16 %v29
  %v149 = vunpack.c.l.b16 %v30
  %v150 = vunpack.c.l.b16 %v31
  %v151 = vunpack.c.l.b16 %v32
  %v152 = vunpack.c.l.b16 %v33
  %v153 = vunpack.c.l.b16 %v34
  %v154 = vunpack.c.l.b16 %v35
  %v155 = vunpack.c.l.b16 %v36
  %v156 = vunpack.c.l.b16 %v37
  %v157 = vunpack.c.l.b16 %v38
  %v158 = vunpack.c.l.b16 %v39
  %v159 = vunpack.c.l.b16 %v40
  %v160 = vunpack.c.l.b16 %v41
  %v161 = vunpack.c.l.b16 %v42
  %v162 = vunpack.c.l.b16 %v43
  %v163 = vunpack.c.l.b16 %v44
  %v164 = vunpack.c.l.b16 %v45
  %v165 = vunpack.c.l.b16 %v46
  %v166 = vunpack.c.l.b16 %v47
  %v167 = vunpack.c.l.b16 %v48
  %v168 = vunpack.c.l.b16 %v49
  %v169 = vunpack.c.l.b16 %v50
  %v170 = vunpack.c.l.b16 %v51
  %v171 = vunpack.c.l.b16 %v52
  %v172 = vunpack.c.l.b16 %v53
  %v173 = vunpack.c.l.b16 %v54
  %v174 = vunpack.c.l.b16 %v55
  %v175 = vunpack.c.l.b16 %v56
  %v176 = vunpack.c.l.b16 %v57
  %v177 = vunpack.c.l.b16 %v58
  %v178 = vunpack.c.l.b16 %v59
  %v179 = vunpack.c.l.b16 %v60
  %v180 = vunpack.c.l.b16 %v61
  %v181 = vunpack.c.l.b16 %v62
  %v182 = vunpack.c.l.b16 %v63
  %v183 = vunpack.c.l.b16 %v64
  %v184 = vunpack.c.l.b16 %v65
  %v185 = vunpack.c.l.b16 %v66
  %v186 = vpack.c.b16 %v139, %v138
  %v187 = vpack.c.b16 %v141, %v140
  %v188 = vpack.c.b16 %v143, %v142
  %v189 = vpack.c.b16 %v145, %v144
  %v190 = vpack.c.b16 %v147, %v146
  %v191 = vpack.c.b16 %v149, %v148
  %v192 = vpack.c.b16 %v151, %v150
  %v193 = vpack.c.b16 %v153, %v152
  %v194 = vpack.c.b16 %v155, %v154
  %v195 = vpack.c.b16 %v157, %v156
  %v196 = vpack.c.b16 %v159, %v158
  %v197 = vpack.c.b16 %v161, %v160
  %v198 = vpack.c.b16 %v163, %v162
  %v199 = vpack.c.b16 %v165, %v164
  %v200 = vpack.c.b16 %v167, %v166
  %v201 = vpack.c.b16 %v169, %v168
  %v202 = vpack.c.b16 %v171, %v170
  %v203 = vpack.c.b16 %v173, %v172
  %v204 = vpack.c.b16 %v175, %v174
  %v205 = vpack.c.b16 %v177, %v176
  %v206 = vpack.c.b16 %v179, %v178
  %v207 = vpack.c.b16 %v181, %v180
  %v208 = vpack.c.b16 %v183, %v182
  %v209 = vpack.c.b16 %v185, %v184
  %234 = vmatprep.subr.bf16.mxu0 0
  %235 = vmatpush1.bf16.msra.mxu0 %v186
  %236 = vmatprep.subr.bf16.mxu0 0
  %237 = vmatpush1.bf16.msra.mxu0 %v187
  %238 = vmatprep.subr.bf16.mxu0 0
  %239 = vmatpush1.bf16.msra.mxu0 %v188
  %240 = vmatprep.subr.bf16.mxu0 0
  %241 = vmatpush1.bf16.msra.mxu0 %v189
  %242 = vmatprep.subr.bf16.mxu0 0
  %243 = vmatpush1.bf16.msra.mxu0 %v190
  %244 = vmatprep.subr.bf16.mxu0 0
  %245 = vmatpush1.bf16.msra.mxu0 %v191
  %246 = vmatprep.subr.bf16.mxu0 0
  %247 = vmatpush1.bf16.msra.mxu0 %v192
  %248 = vmatprep.subr.bf16.mxu0 0
  %249 = vmatpush1.bf16.msra.mxu0 %v193
  %250 = vmatprep.subr.bf16.mxu0 0
  %251 = vmatpush1.bf16.msra.mxu0 %v194
  %252 = vmatprep.subr.bf16.mxu0 0
  %253 = vmatpush1.bf16.msra.mxu0 %v195
  %254 = vmatprep.subr.bf16.mxu0 0
  %255 = vmatpush1.bf16.msra.mxu0 %v196
  %256 = vmatprep.subr.bf16.mxu0 0
  %257 = vmatpush1.bf16.msra.mxu0 %v197
  %258 = vmatprep.subr.bf16.mxu0 0
  %259 = vmatpush1.bf16.msra.mxu0 %v198
  %260 = vmatprep.subr.bf16.mxu0 0
  %261 = vmatpush1.bf16.msra.mxu0 %v199
  %262 = vmatprep.subr.bf16.mxu0 0
  %263 = vmatpush1.bf16.msra.mxu0 %v200
  %264 = vmatprep.subr.bf16.mxu0 0
  %265 = vmatpush1.bf16.msra.mxu0 %v201
  %266 = vmatprep.mubr.bf16.mxu0 %v85
  %267 = vmatmul.mubr.bf16.gmra.mrb[0].mxu0 %v84
  %v268 = vpop.f32.mrb[0].mxu0
  %v269 = vadd.f32 %v72, %v268
  %v270 = vpop.f32.mrb[0].mxu0
  %v271 = vpop.f32.mrb[0].mxu0
  %v272 = vadd.f32 %v72, %v271
  %v273 = vpop.f32.mrb[0].mxu0
  %274 = vdwg.mxu0
  %275 = vmatprep.subr.bf16.mxu0 0
  %276 = vmatpush1.bf16.msra.mxu0 %v202
  %277 = vmatprep.subr.bf16.mxu0 0
  %278 = vmatpush1.bf16.msra.mxu0 %v203
  %279 = vmatprep.subr.bf16.mxu0 0
  %280 = vmatpush1.bf16.msra.mxu0 %v204
  %281 = vmatprep.subr.bf16.mxu0 0
  %282 = vmatpush1.bf16.msra.mxu0 %v205
  %283 = vmatprep.subr.bf16.mxu0 0
  %284 = vmatpush1.bf16.msra.mxu0 %v206
  %285 = vmatprep.subr.bf16.mxu0 0
  %286 = vmatpush1.bf16.msra.mxu0 %v207
  %287 = vmatprep.subr.bf16.mxu0 0
  %288 = vmatpush1.bf16.msra.mxu0 %v208
  %289 = vmatprep.subr.bf16.mxu0 0
  %290 = vmatpush1.bf16.msra.mxu0 %v209
  %291 = vmatprep.subr.bf16.mxu0 0
  %292 = vmatpush1.bf16.msra.mxu0 0
  %293 = vmatprep.subr.bf16.mxu0 0
  %294 = vmatpush1.bf16.msra.mxu0 0
  %295 = vmatprep.subr.bf16.mxu0 0
  %296 = vmatpush1.bf16.msra.mxu0 0
  %297 = vmatprep.subr.bf16.mxu0 0
  %298 = vmatpush1.bf16.msra.mxu0 0
  %299 = vmatprep.subr.bf16.mxu0 0
  %300 = vmatpush1.bf16.msra.mxu0 0
  %301 = vmatprep.subr.bf16.mxu0 0
  %302 = vmatpush1.bf16.msra.mxu0 0
  %303 = vmatprep.subr.bf16.mxu0 0
  %304 = vmatpush1.bf16.msra.mxu0 0
  %305 = vmatprep.subr.bf16.mxu0 0
  %306 = vmatpush1.bf16.msra.mxu0 0
  %307 = vmatprep.mubr.bf16.mxu0 0
  %308 = vmatmul.mubr.bf16.gmra.mrb[0].mxu0 %v86
  %v309 = vpop.f32.mrb[0].mxu0
  %v310 = vadd.f32 %v269, %v309
  %v311 = vpop.f32.mrb[0].mxu0
  %v312 = vpop.f32.mrb[0].mxu0
  %v313 = vadd.f32 %v272, %v312
  %v314 = vpop.f32.mrb[0].mxu0
  %315 = vdwg.mxu0
  %v316 = vpack.c.bf16 %v313, %v310
  %v318 = vunpack.c.l.b16 %v316
  %v319 = vunpack.c.h.b16 %v316
  %v320 = vpack.c.b16 %v318, %v318
  %v321 = vpack.c.b16 %v319, %v319
  %324 = vst [vmem:[%s3] sm:$0xf] %v320
  %325 = vst [vmem:[%s3 + $0x4] sm:$0xf] %v321
  // Predicated region
  $region14: #{vivit_forward.4} parent=0 // pred_check
    _
  $region15: #{vivit_forward.4} parent=0 // pred_check_branch
    %327 = sbr.rel (0) target = $region17
  $region16: #{vivit_forward.4} parent=0 // pred_region
    _
  $region17: #{vivit_forward.4} parent=0 // pred_fallthru
    _
  // Predicated region
  $region18: #{vivit_forward.4} parent=0 // pred_check
    _
  $region19: #{vivit_forward.4} parent=0 // pred_check_branch
    %329 = sbr.rel (0) target = $region21
  $region20: #{vivit_forward.4} parent=0 // pred_region
    _
  $region21: #{vivit_forward.4} parent=0 // pred_fallthru
    _

// kernel: vivit_forward.5
$region0: #{vivit_forward.5}
  #allocation0 [shape = 'u32[]', space=smem, size = 0x4, offset = 0x4, fixed_abs, tag = 'smem constant byte address 0x4 - core index']
  #allocation1 [shape = 'u32[144,128]{1,0:T(1,128)}', space=vmem, size = 0x12000, scoped, tag = 'internal scratch']
  #allocation2 [shape = 'f32[4,8,32]{2,1,0:T(8,128)}', space=vmem, size = 0x4000, scoped, tag = 'scratch operand']
  %s0 = inlined_call_operand.vmem [shape: f32[4,8,32], index: 0, kind: input, shape index: {}]
  %s1 = inlined_call_operand.vmem [shape: f32[4,1,8], index: 1, kind: input, shape index: {}]
  %s2 = inlined_call_operand.vmem [shape: bf16[2,32,32], index: 2, kind: input, shape index: {}]
  %s3 = inlined_call_operand.vmem [shape: f32[2,1,32], index: 3, kind: input, shape index: {}]
  %s4 = inlined_call_operand.vmem [shape: bf16[2,32,32], index: 4, kind: input, shape index: {}]
  %s5 = inlined_call_operand.vmem [shape: f32[2,1,32], index: 5, kind: input, shape index: {}]
  %s6 = inlined_call_operand.vmem [shape: bf16[2,32,32], index: 6, kind: input, shape index: {}]
  %s7 = inlined_call_operand.vmem [shape: f32[2,1,32], index: 7, kind: input, shape index: {}]
  %s8 = inlined_call_operand.vmem [shape: bf16[2,32,32], index: 8, kind: input, shape index: {}]
  %s9 = inlined_call_operand.vmem [shape: f32[2,1,32], index: 9, kind: input, shape index: {}]
  %s10 = inlined_call_operand.vmem [shape: f32[2,1,32], index: 10, kind: input, shape index: {}]
  %s11 = inlined_call_operand.vmem [shape: f32[2,1,32], index: 11, kind: input, shape index: {}]
  %s12 = inlined_call_operand.vmem [shape: bf16[2,32,64], index: 12, kind: input, shape index: {}]
  %s13 = inlined_call_operand.vmem [shape: f32[2,1,64], index: 13, kind: input, shape index: {}]
  %s14 = inlined_call_operand.vmem [shape: bf16[2,64,32], index: 14, kind: input, shape index: {}]
  %s15 = inlined_call_operand.vmem [shape: f32[2,1,32], index: 15, kind: input, shape index: {}]
  %s16 = inlined_call_operand.vmem [shape: f32[2,1,32], index: 16, kind: input, shape index: {}]
  %s17 = inlined_call_operand.vmem [shape: f32[2,1,32], index: 17, kind: input, shape index: {}]
  %s18 = inlined_call_operand.vmem [shape: f32[1,32], index: 18, kind: input, shape index: {}]
  %s19 = inlined_call_operand.vmem [shape: f32[1,32], index: 19, kind: input, shape index: {}]
  %s20 = inlined_call_operand.vmem [shape: f32[4,8,32], index: 20, kind: output, shape index: {}]
  %s21 = sld [smem:[#allocation0]]
  $region121: #{vivit_forward.5} parent=0
    _
  %s23 = ssub.s32 1, %s21
  %s24 = scalar_select 0, %s23, %s21
  loop: start=0, step=1, limit=4
  $region2: #{vivit_forward.5} parent=0 // loop_pre_header
    _
  $region3: #{vivit_forward.5} parent=0 // loop_header
    %s26 = sphi 0, %s30
    %p27 = scmp.ge.s32.totalorder %s26, 4
    %s33 = sphi 0, %s45
    %s34 = sphi 0, %s41
    %s35 = sphi 0, %s33
    %s36 = sphi 0, %s34
    %s37 = sphi 0, %s35
    %s38 = sphi 0, %s36
    %s48 = sphi 0, %s50
    %s51 = sphi 0, %s48
    %s52 = sphi 0, %s51
    %s68 = sphi 0, %s52
    %s74 = sphi 0, %s76
    %s77 = sphi 0, %s74
    %s78 = sphi 0, %s77
    %s94 = sphi 0, %s78
    %s100 = sphi 0, %s102
    %s103 = sphi 0, %s100
    %s104 = sphi 0, %s103
    %s120 = sphi 0, %s104
    %s126 = sphi 0, %s128
    %s129 = sphi 0, %s126
    %s130 = sphi 0, %s129
    %s146 = sphi 0, %s130
    %s152 = sphi 0, %s154
    %s155 = sphi 0, %s152
    %s156 = sphi 0, %s155
    %s172 = sphi 0, %s156
    %s178 = sphi 0, %s180
    %s181 = sphi 0, %s178
    %s182 = sphi 0, %s181
    %s198 = sphi 0, %s182
    %s204 = sphi 0, %s206
    %s207 = sphi 0, %s204
    %s208 = sphi 0, %s207
    %s224 = sphi 0, %s208
    %s230 = sphi 0, %s232
    %s233 = sphi 0, %s230
    %s234 = sphi 0, %s233
    %s250 = sphi 0, %s234
    %s256 = sphi 0, %s258
    %s259 = sphi 0, %s256
    %s260 = sphi 0, %s259
    %s276 = sphi 0, %s260
    %s282 = sphi 0, %s284
    %s285 = sphi 0, %s282
    %s286 = sphi 0, %s285
    %s302 = sphi 0, %s286
    %s308 = sphi 0, %s310
    %s311 = sphi 0, %s308
    %s312 = sphi 0, %s311
    %s328 = sphi 0, %s312
    %s334 = sphi 0, %s336
    %s337 = sphi 0, %s334
    %s338 = sphi 0, %s337
    %s354 = sphi 0, %s338
    %s360 = sphi 0, %s362
    %s363 = sphi 0, %s360
    %s364 = sphi 0, %s363
    %s380 = sphi 0, %s364
    %s386 = sphi 0, %s388
    %s389 = sphi 0, %s386
    %s390 = sphi 0, %s389
    %s406 = sphi 0, %s390
    %s412 = sphi 0, %s414
    %s415 = sphi 0, %s412
    %s416 = sphi 0, %s415
    %s432 = sphi 0, %s416
    %s438 = sphi 0, %s440
    %s441 = sphi 0, %s438
    %s442 = sphi 0, %s441
    %s458 = sphi 0, %s442
    %s464 = sphi 0, %s466
    %s467 = sphi 0, %s464
    %s468 = sphi 0, %s467
    %s484 = sphi 0, %s468
    %s490 = sphi 0, %s492
    %s493 = sphi 0, %s490
    %s494 = sphi 0, %s493
    %s510 = sphi 0, %s494
    %s514 = sphi 0, %s514
    %s516 = sphi 0, %s514
    %s517 = sphi 0, %s516
    %s531 = sphi 0, %s517
    %s535 = sphi 0, %s535
    %s537 = sphi 0, %s535
    %s538 = sphi 0, %s537
    %s552 = sphi 0, %s538
    %s558 = sphi 0, %s560
    %s561 = sphi 0, %s558
    %s562 = sphi 0, %s561
    %s578 = sphi 0, %s562
  $region4: #{vivit_forward.5} parent=0 // loop_header_branch
    %29 = sbr.rel (%p27) target = $region8
  $region5: #{vivit_forward.5} parent=0 // loop_body
    %s31 = ssub.s32 %s26, 1
    %s32 = ssub.s32 %s26, 2
    %s39 = sadd.s32 1, %s34
    %p40 = scmp.ge.s32.totalorder %s39, 2
    %s41 = scalar_select %p40, 0, %s39
    %s42 = sadd.s32 1, %s33
    %s43 = scalar_select %p40, %s42, %s33
    %p44 = scmp.ge.s32.totalorder %s43, 1
    %s45 = scalar_select %p44, 0, %s43
    %s46 = ssub.s32 %s33, %s45
    %p47 = scmp.eq.s32.totalorder %s46, 0
    %s49 = sadd.s32 %s48, 1
    %s50 = scalar_select %p47, %s48, %s49
    %p53 = pneg %p47
    %p54 = scmp.eq.s32.totalorder %s26, 1
    %p55 = por %p53, %p54
    %p56 = scmp.ne.s32.totalorder %s48, %s51
    %p57 = scmp.eq.s32.totalorder %s26, 0
    %p58 = por %p56, %p57
    %p59 = scmp.ne.s32.totalorder %s48, %s51
    %p60 = scmp.eq.s32.totalorder %s31, 1
    %p61 = por %p59, %p60
    %p62 = scmp.ne.s32.totalorder %s51, %s52
    %p63 = scmp.eq.s32.totalorder %s31, 0
    %p64 = por %p62, %p63
    %p65 = scmp.ne.s32.totalorder %s51, %s52
    %p66 = scmp.eq.s32.totalorder %s32, 1
    %p67 = por %p65, %p66
    %p69 = scmp.ne.s32.totalorder %s52, %s68
    %p70 = scmp.eq.s32.totalorder %s32, 0
    %p71 = por %p69, %p70
    %s72 = ssub.s32 %s33, %s45
    %p73 = scmp.eq.s32.totalorder %s72, 0
    %s75 = sadd.s32 %s74, 1
    %s76 = scalar_select %p73, %s74, %s75
    %p79 = pneg %p73
    %p80 = scmp.eq.s32.totalorder %s26, 1
    %p81 = por %p79, %p80
    %p82 = scmp.ne.s32.totalorder %s74, %s77
    %p83 = scmp.eq.s32.totalorder %s26, 0
    %p84 = por %p82, %p83
    %p85 = scmp.ne.s32.totalorder %s74, %s77
    %p86 = scmp.eq.s32.totalorder %s31, 1
    %p87 = por %p85, %p86
    %p88 = scmp.ne.s32.totalorder %s77, %s78
    %p89 = scmp.eq.s32.totalorder %s31, 0
    %p90 = por %p88, %p89
    %p91 = scmp.ne.s32.totalorder %s77, %s78
    %p92 = scmp.eq.s32.totalorder %s32, 1
    %p93 = por %p91, %p92
    %p95 = scmp.ne.s32.totalorder %s78, %s94
    %p96 = scmp.eq.s32.totalorder %s32, 0
    %p97 = por %p95, %p96
    %s98 = ssub.s32 %s34, %s41
    %p99 = scmp.eq.s32.totalorder %s98, 0
    %s101 = sadd.s32 %s100, 1
    %s102 = scalar_select %p99, %s100, %s101
    %p105 = pneg %p99
    %p106 = scmp.eq.s32.totalorder %s26, 1
    %p107 = por %p105, %p106
    %p108 = scmp.ne.s32.totalorder %s100, %s103
    %p109 = scmp.eq.s32.totalorder %s26, 0
    %p110 = por %p108, %p109
    %p111 = scmp.ne.s32.totalorder %s100, %s103
    %p112 = scmp.eq.s32.totalorder %s31, 1
    %p113 = por %p111, %p112
    %p114 = scmp.ne.s32.totalorder %s103, %s104
    %p115 = scmp.eq.s32.totalorder %s31, 0
    %p116 = por %p114, %p115
    %p117 = scmp.ne.s32.totalorder %s103, %s104
    %p118 = scmp.eq.s32.totalorder %s32, 1
    %p119 = por %p117, %p118
    %p121 = scmp.ne.s32.totalorder %s104, %s120
    %p122 = scmp.eq.s32.totalorder %s32, 0
    %p123 = por %p121, %p122
    %s124 = ssub.s32 %s34, %s41
    %p125 = scmp.eq.s32.totalorder %s124, 0
    %s127 = sadd.s32 %s126, 1
    %s128 = scalar_select %p125, %s126, %s127
    %p131 = pneg %p125
    %p132 = scmp.eq.s32.totalorder %s26, 1
    %p133 = por %p131, %p132
    %p134 = scmp.ne.s32.totalorder %s126, %s129
    %p135 = scmp.eq.s32.totalorder %s26, 0
    %p136 = por %p134, %p135
    %p137 = scmp.ne.s32.totalorder %s126, %s129
    %p138 = scmp.eq.s32.totalorder %s31, 1
    %p139 = por %p137, %p138
    %p140 = scmp.ne.s32.totalorder %s129, %s130
    %p141 = scmp.eq.s32.totalorder %s31, 0
    %p142 = por %p140, %p141
    %p143 = scmp.ne.s32.totalorder %s129, %s130
    %p144 = scmp.eq.s32.totalorder %s32, 1
    %p145 = por %p143, %p144
    %p147 = scmp.ne.s32.totalorder %s130, %s146
    %p148 = scmp.eq.s32.totalorder %s32, 0
    %p149 = por %p147, %p148
    %s150 = ssub.s32 %s34, %s41
    %p151 = scmp.eq.s32.totalorder %s150, 0
    %s153 = sadd.s32 %s152, 1
    %s154 = scalar_select %p151, %s152, %s153
    %p157 = pneg %p151
    %p158 = scmp.eq.s32.totalorder %s26, 1
    %p159 = por %p157, %p158
    %p160 = scmp.ne.s32.totalorder %s152, %s155
    %p161 = scmp.eq.s32.totalorder %s26, 0
    %p162 = por %p160, %p161
    %p163 = scmp.ne.s32.totalorder %s152, %s155
    %p164 = scmp.eq.s32.totalorder %s31, 1
    %p165 = por %p163, %p164
    %p166 = scmp.ne.s32.totalorder %s155, %s156
    %p167 = scmp.eq.s32.totalorder %s31, 0
    %p168 = por %p166, %p167
    %p169 = scmp.ne.s32.totalorder %s155, %s156
    %p170 = scmp.eq.s32.totalorder %s32, 1
    %p171 = por %p169, %p170
    %p173 = scmp.ne.s32.totalorder %s156, %s172
    %p174 = scmp.eq.s32.totalorder %s32, 0
    %p175 = por %p173, %p174
    %s176 = ssub.s32 %s34, %s41
    %p177 = scmp.eq.s32.totalorder %s176, 0
    %s179 = sadd.s32 %s178, 1
    %s180 = scalar_select %p177, %s178, %s179
    %p183 = pneg %p177
    %p184 = scmp.eq.s32.totalorder %s26, 1
    %p185 = por %p183, %p184
    %p186 = scmp.ne.s32.totalorder %s178, %s181
    %p187 = scmp.eq.s32.totalorder %s26, 0
    %p188 = por %p186, %p187
    %p189 = scmp.ne.s32.totalorder %s178, %s181
    %p190 = scmp.eq.s32.totalorder %s31, 1
    %p191 = por %p189, %p190
    %p192 = scmp.ne.s32.totalorder %s181, %s182
    %p193 = scmp.eq.s32.totalorder %s31, 0
    %p194 = por %p192, %p193
    %p195 = scmp.ne.s32.totalorder %s181, %s182
    %p196 = scmp.eq.s32.totalorder %s32, 1
    %p197 = por %p195, %p196
    %p199 = scmp.ne.s32.totalorder %s182, %s198
    %p200 = scmp.eq.s32.totalorder %s32, 0
    %p201 = por %p199, %p200
    %s202 = ssub.s32 %s34, %s41
    %p203 = scmp.eq.s32.totalorder %s202, 0
    %s205 = sadd.s32 %s204, 1
    %s206 = scalar_select %p203, %s204, %s205
    %p209 = pneg %p203
    %p210 = scmp.eq.s32.totalorder %s26, 1
    %p211 = por %p209, %p210
    %p212 = scmp.ne.s32.totalorder %s204, %s207
    %p213 = scmp.eq.s32.totalorder %s26, 0
    %p214 = por %p212, %p213
    %p215 = scmp.ne.s32.totalorder %s204, %s207
    %p216 = scmp.eq.s32.totalorder %s31, 1
    %p217 = por %p215, %p216
    %p218 = scmp.ne.s32.totalorder %s207, %s208
    %p219 = scmp.eq.s32.totalorder %s31, 0
    %p220 = por %p218, %p219
    %p221 = scmp.ne.s32.totalorder %s207, %s208
    %p222 = scmp.eq.s32.totalorder %s32, 1
    %p223 = por %p221, %p222
    %p225 = scmp.ne.s32.totalorder %s208, %s224
    %p226 = scmp.eq.s32.totalorder %s32, 0
    %p227 = por %p225, %p226
    %s228 = ssub.s32 %s34, %s41
    %p229 = scmp.eq.s32.totalorder %s228, 0
    %s231 = sadd.s32 %s230, 1
    %s232 = scalar_select %p229, %s230, %s231
    %p235 = pneg %p229
    %p236 = scmp.eq.s32.totalorder %s26, 1
    %p237 = por %p235, %p236
    %p238 = scmp.ne.s32.totalorder %s230, %s233
    %p239 = scmp.eq.s32.totalorder %s26, 0
    %p240 = por %p238, %p239
    %p241 = scmp.ne.s32.totalorder %s230, %s233
    %p242 = scmp.eq.s32.totalorder %s31, 1
    %p243 = por %p241, %p242
    %p244 = scmp.ne.s32.totalorder %s233, %s234
    %p245 = scmp.eq.s32.totalorder %s31, 0
    %p246 = por %p244, %p245
    %p247 = scmp.ne.s32.totalorder %s233, %s234
    %p248 = scmp.eq.s32.totalorder %s32, 1
    %p249 = por %p247, %p248
    %p251 = scmp.ne.s32.totalorder %s234, %s250
    %p252 = scmp.eq.s32.totalorder %s32, 0
    %p253 = por %p251, %p252
    %s254 = ssub.s32 %s34, %s41
    %p255 = scmp.eq.s32.totalorder %s254, 0
    %s257 = sadd.s32 %s256, 1
    %s258 = scalar_select %p255, %s256, %s257
    %p261 = pneg %p255
    %p262 = scmp.eq.s32.totalorder %s26, 1
    %p263 = por %p261, %p262
    %p264 = scmp.ne.s32.totalorder %s256, %s259
    %p265 = scmp.eq.s32.totalorder %s26, 0
    %p266 = por %p264, %p265
    %p267 = scmp.ne.s32.totalorder %s256, %s259
    %p268 = scmp.eq.s32.totalorder %s31, 1
    %p269 = por %p267, %p268
    %p270 = scmp.ne.s32.totalorder %s259, %s260
    %p271 = scmp.eq.s32.totalorder %s31, 0
    %p272 = por %p270, %p271
    %p273 = scmp.ne.s32.totalorder %s259, %s260
    %p274 = scmp.eq.s32.totalorder %s32, 1
    %p275 = por %p273, %p274
    %p277 = scmp.ne.s32.totalorder %s260, %s276
    %p278 = scmp.eq.s32.totalorder %s32, 0
    %p279 = por %p277, %p278
    %s280 = ssub.s32 %s34, %s41
    %p281 = scmp.eq.s32.totalorder %s280, 0
    %s283 = sadd.s32 %s282, 1
    %s284 = scalar_select %p281, %s282, %s283
    %p287 = pneg %p281
    %p288 = scmp.eq.s32.totalorder %s26, 1
    %p289 = por %p287, %p288
    %p290 = scmp.ne.s32.totalorder %s282, %s285
    %p291 = scmp.eq.s32.totalorder %s26, 0
    %p292 = por %p290, %p291
    %p293 = scmp.ne.s32.totalorder %s282, %s285
    %p294 = scmp.eq.s32.totalorder %s31, 1
    %p295 = por %p293, %p294
    %p296 = scmp.ne.s32.totalorder %s285, %s286
    %p297 = scmp.eq.s32.totalorder %s31, 0
    %p298 = por %p296, %p297
    %p299 = scmp.ne.s32.totalorder %s285, %s286
    %p300 = scmp.eq.s32.totalorder %s32, 1
    %p301 = por %p299, %p300
    %p303 = scmp.ne.s32.totalorder %s286, %s302
    %p304 = scmp.eq.s32.totalorder %s32, 0
    %p305 = por %p303, %p304
    %s306 = ssub.s32 %s34, %s41
    %p307 = scmp.eq.s32.totalorder %s306, 0
    %s309 = sadd.s32 %s308, 1
    %s310 = scalar_select %p307, %s308, %s309
    %p313 = pneg %p307
    %p314 = scmp.eq.s32.totalorder %s26, 1
    %p315 = por %p313, %p314
    %p316 = scmp.ne.s32.totalorder %s308, %s311
    %p317 = scmp.eq.s32.totalorder %s26, 0
    %p318 = por %p316, %p317
    %p319 = scmp.ne.s32.totalorder %s308, %s311
    %p320 = scmp.eq.s32.totalorder %s31, 1
    %p321 = por %p319, %p320
    %p322 = scmp.ne.s32.totalorder %s311, %s312
    %p323 = scmp.eq.s32.totalorder %s31, 0
    %p324 = por %p322, %p323
    %p325 = scmp.ne.s32.totalorder %s311, %s312
    %p326 = scmp.eq.s32.totalorder %s32, 1
    %p327 = por %p325, %p326
    %p329 = scmp.ne.s32.totalorder %s312, %s328
    %p330 = scmp.eq.s32.totalorder %s32, 0
    %p331 = por %p329, %p330
    %s332 = ssub.s32 %s34, %s41
    %p333 = scmp.eq.s32.totalorder %s332, 0
    %s335 = sadd.s32 %s334, 1
    %s336 = scalar_select %p333, %s334, %s335
    %p339 = pneg %p333
    %p340 = scmp.eq.s32.totalorder %s26, 1
    %p341 = por %p339, %p340
    %p342 = scmp.ne.s32.totalorder %s334, %s337
    %p343 = scmp.eq.s32.totalorder %s26, 0
    %p344 = por %p342, %p343
    %p345 = scmp.ne.s32.totalorder %s334, %s337
    %p346 = scmp.eq.s32.totalorder %s31, 1
    %p347 = por %p345, %p346
    %p348 = scmp.ne.s32.totalorder %s337, %s338
    %p349 = scmp.eq.s32.totalorder %s31, 0
    %p350 = por %p348, %p349
    %p351 = scmp.ne.s32.totalorder %s337, %s338
    %p352 = scmp.eq.s32.totalorder %s32, 1
    %p353 = por %p351, %p352
    %p355 = scmp.ne.s32.totalorder %s338, %s354
    %p356 = scmp.eq.s32.totalorder %s32, 0
    %p357 = por %p355, %p356
    %s358 = ssub.s32 %s34, %s41
    %p359 = scmp.eq.s32.totalorder %s358, 0
    %s361 = sadd.s32 %s360, 1
    %s362 = scalar_select %p359, %s360, %s361
    %p365 = pneg %p359
    %p366 = scmp.eq.s32.totalorder %s26, 1
    %p367 = por %p365, %p366
    %p368 = scmp.ne.s32.totalorder %s360, %s363
    %p369 = scmp.eq.s32.totalorder %s26, 0
    %p370 = por %p368, %p369
    %p371 = scmp.ne.s32.totalorder %s360, %s363
    %p372 = scmp.eq.s32.totalorder %s31, 1
    %p373 = por %p371, %p372
    %p374 = scmp.ne.s32.totalorder %s363, %s364
    %p375 = scmp.eq.s32.totalorder %s31, 0
    %p376 = por %p374, %p375
    %p377 = scmp.ne.s32.totalorder %s363, %s364
    %p378 = scmp.eq.s32.totalorder %s32, 1
    %p379 = por %p377, %p378
    %p381 = scmp.ne.s32.totalorder %s364, %s380
    %p382 = scmp.eq.s32.totalorder %s32, 0
    %p383 = por %p381, %p382
    %s384 = ssub.s32 %s34, %s41
    %p385 = scmp.eq.s32.totalorder %s384, 0
    %s387 = sadd.s32 %s386, 1
    %s388 = scalar_select %p385, %s386, %s387
    %p391 = pneg %p385
    %p392 = scmp.eq.s32.totalorder %s26, 1
    %p393 = por %p391, %p392
    %p394 = scmp.ne.s32.totalorder %s386, %s389
    %p395 = scmp.eq.s32.totalorder %s26, 0
    %p396 = por %p394, %p395
    %p397 = scmp.ne.s32.totalorder %s386, %s389
    %p398 = scmp.eq.s32.totalorder %s31, 1
    %p399 = por %p397, %p398
    %p400 = scmp.ne.s32.totalorder %s389, %s390
    %p401 = scmp.eq.s32.totalorder %s31, 0
    %p402 = por %p400, %p401
    %p403 = scmp.ne.s32.totalorder %s389, %s390
    %p404 = scmp.eq.s32.totalorder %s32, 1
    %p405 = por %p403, %p404
    %p407 = scmp.ne.s32.totalorder %s390, %s406
    %p408 = scmp.eq.s32.totalorder %s32, 0
    %p409 = por %p407, %p408
    %s410 = ssub.s32 %s34, %s41
    %p411 = scmp.eq.s32.totalorder %s410, 0
    %s413 = sadd.s32 %s412, 1
    %s414 = scalar_select %p411, %s412, %s413
    %p417 = pneg %p411
    %p418 = scmp.eq.s32.totalorder %s26, 1
    %p419 = por %p417, %p418
    %p420 = scmp.ne.s32.totalorder %s412, %s415
    %p421 = scmp.eq.s32.totalorder %s26, 0
    %p422 = por %p420, %p421
    %p423 = scmp.ne.s32.totalorder %s412, %s415
    %p424 = scmp.eq.s32.totalorder %s31, 1
    %p425 = por %p423, %p424
    %p426 = scmp.ne.s32.totalorder %s415, %s416
    %p427 = scmp.eq.s32.totalorder %s31, 0
    %p428 = por %p426, %p427
    %p429 = scmp.ne.s32.totalorder %s415, %s416
    %p430 = scmp.eq.s32.totalorder %s32, 1
    %p431 = por %p429, %p430
    %p433 = scmp.ne.s32.totalorder %s416, %s432
    %p434 = scmp.eq.s32.totalorder %s32, 0
    %p435 = por %p433, %p434
    %s436 = ssub.s32 %s34, %s41
    %p437 = scmp.eq.s32.totalorder %s436, 0
    %s439 = sadd.s32 %s438, 1
    %s440 = scalar_select %p437, %s438, %s439
    %p443 = pneg %p437
    %p444 = scmp.eq.s32.totalorder %s26, 1
    %p445 = por %p443, %p444
    %p446 = scmp.ne.s32.totalorder %s438, %s441
    %p447 = scmp.eq.s32.totalorder %s26, 0
    %p448 = por %p446, %p447
    %p449 = scmp.ne.s32.totalorder %s438, %s441
    %p450 = scmp.eq.s32.totalorder %s31, 1
    %p451 = por %p449, %p450
    %p452 = scmp.ne.s32.totalorder %s441, %s442
    %p453 = scmp.eq.s32.totalorder %s31, 0
    %p454 = por %p452, %p453
    %p455 = scmp.ne.s32.totalorder %s441, %s442
    %p456 = scmp.eq.s32.totalorder %s32, 1
    %p457 = por %p455, %p456
    %p459 = scmp.ne.s32.totalorder %s442, %s458
    %p460 = scmp.eq.s32.totalorder %s32, 0
    %p461 = por %p459, %p460
    %s462 = ssub.s32 %s34, %s41
    %p463 = scmp.eq.s32.totalorder %s462, 0
    %s465 = sadd.s32 %s464, 1
    %s466 = scalar_select %p463, %s464, %s465
    %p469 = pneg %p463
    %p470 = scmp.eq.s32.totalorder %s26, 1
    %p471 = por %p469, %p470
    %p472 = scmp.ne.s32.totalorder %s464, %s467
    %p473 = scmp.eq.s32.totalorder %s26, 0
    %p474 = por %p472, %p473
    %p475 = scmp.ne.s32.totalorder %s464, %s467
    %p476 = scmp.eq.s32.totalorder %s31, 1
    %p477 = por %p475, %p476
    %p478 = scmp.ne.s32.totalorder %s467, %s468
    %p479 = scmp.eq.s32.totalorder %s31, 0
    %p480 = por %p478, %p479
    %p481 = scmp.ne.s32.totalorder %s467, %s468
    %p482 = scmp.eq.s32.totalorder %s32, 1
    %p483 = por %p481, %p482
    %p485 = scmp.ne.s32.totalorder %s468, %s484
    %p486 = scmp.eq.s32.totalorder %s32, 0
    %p487 = por %p485, %p486
    %s488 = ssub.s32 %s34, %s41
    %p489 = scmp.eq.s32.totalorder %s488, 0
    %s491 = sadd.s32 %s490, 1
    %s492 = scalar_select %p489, %s490, %s491
    %p495 = pneg %p489
    %p496 = scmp.eq.s32.totalorder %s26, 1
    %p497 = por %p495, %p496
    %p498 = scmp.ne.s32.totalorder %s490, %s493
    %p499 = scmp.eq.s32.totalorder %s26, 0
    %p500 = por %p498, %p499
    %p501 = scmp.ne.s32.totalorder %s490, %s493
    %p502 = scmp.eq.s32.totalorder %s31, 1
    %p503 = por %p501, %p502
    %p504 = scmp.ne.s32.totalorder %s493, %s494
    %p505 = scmp.eq.s32.totalorder %s31, 0
    %p506 = por %p504, %p505
    %p507 = scmp.ne.s32.totalorder %s493, %s494
    %p508 = scmp.eq.s32.totalorder %s32, 1
    %p509 = por %p507, %p508
    %p511 = scmp.ne.s32.totalorder %s494, %s510
    %p512 = scmp.eq.s32.totalorder %s32, 0
    %p513 = por %p511, %p512
    %s515 = sadd.s32 %s514, 1
    %p518 = scmp.eq.s32.totalorder %s26, 1
    %p519 = scmp.ne.s32.totalorder %s514, %s516
    %p520 = scmp.eq.s32.totalorder %s26, 0
    %p521 = por %p519, %p520
    %p522 = scmp.ne.s32.totalorder %s514, %s516
    %p523 = scmp.eq.s32.totalorder %s31, 1
    %p524 = por %p522, %p523
    %p525 = scmp.ne.s32.totalorder %s516, %s517
    %p526 = scmp.eq.s32.totalorder %s31, 0
    %p527 = por %p525, %p526
    %p528 = scmp.ne.s32.totalorder %s516, %s517
    %p529 = scmp.eq.s32.totalorder %s32, 1
    %p530 = por %p528, %p529
    %p532 = scmp.ne.s32.totalorder %s517, %s531
    %p533 = scmp.eq.s32.totalorder %s32, 0
    %p534 = por %p532, %p533
    %s536 = sadd.s32 %s535, 1
    %p539 = scmp.eq.s32.totalorder %s26, 1
    %p540 = scmp.ne.s32.totalorder %s535, %s537
    %p541 = scmp.eq.s32.totalorder %s26, 0
    %p542 = por %p540, %p541
    %p543 = scmp.ne.s32.totalorder %s535, %s537
    %p544 = scmp.eq.s32.totalorder %s31, 1
    %p545 = por %p543, %p544
    %p546 = scmp.ne.s32.totalorder %s537, %s538
    %p547 = scmp.eq.s32.totalorder %s31, 0
    %p548 = por %p546, %p547
    %p549 = scmp.ne.s32.totalorder %s537, %s538
    %p550 = scmp.eq.s32.totalorder %s32, 1
    %p551 = por %p549, %p550
    %p553 = scmp.ne.s32.totalorder %s538, %s552
    %p554 = scmp.eq.s32.totalorder %s32, 0
    %p555 = por %p553, %p554
    %s556 = ssub.s32 %s33, %s45
    %p557 = scmp.eq.s32.totalorder %s556, 0
    %s559 = sadd.s32 %s558, 1
    %s560 = scalar_select %p557, %s558, %s559
    %p563 = pneg %p557
    %p564 = scmp.eq.s32.totalorder %s26, 1
    %p565 = por %p563, %p564
    %p566 = scmp.ne.s32.totalorder %s558, %s561
    %p567 = scmp.eq.s32.totalorder %s26, 0
    %p568 = por %p566, %p567
    %p569 = scmp.ne.s32.totalorder %s558, %s561
    %p570 = scmp.eq.s32.totalorder %s31, 1
    %p571 = por %p569, %p570
    %p572 = scmp.ne.s32.totalorder %s561, %s562
    %p573 = scmp.eq.s32.totalorder %s31, 0
    %p574 = por %p572, %p573
    %p575 = scmp.ne.s32.totalorder %s561, %s562
    %p576 = scmp.eq.s32.totalorder %s32, 1
    %p577 = por %p575, %p576
    %p579 = scmp.ne.s32.totalorder %s562, %s578
    %p580 = scmp.eq.s32.totalorder %s32, 0
    %p581 = por %p579, %p580
    %p582 = scmp.le.s32.totalorder 1, %s26
    %p583 = scmp.lt.s32.totalorder %s26, 3
    %p584 = pnand %p582, %p583
    %p585 = pneg %p584
    // Predicated region
    $region9: #{vivit_forward.5} parent=5 // pred_check
      _
    $region10: #{vivit_forward.5} parent=5 // pred_check_branch
      %587 = sbr.rel (%p584) target = $region12
    $region11: #{vivit_forward.5} parent=5 // pred_region
      %s588 = ssub.s32 %s26, 1
      // Predicated region
      $region13: #{vivit_forward.5} parent=11 // pred_check
        %p589 = pneg %p64
      $region14: #{vivit_forward.5} parent=11 // pred_check_branch
        %591 = sbr.rel (%p589) target = $region16
      $region15: #{vivit_forward.5} parent=11 // pred_region
        %s592 = smul.u32 4, %s35
        %p593 = scmp.lt.s32.totalorder %s592, 3
        %s594 = scalar_select %p593, %s592, 3
        %s595 = smul.addr %s594, 8
        %s596 = scalar_lea.vmem %s0, %s595
        %s597 = smul.u32 4, %s35
      $region16: #{vivit_forward.5} parent=11 // pred_fallthru
        _
      // Predicated region
      $region17: #{vivit_forward.5} parent=11 // pred_check
        %p598 = pneg %p90
      $region18: #{vivit_forward.5} parent=11 // pred_check_branch
        %600 = sbr.rel (%p598) target = $region20
      $region19: #{vivit_forward.5} parent=11 // pred_region
        %s601 = smul.u32 4, %s35
        %p602 = scmp.lt.s32.totalorder %s601, 3
        %s603 = scalar_select %p602, %s601, 3
        %s604 = scalar_lea.vmem %s1, %s603
        %s605 = smul.u32 4, %s35
      $region20: #{vivit_forward.5} parent=11 // pred_fallthru
        _
      // Predicated region
      $region21: #{vivit_forward.5} parent=11 // pred_check
        %p606 = pneg %p527
      $region22: #{vivit_forward.5} parent=11 // pred_check_branch
        %608 = sbr.rel (%p606) target = $region24
      $region23: #{vivit_forward.5} parent=11 // pred_region
        _
      $region24: #{vivit_forward.5} parent=11 // pred_fallthru
        _
      // Predicated region
      $region25: #{vivit_forward.5} parent=11 // pred_check
        %p609 = pneg %p548
      $region26: #{vivit_forward.5} parent=11 // pred_check_branch
        %611 = sbr.rel (%p609) target = $region28
      $region27: #{vivit_forward.5} parent=11 // pred_region
        _
      $region28: #{vivit_forward.5} parent=11 // pred_fallthru
        _
    $region12: #{vivit_forward.5} parent=5 // pred_fallthru
      _
    %p612 = scmp.lt.s32.totalorder %s26, 2
    // Predicated region
    $region29: #{vivit_forward.5} parent=5 // pred_check
      %p613 = pneg %p612
    $region30: #{vivit_forward.5} parent=5 // pred_check_branch
      %615 = sbr.rel (%p613) target = $region32
    $region31: #{vivit_forward.5} parent=5 // pred_region
      // Predicated region
      $region33: #{vivit_forward.5} parent=31 // pred_check
        %p616 = pneg %p110
      $region34: #{vivit_forward.5} parent=31 // pred_check_branch
        %618 = sbr.rel (%p616) target = $region36
      $region35: #{vivit_forward.5} parent=31 // pred_region
        %p619 = scmp.lt.s32.totalorder %s34, 1
        %s620 = scalar_select %p619, %s34, 1
        %s621 = smul.addr %s620, 4
        %s622 = smul.addr %s621, 4
        %s623 = scalar_lea.vmem %s2, %s622
      $region36: #{vivit_forward.5} parent=31 // pred_fallthru
        _
      // Predicated region
      $region37: #{vivit_forward.5} parent=31 // pred_check
        %p624 = pneg %p136
      $region38: #{vivit_forward.5} parent=31 // pred_check_branch
        %626 = sbr.rel (%p624) target = $region40
      $region39: #{vivit_forward.5} parent=31 // pred_region
        %p627 = scmp.lt.s32.totalorder %s34, 1
        %s628 = scalar_select %p627, %s34, 1
        %s629 = scalar_lea.vmem %s3, %s628
      $region40: #{vivit_forward.5} parent=31 // pred_fallthru
        _
      // Predicated region
      $region41: #{vivit_forward.5} parent=31 // pred_check
        %p630 = pneg %p162
      $region42: #{vivit_forward.5} parent=31 // pred_check_branch
        %632 = sbr.rel (%p630) target = $region44
      $region43: #{vivit_forward.5} parent=31 // pred_region
        %p633 = scmp.lt.s32.totalorder %s34, 1
        %s634 = scalar_select %p633, %s34, 1
        %s635 = smul.addr %s634, 4
        %s636 = smul.addr %s635, 4
        %s637 = scalar_lea.vmem %s4, %s636
      $region44: #{vivit_forward.5} parent=31 // pred_fallthru
        _
      // Predicated region
      $region45: #{vivit_forward.5} parent=31 // pred_check
        %p638 = pneg %p188
      $region46: #{vivit_forward.5} parent=31 // pred_check_branch
        %640 = sbr.rel (%p638) target = $region48
      $region47: #{vivit_forward.5} parent=31 // pred_region
        %p641 = scmp.lt.s32.totalorder %s34, 1
        %s642 = scalar_select %p641, %s34, 1
        %s643 = scalar_lea.vmem %s5, %s642
      $region48: #{vivit_forward.5} parent=31 // pred_fallthru
        _
      // Predicated region
      $region49: #{vivit_forward.5} parent=31 // pred_check
        %p644 = pneg %p214
      $region50: #{vivit_forward.5} parent=31 // pred_check_branch
        %646 = sbr.rel (%p644) target = $region52
      $region51: #{vivit_forward.5} parent=31 // pred_region
        %p647 = scmp.lt.s32.totalorder %s34, 1
        %s648 = scalar_select %p647, %s34, 1
        %s649 = smul.addr %s648, 4
        %s650 = smul.addr %s649, 4
        %s651 = scalar_lea.vmem %s6, %s650
      $region52: #{vivit_forward.5} parent=31 // pred_fallthru
        _
      // Predicated region
      $region53: #{vivit_forward.5} parent=31 // pred_check
        %p652 = pneg %p240
      $region54: #{vivit_forward.5} parent=31 // pred_check_branch
        %654 = sbr.rel (%p652) target = $region56
      $region55: #{vivit_forward.5} parent=31 // pred_region
        %p655 = scmp.lt.s32.totalorder %s34, 1
        %s656 = scalar_select %p655, %s34, 1
        %s657 = scalar_lea.vmem %s7, %s656
      $region56: #{vivit_forward.5} parent=31 // pred_fallthru
        _
      // Predicated region
      $region57: #{vivit_forward.5} parent=31 // pred_check
        %p658 = pneg %p266
      $region58: #{vivit_forward.5} parent=31 // pred_check_branch
        %660 = sbr.rel (%p658) target = $region60
      $region59: #{vivit_forward.5} parent=31 // pred_region
        %p661 = scmp.lt.s32.totalorder %s34, 1
        %s662 = scalar_select %p661, %s34, 1
        %s663 = smul.addr %s662, 4
        %s664 = smul.addr %s663, 4
        %s665 = scalar_lea.vmem %s8, %s664
      $region60: #{vivit_forward.5} parent=31 // pred_fallthru
        _
      // Predicated region
      $region61: #{vivit_forward.5} parent=31 // pred_check
        %p666 = pneg %p292
      $region62: #{vivit_forward.5} parent=31 // pred_check_branch
        %668 = sbr.rel (%p666) target = $region64
      $region63: #{vivit_forward.5} parent=31 // pred_region
        %p669 = scmp.lt.s32.totalorder %s34, 1
        %s670 = scalar_select %p669, %s34, 1
        %s671 = scalar_lea.vmem %s9, %s670
      $region64: #{vivit_forward.5} parent=31 // pred_fallthru
        _
      // Predicated region
      $region65: #{vivit_forward.5} parent=31 // pred_check
        %p672 = pneg %p318
      $region66: #{vivit_forward.5} parent=31 // pred_check_branch
        %674 = sbr.rel (%p672) target = $region68
      $region67: #{vivit_forward.5} parent=31 // pred_region
        %p675 = scmp.lt.s32.totalorder %s34, 1
        %s676 = scalar_select %p675, %s34, 1
        %s677 = scalar_lea.vmem %s10, %s676
      $region68: #{vivit_forward.5} parent=31 // pred_fallthru
        _
      // Predicated region
      $region69: #{vivit_forward.5} parent=31 // pred_check
        %p678 = pneg %p344
      $region70: #{vivit_forward.5} parent=31 // pred_check_branch
        %680 = sbr.rel (%p678) target = $region72
      $region71: #{vivit_forward.5} parent=31 // pred_region
        %p681 = scmp.lt.s32.totalorder %s34, 1
        %s682 = scalar_select %p681, %s34, 1
        %s683 = scalar_lea.vmem %s11, %s682
      $region72: #{vivit_forward.5} parent=31 // pred_fallthru
        _
      // Predicated region
      $region73: #{vivit_forward.5} parent=31 // pred_check
        %p684 = pneg %p370
      $region74: #{vivit_forward.5} parent=31 // pred_check_branch
        %686 = sbr.rel (%p684) target = $region76
      $region75: #{vivit_forward.5} parent=31 // pred_region
        %p687 = scmp.lt.s32.totalorder %s34, 1
        %s688 = scalar_select %p687, %s34, 1
        %s689 = smul.addr %s688, 4
        %s690 = smul.addr %s689, 4
        %s691 = scalar_lea.vmem %s12, %s690
      $region76: #{vivit_forward.5} parent=31 // pred_fallthru
        _
      // Predicated region
      $region77: #{vivit_forward.5} parent=31 // pred_check
        %p692 = pneg %p396
      $region78: #{vivit_forward.5} parent=31 // pred_check_branch
        %694 = sbr.rel (%p692) target = $region80
      $region79: #{vivit_forward.5} parent=31 // pred_region
        %p695 = scmp.lt.s32.totalorder %s34, 1
        %s696 = scalar_select %p695, %s34, 1
        %s697 = scalar_lea.vmem %s13, %s696
      $region80: #{vivit_forward.5} parent=31 // pred_fallthru
        _
      // Predicated region
      $region81: #{vivit_forward.5} parent=31 // pred_check
        %p698 = pneg %p422
      $region82: #{vivit_forward.5} parent=31 // pred_check_branch
        %700 = sbr.rel (%p698) target = $region84
      $region83: #{vivit_forward.5} parent=31 // pred_region
        %p701 = scmp.lt.s32.totalorder %s34, 1
        %s702 = scalar_select %p701, %s34, 1
        %s703 = smul.addr %s702, 8
        %s704 = smul.addr %s703, 4
        %s705 = scalar_lea.vmem %s14, %s704
      $region84: #{vivit_forward.5} parent=31 // pred_fallthru
        _
      // Predicated region
      $region85: #{vivit_forward.5} parent=31 // pred_check
        %p706 = pneg %p448
      $region86: #{vivit_forward.5} parent=31 // pred_check_branch
        %708 = sbr.rel (%p706) target = $region88
      $region87: #{vivit_forward.5} parent=31 // pred_region
        %p709 = scmp.lt.s32.totalorder %s34, 1
        %s710 = scalar_select %p709, %s34, 1
        %s711 = scalar_lea.vmem %s15, %s710
      $region88: #{vivit_forward.5} parent=31 // pred_fallthru
        _
      // Predicated region
      $region89: #{vivit_forward.5} parent=31 // pred_check
        %p712 = pneg %p474
      $region90: #{vivit_forward.5} parent=31 // pred_check_branch
        %714 = sbr.rel (%p712) target = $region92
      $region91: #{vivit_forward.5} parent=31 // pred_region
        %p715 = scmp.lt.s32.totalorder %s34, 1
        %s716 = scalar_select %p715, %s34, 1
        %s717 = scalar_lea.vmem %s16, %s716
      $region92: #{vivit_forward.5} parent=31 // pred_fallthru
        _
      // Predicated region
      $region93: #{vivit_forward.5} parent=31 // pred_check
        %p718 = pneg %p500
      $region94: #{vivit_forward.5} parent=31 // pred_check_branch
        %720 = sbr.rel (%p718) target = $region96
      $region95: #{vivit_forward.5} parent=31 // pred_region
        %p721 = scmp.lt.s32.totalorder %s34, 1
        %s722 = scalar_select %p721, %s34, 1
        %s723 = scalar_lea.vmem %s17, %s722
      $region96: #{vivit_forward.5} parent=31 // pred_fallthru
        _
    $region32: #{vivit_forward.5} parent=5 // pred_fallthru
      _
    %p724 = scmp.le.s32.totalorder 1, %s26
    %p725 = scmp.lt.s32.totalorder %s26, 3
    %p726 = pnand %p724, %p725
    %p727 = pneg %p726
    // Predicated region
    $region97: #{vivit_forward.5} parent=5 // pred_check
      _
    $region98: #{vivit_forward.5} parent=5 // pred_check_branch
      %729 = sbr.rel (%p726) target = $region100
    $region99: #{vivit_forward.5} parent=5 // pred_region
      %s730 = ssub.s32 %s26, 1
      %s731 = smul.u32 4, %s35
      %p732 = scmp.lt.s32.totalorder %s731, 3
      %s733 = scalar_select %p732, %s731, 3
      %s734 = smul.addr %s733, 8
      %s735 = scalar_lea.vmem %s0, %s734
      %p736 = pneg %p64
      %p737 = pneg %p61
      %s738 = smul.u32 4, %s35
      %p739 = scmp.lt.s32.totalorder %s738, 3
      %s740 = scalar_select %p739, %s738, 3
      %s741 = scalar_lea.vmem %s1, %s740
      %p742 = pneg %p90
      %p743 = pneg %p87
      %p744 = scmp.lt.s32.totalorder %s36, 1
      %s745 = scalar_select %p744, %s36, 1
      %s746 = smul.addr %s745, 4
      %s747 = smul.addr %s746, 4
      %s748 = scalar_lea.vmem %s2, %s747
      %p749 = pneg %p116
      %p750 = pneg %p113
      %p751 = scmp.lt.s32.totalorder %s36, 1
      %s752 = scalar_select %p751, %s36, 1
      %s753 = scalar_lea.vmem %s3, %s752
      %p754 = pneg %p142
      %p755 = pneg %p139
      %p756 = scmp.lt.s32.totalorder %s36, 1
      %s757 = scalar_select %p756, %s36, 1
      %s758 = smul.addr %s757, 4
      %s759 = smul.addr %s758, 4
      %s760 = scalar_lea.vmem %s4, %s759
      %p761 = pneg %p168
      %p762 = pneg %p165
      %p763 = scmp.lt.s32.totalorder %s36, 1
      %s764 = scalar_select %p763, %s36, 1
      %s765 = scalar_lea.vmem %s5, %s764
      %p766 = pneg %p194
      %p767 = pneg %p191
      %p768 = scmp.lt.s32.totalorder %s36, 1
      %s769 = scalar_select %p768, %s36, 1
      %s770 = smul.addr %s769, 4
      %s771 = smul.addr %s770, 4
      %s772 = scalar_lea.vmem %s6, %s771
      %p773 = pneg %p220
      %p774 = pneg %p217
      %p775 = scmp.lt.s32.totalorder %s36, 1
      %s776 = scalar_select %p775, %s36, 1
      %s777 = scalar_lea.vmem %s7, %s776
      %p778 = pneg %p246
      %p779 = pneg %p243
      %p780 = scmp.lt.s32.totalorder %s36, 1
      %s781 = scalar_select %p780, %s36, 1
      %s782 = smul.addr %s781, 4
      %s783 = smul.addr %s782, 4
      %s784 = scalar_lea.vmem %s8, %s783
      %p785 = pneg %p272
      %p786 = pneg %p269
      %p787 = scmp.lt.s32.totalorder %s36, 1
      %s788 = scalar_select %p787, %s36, 1
      %s789 = scalar_lea.vmem %s9, %s788
      %p790 = pneg %p298
      %p791 = pneg %p295
      %p792 = scmp.lt.s32.totalorder %s36, 1
      %s793 = scalar_select %p792, %s36, 1
      %s794 = scalar_lea.vmem %s10, %s793
      %p795 = pneg %p324
      %p796 = pneg %p321
      %p797 = scmp.lt.s32.totalorder %s36, 1
      %s798 = scalar_select %p797, %s36, 1
      %s799 = scalar_lea.vmem %s11, %s798
      %p800 = pneg %p350
      %p801 = pneg %p347
      %p802 = scmp.lt.s32.totalorder %s36, 1
      %s803 = scalar_select %p802, %s36, 1
      %s804 = smul.addr %s803, 4
      %s805 = smul.addr %s804, 4
      %s806 = scalar_lea.vmem %s12, %s805
      %p807 = pneg %p376
      %p808 = pneg %p373
      %p809 = scmp.lt.s32.totalorder %s36, 1
      %s810 = scalar_select %p809, %s36, 1
      %s811 = scalar_lea.vmem %s13, %s810
      %p812 = pneg %p402
      %p813 = pneg %p399
      %p814 = scmp.lt.s32.totalorder %s36, 1
      %s815 = scalar_select %p814, %s36, 1
      %s816 = smul.addr %s815, 8
      %s817 = smul.addr %s816, 4
      %s818 = scalar_lea.vmem %s14, %s817
      %p819 = pneg %p428
      %p820 = pneg %p425
      %p821 = scmp.lt.s32.totalorder %s36, 1
      %s822 = scalar_select %p821, %s36, 1
      %s823 = scalar_lea.vmem %s15, %s822
      %p824 = pneg %p454
      %p825 = pneg %p451
      %p826 = scmp.lt.s32.totalorder %s36, 1
      %s827 = scalar_select %p826, %s36, 1
      %s828 = scalar_lea.vmem %s16, %s827
      %p829 = pneg %p480
      %p830 = pneg %p477
      %p831 = scmp.lt.s32.totalorder %s36, 1
      %s832 = scalar_select %p831, %s36, 1
      %s833 = scalar_lea.vmem %s17, %s832
      %p834 = pneg %p506
      %p835 = pneg %p503
      %p836 = pneg %p527
      %p837 = pneg %p524
      %p838 = pneg %p548
      %p839 = pneg %p545
      %p840 = pneg %p574
      %p841 = pneg %p571
      %s842 = smul.u32 4, %s35
      %p843 = scmp.lt.s32.totalorder %s842, 3
      %s844 = scalar_select %p843, %s842, 3
      %s845 = smul.addr %s844, 8
      %s846 = scalar_lea.vmem %s20, %s845
      %s847 = smul.u32 4, %s35
      %p848 = scmp.lt.s32.totalorder %s847, 3
      %s849 = scalar_select %p848, %s847, 3
      %s850 = smul.addr %s849, 8
      %s851 = scalar_lea.vmem %s0, %s850
      %s852 = smul.u32 4, %s35
      %s853 = smul.u32 4, %s35
      %p854 = scmp.lt.s32.totalorder %s853, 3
      %s855 = scalar_select %p854, %s853, 3
      %s856 = scalar_lea.vmem %s1, %s855
      %s857 = smul.u32 4, %s35
      %p858 = scmp.lt.s32.totalorder %s36, 1
      %s859 = scalar_select %p858, %s36, 1
      %s860 = smul.addr %s859, 4
      %s861 = smul.addr %s860, 4
      %s862 = scalar_lea.vmem %s2, %s861
      %p863 = scmp.lt.s32.totalorder %s36, 1
      %s864 = scalar_select %p863, %s36, 1
      %s865 = scalar_lea.vmem %s3, %s864
      %p866 = scmp.lt.s32.totalorder %s36, 1
      %s867 = scalar_select %p866, %s36, 1
      %s868 = smul.addr %s867, 4
      %s869 = smul.addr %s868, 4
      %s870 = scalar_lea.vmem %s4, %s869
      %p871 = scmp.lt.s32.totalorder %s36, 1
      %s872 = scalar_select %p871, %s36, 1
      %s873 = scalar_lea.vmem %s5, %s872
      %p874 = scmp.lt.s32.totalorder %s36, 1
      %s875 = scalar_select %p874, %s36, 1
      %s876 = smul.addr %s875, 4
      %s877 = smul.addr %s876, 4
      %s878 = scalar_lea.vmem %s6, %s877
      %p879 = scmp.lt.s32.totalorder %s36, 1
      %s880 = scalar_select %p879, %s36, 1
      %s881 = scalar_lea.vmem %s7, %s880
      %p882 = scmp.lt.s32.totalorder %s36, 1
      %s883 = scalar_select %p882, %s36, 1
      %s884 = smul.addr %s883, 4
      %s885 = smul.addr %s884, 4
      %s886 = scalar_lea.vmem %s8, %s885
      %p887 = scmp.lt.s32.totalorder %s36, 1
      %s888 = scalar_select %p887, %s36, 1
      %s889 = scalar_lea.vmem %s9, %s888
      %p890 = scmp.lt.s32.totalorder %s36, 1
      %s891 = scalar_select %p890, %s36, 1
      %s892 = scalar_lea.vmem %s10, %s891
      %p893 = scmp.lt.s32.totalorder %s36, 1
      %s894 = scalar_select %p893, %s36, 1
      %s895 = scalar_lea.vmem %s11, %s894
      %p896 = scmp.lt.s32.totalorder %s36, 1
      %s897 = scalar_select %p896, %s36, 1
      %s898 = smul.addr %s897, 4
      %s899 = smul.addr %s898, 4
      %s900 = scalar_lea.vmem %s12, %s899
      %p901 = scmp.lt.s32.totalorder %s36, 1
      %s902 = scalar_select %p901, %s36, 1
      %s903 = scalar_lea.vmem %s13, %s902
      %p904 = scmp.lt.s32.totalorder %s36, 1
      %s905 = scalar_select %p904, %s36, 1
      %s906 = smul.addr %s905, 8
      %s907 = smul.addr %s906, 4
      %s908 = scalar_lea.vmem %s14, %s907
      %p909 = scmp.lt.s32.totalorder %s36, 1
      %s910 = scalar_select %p909, %s36, 1
      %s911 = scalar_lea.vmem %s15, %s910
      %p912 = scmp.lt.s32.totalorder %s36, 1
      %s913 = scalar_select %p912, %s36, 1
      %s914 = scalar_lea.vmem %s16, %s913
      %p915 = scmp.lt.s32.totalorder %s36, 1
      %s916 = scalar_select %p915, %s36, 1
      %s917 = scalar_lea.vmem %s17, %s916
      %s918 = smul.u32 4, %s35
      %p919 = scmp.lt.s32.totalorder %s918, 3
      %s920 = scalar_select %p919, %s918, 3
      %s921 = smul.addr %s920, 8
      %s922 = scalar_lea.vmem %s20, %s921
      %s923 = smul.u32 4, %s35
      %p925 = scmp.eq.s32.totalorder %s36, 0
      // Predicated region
      $region101: #{vivit_forward.5} parent=99 // pred_check
        %p926 = pneg %p925
      $region102: #{vivit_forward.5} parent=99 // pred_check_branch
        %928 = sbr.rel (%p926) target = $region104
      $region103: #{vivit_forward.5} parent=99 // pred_region
        %v929 = vld [vmem:[%s851] sm:$0xff]
        %v930 = vld [vmem:[%s851 + $0x8] sm:$0xff]
        %v931 = vld [vmem:[%s851 + $0x10] sm:$0xff]
        %v932 = vld [vmem:[%s851 + $0x18] sm:$0xff]
        %vm933 = vcmask 261120
        %934 = vst.msk [vmem:[#allocation2] sm:$0xff] %vm933, %v929
        %935 = vst.msk [vmem:[#allocation2 + $0x8] sm:$0xff] %vm933, %v930
        %936 = vst.msk [vmem:[#allocation2 + $0x10] sm:$0xff] %vm933, %v931
        %937 = vst.msk [vmem:[#allocation2 + $0x18] sm:$0xff] %vm933, %v932
      $region104: #{vivit_forward.5} parent=99 // pred_fallthru
        _
      %v938 = vld [vmem:[#allocation2] sm:$0xff]
      %v939 = vld [vmem:[#allocation2 + $0x8] sm:$0xff]
      %v940 = vld [vmem:[#allocation2 + $0x10] sm:$0xff]
      %v941 = vld [vmem:[#allocation2 + $0x18] sm:$0xff]
      %v942 = vpack.c.bf16 %v939, %v938
      %v943 = vpack.c.bf16 %v941, %v940
      %v944 = vld [vmem:[%s856] sm:$0x1]
      %v945 = vld [vmem:[%s856 + $0x1] sm:$0x1]
      %v946 = vld [vmem:[%s856 + $0x2] sm:$0x1]
      %v947 = vld [vmem:[%s856 + $0x3] sm:$0x1]
      %v948 = vld [vmem:[%s862] sm:$0xf]
      %v949 = vld [vmem:[%s862 + $0x4] sm:$0xf]
      %v950 = vld [vmem:[%s862 + $0x8] sm:$0xf]
      %v951 = vld [vmem:[%s862 + $0xc] sm:$0xf]
      %v952 = vld [vmem:[%s865] sm:$0x1]
      %v954 = vlaneseq
      %v955 = vshrl.u32 %v954, 7
      %v956 = vsub.s32 0, %v955
      %v957 = vrot.slane %v952, %v956
      %v963 = vunpack.c.l.b16 %v948
      %v964 = vunpack.c.l.b16 %v949
      %v965 = vunpack.c.l.b16 %v950
      %v966 = vunpack.c.l.b16 %v951
      %v967 = vpack.c.b16 %v964, %v963
      %v968 = vpack.c.b16 %v966, %v965
      %vm971 = vcmask 261120
      %v973 = vsel %vm971, %v942, 0
      %v976 = vsel %vm971, %v943, 0
      %978 = vmatprep.subr.bf16.mxu0 0
      %979 = vmatpush1.bf16.msra.mxu0 %v967
      %980 = vmatprep.subr.bf16.mxu0 0
      %981 = vmatpush1.bf16.msra.mxu0 %v968
      %982 = vmatprep.subr.bf16.mxu0 0
      %983 = vmatpush1.bf16.msra.mxu0 0
      %984 = vmatprep.subr.bf16.mxu0 0
      %985 = vmatpush1.bf16.msra.mxu0 0
      %986 = vmatprep.subr.bf16.mxu0 0
      %987 = vmatpush1.bf16.msra.mxu0 0
      %988 = vmatprep.subr.bf16.mxu0 0
      %989 = vmatpush1.bf16.msra.mxu0 0
      %990 = vmatprep.subr.bf16.mxu0 0
      %991 = vmatpush1.bf16.msra.mxu0 0
      %992 = vmatprep.subr.bf16.mxu0 0
      %993 = vmatpush1.bf16.msra.mxu0 0
      %994 = vmatprep.subr.bf16.mxu0 0
      %995 = vmatpush1.bf16.msra.mxu0 0
      %996 = vmatprep.subr.bf16.mxu0 0
      %997 = vmatpush1.bf16.msra.mxu0 0
      %998 = vmatprep.subr.bf16.mxu0 0
      %999 = vmatpush1.bf16.msra.mxu0 0
      %1000 = vmatprep.subr.bf16.mxu0 0
      %1001 = vmatpush1.bf16.msra.mxu0 0
      %1002 = vmatprep.subr.bf16.mxu0 0
      %1003 = vmatpush1.bf16.msra.mxu0 0
      %1004 = vmatprep.subr.bf16.mxu0 0
      %1005 = vmatpush1.bf16.msra.mxu0 0
      %1006 = vmatprep.subr.bf16.mxu0 0
      %1007 = vmatpush1.bf16.msra.mxu0 0
      %1008 = vmatprep.subr.bf16.mxu0 0
      %1009 = vmatpush1.bf16.msra.mxu0 0
      %1010 = vmatprep.mubr.bf16.mxu0 0
      %1011 = vmatmul.mubr.bf16.gmra.mrb[0].mxu0 %v973
      %v1012 = vpop.f32.mrb[0].mxu0
      %v1013 = vadd.f32 %v957, %v1012
      %v1014 = vpop.f32.mrb[0].mxu0
      %v1015 = vpop.f32.mrb[0].mxu0
      %v1016 = vadd.f32 %v957, %v1015
      %v1017 = vpop.f32.mrb[0].mxu0
      %1018 = vmatprep.mubr.bf16.mxu0 0
      %1019 = vmatmul.mubr.bf16.gmra.mrb[0].mxu0 %v976
      %v1020 = vpop.f32.mrb[0].mxu0
      %v1021 = vadd.f32 %v957, %v1020
      %v1022 = vpop.f32.mrb[0].mxu0
      %v1023 = vpop.f32.mrb[0].mxu0
      %v1024 = vadd.f32 %v957, %v1023
      %v1025 = vpop.f32.mrb[0].mxu0
      %1026 = vdwg.mxu0
      %v1027 = vld [vmem:[%s870] sm:$0xf]
      %v1028 = vld [vmem:[%s870 + $0x4] sm:$0xf]
      %v1029 = vld [vmem:[%s870 + $0x8] sm:$0xf]
      %v1030 = vld [vmem:[%s870 + $0xc] sm:$0xf]
      %v1031 = vld [vmem:[%s873] sm:$0x1]
      %v1033 = vlaneseq
      %v1034 = vshrl.u32 %v1033, 7
      %v1035 = vsub.s32 0, %v1034
      %v1036 = vrot.slane %v1031, %v1035
      %v1042 = vunpack.c.l.b16 %v1027
      %v1043 = vunpack.c.l.b16 %v1028
      %v1044 = vunpack.c.l.b16 %v1029
      %v1045 = vunpack.c.l.b16 %v1030
      %v1046 = vpack.c.b16 %v1043, %v1042
      %v1047 = vpack.c.b16 %v1045, %v1044
      %1050 = vmatprep.subr.bf16.mxu0 0
      %1051 = vmatpush1.bf16.msra.mxu0 %v1046
      %1052 = vmatprep.subr.bf16.mxu0 0
      %1053 = vmatpush1.bf16.msra.mxu0 %v1047
      %1054 = vmatprep.subr.bf16.mxu0 0
      %1055 = vmatpush1.bf16.msra.mxu0 0
      %1056 = vmatprep.subr.bf16.mxu0 0
      %1057 = vmatpush1.bf16.msra.mxu0 0
      %1058 = vmatprep.subr.bf16.mxu0 0
      %1059 = vmatpush1.bf16.msra.mxu0 0
      %1060 = vmatprep.subr.bf16.mxu0 0
      %1061 = vmatpush1.bf16.msra.mxu0 0
      %1062 = vmatprep.subr.bf16.mxu0 0
      %1063 = vmatpush1.bf16.msra.mxu0 0
      %1064 = vmatprep.subr.bf16.mxu0 0
      %1065 = vmatpush1.bf16.msra.mxu0 0
      %1066 = vmatprep.subr.bf16.mxu0 0
      %1067 = vmatpush1.bf16.msra.mxu0 0
      %1068 = vmatprep.subr.bf16.mxu0 0
      %1069 = vmatpush1.bf16.msra.mxu0 0
      %1070 = vmatprep.subr.bf16.mxu0 0
      %1071 = vmatpush1.bf16.msra.mxu0 0
      %1072 = vmatprep.subr.bf16.mxu0 0
      %1073 = vmatpush1.bf16.msra.mxu0 0
      %1074 = vmatprep.subr.bf16.mxu0 0
      %1075 = vmatpush1.bf16.msra.mxu0 0
      %1076 = vmatprep.subr.bf16.mxu0 0
      %1077 = vmatpush1.bf16.msra.mxu0 0
      %1078 = vmatprep.subr.bf16.mxu0 0
      %1079 = vmatpush1.bf16.msra.mxu0 0
      %1080 = vmatprep.subr.bf16.mxu0 0
      %1081 = vmatpush1.bf16.msra.mxu0 0
      %1082 = vmatprep.mubr.bf16.mxu0 0
      %1083 = vmatmul.mubr.bf16.gmra.mrb[0].mxu0 %v973
      %v1084 = vpop.f32.mrb[0].mxu0
      %v1085 = vadd.f32 %v1036, %v1084
      %v1086 = vpop.f32.mrb[0].mxu0
      %v1087 = vpop.f32.mrb[0].mxu0
      %v1088 = vadd.f32 %v1036, %v1087
      %v1089 = vpop.f32.mrb[0].mxu0
      %1090 = vmatprep.mubr.bf16.mxu0 0
      %1091 = vmatmul.mubr.bf16.gmra.mrb[0].mxu0 %v976
      %v1092 = vpop.f32.mrb[0].mxu0
      %v1093 = vadd.f32 %v1036, %v1092
      %v1094 = vpop.f32.mrb[0].mxu0
      %v1095 = vpop.f32.mrb[0].mxu0
      %v1096 = vadd.f32 %v1036, %v1095
      %v1097 = vpop.f32.mrb[0].mxu0
      %1098 = vdwg.mxu0
      %v1099 = vld [vmem:[%s878] sm:$0xf]
      %v1100 = vld [vmem:[%s878 + $0x4] sm:$0xf]
      %v1101 = vld [vmem:[%s878 + $0x8] sm:$0xf]
      %v1102 = vld [vmem:[%s878 + $0xc] sm:$0xf]
      %v1103 = vld [vmem:[%s881] sm:$0x1]
      %v1105 = vlaneseq
      %v1106 = vshrl.u32 %v1105, 7
      %v1107 = vsub.s32 0, %v1106
      %v1108 = vrot.slane %v1103, %v1107
      %v1114 = vunpack.c.l.b16 %v1099
      %v1115 = vunpack.c.l.b16 %v1100
      %v1116 = vunpack.c.l.b16 %v1101
      %v1117 = vunpack.c.l.b16 %v1102
      %v1118 = vpack.c.b16 %v1115, %v1114
      %v1119 = vpack.c.b16 %v1117, %v1116
      %1122 = vmatprep.subr.bf16.mxu0 0
      %1123 = vmatpush1.bf16.msra.mxu0 %v1118
      %1124 = vmatprep.subr.bf16.mxu0 0
      %1125 = vmatpush1.bf16.msra.mxu0 %v1119
      %1126 = vmatprep.subr.bf16.mxu0 0
      %1127 = vmatpush1.bf16.msra.mxu0 0
      %1128 = vmatprep.subr.bf16.mxu0 0
      %1129 = vmatpush1.bf16.msra.mxu0 0
      %1130 = vmatprep.subr.bf16.mxu0 0
      %1131 = vmatpush1.bf16.msra.mxu0 0
      %1132 = vmatprep.subr.bf16.mxu0 0
      %1133 = vmatpush1.bf16.msra.mxu0 0
      %1134 = vmatprep.subr.bf16.mxu0 0
      %1135 = vmatpush1.bf16.msra.mxu0 0
      %1136 = vmatprep.subr.bf16.mxu0 0
      %1137 = vmatpush1.bf16.msra.mxu0 0
      %1138 = vmatprep.subr.bf16.mxu0 0
      %1139 = vmatpush1.bf16.msra.mxu0 0
      %1140 = vmatprep.subr.bf16.mxu0 0
      %1141 = vmatpush1.bf16.msra.mxu0 0
      %1142 = vmatprep.subr.bf16.mxu0 0
      %1143 = vmatpush1.bf16.msra.mxu0 0
      %1144 = vmatprep.subr.bf16.mxu0 0
      %1145 = vmatpush1.bf16.msra.mxu0 0
      %1146 = vmatprep.subr.bf16.mxu0 0
      %1147 = vmatpush1.bf16.msra.mxu0 0
      %1148 = vmatprep.subr.bf16.mxu0 0
      %1149 = vmatpush1.bf16.msra.mxu0 0
      %1150 = vmatprep.subr.bf16.mxu0 0
      %1151 = vmatpush1.bf16.msra.mxu0 0
      %1152 = vmatprep.subr.bf16.mxu0 0
      %1153 = vmatpush1.bf16.msra.mxu0 0
      %1154 = vmatprep.mubr.bf16.mxu0 0
      %1155 = vmatmul.mubr.bf16.gmra.mrb[0].mxu0 %v973
      %v1156 = vpop.f32.mrb[0].mxu0
      %v1157 = vadd.f32 %v1108, %v1156
      %v1158 = vpop.f32.mrb[0].mxu0
      %v1159 = vpop.f32.mrb[0].mxu0
      %v1160 = vadd.f32 %v1108, %v1159
      %v1161 = vpop.f32.mrb[0].mxu0
      %1162 = vmatprep.mubr.bf16.mxu0 0
      %1163 = vmatmul.mubr.bf16.gmra.mrb[0].mxu0 %v976
      %v1164 = vpop.f32.mrb[0].mxu0
      %v1165 = vadd.f32 %v1108, %v1164
      %v1166 = vpop.f32.mrb[0].mxu0
      %v1167 = vpop.f32.mrb[0].mxu0
      %v1168 = vadd.f32 %v1108, %v1167
      %v1169 = vpop.f32.mrb[0].mxu0
      %1170 = vdwg.mxu0
      %v1171 = vmul.f32 %v1013, 0.35355338
      %v1172 = vmul.f32 %v1016, 0.35355338
      %v1173 = vmul.f32 %v1021, 0.35355338
      %v1174 = vmul.f32 %v1024, 0.35355338
      %v1175 = vpack.c.bf16 %v1171, %v1171
      %v1176 = vpack.c.bf16 %v1172, %v1172
      %v1177 = vpack.c.bf16 %v1173, %v1173
      %v1178 = vpack.c.bf16 %v1174, %v1174
      %v1179 = vpack.c.bf16 %v1085, %v1085
      %v1180 = vpack.c.bf16 %v1088, %v1088
      %v1181 = vpack.c.bf16 %v1093, %v1093
      %v1182 = vpack.c.bf16 %v1096, %v1096
      %v1183 = vpack.c.bf16 %v1157, %v1157
      %v1184 = vpack.c.bf16 %v1160, %v1160
      %v1185 = vpack.c.bf16 %v1165, %v1165
      %v1186 = vpack.c.bf16 %v1168, %v1168
      %v1191 = vlaneseq
      %v1192 = vshrl.u32 %v1191, 7
      %v1193 = vsub.s32 0, %v1192
      %v1194 = vrot.slane %v944, %v1193
      %v1195 = vlaneseq
      %v1196 = vshrl.u32 %v1195, 7
      %v1197 = vsub.s32 0, %v1196
      %v1198 = vrot.slane %v945, %v1197
      %v1199 = vlaneseq
      %v1200 = vshrl.u32 %v1199, 7
      %v1201 = vsub.s32 0, %v1200
      %v1202 = vrot.slane %v946, %v1201
      %v1203 = vlaneseq
      %v1204 = vshrl.u32 %v1203, 7
      %v1205 = vsub.s32 0, %v1204
      %v1206 = vrot.slane %v947, %v1205
      %vm1211 = vcmask 64512
      %v1213 = vsel %vm1211, %v1175, 0
      %v1216 = vsel %vm1211, %v1179, 0
      %1218 = vmatprep.subr.bf16.mxu0 0
      %1219 = vmatpush1.bf16.xpose.msra.mxu0 %v1216
      %1220 = vmatprep.subr.bf16.mxu0 0
      %1221 = vmatpush1.bf16.xpose.msra.mxu0 0
      %1222 = vmatprep.subr.bf16.mxu0 0
      %1223 = vmatpush1.bf16.xpose.msra.mxu0 0
      %1224 = vmatprep.subr.bf16.mxu0 0
      %1225 = vmatpush1.bf16.xpose.msra.mxu0 0
      %1226 = vmatprep.subr.bf16.mxu0 0
      %1227 = vmatpush1.bf16.xpose.msra.mxu0 0
      %1228 = vmatprep.subr.bf16.mxu0 0
      %1229 = vmatpush1.bf16.xpose.msra.mxu0 0
      %1230 = vmatprep.subr.bf16.mxu0 0
      %1231 = vmatpush1.bf16.xpose.msra.mxu0 0
      %1232 = vmatprep.subr.bf16.mxu0 0
      %1233 = vmatpush1.bf16.xpose.msra.mxu0 0
      %1234 = vmatprep.subr.bf16.mxu0 0
      %1235 = vmatpush1.bf16.xpose.msra.mxu0 0
      %1236 = vmatprep.subr.bf16.mxu0 0
      %1237 = vmatpush1.bf16.xpose.msra.mxu0 0
      %1238 = vmatprep.subr.bf16.mxu0 0
      %1239 = vmatpush1.bf16.xpose.msra.mxu0 0
      %1240 = vmatprep.subr.bf16.mxu0 0
      %1241 = vmatpush1.bf16.xpose.msra.mxu0 0
      %1242 = vmatprep.subr.bf16.mxu0 0
      %1243 = vmatpush1.bf16.xpose.msra.mxu0 0
      %1244 = vmatprep.subr.bf16.mxu0 0
      %1245 = vmatpush1.bf16.xpose.msra.mxu0 0
      %1246 = vmatprep.subr.bf16.mxu0 0
      %1247 = vmatpush1.bf16.xpose.msra.mxu0 0
      %1248 = vmatprep.subr.bf16.mxu0 0
      %1249 = vmatpush1.bf16.xpose.msra.mxu0 0
      %1250 = vmatprep.mubr.bf16.mxu0 0
      %1251 = vmatmul.mubr.bf16.gmra.mrb[0].mxu0 %v1213
      %v1252 = vpop.f32.mrb[0].mxu0
      %v1253 = vadd.f32 %v1194, %v1252
      %v1254 = vpop.f32.mrb[0].mxu0
      %v1255 = vpop.f32.mrb[0].mxu0
      %v1256 = vpop.f32.mrb[0].mxu0
      %1257 = vdwg.mxu0
      %v1259 = vsel %vm1211, %v1176, 0
      %v1262 = vsel %vm1211, %v1180, 0
      %1264 = vmatprep.subr.bf16.mxu0 0
      %1265 = vmatpush1.bf16.xpose.msra.mxu0 %v1262
      %1266 = vmatprep.subr.bf16.mxu0 0
      %1267 = vmatpush1.bf16.xpose.msra.mxu0 0
      %1268 = vmatprep.subr.bf16.mxu0 0
      %1269 = vmatpush1.bf16.xpose.msra.mxu0 0
      %1270 = vmatprep.subr.bf16.mxu0 0
      %1271 = vmatpush1.bf16.xpose.msra.mxu0 0
      %1272 = vmatprep.subr.bf16.mxu0 0
      %1273 = vmatpush1.bf16.xpose.msra.mxu0 0
      %1274 = vmatprep.subr.bf16.mxu0 0
      %1275 = vmatpush1.bf16.xpose.msra.mxu0 0
      %1276 = vmatprep.subr.bf16.mxu0 0
      %1277 = vmatpush1.bf16.xpose.msra.mxu0 0
      %1278 = vmatprep.subr.bf16.mxu0 0
      %1279 = vmatpush1.bf16.xpose.msra.mxu0 0
      %1280 = vmatprep.subr.bf16.mxu0 0
      %1281 = vmatpush1.bf16.xpose.msra.mxu0 0
      %1282 = vmatprep.subr.bf16.mxu0 0
      %1283 = vmatpush1.bf16.xpose.msra.mxu0 0
      %1284 = vmatprep.subr.bf16.mxu0 0
      %1285 = vmatpush1.bf16.xpose.msra.mxu0 0
      %1286 = vmatprep.subr.bf16.mxu0 0
      %1287 = vmatpush1.bf16.xpose.msra.mxu0 0
      %1288 = vmatprep.subr.bf16.mxu0 0
      %1289 = vmatpush1.bf16.xpose.msra.mxu0 0
      %1290 = vmatprep.subr.bf16.mxu0 0
      %1291 = vmatpush1.bf16.xpose.msra.mxu0 0
      %1292 = vmatprep.subr.bf16.mxu0 0
      %1293 = vmatpush1.bf16.xpose.msra.mxu0 0
      %1294 = vmatprep.subr.bf16.mxu0 0
      %1295 = vmatpush1.bf16.xpose.msra.mxu0 0
      %1296 = vmatprep.mubr.bf16.mxu0 0
      %1297 = vmatmul.mubr.bf16.gmra.mrb[0].mxu0 %v1259
      %v1298 = vpop.f32.mrb[0].mxu0
      %v1299 = vadd.f32 %v1198, %v1298
      %v1300 = vpop.f32.mrb[0].mxu0
      %v1301 = vpop.f32.mrb[0].mxu0
      %v1302 = vpop.f32.mrb[0].mxu0
      %1303 = vdwg.mxu0
      %v1305 = vsel %vm1211, %v1177, 0
      %v1308 = vsel %vm1211, %v1181, 0
      %1310 = vmatprep.subr.bf16.mxu0 0
      %1311 = vmatpush1.bf16.xpose.msra.mxu0 %v1308
      %1312 = vmatprep.subr.bf16.mxu0 0
      %1313 = vmatpush1.bf16.xpose.msra.mxu0 0
      %1314 = vmatprep.subr.bf16.mxu0 0
      %1315 = vmatpush1.bf16.xpose.msra.mxu0 0
      %1316 = vmatprep.subr.bf16.mxu0 0
      %1317 = vmatpush1.bf16.xpose.msra.mxu0 0
      %1318 = vmatprep.subr.bf16.mxu0 0
      %1319 = vmatpush1.bf16.xpose.msra.mxu0 0
      %1320 = vmatprep.subr.bf16.mxu0 0
      %1321 = vmatpush1.bf16.xpose.msra.mxu0 0
      %1322 = vmatprep.subr.bf16.mxu0 0
      %1323 = vmatpush1.bf16.xpose.msra.mxu0 0
      %1324 = vmatprep.subr.bf16.mxu0 0
      %1325 = vmatpush1.bf16.xpose.msra.mxu0 0
      %1326 = vmatprep.subr.bf16.mxu0 0
      %1327 = vmatpush1.bf16.xpose.msra.mxu0 0
      %1328 = vmatprep.subr.bf16.mxu0 0
      %1329 = vmatpush1.bf16.xpose.msra.mxu0 0
      %1330 = vmatprep.subr.bf16.mxu0 0
      %1331 = vmatpush1.bf16.xpose.msra.mxu0 0
      %1332 = vmatprep.subr.bf16.mxu0 0
      %1333 = vmatpush1.bf16.xpose.msra.mxu0 0
      %1334 = vmatprep.subr.bf16.mxu0 0
      %1335 = vmatpush1.bf16.xpose.msra.mxu0 0
      %1336 = vmatprep.subr.bf16.mxu0 0
      %1337 = vmatpush1.bf16.xpose.msra.mxu0 0
      %1338 = vmatprep.subr.bf16.mxu0 0
      %1339 = vmatpush1.bf16.xpose.msra.mxu0 0
      %1340 = vmatprep.subr.bf16.mxu0 0
      %1341 = vmatpush1.bf16.xpose.msra.mxu0 0
      %1342 = vmatprep.mubr.bf16.mxu0 0
      %1343 = vmatmul.mubr.bf16.gmra.mrb[0].mxu0 %v1305
      %v1344 = vpop.f32.mrb[0].mxu0
      %v1345 = vadd.f32 %v1202, %v1344
      %v1346 = vpop.f32.mrb[0].mxu0
      %v1347 = vpop.f32.mrb[0].mxu0
      %v1348 = vpop.f32.mrb[0].mxu0
      %1349 = vdwg.mxu0
      %v1351 = vsel %vm1211, %v1178, 0
      %v1354 = vsel %vm1211, %v1182, 0
      %1356 = vmatprep.subr.bf16.mxu0 0
      %1357 = vmatpush1.bf16.xpose.msra.mxu0 %v1354
      %1358 = vmatprep.subr.bf16.mxu0 0
      %1359 = vmatpush1.bf16.xpose.msra.mxu0 0
      %1360 = vmatprep.subr.bf16.mxu0 0
      %1361 = vmatpush1.bf16.xpose.msra.mxu0 0
      %1362 = vmatprep.subr.bf16.mxu0 0
      %1363 = vmatpush1.bf16.xpose.msra.mxu0 0
      %1364 = vmatprep.subr.bf16.mxu0 0
      %1365 = vmatpush1.bf16.xpose.msra.mxu0 0
      %1366 = vmatprep.subr.bf16.mxu0 0
      %1367 = vmatpush1.bf16.xpose.msra.mxu0 0
      %1368 = vmatprep.subr.bf16.mxu0 0
      %1369 = vmatpush1.bf16.xpose.msra.mxu0 0
      %1370 = vmatprep.subr.bf16.mxu0 0
      %1371 = vmatpush1.bf16.xpose.msra.mxu0 0
      %1372 = vmatprep.subr.bf16.mxu0 0
      %1373 = vmatpush1.bf16.xpose.msra.mxu0 0
      %1374 = vmatprep.subr.bf16.mxu0 0
      %1375 = vmatpush1.bf16.xpose.msra.mxu0 0
      %1376 = vmatprep.subr.bf16.mxu0 0
      %1377 = vmatpush1.bf16.xpose.msra.mxu0 0
      %1378 = vmatprep.subr.bf16.mxu0 0
      %1379 = vmatpush1.bf16.xpose.msra.mxu0 0
      %1380 = vmatprep.subr.bf16.mxu0 0
      %1381 = vmatpush1.bf16.xpose.msra.mxu0 0
      %1382 = vmatprep.subr.bf16.mxu0 0
      %1383 = vmatpush1.bf16.xpose.msra.mxu0 0
      %1384 = vmatprep.subr.bf16.mxu0 0
      %1385 = vmatpush1.bf16.xpose.msra.mxu0 0
      %1386 = vmatprep.subr.bf16.mxu0 0
      %1387 = vmatpush1.bf16.xpose.msra.mxu0 0
      %1388 = vmatprep.mubr.bf16.mxu0 0
      %1389 = vmatmul.mubr.bf16.gmra.mrb[0].mxu0 %v1351
      %v1390 = vpop.f32.mrb[0].mxu0
      %v1391 = vadd.f32 %v1206, %v1390
      %v1392 = vpop.f32.mrb[0].mxu0
      %v1393 = vpop.f32.mrb[0].mxu0
      %v1394 = vpop.f32.mrb[0].mxu0
      %1395 = vdwg.mxu0
      %v1396 = vsel %vm1211, %v1253, -inf
      %1397 = vmax.xlane.f32.xlu0 %v1396
      %v1398 = vpop.xlane.xlu0 %1397
      %v1399 = vsel %vm1211, %v1299, -inf
      %1400 = vmax.xlane.f32.xlu0 %v1399
      %v1401 = vpop.xlane.xlu0 %1400
      %v1402 = vsel %vm1211, %v1345, -inf
      %1403 = vmax.xlane.f32.xlu0 %v1402
      %v1404 = vpop.xlane.xlu0 %1403
      %v1405 = vsel %vm1211, %v1391, -inf
      %1406 = vmax.xlane.f32.xlu0 %v1405
      %v1407 = vpop.xlane.xlu0 %1406
      %v1408 = vsub.f32 %v1253, %v1398
      %v1409 = vsub.f32 %v1299, %v1401
      %v1410 = vsub.f32 %v1345, %v1404
      %v1411 = vsub.f32 %v1391, %v1407
      %v1412 = vmul.f32 %v1408, 1.442695
      %v1413 = vpow.pop %v1412
      %v1414 = vmul.f32 %v1409, 1.442695
      %v1415 = vpow.pop %v1414
      %v1416 = vmul.f32 %v1410, 1.442695
      %v1417 = vpow.pop %v1416
      %v1418 = vmul.f32 %v1411, 1.442695
      %v1419 = vpow.pop %v1418
      %v1420 = vsel %vm1211, %v1413, 0.0
      %1421 = vadd.xlane.f32.xlu0 %v1420
      %v1422 = vpop.xlane.xlu0 %1421
      %v1423 = vsel %vm1211, %v1415, 0.0
      %1424 = vadd.xlane.f32.xlu0 %v1423
      %v1425 = vpop.xlane.xlu0 %1424
      %v1426 = vsel %vm1211, %v1417, 0.0
      %1427 = vadd.xlane.f32.xlu0 %v1426
      %v1428 = vpop.xlane.xlu0 %1427
      %v1429 = vsel %vm1211, %v1419, 0.0
      %1430 = vadd.xlane.f32.xlu0 %v1429
      %v1431 = vpop.xlane.xlu0 %1430
      %v1432 = vrcp.pop %v1422
      %v1433 = vrcp.pop %v1425
      %v1434 = vrcp.pop %v1428
      %v1435 = vrcp.pop %v1431
      %v1436 = vmul.f32 %v1413, %v1432
      %v1437 = vmul.f32 %v1415, %v1433
      %v1438 = vmul.f32 %v1417, %v1434
      %v1439 = vmul.f32 %v1419, %v1435
      %v1440 = vpack.c.bf16 %v1436, %v1436
      %v1441 = vpack.c.bf16 %v1437, %v1437
      %v1442 = vpack.c.bf16 %v1438, %v1438
      %v1443 = vpack.c.bf16 %v1439, %v1439
      %v1445 = vsel %vm1211, %v1440, 0
      %vm1447 = vcmask 1043456
      %v1449 = vsel %vm1447, %v1183, 0
      %1451 = vmatprep.subr.bf16.mxu0 0
      %1452 = vmatpush1.bf16.msra.mxu0 %v1449
      %1453 = vmatprep.subr.bf16.mxu0 0
      %1454 = vmatpush1.bf16.msra.mxu0 0
      %1455 = vmatprep.subr.bf16.mxu0 0
      %1456 = vmatpush1.bf16.msra.mxu0 0
      %1457 = vmatprep.subr.bf16.mxu0 0
      %1458 = vmatpush1.bf16.msra.mxu0 0
      %1459 = vmatprep.subr.bf16.mxu0 0
      %1460 = vmatpush1.bf16.msra.mxu0 0
      %1461 = vmatprep.subr.bf16.mxu0 0
      %1462 = vmatpush1.bf16.msra.mxu0 0
      %1463 = vmatprep.subr.bf16.mxu0 0
      %1464 = vmatpush1.bf16.msra.mxu0 0
      %1465 = vmatprep.subr.bf16.mxu0 0
      %1466 = vmatpush1.bf16.msra.mxu0 0
      %1467 = vmatprep.subr.bf16.mxu0 0
      %1468 = vmatpush1.bf16.msra.mxu0 0
      %1469 = vmatprep.subr.bf16.mxu0 0
      %1470 = vmatpush1.bf16.msra.mxu0 0
      %1471 = vmatprep.subr.bf16.mxu0 0
      %1472 = vmatpush1.bf16.msra.mxu0 0
      %1473 = vmatprep.subr.bf16.mxu0 0
      %1474 = vmatpush1.bf16.msra.mxu0 0
      %1475 = vmatprep.subr.bf16.mxu0 0
      %1476 = vmatpush1.bf16.msra.mxu0 0
      %1477 = vmatprep.subr.bf16.mxu0 0
      %1478 = vmatpush1.bf16.msra.mxu0 0
      %1479 = vmatprep.subr.bf16.mxu0 0
      %1480 = vmatpush1.bf16.msra.mxu0 0
      %1481 = vmatprep.subr.bf16.mxu0 0
      %1482 = vmatpush1.bf16.msra.mxu0 0
      %1483 = vmatprep.mubr.bf16.mxu0 0
      %1484 = vmatmul.mubr.bf16.gmra.mrb[0].mxu0 %v1445
      %v1485 = vpop.f32.mrb[0].mxu0
      %v1486 = vadd.f32 0.0, %v1485
      %v1487 = vpop.f32.mrb[0].mxu0
      %v1488 = vpop.f32.mrb[0].mxu0
      %v1489 = vpop.f32.mrb[0].mxu0
      %1490 = vdwg.mxu0
      %v1492 = vsel %vm1211, %v1441, 0
      %v1495 = vsel %vm1447, %v1184, 0
      %1497 = vmatprep.subr.bf16.mxu0 0
      %1498 = vmatpush1.bf16.msra.mxu0 %v1495
      %1499 = vmatprep.subr.bf16.mxu0 0
      %1500 = vmatpush1.bf16.msra.mxu0 0
      %1501 = vmatprep.subr.bf16.mxu0 0
      %1502 = vmatpush1.bf16.msra.mxu0 0
      %1503 = vmatprep.subr.bf16.mxu0 0
      %1504 = vmatpush1.bf16.msra.mxu0 0
      %1505 = vmatprep.subr.bf16.mxu0 0
      %1506 = vmatpush1.bf16.msra.mxu0 0
      %1507 = vmatprep.subr.bf16.mxu0 0
      %1508 = vmatpush1.bf16.msra.mxu0 0
      %1509 = vmatprep.subr.bf16.mxu0 0
      %1510 = vmatpush1.bf16.msra.mxu0 0
      %1511 = vmatprep.subr.bf16.mxu0 0
      %1512 = vmatpush1.bf16.msra.mxu0 0
      %1513 = vmatprep.subr.bf16.mxu0 0
      %1514 = vmatpush1.bf16.msra.mxu0 0
      %1515 = vmatprep.subr.bf16.mxu0 0
      %1516 = vmatpush1.bf16.msra.mxu0 0
      %1517 = vmatprep.subr.bf16.mxu0 0
      %1518 = vmatpush1.bf16.msra.mxu0 0
      %1519 = vmatprep.subr.bf16.mxu0 0
      %1520 = vmatpush1.bf16.msra.mxu0 0
      %1521 = vmatprep.subr.bf16.mxu0 0
      %1522 = vmatpush1.bf16.msra.mxu0 0
      %1523 = vmatprep.subr.bf16.mxu0 0
      %1524 = vmatpush1.bf16.msra.mxu0 0
      %1525 = vmatprep.subr.bf16.mxu0 0
      %1526 = vmatpush1.bf16.msra.mxu0 0
      %1527 = vmatprep.subr.bf16.mxu0 0
      %1528 = vmatpush1.bf16.msra.mxu0 0
      %1529 = vmatprep.mubr.bf16.mxu0 0
      %1530 = vmatmul.mubr.bf16.gmra.mrb[0].mxu0 %v1492
      %v1531 = vpop.f32.mrb[0].mxu0
      %v1532 = vadd.f32 0.0, %v1531
      %v1533 = vpop.f32.mrb[0].mxu0
      %v1534 = vpop.f32.mrb[0].mxu0
      %v1535 = vpop.f32.mrb[0].mxu0
      %1536 = vdwg.mxu0
      %v1538 = vsel %vm1211, %v1442, 0
      %v1541 = vsel %vm1447, %v1185, 0
      %1543 = vmatprep.subr.bf16.mxu0 0
      %1544 = vmatpush1.bf16.msra.mxu0 %v1541
      %1545 = vmatprep.subr.bf16.mxu0 0
      %1546 = vmatpush1.bf16.msra.mxu0 0
      %1547 = vmatprep.subr.bf16.mxu0 0
      %1548 = vmatpush1.bf16.msra.mxu0 0
      %1549 = vmatprep.subr.bf16.mxu0 0
      %1550 = vmatpush1.bf16.msra.mxu0 0
      %1551 = vmatprep.subr.bf16.mxu0 0
      %1552 = vmatpush1.bf16.msra.mxu0 0
      %1553 = vmatprep.subr.bf16.mxu0 0
      %1554 = vmatpush1.bf16.msra.mxu0 0
      %1555 = vmatprep.subr.bf16.mxu0 0
      %1556 = vmatpush1.bf16.msra.mxu0 0
      %1557 = vmatprep.subr.bf16.mxu0 0
      %1558 = vmatpush1.bf16.msra.mxu0 0
      %1559 = vmatprep.subr.bf16.mxu0 0
      %1560 = vmatpush1.bf16.msra.mxu0 0
      %1561 = vmatprep.subr.bf16.mxu0 0
      %1562 = vmatpush1.bf16.msra.mxu0 0
      %1563 = vmatprep.subr.bf16.mxu0 0
      %1564 = vmatpush1.bf16.msra.mxu0 0
      %1565 = vmatprep.subr.bf16.mxu0 0
      %1566 = vmatpush1.bf16.msra.mxu0 0
      %1567 = vmatprep.subr.bf16.mxu0 0
      %1568 = vmatpush1.bf16.msra.mxu0 0
      %1569 = vmatprep.subr.bf16.mxu0 0
      %1570 = vmatpush1.bf16.msra.mxu0 0
      %1571 = vmatprep.subr.bf16.mxu0 0
      %1572 = vmatpush1.bf16.msra.mxu0 0
      %1573 = vmatprep.subr.bf16.mxu0 0
      %1574 = vmatpush1.bf16.msra.mxu0 0
      %1575 = vmatprep.mubr.bf16.mxu0 0
      %1576 = vmatmul.mubr.bf16.gmra.mrb[0].mxu0 %v1538
      %v1577 = vpop.f32.mrb[0].mxu0
      %v1578 = vadd.f32 0.0, %v1577
      %v1579 = vpop.f32.mrb[0].mxu0
      %v1580 = vpop.f32.mrb[0].mxu0
      %v1581 = vpop.f32.mrb[0].mxu0
      %1582 = vdwg.mxu0
      %v1584 = vsel %vm1211, %v1443, 0
      %v1587 = vsel %vm1447, %v1186, 0
      %1589 = vmatprep.subr.bf16.mxu0 0
      %1590 = vmatpush1.bf16.msra.mxu0 %v1587
      %1591 = vmatprep.subr.bf16.mxu0 0
      %1592 = vmatpush1.bf16.msra.mxu0 0
      %1593 = vmatprep.subr.bf16.mxu0 0
      %1594 = vmatpush1.bf16.msra.mxu0 0
      %1595 = vmatprep.subr.bf16.mxu0 0
      %1596 = vmatpush1.bf16.msra.mxu0 0
      %1597 = vmatprep.subr.bf16.mxu0 0
      %1598 = vmatpush1.bf16.msra.mxu0 0
      %1599 = vmatprep.subr.bf16.mxu0 0
      %1600 = vmatpush1.bf16.msra.mxu0 0
      %1601 = vmatprep.subr.bf16.mxu0 0
      %1602 = vmatpush1.bf16.msra.mxu0 0
      %1603 = vmatprep.subr.bf16.mxu0 0
      %1604 = vmatpush1.bf16.msra.mxu0 0
      %1605 = vmatprep.subr.bf16.mxu0 0
      %1606 = vmatpush1.bf16.msra.mxu0 0
      %1607 = vmatprep.subr.bf16.mxu0 0
      %1608 = vmatpush1.bf16.msra.mxu0 0
      %1609 = vmatprep.subr.bf16.mxu0 0
      %1610 = vmatpush1.bf16.msra.mxu0 0
      %1611 = vmatprep.subr.bf16.mxu0 0
      %1612 = vmatpush1.bf16.msra.mxu0 0
      %1613 = vmatprep.subr.bf16.mxu0 0
      %1614 = vmatpush1.bf16.msra.mxu0 0
      %1615 = vmatprep.subr.bf16.mxu0 0
      %1616 = vmatpush1.bf16.msra.mxu0 0
      %1617 = vmatprep.subr.bf16.mxu0 0
      %1618 = vmatpush1.bf16.msra.mxu0 0
      %1619 = vmatprep.subr.bf16.mxu0 0
      %1620 = vmatpush1.bf16.msra.mxu0 0
      %1621 = vmatprep.mubr.bf16.mxu0 0
      %1622 = vmatmul.mubr.bf16.gmra.mrb[0].mxu0 %v1584
      %v1623 = vpop.f32.mrb[0].mxu0
      %v1624 = vadd.f32 0.0, %v1623
      %v1625 = vpop.f32.mrb[0].mxu0
      %v1626 = vpop.f32.mrb[0].mxu0
      %v1627 = vpop.f32.mrb[0].mxu0
      %1628 = vdwg.mxu0
      %1630 = vrot.lane.b32.xlu0 %v1175, 120
      %v1631 = vpop.permute.xlu0 %1630
      %1633 = vrot.lane.b32.xlu0 %v1179, 120
      %v1634 = vpop.permute.xlu0 %1633
      %v1636 = vsel %vm1211, %v1631, 0
      %v1639 = vsel %vm1211, %v1634, 0
      %1641 = vmatprep.subr.bf16.mxu0 0
      %1642 = vmatpush1.bf16.xpose.msra.mxu0 %v1639
      %1643 = vmatprep.subr.bf16.mxu0 0
      %1644 = vmatpush1.bf16.xpose.msra.mxu0 0
      %1645 = vmatprep.subr.bf16.mxu0 0
      %1646 = vmatpush1.bf16.xpose.msra.mxu0 0
      %1647 = vmatprep.subr.bf16.mxu0 0
      %1648 = vmatpush1.bf16.xpose.msra.mxu0 0
      %1649 = vmatprep.subr.bf16.mxu0 0
      %1650 = vmatpush1.bf16.xpose.msra.mxu0 0
      %1651 = vmatprep.subr.bf16.mxu0 0
      %1652 = vmatpush1.bf16.xpose.msra.mxu0 0
      %1653 = vmatprep.subr.bf16.mxu0 0
      %1654 = vmatpush1.bf16.xpose.msra.mxu0 0
      %1655 = vmatprep.subr.bf16.mxu0 0
      %1656 = vmatpush1.bf16.xpose.msra.mxu0 0
      %1657 = vmatprep.subr.bf16.mxu0 0
      %1658 = vmatpush1.bf16.xpose.msra.mxu0 0
      %1659 = vmatprep.subr.bf16.mxu0 0
      %1660 = vmatpush1.bf16.xpose.msra.mxu0 0
      %1661 = vmatprep.subr.bf16.mxu0 0
      %1662 = vmatpush1.bf16.xpose.msra.mxu0 0
      %1663 = vmatprep.subr.bf16.mxu0 0
      %1664 = vmatpush1.bf16.xpose.msra.mxu0 0
      %1665 = vmatprep.subr.bf16.mxu0 0
      %1666 = vmatpush1.bf16.xpose.msra.mxu0 0
      %1667 = vmatprep.subr.bf16.mxu0 0
      %1668 = vmatpush1.bf16.xpose.msra.mxu0 0
      %1669 = vmatprep.subr.bf16.mxu0 0
      %1670 = vmatpush1.bf16.xpose.msra.mxu0 0
      %1671 = vmatprep.subr.bf16.mxu0 0
      %1672 = vmatpush1.bf16.xpose.msra.mxu0 0
      %1673 = vmatprep.mubr.bf16.mxu0 0
      %1674 = vmatmul.mubr.bf16.gmra.mrb[0].mxu0 %v1636
      %v1675 = vpop.f32.mrb[0].mxu0
      %v1676 = vadd.f32 %v1194, %v1675
      %v1677 = vpop.f32.mrb[0].mxu0
      %v1678 = vpop.f32.mrb[0].mxu0
      %v1679 = vpop.f32.mrb[0].mxu0
      %1680 = vdwg.mxu0
      %1682 = vrot.lane.b32.xlu0 %v1176, 120
      %v1683 = vpop.permute.xlu0 %1682
      %1685 = vrot.lane.b32.xlu0 %v1180, 120
      %v1686 = vpop.permute.xlu0 %1685
      %v1688 = vsel %vm1211, %v1683, 0
      %v1691 = vsel %vm1211, %v1686, 0
      %1693 = vmatprep.subr.bf16.mxu0 0
      %1694 = vmatpush1.bf16.xpose.msra.mxu0 %v1691
      %1695 = vmatprep.subr.bf16.mxu0 0
      %1696 = vmatpush1.bf16.xpose.msra.mxu0 0
      %1697 = vmatprep.subr.bf16.mxu0 0
      %1698 = vmatpush1.bf16.xpose.msra.mxu0 0
      %1699 = vmatprep.subr.bf16.mxu0 0
      %1700 = vmatpush1.bf16.xpose.msra.mxu0 0
      %1701 = vmatprep.subr.bf16.mxu0 0
      %1702 = vmatpush1.bf16.xpose.msra.mxu0 0
      %1703 = vmatprep.subr.bf16.mxu0 0
      %1704 = vmatpush1.bf16.xpose.msra.mxu0 0
      %1705 = vmatprep.subr.bf16.mxu0 0
      %1706 = vmatpush1.bf16.xpose.msra.mxu0 0
      %1707 = vmatprep.subr.bf16.mxu0 0
      %1708 = vmatpush1.bf16.xpose.msra.mxu0 0
      %1709 = vmatprep.subr.bf16.mxu0 0
      %1710 = vmatpush1.bf16.xpose.msra.mxu0 0
      %1711 = vmatprep.subr.bf16.mxu0 0
      %1712 = vmatpush1.bf16.xpose.msra.mxu0 0
      %1713 = vmatprep.subr.bf16.mxu0 0
      %1714 = vmatpush1.bf16.xpose.msra.mxu0 0
      %1715 = vmatprep.subr.bf16.mxu0 0
      %1716 = vmatpush1.bf16.xpose.msra.mxu0 0
      %1717 = vmatprep.subr.bf16.mxu0 0
      %1718 = vmatpush1.bf16.xpose.msra.mxu0 0
      %1719 = vmatprep.subr.bf16.mxu0 0
      %1720 = vmatpush1.bf16.xpose.msra.mxu0 0
      %1721 = vmatprep.subr.bf16.mxu0 0
      %1722 = vmatpush1.bf16.xpose.msra.mxu0 0
      %1723 = vmatprep.subr.bf16.mxu0 0
      %1724 = vmatpush1.bf16.xpose.msra.mxu0 0
      %1725 = vmatprep.mubr.bf16.mxu0 0
      %1726 = vmatmul.mubr.bf16.gmra.mrb[0].mxu0 %v1688
      %v1727 = vpop.f32.mrb[0].mxu0
      %v1728 = vadd.f32 %v1198, %v1727
      %v1729 = vpop.f32.mrb[0].mxu0
      %v1730 = vpop.f32.mrb[0].mxu0
      %v1731 = vpop.f32.mrb[0].mxu0
      %1732 = vdwg.mxu0
      %1734 = vrot.lane.b32.xlu0 %v1177, 120
      %v1735 = vpop.permute.xlu0 %1734
      %1737 = vrot.lane.b32.xlu0 %v1181, 120
      %v1738 = vpop.permute.xlu0 %1737
      %v1740 = vsel %vm1211, %v1735, 0
      %v1743 = vsel %vm1211, %v1738, 0
      %1745 = vmatprep.subr.bf16.mxu0 0
      %1746 = vmatpush1.bf16.xpose.msra.mxu0 %v1743
      %1747 = vmatprep.subr.bf16.mxu0 0
      %1748 = vmatpush1.bf16.xpose.msra.mxu0 0
      %1749 = vmatprep.subr.bf16.mxu0 0
      %1750 = vmatpush1.bf16.xpose.msra.mxu0 0
      %1751 = vmatprep.subr.bf16.mxu0 0
      %1752 = vmatpush1.bf16.xpose.msra.mxu0 0
      %1753 = vmatprep.subr.bf16.mxu0 0
      %1754 = vmatpush1.bf16.xpose.msra.mxu0 0
      %1755 = vmatprep.subr.bf16.mxu0 0
      %1756 = vmatpush1.bf16.xpose.msra.mxu0 0
      %1757 = vmatprep.subr.bf16.mxu0 0
      %1758 = vmatpush1.bf16.xpose.msra.mxu0 0
      %1759 = vmatprep.subr.bf16.mxu0 0
      %1760 = vmatpush1.bf16.xpose.msra.mxu0 0
      %1761 = vmatprep.subr.bf16.mxu0 0
      %1762 = vmatpush1.bf16.xpose.msra.mxu0 0
      %1763 = vmatprep.subr.bf16.mxu0 0
      %1764 = vmatpush1.bf16.xpose.msra.mxu0 0
      %1765 = vmatprep.subr.bf16.mxu0 0
      %1766 = vmatpush1.bf16.xpose.msra.mxu0 0
      %1767 = vmatprep.subr.bf16.mxu0 0
      %1768 = vmatpush1.bf16.xpose.msra.mxu0 0
      %1769 = vmatprep.subr.bf16.mxu0 0
      %1770 = vmatpush1.bf16.xpose.msra.mxu0 0
      %1771 = vmatprep.subr.bf16.mxu0 0
      %1772 = vmatpush1.bf16.xpose.msra.mxu0 0
      %1773 = vmatprep.subr.bf16.mxu0 0
      %1774 = vmatpush1.bf16.xpose.msra.mxu0 0
      %1775 = vmatprep.subr.bf16.mxu0 0
      %1776 = vmatpush1.bf16.xpose.msra.mxu0 0
      %1777 = vmatprep.mubr.bf16.mxu0 0
      %1778 = vmatmul.mubr.bf16.gmra.mrb[0].mxu0 %v1740
      %v1779 = vpop.f32.mrb[0].mxu0
      %v1780 = vadd.f32 %v1202, %v1779
      %v1781 = vpop.f32.mrb[0].mxu0
      %v1782 = vpop.f32.mrb[0].mxu0
      %v1783 = vpop.f32.mrb[0].mxu0
      %1784 = vdwg.mxu0
      %1786 = vrot.lane.b32.xlu0 %v1178, 120
      %v1787 = vpop.permute.xlu0 %1786
      %1789 = vrot.lane.b32.xlu0 %v1182, 120
      %v1790 = vpop.permute.xlu0 %1789
      %v1792 = vsel %vm1211, %v1787, 0
      %v1795 = vsel %vm1211, %v1790, 0
      %1797 = vmatprep.subr.bf16.mxu0 0
      %1798 = vmatpush1.bf16.xpose.msra.mxu0 %v1795
      %1799 = vmatprep.subr.bf16.mxu0 0
      %1800 = vmatpush1.bf16.xpose.msra.mxu0 0
      %1801 = vmatprep.subr.bf16.mxu0 0
      %1802 = vmatpush1.bf16.xpose.msra.mxu0 0
      %1803 = vmatprep.subr.bf16.mxu0 0
      %1804 = vmatpush1.bf16.xpose.msra.mxu0 0
      %1805 = vmatprep.subr.bf16.mxu0 0
      %1806 = vmatpush1.bf16.xpose.msra.mxu0 0
      %1807 = vmatprep.subr.bf16.mxu0 0
      %1808 = vmatpush1.bf16.xpose.msra.mxu0 0
      %1809 = vmatprep.subr.bf16.mxu0 0
      %1810 = vmatpush1.bf16.xpose.msra.mxu0 0
      %1811 = vmatprep.subr.bf16.mxu0 0
      %1812 = vmatpush1.bf16.xpose.msra.mxu0 0
      %1813 = vmatprep.subr.bf16.mxu0 0
      %1814 = vmatpush1.bf16.xpose.msra.mxu0 0
      %1815 = vmatprep.subr.bf16.mxu0 0
      %1816 = vmatpush1.bf16.xpose.msra.mxu0 0
      %1817 = vmatprep.subr.bf16.mxu0 0
      %1818 = vmatpush1.bf16.xpose.msra.mxu0 0
      %1819 = vmatprep.subr.bf16.mxu0 0
      %1820 = vmatpush1.bf16.xpose.msra.mxu0 0
      %1821 = vmatprep.subr.bf16.mxu0 0
      %1822 = vmatpush1.bf16.xpose.msra.mxu0 0
      %1823 = vmatprep.subr.bf16.mxu0 0
      %1824 = vmatpush1.bf16.xpose.msra.mxu0 0
      %1825 = vmatprep.subr.bf16.mxu0 0
      %1826 = vmatpush1.bf16.xpose.msra.mxu0 0
      %1827 = vmatprep.subr.bf16.mxu0 0
      %1828 = vmatpush1.bf16.xpose.msra.mxu0 0
      %1829 = vmatprep.mubr.bf16.mxu0 0
      %1830 = vmatmul.mubr.bf16.gmra.mrb[0].mxu0 %v1792
      %v1831 = vpop.f32.mrb[0].mxu0
      %v1832 = vadd.f32 %v1206, %v1831
      %v1833 = vpop.f32.mrb[0].mxu0
      %v1834 = vpop.f32.mrb[0].mxu0
      %v1835 = vpop.f32.mrb[0].mxu0
      %1836 = vdwg.mxu0
      %v1837 = vsel %vm1211, %v1676, -inf
      %1838 = vmax.xlane.f32.xlu0 %v1837
      %v1839 = vpop.xlane.xlu0 %1838
      %v1840 = vsel %vm1211, %v1728, -inf
      %1841 = vmax.xlane.f32.xlu0 %v1840
      %v1842 = vpop.xlane.xlu0 %1841
      %v1843 = vsel %vm1211, %v1780, -inf
      %1844 = vmax.xlane.f32.xlu0 %v1843
      %v1845 = vpop.xlane.xlu0 %1844
      %v1846 = vsel %vm1211, %v1832, -inf
      %1847 = vmax.xlane.f32.xlu0 %v1846
      %v1848 = vpop.xlane.xlu0 %1847
      %v1849 = vsub.f32 %v1676, %v1839
      %v1850 = vsub.f32 %v1728, %v1842
      %v1851 = vsub.f32 %v1780, %v1845
      %v1852 = vsub.f32 %v1832, %v1848
      %v1853 = vmul.f32 %v1849, 1.442695
      %v1854 = vpow.pop %v1853
      %v1855 = vmul.f32 %v1850, 1.442695
      %v1856 = vpow.pop %v1855
      %v1857 = vmul.f32 %v1851, 1.442695
      %v1858 = vpow.pop %v1857
      %v1859 = vmul.f32 %v1852, 1.442695
      %v1860 = vpow.pop %v1859
      %v1861 = vsel %vm1211, %v1854, 0.0
      %1862 = vadd.xlane.f32.xlu0 %v1861
      %v1863 = vpop.xlane.xlu0 %1862
      %v1864 = vsel %vm1211, %v1856, 0.0
      %1865 = vadd.xlane.f32.xlu0 %v1864
      %v1866 = vpop.xlane.xlu0 %1865
      %v1867 = vsel %vm1211, %v1858, 0.0
      %1868 = vadd.xlane.f32.xlu0 %v1867
      %v1869 = vpop.xlane.xlu0 %1868
      %v1870 = vsel %vm1211, %v1860, 0.0
      %1871 = vadd.xlane.f32.xlu0 %v1870
      %v1872 = vpop.xlane.xlu0 %1871
      %v1873 = vrcp.pop %v1863
      %v1874 = vrcp.pop %v1866
      %v1875 = vrcp.pop %v1869
      %v1876 = vrcp.pop %v1872
      %v1877 = vmul.f32 %v1854, %v1873
      %v1878 = vmul.f32 %v1856, %v1874
      %v1879 = vmul.f32 %v1858, %v1875
      %v1880 = vmul.f32 %v1860, %v1876
      %v1881 = vpack.c.bf16 %v1877, %v1877
      %v1882 = vpack.c.bf16 %v1878, %v1878
      %v1883 = vpack.c.bf16 %v1879, %v1879
      %v1884 = vpack.c.bf16 %v1880, %v1880
      %1886 = vrot.lane.b32.xlu0 %v1183, 120
      %v1887 = vpop.permute.xlu0 %1886
      %v1889 = vsel %vm1211, %v1881, 0
      %v1892 = vsel %vm1447, %v1887, 0
      %1894 = vmatprep.subr.bf16.mxu0 0
      %1895 = vmatpush1.bf16.msra.mxu0 %v1892
      %1896 = vmatprep.subr.bf16.mxu0 0
      %1897 = vmatpush1.bf16.msra.mxu0 0
      %1898 = vmatprep.subr.bf16.mxu0 0
      %1899 = vmatpush1.bf16.msra.mxu0 0
      %1900 = vmatprep.subr.bf16.mxu0 0
      %1901 = vmatpush1.bf16.msra.mxu0 0
      %1902 = vmatprep.subr.bf16.mxu0 0
      %1903 = vmatpush1.bf16.msra.mxu0 0
      %1904 = vmatprep.subr.bf16.mxu0 0
      %1905 = vmatpush1.bf16.msra.mxu0 0
      %1906 = vmatprep.subr.bf16.mxu0 0
      %1907 = vmatpush1.bf16.msra.mxu0 0
      %1908 = vmatprep.subr.bf16.mxu0 0
      %1909 = vmatpush1.bf16.msra.mxu0 0
      %1910 = vmatprep.subr.bf16.mxu0 0
      %1911 = vmatpush1.bf16.msra.mxu0 0
      %1912 = vmatprep.subr.bf16.mxu0 0
      %1913 = vmatpush1.bf16.msra.mxu0 0
      %1914 = vmatprep.subr.bf16.mxu0 0
      %1915 = vmatpush1.bf16.msra.mxu0 0
      %1916 = vmatprep.subr.bf16.mxu0 0
      %1917 = vmatpush1.bf16.msra.mxu0 0
      %1918 = vmatprep.subr.bf16.mxu0 0
      %1919 = vmatpush1.bf16.msra.mxu0 0
      %1920 = vmatprep.subr.bf16.mxu0 0
      %1921 = vmatpush1.bf16.msra.mxu0 0
      %1922 = vmatprep.subr.bf16.mxu0 0
      %1923 = vmatpush1.bf16.msra.mxu0 0
      %1924 = vmatprep.subr.bf16.mxu0 0
      %1925 = vmatpush1.bf16.msra.mxu0 0
      %1926 = vmatprep.mubr.bf16.mxu0 0
      %1927 = vmatmul.mubr.bf16.gmra.mrb[0].mxu0 %v1889
      %v1928 = vpop.f32.mrb[0].mxu0
      %v1929 = vadd.f32 0.0, %v1928
      %v1930 = vpop.f32.mrb[0].mxu0
      %v1931 = vpop.f32.mrb[0].mxu0
      %v1932 = vpop.f32.mrb[0].mxu0
      %1933 = vdwg.mxu0
      %1935 = vrot.lane.b32.xlu0 %v1184, 120
      %v1936 = vpop.permute.xlu0 %1935
      %v1938 = vsel %vm1211, %v1882, 0
      %v1941 = vsel %vm1447, %v1936, 0
      %1943 = vmatprep.subr.bf16.mxu0 0
      %1944 = vmatpush1.bf16.msra.mxu0 %v1941
      %1945 = vmatprep.subr.bf16.mxu0 0
      %1946 = vmatpush1.bf16.msra.mxu0 0
      %1947 = vmatprep.subr.bf16.mxu0 0
      %1948 = vmatpush1.bf16.msra.mxu0 0
      %1949 = vmatprep.subr.bf16.mxu0 0
      %1950 = vmatpush1.bf16.msra.mxu0 0
      %1951 = vmatprep.subr.bf16.mxu0 0
      %1952 = vmatpush1.bf16.msra.mxu0 0
      %1953 = vmatprep.subr.bf16.mxu0 0
      %1954 = vmatpush1.bf16.msra.mxu0 0
      %1955 = vmatprep.subr.bf16.mxu0 0
      %1956 = vmatpush1.bf16.msra.mxu0 0
      %1957 = vmatprep.subr.bf16.mxu0 0
      %1958 = vmatpush1.bf16.msra.mxu0 0
      %1959 = vmatprep.subr.bf16.mxu0 0
      %1960 = vmatpush1.bf16.msra.mxu0 0
      %1961 = vmatprep.subr.bf16.mxu0 0
      %1962 = vmatpush1.bf16.msra.mxu0 0
      %1963 = vmatprep.subr.bf16.mxu0 0
      %1964 = vmatpush1.bf16.msra.mxu0 0
      %1965 = vmatprep.subr.bf16.mxu0 0
      %1966 = vmatpush1.bf16.msra.mxu0 0
      %1967 = vmatprep.subr.bf16.mxu0 0
      %1968 = vmatpush1.bf16.msra.mxu0 0
      %1969 = vmatprep.subr.bf16.mxu0 0
      %1970 = vmatpush1.bf16.msra.mxu0 0
      %1971 = vmatprep.subr.bf16.mxu0 0
      %1972 = vmatpush1.bf16.msra.mxu0 0
      %1973 = vmatprep.subr.bf16.mxu0 0
      %1974 = vmatpush1.bf16.msra.mxu0 0
      %1975 = vmatprep.mubr.bf16.mxu0 0
      %1976 = vmatmul.mubr.bf16.gmra.mrb[0].mxu0 %v1938
      %v1977 = vpop.f32.mrb[0].mxu0
      %v1978 = vadd.f32 0.0, %v1977
      %v1979 = vpop.f32.mrb[0].mxu0
      %v1980 = vpop.f32.mrb[0].mxu0
      %v1981 = vpop.f32.mrb[0].mxu0
      %1982 = vdwg.mxu0
      %1984 = vrot.lane.b32.xlu0 %v1185, 120
      %v1985 = vpop.permute.xlu0 %1984
      %v1987 = vsel %vm1211, %v1883, 0
      %v1990 = vsel %vm1447, %v1985, 0
      %1992 = vmatprep.subr.bf16.mxu0 0
      %1993 = vmatpush1.bf16.msra.mxu0 %v1990
      %1994 = vmatprep.subr.bf16.mxu0 0
      %1995 = vmatpush1.bf16.msra.mxu0 0
      %1996 = vmatprep.subr.bf16.mxu0 0
      %1997 = vmatpush1.bf16.msra.mxu0 0
      %1998 = vmatprep.subr.bf16.mxu0 0
      %1999 = vmatpush1.bf16.msra.mxu0 0
      %2000 = vmatprep.subr.bf16.mxu0 0
      %2001 = vmatpush1.bf16.msra.mxu0 0
      %2002 = vmatprep.subr.bf16.mxu0 0
      %2003 = vmatpush1.bf16.msra.mxu0 0
      %2004 = vmatprep.subr.bf16.mxu0 0
      %2005 = vmatpush1.bf16.msra.mxu0 0
      %2006 = vmatprep.subr.bf16.mxu0 0
      %2007 = vmatpush1.bf16.msra.mxu0 0
      %2008 = vmatprep.subr.bf16.mxu0 0
      %2009 = vmatpush1.bf16.msra.mxu0 0
      %2010 = vmatprep.subr.bf16.mxu0 0
      %2011 = vmatpush1.bf16.msra.mxu0 0
      %2012 = vmatprep.subr.bf16.mxu0 0
      %2013 = vmatpush1.bf16.msra.mxu0 0
      %2014 = vmatprep.subr.bf16.mxu0 0
      %2015 = vmatpush1.bf16.msra.mxu0 0
      %2016 = vmatprep.subr.bf16.mxu0 0
      %2017 = vmatpush1.bf16.msra.mxu0 0
      %2018 = vmatprep.subr.bf16.mxu0 0
      %2019 = vmatpush1.bf16.msra.mxu0 0
      %2020 = vmatprep.subr.bf16.mxu0 0
      %2021 = vmatpush1.bf16.msra.mxu0 0
      %2022 = vmatprep.subr.bf16.mxu0 0
      %2023 = vmatpush1.bf16.msra.mxu0 0
      %2024 = vmatprep.mubr.bf16.mxu0 0
      %2025 = vmatmul.mubr.bf16.gmra.mrb[0].mxu0 %v1987
      %v2026 = vpop.f32.mrb[0].mxu0
      %v2027 = vadd.f32 0.0, %v2026
      %v2028 = vpop.f32.mrb[0].mxu0
      %v2029 = vpop.f32.mrb[0].mxu0
      %v2030 = vpop.f32.mrb[0].mxu0
      %2031 = vdwg.mxu0
      %2033 = vrot.lane.b32.xlu0 %v1186, 120
      %v2034 = vpop.permute.xlu0 %2033
      %v2036 = vsel %vm1211, %v1884, 0
      %v2039 = vsel %vm1447, %v2034, 0
      %2041 = vmatprep.subr.bf16.mxu0 0
      %2042 = vmatpush1.bf16.msra.mxu0 %v2039
      %2043 = vmatprep.subr.bf16.mxu0 0
      %2044 = vmatpush1.bf16.msra.mxu0 0
      %2045 = vmatprep.subr.bf16.mxu0 0
      %2046 = vmatpush1.bf16.msra.mxu0 0
      %2047 = vmatprep.subr.bf16.mxu0 0
      %2048 = vmatpush1.bf16.msra.mxu0 0
      %2049 = vmatprep.subr.bf16.mxu0 0
      %2050 = vmatpush1.bf16.msra.mxu0 0
      %2051 = vmatprep.subr.bf16.mxu0 0
      %2052 = vmatpush1.bf16.msra.mxu0 0
      %2053 = vmatprep.subr.bf16.mxu0 0
      %2054 = vmatpush1.bf16.msra.mxu0 0
      %2055 = vmatprep.subr.bf16.mxu0 0
      %2056 = vmatpush1.bf16.msra.mxu0 0
      %2057 = vmatprep.subr.bf16.mxu0 0
      %2058 = vmatpush1.bf16.msra.mxu0 0
      %2059 = vmatprep.subr.bf16.mxu0 0
      %2060 = vmatpush1.bf16.msra.mxu0 0
      %2061 = vmatprep.subr.bf16.mxu0 0
      %2062 = vmatpush1.bf16.msra.mxu0 0
      %2063 = vmatprep.subr.bf16.mxu0 0
      %2064 = vmatpush1.bf16.msra.mxu0 0
      %2065 = vmatprep.subr.bf16.mxu0 0
      %2066 = vmatpush1.bf16.msra.mxu0 0
      %2067 = vmatprep.subr.bf16.mxu0 0
      %2068 = vmatpush1.bf16.msra.mxu0 0
      %2069 = vmatprep.subr.bf16.mxu0 0
      %2070 = vmatpush1.bf16.msra.mxu0 0
      %2071 = vmatprep.subr.bf16.mxu0 0
      %2072 = vmatpush1.bf16.msra.mxu0 0
      %2073 = vmatprep.mubr.bf16.mxu0 0
      %2074 = vmatmul.mubr.bf16.gmra.mrb[0].mxu0 %v2036
      %v2075 = vpop.f32.mrb[0].mxu0
      %v2076 = vadd.f32 0.0, %v2075
      %v2077 = vpop.f32.mrb[0].mxu0
      %v2078 = vpop.f32.mrb[0].mxu0
      %v2079 = vpop.f32.mrb[0].mxu0
      %2080 = vdwg.mxu0
      %2081 = vrot.lane.b32.xlu0 %v1175, 112
      %v2082 = vpop.permute.xlu0 %2081
      %2083 = vrot.lane.b32.xlu0 %v1179, 112
      %v2084 = vpop.permute.xlu0 %2083
      %v2086 = vsel %vm1211, %v2082, 0
      %v2089 = vsel %vm1211, %v2084, 0
      %2091 = vmatprep.subr.bf16.mxu0 0
      %2092 = vmatpush1.bf16.xpose.msra.mxu0 %v2089
      %2093 = vmatprep.subr.bf16.mxu0 0
      %2094 = vmatpush1.bf16.xpose.msra.mxu0 0
      %2095 = vmatprep.subr.bf16.mxu0 0
      %2096 = vmatpush1.bf16.xpose.msra.mxu0 0
      %2097 = vmatprep.subr.bf16.mxu0 0
      %2098 = vmatpush1.bf16.xpose.msra.mxu0 0
      %2099 = vmatprep.subr.bf16.mxu0 0
      %2100 = vmatpush1.bf16.xpose.msra.mxu0 0
      %2101 = vmatprep.subr.bf16.mxu0 0
      %2102 = vmatpush1.bf16.xpose.msra.mxu0 0
      %2103 = vmatprep.subr.bf16.mxu0 0
      %2104 = vmatpush1.bf16.xpose.msra.mxu0 0
      %2105 = vmatprep.subr.bf16.mxu0 0
      %2106 = vmatpush1.bf16.xpose.msra.mxu0 0
      %2107 = vmatprep.subr.bf16.mxu0 0
      %2108 = vmatpush1.bf16.xpose.msra.mxu0 0
      %2109 = vmatprep.subr.bf16.mxu0 0
      %2110 = vmatpush1.bf16.xpose.msra.mxu0 0
      %2111 = vmatprep.subr.bf16.mxu0 0
      %2112 = vmatpush1.bf16.xpose.msra.mxu0 0
      %2113 = vmatprep.subr.bf16.mxu0 0
      %2114 = vmatpush1.bf16.xpose.msra.mxu0 0
      %2115 = vmatprep.subr.bf16.mxu0 0
      %2116 = vmatpush1.bf16.xpose.msra.mxu0 0
      %2117 = vmatprep.subr.bf16.mxu0 0
      %2118 = vmatpush1.bf16.xpose.msra.mxu0 0
      %2119 = vmatprep.subr.bf16.mxu0 0
      %2120 = vmatpush1.bf16.xpose.msra.mxu0 0
      %2121 = vmatprep.subr.bf16.mxu0 0
      %2122 = vmatpush1.bf16.xpose.msra.mxu0 0
      %2123 = vmatprep.mubr.bf16.mxu0 0
      %2124 = vmatmul.mubr.bf16.gmra.mrb[0].mxu0 %v2086
      %v2125 = vpop.f32.mrb[0].mxu0
      %v2126 = vadd.f32 %v1194, %v2125
      %v2127 = vpop.f32.mrb[0].mxu0
      %v2128 = vpop.f32.mrb[0].mxu0
      %v2129 = vpop.f32.mrb[0].mxu0
      %2130 = vdwg.mxu0
      %2131 = vrot.lane.b32.xlu0 %v1176, 112
      %v2132 = vpop.permute.xlu0 %2131
      %2133 = vrot.lane.b32.xlu0 %v1180, 112
      %v2134 = vpop.permute.xlu0 %2133
      %v2136 = vsel %vm1211, %v2132, 0
      %v2139 = vsel %vm1211, %v2134, 0
      %2141 = vmatprep.subr.bf16.mxu0 0
      %2142 = vmatpush1.bf16.xpose.msra.mxu0 %v2139
      %2143 = vmatprep.subr.bf16.mxu0 0
      %2144 = vmatpush1.bf16.xpose.msra.mxu0 0
      %2145 = vmatprep.subr.bf16.mxu0 0
      %2146 = vmatpush1.bf16.xpose.msra.mxu0 0
      %2147 = vmatprep.subr.bf16.mxu0 0
      %2148 = vmatpush1.bf16.xpose.msra.mxu0 0
      %2149 = vmatprep.subr.bf16.mxu0 0
      %2150 = vmatpush1.bf16.xpose.msra.mxu0 0
      %2151 = vmatprep.subr.bf16.mxu0 0
      %2152 = vmatpush1.bf16.xpose.msra.mxu0 0
      %2153 = vmatprep.subr.bf16.mxu0 0
      %2154 = vmatpush1.bf16.xpose.msra.mxu0 0
      %2155 = vmatprep.subr.bf16.mxu0 0
      %2156 = vmatpush1.bf16.xpose.msra.mxu0 0
      %2157 = vmatprep.subr.bf16.mxu0 0
      %2158 = vmatpush1.bf16.xpose.msra.mxu0 0
      %2159 = vmatprep.subr.bf16.mxu0 0
      %2160 = vmatpush1.bf16.xpose.msra.mxu0 0
      %2161 = vmatprep.subr.bf16.mxu0 0
      %2162 = vmatpush1.bf16.xpose.msra.mxu0 0
      %2163 = vmatprep.subr.bf16.mxu0 0
      %2164 = vmatpush1.bf16.xpose.msra.mxu0 0
      %2165 = vmatprep.subr.bf16.mxu0 0
      %2166 = vmatpush1.bf16.xpose.msra.mxu0 0
      %2167 = vmatprep.subr.bf16.mxu0 0
      %2168 = vmatpush1.bf16.xpose.msra.mxu0 0
      %2169 = vmatprep.subr.bf16.mxu0 0
      %2170 = vmatpush1.bf16.xpose.msra.mxu0 0
      %2171 = vmatprep.subr.bf16.mxu0 0
      %2172 = vmatpush1.bf16.xpose.msra.mxu0 0
      %2173 = vmatprep.mubr.bf16.mxu0 0
      %2174 = vmatmul.mubr.bf16.gmra.mrb[0].mxu0 %v2136
      %v2175 = vpop.f32.mrb[0].mxu0
      %v2176 = vadd.f32 %v1198, %v2175
      %v2177 = vpop.f32.mrb[0].mxu0
      %v2178 = vpop.f32.mrb[0].mxu0
      %v2179 = vpop.f32.mrb[0].mxu0
      %2180 = vdwg.mxu0
      %2181 = vrot.lane.b32.xlu0 %v1177, 112
      %v2182 = vpop.permute.xlu0 %2181
      %2183 = vrot.lane.b32.xlu0 %v1181, 112
      %v2184 = vpop.permute.xlu0 %2183
      %v2186 = vsel %vm1211, %v2182, 0
      %v2189 = vsel %vm1211, %v2184, 0
      %2191 = vmatprep.subr.bf16.mxu0 0
      %2192 = vmatpush1.bf16.xpose.msra.mxu0 %v2189
      %2193 = vmatprep.subr.bf16.mxu0 0
      %2194 = vmatpush1.bf16.xpose.msra.mxu0 0
      %2195 = vmatprep.subr.bf16.mxu0 0
      %2196 = vmatpush1.bf16.xpose.msra.mxu0 0
      %2197 = vmatprep.subr.bf16.mxu0 0
      %2198 = vmatpush1.bf16.xpose.msra.mxu0 0
      %2199 = vmatprep.subr.bf16.mxu0 0
      %2200 = vmatpush1.bf16.xpose.msra.mxu0 0
      %2201 = vmatprep.subr.bf16.mxu0 0
      %2202 = vmatpush1.bf16.xpose.msra.mxu0 0
      %2203 = vmatprep.subr.bf16.mxu0 0
      %2204 = vmatpush1.bf16.xpose.msra.mxu0 0
      %2205 = vmatprep.subr.bf16.mxu0 0
      %2206 = vmatpush1.bf16.xpose.msra.mxu0 0
      %2207 = vmatprep.subr.bf16.mxu0 0
      %2208 = vmatpush1.bf16.xpose.msra.mxu0 0
      %2209 = vmatprep.subr.bf16.mxu0 0
      %2210 = vmatpush1.bf16.xpose.msra.mxu0 0
      %2211 = vmatprep.subr.bf16.mxu0 0
      %2212 = vmatpush1.bf16.xpose.msra.mxu0 0
      %2213 = vmatprep.subr.bf16.mxu0 0
      %2214 = vmatpush1.bf16.xpose.msra.mxu0 0
      %2215 = vmatprep.subr.bf16.mxu0 0
      %2216 = vmatpush1.bf16.xpose.msra.mxu0 0
      %2217 = vmatprep.subr.bf16.mxu0 0
      %2218 = vmatpush1.bf16.xpose.msra.mxu0 0
      %2219 = vmatprep.subr.bf16.mxu0 0
      %2220 = vmatpush1.bf16.xpose.msra.mxu0 0
      %2221 = vmatprep.subr.bf16.mxu0 0
      %2222 = vmatpush1.bf16.xpose.msra.mxu0 0
      %2223 = vmatprep.mubr.bf16.mxu0 0
      %2224 = vmatmul.mubr.bf16.gmra.mrb[0].mxu0 %v2186
      %v2225 = vpop.f32.mrb[0].mxu0
      %v2226 = vadd.f32 %v1202, %v2225
      %v2227 = vpop.f32.mrb[0].mxu0
      %v2228 = vpop.f32.mrb[0].mxu0
      %v2229 = vpop.f32.mrb[0].mxu0
      %2230 = vdwg.mxu0
      %2231 = vrot.lane.b32.xlu0 %v1178, 112
      %v2232 = vpop.permute.xlu0 %2231
      %2233 = vrot.lane.b32.xlu0 %v1182, 112
      %v2234 = vpop.permute.xlu0 %2233
      %v2236 = vsel %vm1211, %v2232, 0
      %v2239 = vsel %vm1211, %v2234, 0
      %2241 = vmatprep.subr.bf16.mxu0 0
      %2242 = vmatpush1.bf16.xpose.msra.mxu0 %v2239
      %2243 = vmatprep.subr.bf16.mxu0 0
      %2244 = vmatpush1.bf16.xpose.msra.mxu0 0
      %2245 = vmatprep.subr.bf16.mxu0 0
      %2246 = vmatpush1.bf16.xpose.msra.mxu0 0
      %2247 = vmatprep.subr.bf16.mxu0 0
      %2248 = vmatpush1.bf16.xpose.msra.mxu0 0
      %2249 = vmatprep.subr.bf16.mxu0 0
      %2250 = vmatpush1.bf16.xpose.msra.mxu0 0
      %2251 = vmatprep.subr.bf16.mxu0 0
      %2252 = vmatpush1.bf16.xpose.msra.mxu0 0
      %2253 = vmatprep.subr.bf16.mxu0 0
      %2254 = vmatpush1.bf16.xpose.msra.mxu0 0
      %2255 = vmatprep.subr.bf16.mxu0 0
      %2256 = vmatpush1.bf16.xpose.msra.mxu0 0
      %2257 = vmatprep.subr.bf16.mxu0 0
      %2258 = vmatpush1.bf16.xpose.msra.mxu0 0
      %2259 = vmatprep.subr.bf16.mxu0 0
      %2260 = vmatpush1.bf16.xpose.msra.mxu0 0
      %2261 = vmatprep.subr.bf16.mxu0 0
      %2262 = vmatpush1.bf16.xpose.msra.mxu0 0
      %2263 = vmatprep.subr.bf16.mxu0 0
      %2264 = vmatpush1.bf16.xpose.msra.mxu0 0
      %2265 = vmatprep.subr.bf16.mxu0 0
      %2266 = vmatpush1.bf16.xpose.msra.mxu0 0
      %2267 = vmatprep.subr.bf16.mxu0 0
      %2268 = vmatpush1.bf16.xpose.msra.mxu0 0
      %2269 = vmatprep.subr.bf16.mxu0 0
      %2270 = vmatpush1.bf16.xpose.msra.mxu0 0
      %2271 = vmatprep.subr.bf16.mxu0 0
      %2272 = vmatpush1.bf16.xpose.msra.mxu0 0
      %2273 = vmatprep.mubr.bf16.mxu0 0
      %2274 = vmatmul.mubr.bf16.gmra.mrb[0].mxu0 %v2236
      %v2275 = vpop.f32.mrb[0].mxu0
      %v2276 = vadd.f32 %v1206, %v2275
      %v2277 = vpop.f32.mrb[0].mxu0
      %v2278 = vpop.f32.mrb[0].mxu0
      %v2279 = vpop.f32.mrb[0].mxu0
      %2280 = vdwg.mxu0
      %v2281 = vsel %vm1211, %v2126, -inf
      %2282 = vmax.xlane.f32.xlu0 %v2281
      %v2283 = vpop.xlane.xlu0 %2282
      %v2284 = vsel %vm1211, %v2176, -inf
      %2285 = vmax.xlane.f32.xlu0 %v2284
      %v2286 = vpop.xlane.xlu0 %2285
      %v2287 = vsel %vm1211, %v2226, -inf
      %2288 = vmax.xlane.f32.xlu0 %v2287
      %v2289 = vpop.xlane.xlu0 %2288
      %v2290 = vsel %vm1211, %v2276, -inf
      %2291 = vmax.xlane.f32.xlu0 %v2290
      %v2292 = vpop.xlane.xlu0 %2291
      %v2293 = vsub.f32 %v2126, %v2283
      %v2294 = vsub.f32 %v2176, %v2286
      %v2295 = vsub.f32 %v2226, %v2289
      %v2296 = vsub.f32 %v2276, %v2292
      %v2297 = vmul.f32 %v2293, 1.442695
      %v2298 = vpow.pop %v2297
      %v2299 = vmul.f32 %v2294, 1.442695
      %v2300 = vpow.pop %v2299
      %v2301 = vmul.f32 %v2295, 1.442695
      %v2302 = vpow.pop %v2301
      %v2303 = vmul.f32 %v2296, 1.442695
      %v2304 = vpow.pop %v2303
      %v2305 = vsel %vm1211, %v2298, 0.0
      %2306 = vadd.xlane.f32.xlu0 %v2305
      %v2307 = vpop.xlane.xlu0 %2306
      %v2308 = vsel %vm1211, %v2300, 0.0
      %2309 = vadd.xlane.f32.xlu0 %v2308
      %v2310 = vpop.xlane.xlu0 %2309
      %v2311 = vsel %vm1211, %v2302, 0.0
      %2312 = vadd.xlane.f32.xlu0 %v2311
      %v2313 = vpop.xlane.xlu0 %2312
      %v2314 = vsel %vm1211, %v2304, 0.0
      %2315 = vadd.xlane.f32.xlu0 %v2314
      %v2316 = vpop.xlane.xlu0 %2315
      %v2317 = vrcp.pop %v2307
      %v2318 = vrcp.pop %v2310
      %v2319 = vrcp.pop %v2313
      %v2320 = vrcp.pop %v2316
      %v2321 = vmul.f32 %v2298, %v2317
      %v2322 = vmul.f32 %v2300, %v2318
      %v2323 = vmul.f32 %v2302, %v2319
      %v2324 = vmul.f32 %v2304, %v2320
      %v2325 = vpack.c.bf16 %v2321, %v2321
      %v2326 = vpack.c.bf16 %v2322, %v2322
      %v2327 = vpack.c.bf16 %v2323, %v2323
      %v2328 = vpack.c.bf16 %v2324, %v2324
      %2329 = vrot.lane.b32.xlu0 %v1183, 112
      %v2330 = vpop.permute.xlu0 %2329
      %v2332 = vsel %vm1211, %v2325, 0
      %v2335 = vsel %vm1447, %v2330, 0
      %2337 = vmatprep.subr.bf16.mxu0 0
      %2338 = vmatpush1.bf16.msra.mxu0 %v2335
      %2339 = vmatprep.subr.bf16.mxu0 0
      %2340 = vmatpush1.bf16.msra.mxu0 0
      %2341 = vmatprep.subr.bf16.mxu0 0
      %2342 = vmatpush1.bf16.msra.mxu0 0
      %2343 = vmatprep.subr.bf16.mxu0 0
      %2344 = vmatpush1.bf16.msra.mxu0 0
      %2345 = vmatprep.subr.bf16.mxu0 0
      %2346 = vmatpush1.bf16.msra.mxu0 0
      %2347 = vmatprep.subr.bf16.mxu0 0
      %2348 = vmatpush1.bf16.msra.mxu0 0
      %2349 = vmatprep.subr.bf16.mxu0 0
      %2350 = vmatpush1.bf16.msra.mxu0 0
      %2351 = vmatprep.subr.bf16.mxu0 0
      %2352 = vmatpush1.bf16.msra.mxu0 0
      %2353 = vmatprep.subr.bf16.mxu0 0
      %2354 = vmatpush1.bf16.msra.mxu0 0
      %2355 = vmatprep.subr.bf16.mxu0 0
      %2356 = vmatpush1.bf16.msra.mxu0 0
      %2357 = vmatprep.subr.bf16.mxu0 0
      %2358 = vmatpush1.bf16.msra.mxu0 0
      %2359 = vmatprep.subr.bf16.mxu0 0
      %2360 = vmatpush1.bf16.msra.mxu0 0
      %2361 = vmatprep.subr.bf16.mxu0 0
      %2362 = vmatpush1.bf16.msra.mxu0 0
      %2363 = vmatprep.subr.bf16.mxu0 0
      %2364 = vmatpush1.bf16.msra.mxu0 0
      %2365 = vmatprep.subr.bf16.mxu0 0
      %2366 = vmatpush1.bf16.msra.mxu0 0
      %2367 = vmatprep.subr.bf16.mxu0 0
      %2368 = vmatpush1.bf16.msra.mxu0 0
      %2369 = vmatprep.mubr.bf16.mxu0 0
      %2370 = vmatmul.mubr.bf16.gmra.mrb[0].mxu0 %v2332
      %v2371 = vpop.f32.mrb[0].mxu0
      %v2372 = vadd.f32 0.0, %v2371
      %v2373 = vpop.f32.mrb[0].mxu0
      %v2374 = vpop.f32.mrb[0].mxu0
      %v2375 = vpop.f32.mrb[0].mxu0
      %2376 = vdwg.mxu0
      %2377 = vrot.lane.b32.xlu0 %v1184, 112
      %v2378 = vpop.permute.xlu0 %2377
      %v2380 = vsel %vm1211, %v2326, 0
      %v2383 = vsel %vm1447, %v2378, 0
      %2385 = vmatprep.subr.bf16.mxu0 0
      %2386 = vmatpush1.bf16.msra.mxu0 %v2383
      %2387 = vmatprep.subr.bf16.mxu0 0
      %2388 = vmatpush1.bf16.msra.mxu0 0
      %2389 = vmatprep.subr.bf16.mxu0 0
      %2390 = vmatpush1.bf16.msra.mxu0 0
      %2391 = vmatprep.subr.bf16.mxu0 0
      %2392 = vmatpush1.bf16.msra.mxu0 0
      %2393 = vmatprep.subr.bf16.mxu0 0
      %2394 = vmatpush1.bf16.msra.mxu0 0
      %2395 = vmatprep.subr.bf16.mxu0 0
      %2396 = vmatpush1.bf16.msra.mxu0 0
      %2397 = vmatprep.subr.bf16.mxu0 0
      %2398 = vmatpush1.bf16.msra.mxu0 0
      %2399 = vmatprep.subr.bf16.mxu0 0
      %2400 = vmatpush1.bf16.msra.mxu0 0
      %2401 = vmatprep.subr.bf16.mxu0 0
      %2402 = vmatpush1.bf16.msra.mxu0 0
      %2403 = vmatprep.subr.bf16.mxu0 0
      %2404 = vmatpush1.bf16.msra.mxu0 0
      %2405 = vmatprep.subr.bf16.mxu0 0
      %2406 = vmatpush1.bf16.msra.mxu0 0
      %2407 = vmatprep.subr.bf16.mxu0 0
      %2408 = vmatpush1.bf16.msra.mxu0 0
      %2409 = vmatprep.subr.bf16.mxu0 0
      %2410 = vmatpush1.bf16.msra.mxu0 0
      %2411 = vmatprep.subr.bf16.mxu0 0
      %2412 = vmatpush1.bf16.msra.mxu0 0
      %2413 = vmatprep.subr.bf16.mxu0 0
      %2414 = vmatpush1.bf16.msra.mxu0 0
      %2415 = vmatprep.subr.bf16.mxu0 0
      %2416 = vmatpush1.bf16.msra.mxu0 0
      %2417 = vmatprep.mubr.bf16.mxu0 0
      %2418 = vmatmul.mubr.bf16.gmra.mrb[0].mxu0 %v2380
      %v2419 = vpop.f32.mrb[0].mxu0
      %v2420 = vadd.f32 0.0, %v2419
      %v2421 = vpop.f32.mrb[0].mxu0
      %v2422 = vpop.f32.mrb[0].mxu0
      %v2423 = vpop.f32.mrb[0].mxu0
      %2424 = vdwg.mxu0
      %2425 = vrot.lane.b32.xlu0 %v1185, 112
      %v2426 = vpop.permute.xlu0 %2425
      %v2428 = vsel %vm1211, %v2327, 0
      %v2431 = vsel %vm1447, %v2426, 0
      %2433 = vmatprep.subr.bf16.mxu0 0
      %2434 = vmatpush1.bf16.msra.mxu0 %v2431
      %2435 = vmatprep.subr.bf16.mxu0 0
      %2436 = vmatpush1.bf16.msra.mxu0 0
      %2437 = vmatprep.subr.bf16.mxu0 0
      %2438 = vmatpush1.bf16.msra.mxu0 0
      %2439 = vmatprep.subr.bf16.mxu0 0
      %2440 = vmatpush1.bf16.msra.mxu0 0
      %2441 = vmatprep.subr.bf16.mxu0 0
      %2442 = vmatpush1.bf16.msra.mxu0 0
      %2443 = vmatprep.subr.bf16.mxu0 0
      %2444 = vmatpush1.bf16.msra.mxu0 0
      %2445 = vmatprep.subr.bf16.mxu0 0
      %2446 = vmatpush1.bf16.msra.mxu0 0
      %2447 = vmatprep.subr.bf16.mxu0 0
      %2448 = vmatpush1.bf16.msra.mxu0 0
      %2449 = vmatprep.subr.bf16.mxu0 0
      %2450 = vmatpush1.bf16.msra.mxu0 0
      %2451 = vmatprep.subr.bf16.mxu0 0
      %2452 = vmatpush1.bf16.msra.mxu0 0
      %2453 = vmatprep.subr.bf16.mxu0 0
      %2454 = vmatpush1.bf16.msra.mxu0 0
      %2455 = vmatprep.subr.bf16.mxu0 0
      %2456 = vmatpush1.bf16.msra.mxu0 0
      %2457 = vmatprep.subr.bf16.mxu0 0
      %2458 = vmatpush1.bf16.msra.mxu0 0
      %2459 = vmatprep.subr.bf16.mxu0 0
      %2460 = vmatpush1.bf16.msra.mxu0 0
      %2461 = vmatprep.subr.bf16.mxu0 0
      %2462 = vmatpush1.bf16.msra.mxu0 0
      %2463 = vmatprep.subr.bf16.mxu0 0
      %2464 = vmatpush1.bf16.msra.mxu0 0
      %2465 = vmatprep.mubr.bf16.mxu0 0
      %2466 = vmatmul.mubr.bf16.gmra.mrb[0].mxu0 %v2428
      %v2467 = vpop.f32.mrb[0].mxu0
      %v2468 = vadd.f32 0.0, %v2467
      %v2469 = vpop.f32.mrb[0].mxu0
      %v2470 = vpop.f32.mrb[0].mxu0
      %v2471 = vpop.f32.mrb[0].mxu0
      %2472 = vdwg.mxu0
      %2473 = vrot.lane.b32.xlu0 %v1186, 112
      %v2474 = vpop.permute.xlu0 %2473
      %v2476 = vsel %vm1211, %v2328, 0
      %v2479 = vsel %vm1447, %v2474, 0
      %2481 = vmatprep.subr.bf16.mxu0 0
      %2482 = vmatpush1.bf16.msra.mxu0 %v2479
      %2483 = vmatprep.subr.bf16.mxu0 0
      %2484 = vmatpush1.bf16.msra.mxu0 0
      %2485 = vmatprep.subr.bf16.mxu0 0
      %2486 = vmatpush1.bf16.msra.mxu0 0
      %2487 = vmatprep.subr.bf16.mxu0 0
      %2488 = vmatpush1.bf16.msra.mxu0 0
      %2489 = vmatprep.subr.bf16.mxu0 0
      %2490 = vmatpush1.bf16.msra.mxu0 0
      %2491 = vmatprep.subr.bf16.mxu0 0
      %2492 = vmatpush1.bf16.msra.mxu0 0
      %2493 = vmatprep.subr.bf16.mxu0 0
      %2494 = vmatpush1.bf16.msra.mxu0 0
      %2495 = vmatprep.subr.bf16.mxu0 0
      %2496 = vmatpush1.bf16.msra.mxu0 0
      %2497 = vmatprep.subr.bf16.mxu0 0
      %2498 = vmatpush1.bf16.msra.mxu0 0
      %2499 = vmatprep.subr.bf16.mxu0 0
      %2500 = vmatpush1.bf16.msra.mxu0 0
      %2501 = vmatprep.subr.bf16.mxu0 0
      %2502 = vmatpush1.bf16.msra.mxu0 0
      %2503 = vmatprep.subr.bf16.mxu0 0
      %2504 = vmatpush1.bf16.msra.mxu0 0
      %2505 = vmatprep.subr.bf16.mxu0 0
      %2506 = vmatpush1.bf16.msra.mxu0 0
      %2507 = vmatprep.subr.bf16.mxu0 0
      %2508 = vmatpush1.bf16.msra.mxu0 0
      %2509 = vmatprep.subr.bf16.mxu0 0
      %2510 = vmatpush1.bf16.msra.mxu0 0
      %2511 = vmatprep.subr.bf16.mxu0 0
      %2512 = vmatpush1.bf16.msra.mxu0 0
      %2513 = vmatprep.mubr.bf16.mxu0 0
      %2514 = vmatmul.mubr.bf16.gmra.mrb[0].mxu0 %v2476
      %v2515 = vpop.f32.mrb[0].mxu0
      %v2516 = vadd.f32 0.0, %v2515
      %v2517 = vpop.f32.mrb[0].mxu0
      %v2518 = vpop.f32.mrb[0].mxu0
      %v2519 = vpop.f32.mrb[0].mxu0
      %2520 = vdwg.mxu0
      %2521 = vrot.lane.b32.xlu0 %v1175, 104
      %v2522 = vpop.permute.xlu0 %2521
      %2523 = vrot.lane.b32.xlu0 %v1179, 104
      %v2524 = vpop.permute.xlu0 %2523
      %v2526 = vsel %vm1211, %v2522, 0
      %v2529 = vsel %vm1211, %v2524, 0
      %2531 = vmatprep.subr.bf16.mxu0 0
      %2532 = vmatpush1.bf16.xpose.msra.mxu0 %v2529
      %2533 = vmatprep.subr.bf16.mxu0 0
      %2534 = vmatpush1.bf16.xpose.msra.mxu0 0
      %2535 = vmatprep.subr.bf16.mxu0 0
      %2536 = vmatpush1.bf16.xpose.msra.mxu0 0
      %2537 = vmatprep.subr.bf16.mxu0 0
      %2538 = vmatpush1.bf16.xpose.msra.mxu0 0
      %2539 = vmatprep.subr.bf16.mxu0 0
      %2540 = vmatpush1.bf16.xpose.msra.mxu0 0
      %2541 = vmatprep.subr.bf16.mxu0 0
      %2542 = vmatpush1.bf16.xpose.msra.mxu0 0
      %2543 = vmatprep.subr.bf16.mxu0 0
      %2544 = vmatpush1.bf16.xpose.msra.mxu0 0
      %2545 = vmatprep.subr.bf16.mxu0 0
      %2546 = vmatpush1.bf16.xpose.msra.mxu0 0
      %2547 = vmatprep.subr.bf16.mxu0 0
      %2548 = vmatpush1.bf16.xpose.msra.mxu0 0
      %2549 = vmatprep.subr.bf16.mxu0 0
      %2550 = vmatpush1.bf16.xpose.msra.mxu0 0
      %2551 = vmatprep.subr.bf16.mxu0 0
      %2552 = vmatpush1.bf16.xpose.msra.mxu0 0
      %2553 = vmatprep.subr.bf16.mxu0 0
      %2554 = vmatpush1.bf16.xpose.msra.mxu0 0
      %2555 = vmatprep.subr.bf16.mxu0 0
      %2556 = vmatpush1.bf16.xpose.msra.mxu0 0
      %2557 = vmatprep.subr.bf16.mxu0 0
      %2558 = vmatpush1.bf16.xpose.msra.mxu0 0
      %2559 = vmatprep.subr.bf16.mxu0 0
      %2560 = vmatpush1.bf16.xpose.msra.mxu0 0
      %2561 = vmatprep.subr.bf16.mxu0 0
      %2562 = vmatpush1.bf16.xpose.msra.mxu0 0
      %2563 = vmatprep.mubr.bf16.mxu0 0
      %2564 = vmatmul.mubr.bf16.gmra.mrb[0].mxu0 %v2526
      %v2565 = vpop.f32.mrb[0].mxu0
      %v2566 = vadd.f32 %v1194, %v2565
      %v2567 = vpop.f32.mrb[0].mxu0
      %v2568 = vpop.f32.mrb[0].mxu0
      %v2569 = vpop.f32.mrb[0].mxu0
      %2570 = vdwg.mxu0
      %2571 = vrot.lane.b32.xlu0 %v1176, 104
      %v2572 = vpop.permute.xlu0 %2571
      %2573 = vrot.lane.b32.xlu0 %v1180, 104
      %v2574 = vpop.permute.xlu0 %2573
      %v2576 = vsel %vm1211, %v2572, 0
      %v2579 = vsel %vm1211, %v2574, 0
      %2581 = vmatprep.subr.bf16.mxu0 0
      %2582 = vmatpush1.bf16.xpose.msra.mxu0 %v2579
      %2583 = vmatprep.subr.bf16.mxu0 0
      %2584 = vmatpush1.bf16.xpose.msra.mxu0 0
      %2585 = vmatprep.subr.bf16.mxu0 0
      %2586 = vmatpush1.bf16.xpose.msra.mxu0 0
      %2587 = vmatprep.subr.bf16.mxu0 0
      %2588 = vmatpush1.bf16.xpose.msra.mxu0 0
      %2589 = vmatprep.subr.bf16.mxu0 0
      %2590 = vmatpush1.bf16.xpose.msra.mxu0 0
      %2591 = vmatprep.subr.bf16.mxu0 0
      %2592 = vmatpush1.bf16.xpose.msra.mxu0 0
      %2593 = vmatprep.subr.bf16.mxu0 0
      %2594 = vmatpush1.bf16.xpose.msra.mxu0 0
      %2595 = vmatprep.subr.bf16.mxu0 0
      %2596 = vmatpush1.bf16.xpose.msra.mxu0 0
      %2597 = vmatprep.subr.bf16.mxu0 0
      %2598 = vmatpush1.bf16.xpose.msra.mxu0 0
      %2599 = vmatprep.subr.bf16.mxu0 0
      %2600 = vmatpush1.bf16.xpose.msra.mxu0 0
      %2601 = vmatprep.subr.bf16.mxu0 0
      %2602 = vmatpush1.bf16.xpose.msra.mxu0 0
      %2603 = vmatprep.subr.bf16.mxu0 0
      %2604 = vmatpush1.bf16.xpose.msra.mxu0 0
      %2605 = vmatprep.subr.bf16.mxu0 0
      %2606 = vmatpush1.bf16.xpose.msra.mxu0 0
      %2607 = vmatprep.subr.bf16.mxu0 0
      %2608 = vmatpush1.bf16.xpose.msra.mxu0 0
      %2609 = vmatprep.subr.bf16.mxu0 0
      %2610 = vmatpush1.bf16.xpose.msra.mxu0 0
      %2611 = vmatprep.subr.bf16.mxu0 0
      %2612 = vmatpush1.bf16.xpose.msra.mxu0 0
      %2613 = vmatprep.mubr.bf16.mxu0 0
      %2614 = vmatmul.mubr.bf16.gmra.mrb[0].mxu0 %v2576
      %v2615 = vpop.f32.mrb[0].mxu0
      %v2616 = vadd.f32 %v1198, %v2615
      %v2617 = vpop.f32.mrb[0].mxu0
      %v2618 = vpop.f32.mrb[0].mxu0
      %v2619 = vpop.f32.mrb[0].mxu0
      %2620 = vdwg.mxu0
      %2621 = vrot.lane.b32.xlu0 %v1177, 104
      %v2622 = vpop.permute.xlu0 %2621
      %2623 = vrot.lane.b32.xlu0 %v1181, 104
      %v2624 = vpop.permute.xlu0 %2623
      %v2626 = vsel %vm1211, %v2622, 0
      %v2629 = vsel %vm1211, %v2624, 0
      %2631 = vmatprep.subr.bf16.mxu0 0
      %2632 = vmatpush1.bf16.xpose.msra.mxu0 %v2629
      %2633 = vmatprep.subr.bf16.mxu0 0
      %2634 = vmatpush1.bf16.xpose.msra.mxu0 0
      %2635 = vmatprep.subr.bf16.mxu0 0
      %2636 = vmatpush1.bf16.xpose.msra.mxu0 0
      %2637 = vmatprep.subr.bf16.mxu0 0
      %2638 = vmatpush1.bf16.xpose.msra.mxu0 0
      %2639 = vmatprep.subr.bf16.mxu0 0
      %2640 = vmatpush1.bf16.xpose.msra.mxu0 0
      %2641 = vmatprep.subr.bf16.mxu0 0
      %2642 = vmatpush1.bf16.xpose.msra.mxu0 0
      %2643 = vmatprep.subr.bf16.mxu0 0
      %2644 = vmatpush1.bf16.xpose.msra.mxu0 0
      %2645 = vmatprep.subr.bf16.mxu0 0
      %2646 = vmatpush1.bf16.xpose.msra.mxu0 0
      %2647 = vmatprep.subr.bf16.mxu0 0
      %2648 = vmatpush1.bf16.xpose.msra.mxu0 0
      %2649 = vmatprep.subr.bf16.mxu0 0
      %2650 = vmatpush1.bf16.xpose.msra.mxu0 0
      %2651 = vmatprep.subr.bf16.mxu0 0
      %2652 = vmatpush1.bf16.xpose.msra.mxu0 0
      %2653 = vmatprep.subr.bf16.mxu0 0
      %2654 = vmatpush1.bf16.xpose.msra.mxu0 0
      %2655 = vmatprep.subr.bf16.mxu0 0
      %2656 = vmatpush1.bf16.xpose.msra.mxu0 0
      %2657 = vmatprep.subr.bf16.mxu0 0
      %2658 = vmatpush1.bf16.xpose.msra.mxu0 0
      %2659 = vmatprep.subr.bf16.mxu0 0
      %2660 = vmatpush1.bf16.xpose.msra.mxu0 0
      %2661 = vmatprep.subr.bf16.mxu0 0
      %2662 = vmatpush1.bf16.xpose.msra.mxu0 0
      %2663 = vmatprep.mubr.bf16.mxu0 0
      %2664 = vmatmul.mubr.bf16.gmra.mrb[0].mxu0 %v2626
      %v2665 = vpop.f32.mrb[0].mxu0
      %v2666 = vadd.f32 %v1202, %v2665
      %v2667 = vpop.f32.mrb[0].mxu0
      %v2668 = vpop.f32.mrb[0].mxu0
      %v2669 = vpop.f32.mrb[0].mxu0
      %2670 = vdwg.mxu0
      %2671 = vrot.lane.b32.xlu0 %v1178, 104
      %v2672 = vpop.permute.xlu0 %2671
      %2673 = vrot.lane.b32.xlu0 %v1182, 104
      %v2674 = vpop.permute.xlu0 %2673
      %v2676 = vsel %vm1211, %v2672, 0
      %v2679 = vsel %vm1211, %v2674, 0
      %2681 = vmatprep.subr.bf16.mxu0 0
      %2682 = vmatpush1.bf16.xpose.msra.mxu0 %v2679
      %2683 = vmatprep.subr.bf16.mxu0 0
      %2684 = vmatpush1.bf16.xpose.msra.mxu0 0
      %2685 = vmatprep.subr.bf16.mxu0 0
      %2686 = vmatpush1.bf16.xpose.msra.mxu0 0
      %2687 = vmatprep.subr.bf16.mxu0 0
      %2688 = vmatpush1.bf16.xpose.msra.mxu0 0
      %2689 = vmatprep.subr.bf16.mxu0 0
      %2690 = vmatpush1.bf16.xpose.msra.mxu0 0
      %2691 = vmatprep.subr.bf16.mxu0 0
      %2692 = vmatpush1.bf16.xpose.msra.mxu0 0
      %2693 = vmatprep.subr.bf16.mxu0 0
      %2694 = vmatpush1.bf16.xpose.msra.mxu0 0
      %2695 = vmatprep.subr.bf16.mxu0 0
      %2696 = vmatpush1.bf16.xpose.msra.mxu0 0
      %2697 = vmatprep.subr.bf16.mxu0 0
      %2698 = vmatpush1.bf16.xpose.msra.mxu0 0
      %2699 = vmatprep.subr.bf16.mxu0 0
      %2700 = vmatpush1.bf16.xpose.msra.mxu0 0
      %2701 = vmatprep.subr.bf16.mxu0 0
      %2702 = vmatpush1.bf16.xpose.msra.mxu0 0
      %2703 = vmatprep.subr.bf16.mxu0 0
      %2704 = vmatpush1.bf16.xpose.msra.mxu0 0
      %2705 = vmatprep.subr.bf16.mxu0 0
      %2706 = vmatpush1.bf16.xpose.msra.mxu0 0
      %2707 = vmatprep.subr.bf16.mxu0 0
      %2708 = vmatpush1.bf16.xpose.msra.mxu0 0
      %2709 = vmatprep.subr.bf16.mxu0 0
      %2710 = vmatpush1.bf16.xpose.msra.mxu0 0
      %2711 = vmatprep.subr.bf16.mxu0 0
      %2712 = vmatpush1.bf16.xpose.msra.mxu0 0
      %2713 = vmatprep.mubr.bf16.mxu0 0
      %2714 = vmatmul.mubr.bf16.gmra.mrb[0].mxu0 %v2676
      %v2715 = vpop.f32.mrb[0].mxu0
      %v2716 = vadd.f32 %v1206, %v2715
      %v2717 = vpop.f32.mrb[0].mxu0
      %v2718 = vpop.f32.mrb[0].mxu0
      %v2719 = vpop.f32.mrb[0].mxu0
      %2720 = vdwg.mxu0
      %v2721 = vsel %vm1211, %v2566, -inf
      %2722 = vmax.xlane.f32.xlu0 %v2721
      %v2723 = vpop.xlane.xlu0 %2722
      %v2724 = vsel %vm1211, %v2616, -inf
      %2725 = vmax.xlane.f32.xlu0 %v2724
      %v2726 = vpop.xlane.xlu0 %2725
      %v2727 = vsel %vm1211, %v2666, -inf
      %2728 = vmax.xlane.f32.xlu0 %v2727
      %v2729 = vpop.xlane.xlu0 %2728
      %v2730 = vsel %vm1211, %v2716, -inf
      %2731 = vmax.xlane.f32.xlu0 %v2730
      %v2732 = vpop.xlane.xlu0 %2731
      %v2733 = vsub.f32 %v2566, %v2723
      %v2734 = vsub.f32 %v2616, %v2726
      %v2735 = vsub.f32 %v2666, %v2729
      %v2736 = vsub.f32 %v2716, %v2732
      %v2737 = vmul.f32 %v2733, 1.442695
      %v2738 = vpow.pop %v2737
      %v2739 = vmul.f32 %v2734, 1.442695
      %v2740 = vpow.pop %v2739
      %v2741 = vmul.f32 %v2735, 1.442695
      %v2742 = vpow.pop %v2741
      %v2743 = vmul.f32 %v2736, 1.442695
      %v2744 = vpow.pop %v2743
      %v2745 = vsel %vm1211, %v2738, 0.0
      %2746 = vadd.xlane.f32.xlu0 %v2745
      %v2747 = vpop.xlane.xlu0 %2746
      %v2748 = vsel %vm1211, %v2740, 0.0
      %2749 = vadd.xlane.f32.xlu0 %v2748
      %v2750 = vpop.xlane.xlu0 %2749
      %v2751 = vsel %vm1211, %v2742, 0.0
      %2752 = vadd.xlane.f32.xlu0 %v2751
      %v2753 = vpop.xlane.xlu0 %2752
      %v2754 = vsel %vm1211, %v2744, 0.0
      %2755 = vadd.xlane.f32.xlu0 %v2754
      %v2756 = vpop.xlane.xlu0 %2755
      %v2757 = vrcp.pop %v2747
      %v2758 = vrcp.pop %v2750
      %v2759 = vrcp.pop %v2753
      %v2760 = vrcp.pop %v2756
      %v2761 = vmul.f32 %v2738, %v2757
      %v2762 = vmul.f32 %v2740, %v2758
      %v2763 = vmul.f32 %v2742, %v2759
      %v2764 = vmul.f32 %v2744, %v2760
      %v2765 = vpack.c.bf16 %v2761, %v2761
      %v2766 = vpack.c.bf16 %v2762, %v2762
      %v2767 = vpack.c.bf16 %v2763, %v2763
      %v2768 = vpack.c.bf16 %v2764, %v2764
      %2769 = vrot.lane.b32.xlu0 %v1183, 104
      %v2770 = vpop.permute.xlu0 %2769
      %v2772 = vsel %vm1211, %v2765, 0
      %v2775 = vsel %vm1447, %v2770, 0
      %2777 = vmatprep.subr.bf16.mxu0 0
      %2778 = vmatpush1.bf16.msra.mxu0 %v2775
      %2779 = vmatprep.subr.bf16.mxu0 0
      %2780 = vmatpush1.bf16.msra.mxu0 0
      %2781 = vmatprep.subr.bf16.mxu0 0
      %2782 = vmatpush1.bf16.msra.mxu0 0
      %2783 = vmatprep.subr.bf16.mxu0 0
      %2784 = vmatpush1.bf16.msra.mxu0 0
      %2785 = vmatprep.subr.bf16.mxu0 0
      %2786 = vmatpush1.bf16.msra.mxu0 0
      %2787 = vmatprep.subr.bf16.mxu0 0
      %2788 = vmatpush1.bf16.msra.mxu0 0
      %2789 = vmatprep.subr.bf16.mxu0 0
      %2790 = vmatpush1.bf16.msra.mxu0 0
      %2791 = vmatprep.subr.bf16.mxu0 0
      %2792 = vmatpush1.bf16.msra.mxu0 0
      %2793 = vmatprep.subr.bf16.mxu0 0
      %2794 = vmatpush1.bf16.msra.mxu0 0
      %2795 = vmatprep.subr.bf16.mxu0 0
      %2796 = vmatpush1.bf16.msra.mxu0 0
      %2797 = vmatprep.subr.bf16.mxu0 0
      %2798 = vmatpush1.bf16.msra.mxu0 0
      %2799 = vmatprep.subr.bf16.mxu0 0
      %2800 = vmatpush1.bf16.msra.mxu0 0
      %2801 = vmatprep.subr.bf16.mxu0 0
      %2802 = vmatpush1.bf16.msra.mxu0 0
      %2803 = vmatprep.subr.bf16.mxu0 0
      %2804 = vmatpush1.bf16.msra.mxu0 0
      %2805 = vmatprep.subr.bf16.mxu0 0
      %2806 = vmatpush1.bf16.msra.mxu0 0
      %2807 = vmatprep.subr.bf16.mxu0 0
      %2808 = vmatpush1.bf16.msra.mxu0 0
      %2809 = vmatprep.mubr.bf16.mxu0 0
      %2810 = vmatmul.mubr.bf16.gmra.mrb[0].mxu0 %v2772
      %v2811 = vpop.f32.mrb[0].mxu0
      %v2812 = vadd.f32 0.0, %v2811
      %v2813 = vpop.f32.mrb[0].mxu0
      %v2814 = vpop.f32.mrb[0].mxu0
      %v2815 = vpop.f32.mrb[0].mxu0
      %2816 = vdwg.mxu0
      %2817 = vrot.lane.b32.xlu0 %v1184, 104
      %v2818 = vpop.permute.xlu0 %2817
      %v2820 = vsel %vm1211, %v2766, 0
      %v2823 = vsel %vm1447, %v2818, 0
      %2825 = vmatprep.subr.bf16.mxu0 0
      %2826 = vmatpush1.bf16.msra.mxu0 %v2823
      %2827 = vmatprep.subr.bf16.mxu0 0
      %2828 = vmatpush1.bf16.msra.mxu0 0
      %2829 = vmatprep.subr.bf16.mxu0 0
      %2830 = vmatpush1.bf16.msra.mxu0 0
      %2831 = vmatprep.subr.bf16.mxu0 0
      %2832 = vmatpush1.bf16.msra.mxu0 0
      %2833 = vmatprep.subr.bf16.mxu0 0
      %2834 = vmatpush1.bf16.msra.mxu0 0
      %2835 = vmatprep.subr.bf16.mxu0 0
      %2836 = vmatpush1.bf16.msra.mxu0 0
      %2837 = vmatprep.subr.bf16.mxu0 0
      %2838 = vmatpush1.bf16.msra.mxu0 0
      %2839 = vmatprep.subr.bf16.mxu0 0
      %2840 = vmatpush1.bf16.msra.mxu0 0
      %2841 = vmatprep.subr.bf16.mxu0 0
      %2842 = vmatpush1.bf16.msra.mxu0 0
      %2843 = vmatprep.subr.bf16.mxu0 0
      %2844 = vmatpush1.bf16.msra.mxu0 0
      %2845 = vmatprep.subr.bf16.mxu0 0
      %2846 = vmatpush1.bf16.msra.mxu0 0
      %2847 = vmatprep.subr.bf16.mxu0 0
      %2848 = vmatpush1.bf16.msra.mxu0 0
      %2849 = vmatprep.subr.bf16.mxu0 0
      %2850 = vmatpush1.bf16.msra.mxu0 0
      %2851 = vmatprep.subr.bf16.mxu0 0
      %2852 = vmatpush1.bf16.msra.mxu0 0
      %2853 = vmatprep.subr.bf16.mxu0 0
      %2854 = vmatpush1.bf16.msra.mxu0 0
      %2855 = vmatprep.subr.bf16.mxu0 0
      %2856 = vmatpush1.bf16.msra.mxu0 0
      %2857 = vmatprep.mubr.bf16.mxu0 0
      %2858 = vmatmul.mubr.bf16.gmra.mrb[0].mxu0 %v2820
      %v2859 = vpop.f32.mrb[0].mxu0
      %v2860 = vadd.f32 0.0, %v2859
      %v2861 = vpop.f32.mrb[0].mxu0
      %v2862 = vpop.f32.mrb[0].mxu0
      %v2863 = vpop.f32.mrb[0].mxu0
      %2864 = vdwg.mxu0
      %2865 = vrot.lane.b32.xlu0 %v1185, 104
      %v2866 = vpop.permute.xlu0 %2865
      %v2868 = vsel %vm1211, %v2767, 0
      %v2871 = vsel %vm1447, %v2866, 0
      %2873 = vmatprep.subr.bf16.mxu0 0
      %2874 = vmatpush1.bf16.msra.mxu0 %v2871
      %2875 = vmatprep.subr.bf16.mxu0 0
      %2876 = vmatpush1.bf16.msra.mxu0 0
      %2877 = vmatprep.subr.bf16.mxu0 0
      %2878 = vmatpush1.bf16.msra.mxu0 0
      %2879 = vmatprep.subr.bf16.mxu0 0
      %2880 = vmatpush1.bf16.msra.mxu0 0
      %2881 = vmatprep.subr.bf16.mxu0 0
      %2882 = vmatpush1.bf16.msra.mxu0 0
      %2883 = vmatprep.subr.bf16.mxu0 0
      %2884 = vmatpush1.bf16.msra.mxu0 0
      %2885 = vmatprep.subr.bf16.mxu0 0
      %2886 = vmatpush1.bf16.msra.mxu0 0
      %2887 = vmatprep.subr.bf16.mxu0 0
      %2888 = vmatpush1.bf16.msra.mxu0 0
      %2889 = vmatprep.subr.bf16.mxu0 0
      %2890 = vmatpush1.bf16.msra.mxu0 0
      %2891 = vmatprep.subr.bf16.mxu0 0
      %2892 = vmatpush1.bf16.msra.mxu0 0
      %2893 = vmatprep.subr.bf16.mxu0 0
      %2894 = vmatpush1.bf16.msra.mxu0 0
      %2895 = vmatprep.subr.bf16.mxu0 0
      %2896 = vmatpush1.bf16.msra.mxu0 0
      %2897 = vmatprep.subr.bf16.mxu0 0
      %2898 = vmatpush1.bf16.msra.mxu0 0
      %2899 = vmatprep.subr.bf16.mxu0 0
      %2900 = vmatpush1.bf16.msra.mxu0 0
      %2901 = vmatprep.subr.bf16.mxu0 0
      %2902 = vmatpush1.bf16.msra.mxu0 0
      %2903 = vmatprep.subr.bf16.mxu0 0
      %2904 = vmatpush1.bf16.msra.mxu0 0
      %2905 = vmatprep.mubr.bf16.mxu0 0
      %2906 = vmatmul.mubr.bf16.gmra.mrb[0].mxu0 %v2868
      %v2907 = vpop.f32.mrb[0].mxu0
      %v2908 = vadd.f32 0.0, %v2907
      %v2909 = vpop.f32.mrb[0].mxu0
      %v2910 = vpop.f32.mrb[0].mxu0
      %v2911 = vpop.f32.mrb[0].mxu0
      %2912 = vdwg.mxu0
      %2913 = vrot.lane.b32.xlu0 %v1186, 104
      %v2914 = vpop.permute.xlu0 %2913
      %v2916 = vsel %vm1211, %v2768, 0
      %v2919 = vsel %vm1447, %v2914, 0
      %2921 = vmatprep.subr.bf16.mxu0 0
      %2922 = vmatpush1.bf16.msra.mxu0 %v2919
      %2923 = vmatprep.subr.bf16.mxu0 0
      %2924 = vmatpush1.bf16.msra.mxu0 0
      %2925 = vmatprep.subr.bf16.mxu0 0
      %2926 = vmatpush1.bf16.msra.mxu0 0
      %2927 = vmatprep.subr.bf16.mxu0 0
      %2928 = vmatpush1.bf16.msra.mxu0 0
      %2929 = vmatprep.subr.bf16.mxu0 0
      %2930 = vmatpush1.bf16.msra.mxu0 0
      %2931 = vmatprep.subr.bf16.mxu0 0
      %2932 = vmatpush1.bf16.msra.mxu0 0
      %2933 = vmatprep.subr.bf16.mxu0 0
      %2934 = vmatpush1.bf16.msra.mxu0 0
      %2935 = vmatprep.subr.bf16.mxu0 0
      %2936 = vmatpush1.bf16.msra.mxu0 0
      %2937 = vmatprep.subr.bf16.mxu0 0
      %2938 = vmatpush1.bf16.msra.mxu0 0
      %2939 = vmatprep.subr.bf16.mxu0 0
      %2940 = vmatpush1.bf16.msra.mxu0 0
      %2941 = vmatprep.subr.bf16.mxu0 0
      %2942 = vmatpush1.bf16.msra.mxu0 0
      %2943 = vmatprep.subr.bf16.mxu0 0
      %2944 = vmatpush1.bf16.msra.mxu0 0
      %2945 = vmatprep.subr.bf16.mxu0 0
      %2946 = vmatpush1.bf16.msra.mxu0 0
      %2947 = vmatprep.subr.bf16.mxu0 0
      %2948 = vmatpush1.bf16.msra.mxu0 0
      %2949 = vmatprep.subr.bf16.mxu0 0
      %2950 = vmatpush1.bf16.msra.mxu0 0
      %2951 = vmatprep.subr.bf16.mxu0 0
      %2952 = vmatpush1.bf16.msra.mxu0 0
      %2953 = vmatprep.mubr.bf16.mxu0 0
      %2954 = vmatmul.mubr.bf16.gmra.mrb[0].mxu0 %v2916
      %v2955 = vpop.f32.mrb[0].mxu0
      %v2956 = vadd.f32 0.0, %v2955
      %v2957 = vpop.f32.mrb[0].mxu0
      %v2958 = vpop.f32.mrb[0].mxu0
      %v2959 = vpop.f32.mrb[0].mxu0
      %2960 = vdwg.mxu0
      %2965 = vrot.lane.b32.xlu0 %v1929, 8
      %v2966 = vpop.permute.xlu0 %2965
      %2967 = vrot.lane.b32.xlu0 %v1978, 8
      %v2968 = vpop.permute.xlu0 %2967
      %2969 = vrot.lane.b32.xlu0 %v2027, 8
      %v2970 = vpop.permute.xlu0 %2969
      %2971 = vrot.lane.b32.xlu0 %v2076, 8
      %v2972 = vpop.permute.xlu0 %2971
      %2981 = vrot.lane.b32.xlu0 %v2372, 16
      %v2982 = vpop.permute.xlu0 %2981
      %2983 = vrot.lane.b32.xlu0 %v2420, 16
      %v2984 = vpop.permute.xlu0 %2983
      %2985 = vrot.lane.b32.xlu0 %v2468, 16
      %v2986 = vpop.permute.xlu0 %2985
      %2987 = vrot.lane.b32.xlu0 %v2516, 16
      %v2988 = vpop.permute.xlu0 %2987
      %2997 = vrot.lane.b32.xlu0 %v2812, 24
      %v2998 = vpop.permute.xlu0 %2997
      %2999 = vrot.lane.b32.xlu0 %v2860, 24
      %v3000 = vpop.permute.xlu0 %2999
      %3001 = vrot.lane.b32.xlu0 %v2908, 24
      %v3002 = vpop.permute.xlu0 %3001
      %3003 = vrot.lane.b32.xlu0 %v2956, 24
      %v3004 = vpop.permute.xlu0 %3003
      %v3009 = vsel %vm1211, %v1486, %v2966
      %v3010 = vsel %vm1211, %v1532, %v2968
      %v3011 = vsel %vm1211, %v1578, %v2970
      %v3012 = vsel %vm1211, %v1624, %v2972
      %vm3013 = vcmask 130048
      %v3014 = vsel %vm3013, %v3009, %v2982
      %v3015 = vsel %vm3013, %v3010, %v2984
      %v3016 = vsel %vm3013, %v3011, %v2986
      %v3017 = vsel %vm3013, %v3012, %v2988
      %vm3018 = vcmask 195584
      %v3019 = vsel %vm3018, %v3014, %v2998
      %v3020 = vsel %vm3018, %v3015, %v3000
      %v3021 = vsel %vm3018, %v3016, %v3002
      %v3022 = vsel %vm3018, %v3017, %v3004
      %v3023 = vpack.c.bf16 %v3020, %v3019
      %v3024 = vpack.c.bf16 %v3022, %v3021
      %v3025 = vld [vmem:[%s886] sm:$0xf]
      %v3026 = vld [vmem:[%s886 + $0x4] sm:$0xf]
      %v3027 = vld [vmem:[%s886 + $0x8] sm:$0xf]
      %v3028 = vld [vmem:[%s886 + $0xc] sm:$0xf]
      %v3029 = vld [vmem:[%s889] sm:$0x1]
      %v3031 = vlaneseq
      %v3032 = vshrl.u32 %v3031, 7
      %v3033 = vsub.s32 0, %v3032
      %v3034 = vrot.slane %v3029, %v3033
      %v3040 = vunpack.c.l.b16 %v3025
      %v3041 = vunpack.c.l.b16 %v3026
      %v3042 = vunpack.c.l.b16 %v3027
      %v3043 = vunpack.c.l.b16 %v3028
      %v3044 = vpack.c.b16 %v3041, %v3040
      %v3045 = vpack.c.b16 %v3043, %v3042
      %v3049 = vsel %vm971, %v3023, 0
      %v3052 = vsel %vm971, %v3024, 0
      %3054 = vmatprep.subr.bf16.mxu0 0
      %3055 = vmatpush1.bf16.msra.mxu0 %v3044
      %3056 = vmatprep.subr.bf16.mxu0 0
      %3057 = vmatpush1.bf16.msra.mxu0 %v3045
      %3058 = vmatprep.subr.bf16.mxu0 0
      %3059 = vmatpush1.bf16.msra.mxu0 0
      %3060 = vmatprep.subr.bf16.mxu0 0
      %3061 = vmatpush1.bf16.msra.mxu0 0
      %3062 = vmatprep.subr.bf16.mxu0 0
      %3063 = vmatpush1.bf16.msra.mxu0 0
      %3064 = vmatprep.subr.bf16.mxu0 0
      %3065 = vmatpush1.bf16.msra.mxu0 0
      %3066 = vmatprep.subr.bf16.mxu0 0
      %3067 = vmatpush1.bf16.msra.mxu0 0
      %3068 = vmatprep.subr.bf16.mxu0 0
      %3069 = vmatpush1.bf16.msra.mxu0 0
      %3070 = vmatprep.subr.bf16.mxu0 0
      %3071 = vmatpush1.bf16.msra.mxu0 0
      %3072 = vmatprep.subr.bf16.mxu0 0
      %3073 = vmatpush1.bf16.msra.mxu0 0
      %3074 = vmatprep.subr.bf16.mxu0 0
      %3075 = vmatpush1.bf16.msra.mxu0 0
      %3076 = vmatprep.subr.bf16.mxu0 0
      %3077 = vmatpush1.bf16.msra.mxu0 0
      %3078 = vmatprep.subr.bf16.mxu0 0
      %3079 = vmatpush1.bf16.msra.mxu0 0
      %3080 = vmatprep.subr.bf16.mxu0 0
      %3081 = vmatpush1.bf16.msra.mxu0 0
      %3082 = vmatprep.subr.bf16.mxu0 0
      %3083 = vmatpush1.bf16.msra.mxu0 0
      %3084 = vmatprep.subr.bf16.mxu0 0
      %3085 = vmatpush1.bf16.msra.mxu0 0
      %3086 = vmatprep.mubr.bf16.mxu0 0
      %3087 = vmatmul.mubr.bf16.gmra.mrb[0].mxu0 %v3049
      %v3088 = vpop.f32.mrb[0].mxu0
      %v3089 = vadd.f32 %v3034, %v3088
      %v3090 = vpop.f32.mrb[0].mxu0
      %v3091 = vpop.f32.mrb[0].mxu0
      %v3092 = vadd.f32 %v3034, %v3091
      %v3093 = vpop.f32.mrb[0].mxu0
      %3094 = vmatprep.mubr.bf16.mxu0 0
      %3095 = vmatmul.mubr.bf16.gmra.mrb[0].mxu0 %v3052
      %v3096 = vpop.f32.mrb[0].mxu0
      %v3097 = vadd.f32 %v3034, %v3096
      %v3098 = vpop.f32.mrb[0].mxu0
      %v3099 = vpop.f32.mrb[0].mxu0
      %v3100 = vadd.f32 %v3034, %v3099
      %v3101 = vpop.f32.mrb[0].mxu0
      %3102 = vdwg.mxu0
      %v3103 = vadd.f32 %v938, %v3089
      %v3104 = vadd.f32 %v939, %v3092
      %v3105 = vadd.f32 %v940, %v3097
      %v3106 = vadd.f32 %v941, %v3100
      %v3107 = vld [vmem:[%s892] sm:$0x1]
      %v3108 = vld [vmem:[%s895] sm:$0x1]
      %v3109 = vsel %vm971, %v3103, 0.0
      %3110 = vadd.xlane.f32.xlu0 %v3109
      %v3111 = vpop.xlane.xlu0 %3110
      %v3112 = vsel %vm971, %v3104, 0.0
      %3113 = vadd.xlane.f32.xlu0 %v3112
      %v3114 = vpop.xlane.xlu0 %3113
      %v3115 = vsel %vm971, %v3105, 0.0
      %3116 = vadd.xlane.f32.xlu0 %v3115
      %v3117 = vpop.xlane.xlu0 %3116
      %v3118 = vsel %vm971, %v3106, 0.0
      %3119 = vadd.xlane.f32.xlu0 %v3118
      %v3120 = vpop.xlane.xlu0 %3119
      %v3121 = vrcp.pop 32.0
      %v3122 = vmul.f32 %v3111, %v3121
      %v3123 = vmul.f32 %v3114, %v3121
      %v3124 = vmul.f32 %v3117, %v3121
      %v3125 = vmul.f32 %v3120, %v3121
      %v3126 = vsub.f32 %v3103, %v3122
      %v3127 = vsub.f32 %v3104, %v3123
      %v3128 = vsub.f32 %v3105, %v3124
      %v3129 = vsub.f32 %v3106, %v3125
      %v3130 = vmul.f32 %v3126, %v3126
      %v3131 = vmul.f32 %v3127, %v3127
      %v3132 = vmul.f32 %v3128, %v3128
      %v3133 = vmul.f32 %v3129, %v3129
      %v3134 = vsel %vm971, %v3130, 0.0
      %3135 = vadd.xlane.f32.xlu0 %v3134
      %v3136 = vpop.xlane.xlu0 %3135
      %v3137 = vsel %vm971, %v3131, 0.0
      %3138 = vadd.xlane.f32.xlu0 %v3137
      %v3139 = vpop.xlane.xlu0 %3138
      %v3140 = vsel %vm971, %v3132, 0.0
      %3141 = vadd.xlane.f32.xlu0 %v3140
      %v3142 = vpop.xlane.xlu0 %3141
      %v3143 = vsel %vm971, %v3133, 0.0
      %3144 = vadd.xlane.f32.xlu0 %v3143
      %v3145 = vpop.xlane.xlu0 %3144
      %v3146 = vmul.f32 %v3136, %v3121
      %v3147 = vmul.f32 %v3139, %v3121
      %v3148 = vmul.f32 %v3142, %v3121
      %v3149 = vmul.f32 %v3145, %v3121
      %v3150 = vadd.f32 %v3146, 1e-05
      %v3151 = vadd.f32 %v3147, 1e-05
      %v3152 = vadd.f32 %v3148, 1e-05
      %v3153 = vadd.f32 %v3149, 1e-05
      %v3154 = vrsqrt.pop %v3150
      %v3155 = vrsqrt.pop %v3151
      %v3156 = vrsqrt.pop %v3152
      %v3157 = vrsqrt.pop %v3153
      %v3158 = vmul.f32 %v3126, %v3154
      %v3159 = vmul.f32 %v3127, %v3155
      %v3160 = vmul.f32 %v3128, %v3156
      %v3161 = vmul.f32 %v3129, %v3157
      %v3163 = vlaneseq
      %v3164 = vshrl.u32 %v3163, 7
      %v3165 = vsub.s32 0, %v3164
      %v3166 = vrot.slane %v3107, %v3165
      %v3168 = vmul.f32 %v3158, %v3166
      %v3169 = vmul.f32 %v3159, %v3166
      %v3170 = vmul.f32 %v3160, %v3166
      %v3171 = vmul.f32 %v3161, %v3166
      %v3173 = vlaneseq
      %v3174 = vshrl.u32 %v3173, 7
      %v3175 = vsub.s32 0, %v3174
      %v3176 = vrot.slane %v3108, %v3175
      %v3178 = vadd.f32 %v3168, %v3176
      %v3179 = vadd.f32 %v3169, %v3176
      %v3180 = vadd.f32 %v3170, %v3176
      %v3181 = vadd.f32 %v3171, %v3176
      %v3182 = vpack.c.bf16 %v3179, %v3178
      %v3183 = vpack.c.bf16 %v3181, %v3180
      %v3184 = vld [vmem:[%s900] sm:$0xf]
      %v3185 = vld [vmem:[%s900 + $0x4] sm:$0xf]
      %v3186 = vld [vmem:[%s900 + $0x8] sm:$0xf]
      %v3187 = vld [vmem:[%s900 + $0xc] sm:$0xf]
      %v3188 = vld [vmem:[%s903] sm:$0x1]
      %v3190 = vlaneseq
      %v3191 = vshrl.u32 %v3190, 7
      %v3192 = vsub.s32 0, %v3191
      %v3193 = vrot.slane %v3188, %v3192
      %v3199 = vunpack.c.l.b16 %v3184
      %v3200 = vunpack.c.l.b16 %v3185
      %v3201 = vunpack.c.l.b16 %v3186
      %v3202 = vunpack.c.l.b16 %v3187
      %v3203 = vpack.c.b16 %v3200, %v3199
      %v3204 = vpack.c.b16 %v3202, %v3201
      %v3208 = vsel %vm971, %v3182, 0
      %v3211 = vsel %vm971, %v3183, 0
      %3213 = vmatprep.subr.bf16.mxu0 0
      %3214 = vmatpush1.bf16.msra.mxu0 %v3203
      %3215 = vmatprep.subr.bf16.mxu0 0
      %3216 = vmatpush1.bf16.msra.mxu0 %v3204
      %3217 = vmatprep.subr.bf16.mxu0 0
      %3218 = vmatpush1.bf16.msra.mxu0 0
      %3219 = vmatprep.subr.bf16.mxu0 0
      %3220 = vmatpush1.bf16.msra.mxu0 0
      %3221 = vmatprep.subr.bf16.mxu0 0
      %3222 = vmatpush1.bf16.msra.mxu0 0
      %3223 = vmatprep.subr.bf16.mxu0 0
      %3224 = vmatpush1.bf16.msra.mxu0 0
      %3225 = vmatprep.subr.bf16.mxu0 0
      %3226 = vmatpush1.bf16.msra.mxu0 0
      %3227 = vmatprep.subr.bf16.mxu0 0
      %3228 = vmatpush1.bf16.msra.mxu0 0
      %3229 = vmatprep.subr.bf16.mxu0 0
      %3230 = vmatpush1.bf16.msra.mxu0 0
      %3231 = vmatprep.subr.bf16.mxu0 0
      %3232 = vmatpush1.bf16.msra.mxu0 0
      %3233 = vmatprep.subr.bf16.mxu0 0
      %3234 = vmatpush1.bf16.msra.mxu0 0
      %3235 = vmatprep.subr.bf16.mxu0 0
      %3236 = vmatpush1.bf16.msra.mxu0 0
      %3237 = vmatprep.subr.bf16.mxu0 0
      %3238 = vmatpush1.bf16.msra.mxu0 0
      %3239 = vmatprep.subr.bf16.mxu0 0
      %3240 = vmatpush1.bf16.msra.mxu0 0
      %3241 = vmatprep.subr.bf16.mxu0 0
      %3242 = vmatpush1.bf16.msra.mxu0 0
      %3243 = vmatprep.subr.bf16.mxu0 0
      %3244 = vmatpush1.bf16.msra.mxu0 0
      %3245 = vmatprep.mubr.bf16.mxu0 0
      %3246 = vmatmul.mubr.bf16.gmra.mrb[0].mxu0 %v3208
      %v3247 = vpop.f32.mrb[0].mxu0
      %v3248 = vadd.f32 %v3193, %v3247
      %v3249 = vpop.f32.mrb[0].mxu0
      %v3250 = vpop.f32.mrb[0].mxu0
      %v3251 = vadd.f32 %v3193, %v3250
      %v3252 = vpop.f32.mrb[0].mxu0
      %3253 = vmatprep.mubr.bf16.mxu0 0
      %3254 = vmatmul.mubr.bf16.gmra.mrb[0].mxu0 %v3211
      %v3255 = vpop.f32.mrb[0].mxu0
      %v3256 = vadd.f32 %v3193, %v3255
      %v3257 = vpop.f32.mrb[0].mxu0
      %v3258 = vpop.f32.mrb[0].mxu0
      %v3259 = vadd.f32 %v3193, %v3258
      %v3260 = vpop.f32.mrb[0].mxu0
      %3261 = vdwg.mxu0
      %v3262 = vmax.f32 %v3248, 0.0
      %v3263 = vmax.f32 %v3251, 0.0
      %v3264 = vmax.f32 %v3256, 0.0
      %v3265 = vmax.f32 %v3259, 0.0
      %v3266 = vpack.c.bf16 %v3263, %v3262
      %v3267 = vpack.c.bf16 %v3265, %v3264
      %v3268 = vld [vmem:[%s908] sm:$0xf]
      %v3269 = vld [vmem:[%s908 + $0x4] sm:$0xf]
      %v3270 = vld [vmem:[%s908 + $0x8] sm:$0xf]
      %v3271 = vld [vmem:[%s908 + $0xc] sm:$0xf]
      %v3272 = vld [vmem:[%s908 + $0x10] sm:$0xf]
      %v3273 = vld [vmem:[%s908 + $0x14] sm:$0xf]
      %v3274 = vld [vmem:[%s908 + $0x18] sm:$0xf]
      %v3275 = vld [vmem:[%s908 + $0x1c] sm:$0xf]
      %v3276 = vld [vmem:[%s911] sm:$0x1]
      %v3278 = vlaneseq
      %v3279 = vshrl.u32 %v3278, 7
      %v3280 = vsub.s32 0, %v3279
      %v3281 = vrot.slane %v3276, %v3280
      %v3291 = vunpack.c.l.b16 %v3268
      %v3292 = vunpack.c.l.b16 %v3269
      %v3293 = vunpack.c.l.b16 %v3270
      %v3294 = vunpack.c.l.b16 %v3271
      %v3295 = vunpack.c.l.b16 %v3272
      %v3296 = vunpack.c.l.b16 %v3273
      %v3297 = vunpack.c.l.b16 %v3274
      %v3298 = vunpack.c.l.b16 %v3275
      %v3299 = vpack.c.b16 %v3292, %v3291
      %v3300 = vpack.c.b16 %v3294, %v3293
      %v3301 = vpack.c.b16 %v3296, %v3295
      %v3302 = vpack.c.b16 %v3298, %v3297
      %vm3307 = vcmask 523264
      %v3309 = vsel %vm3307, %v3266, 0
      %v3312 = vsel %vm3307, %v3267, 0
      %3314 = vmatprep.subr.bf16.mxu0 0
      %3315 = vmatpush1.bf16.msra.mxu0 %v3299
      %3316 = vmatprep.subr.bf16.mxu0 0
      %3317 = vmatpush1.bf16.msra.mxu0 %v3300
      %3318 = vmatprep.subr.bf16.mxu0 0
      %3319 = vmatpush1.bf16.msra.mxu0 %v3301
      %3320 = vmatprep.subr.bf16.mxu0 0
      %3321 = vmatpush1.bf16.msra.mxu0 %v3302
      %3322 = vmatprep.subr.bf16.mxu0 0
      %3323 = vmatpush1.bf16.msra.mxu0 0
      %3324 = vmatprep.subr.bf16.mxu0 0
      %3325 = vmatpush1.bf16.msra.mxu0 0
      %3326 = vmatprep.subr.bf16.mxu0 0
      %3327 = vmatpush1.bf16.msra.mxu0 0
      %3328 = vmatprep.subr.bf16.mxu0 0
      %3329 = vmatpush1.bf16.msra.mxu0 0
      %3330 = vmatprep.subr.bf16.mxu0 0
      %3331 = vmatpush1.bf16.msra.mxu0 0
      %3332 = vmatprep.subr.bf16.mxu0 0
      %3333 = vmatpush1.bf16.msra.mxu0 0
      %3334 = vmatprep.subr.bf16.mxu0 0
      %3335 = vmatpush1.bf16.msra.mxu0 0
      %3336 = vmatprep.subr.bf16.mxu0 0
      %3337 = vmatpush1.bf16.msra.mxu0 0
      %3338 = vmatprep.subr.bf16.mxu0 0
      %3339 = vmatpush1.bf16.msra.mxu0 0
      %3340 = vmatprep.subr.bf16.mxu0 0
      %3341 = vmatpush1.bf16.msra.mxu0 0
      %3342 = vmatprep.subr.bf16.mxu0 0
      %3343 = vmatpush1.bf16.msra.mxu0 0
      %3344 = vmatprep.subr.bf16.mxu0 0
      %3345 = vmatpush1.bf16.msra.mxu0 0
      %3346 = vmatprep.mubr.bf16.mxu0 0
      %3347 = vmatmul.mubr.bf16.gmra.mrb[0].mxu0 %v3309
      %v3348 = vpop.f32.mrb[0].mxu0
      %v3349 = vadd.f32 %v3281, %v3348
      %v3350 = vpop.f32.mrb[0].mxu0
      %v3351 = vpop.f32.mrb[0].mxu0
      %v3352 = vadd.f32 %v3281, %v3351
      %v3353 = vpop.f32.mrb[0].mxu0
      %3354 = vmatprep.mubr.bf16.mxu0 0
      %3355 = vmatmul.mubr.bf16.gmra.mrb[0].mxu0 %v3312
      %v3356 = vpop.f32.mrb[0].mxu0
      %v3357 = vadd.f32 %v3281, %v3356
      %v3358 = vpop.f32.mrb[0].mxu0
      %v3359 = vpop.f32.mrb[0].mxu0
      %v3360 = vadd.f32 %v3281, %v3359
      %v3361 = vpop.f32.mrb[0].mxu0
      %3362 = vdwg.mxu0
      %v3363 = vadd.f32 %v3178, %v3349
      %v3364 = vadd.f32 %v3179, %v3352
      %v3365 = vadd.f32 %v3180, %v3357
      %v3366 = vadd.f32 %v3181, %v3360
      %v3367 = vld [vmem:[%s914] sm:$0x1]
      %v3368 = vld [vmem:[%s917] sm:$0x1]
      %v3369 = vsel %vm971, %v3363, 0.0
      %3370 = vadd.xlane.f32.xlu0 %v3369
      %v3371 = vpop.xlane.xlu0 %3370
      %v3372 = vsel %vm971, %v3364, 0.0
      %3373 = vadd.xlane.f32.xlu0 %v3372
      %v3374 = vpop.xlane.xlu0 %3373
      %v3375 = vsel %vm971, %v3365, 0.0
      %3376 = vadd.xlane.f32.xlu0 %v3375
      %v3377 = vpop.xlane.xlu0 %3376
      %v3378 = vsel %vm971, %v3366, 0.0
      %3379 = vadd.xlane.f32.xlu0 %v3378
      %v3380 = vpop.xlane.xlu0 %3379
      %v3381 = vmul.f32 %v3371, %v3121
      %v3382 = vmul.f32 %v3374, %v3121
      %v3383 = vmul.f32 %v3377, %v3121
      %v3384 = vmul.f32 %v3380, %v3121
      %v3385 = vsub.f32 %v3363, %v3381
      %v3386 = vsub.f32 %v3364, %v3382
      %v3387 = vsub.f32 %v3365, %v3383
      %v3388 = vsub.f32 %v3366, %v3384
      %v3389 = vmul.f32 %v3385, %v3385
      %v3390 = vmul.f32 %v3386, %v3386
      %v3391 = vmul.f32 %v3387, %v3387
      %v3392 = vmul.f32 %v3388, %v3388
      %v3393 = vsel %vm971, %v3389, 0.0
      %3394 = vadd.xlane.f32.xlu0 %v3393
      %v3395 = vpop.xlane.xlu0 %3394
      %v3396 = vsel %vm971, %v3390, 0.0
      %3397 = vadd.xlane.f32.xlu0 %v3396
      %v3398 = vpop.xlane.xlu0 %3397
      %v3399 = vsel %vm971, %v3391, 0.0
      %3400 = vadd.xlane.f32.xlu0 %v3399
      %v3401 = vpop.xlane.xlu0 %3400
      %v3402 = vsel %vm971, %v3392, 0.0
      %3403 = vadd.xlane.f32.xlu0 %v3402
      %v3404 = vpop.xlane.xlu0 %3403
      %v3405 = vmul.f32 %v3395, %v3121
      %v3406 = vmul.f32 %v3398, %v3121
      %v3407 = vmul.f32 %v3401, %v3121
      %v3408 = vmul.f32 %v3404, %v3121
      %v3409 = vadd.f32 %v3405, 1e-05
      %v3410 = vadd.f32 %v3406, 1e-05
      %v3411 = vadd.f32 %v3407, 1e-05
      %v3412 = vadd.f32 %v3408, 1e-05
      %v3413 = vrsqrt.pop %v3409
      %v3414 = vrsqrt.pop %v3410
      %v3415 = vrsqrt.pop %v3411
      %v3416 = vrsqrt.pop %v3412
      %v3417 = vmul.f32 %v3385, %v3413
      %v3418 = vmul.f32 %v3386, %v3414
      %v3419 = vmul.f32 %v3387, %v3415
      %v3420 = vmul.f32 %v3388, %v3416
      %v3422 = vlaneseq
      %v3423 = vshrl.u32 %v3422, 7
      %v3424 = vsub.s32 0, %v3423
      %v3425 = vrot.slane %v3367, %v3424
      %v3427 = vmul.f32 %v3417, %v3425
      %v3428 = vmul.f32 %v3418, %v3425
      %v3429 = vmul.f32 %v3419, %v3425
      %v3430 = vmul.f32 %v3420, %v3425
      %v3432 = vlaneseq
      %v3433 = vshrl.u32 %v3432, 7
      %v3434 = vsub.s32 0, %v3433
      %v3435 = vrot.slane %v3368, %v3434
      %v3437 = vadd.f32 %v3427, %v3435
      %v3438 = vadd.f32 %v3428, %v3435
      %v3439 = vadd.f32 %v3429, %v3435
      %v3440 = vadd.f32 %v3430, %v3435
      %3441 = vst.msk [vmem:[#allocation2] sm:$0xff] %vm971, %v3437
      %3442 = vst.msk [vmem:[#allocation2 + $0x8] sm:$0xff] %vm971, %v3438
      %3443 = vst.msk [vmem:[#allocation2 + $0x10] sm:$0xff] %vm971, %v3439
      %3444 = vst.msk [vmem:[#allocation2 + $0x18] sm:$0xff] %vm971, %v3440
      %p3445 = scmp.eq.s32.totalorder %s36, 1
      // Predicated region
      $region105: #{vivit_forward.5} parent=99 // pred_check
        %p3446 = pneg %p3445
      $region106: #{vivit_forward.5} parent=99 // pred_check_branch
        %3448 = sbr.rel (%p3446) target = $region108
      $region107: #{vivit_forward.5} parent=99 // pred_region
        %v3449 = vld [vmem:[%s18] sm:$0x1]
        %v3450 = vld [vmem:[%s19] sm:$0x1]
        %v3451 = vsel %vm971, %v3437, 0.0
        %3452 = vadd.xlane.f32.xlu0 %v3451
        %v3453 = vpop.xlane.xlu0 %3452
        %v3454 = vsel %vm971, %v3438, 0.0
        %3455 = vadd.xlane.f32.xlu0 %v3454
        %v3456 = vpop.xlane.xlu0 %3455
        %v3457 = vsel %vm971, %v3439, 0.0
        %3458 = vadd.xlane.f32.xlu0 %v3457
        %v3459 = vpop.xlane.xlu0 %3458
        %v3460 = vsel %vm971, %v3440, 0.0
        %3461 = vadd.xlane.f32.xlu0 %v3460
        %v3462 = vpop.xlane.xlu0 %3461
        %v3463 = vmul.f32 %v3453, %v3121
        %v3464 = vmul.f32 %v3456, %v3121
        %v3465 = vmul.f32 %v3459, %v3121
        %v3466 = vmul.f32 %v3462, %v3121
        %v3467 = vsub.f32 %v3437, %v3463
        %v3468 = vsub.f32 %v3438, %v3464
        %v3469 = vsub.f32 %v3439, %v3465
        %v3470 = vsub.f32 %v3440, %v3466
        %v3471 = vmul.f32 %v3467, %v3467
        %v3472 = vmul.f32 %v3468, %v3468
        %v3473 = vmul.f32 %v3469, %v3469
        %v3474 = vmul.f32 %v3470, %v3470
        %v3475 = vsel %vm971, %v3471, 0.0
        %3476 = vadd.xlane.f32.xlu0 %v3475
        %v3477 = vpop.xlane.xlu0 %3476
        %v3478 = vsel %vm971, %v3472, 0.0
        %3479 = vadd.xlane.f32.xlu0 %v3478
        %v3480 = vpop.xlane.xlu0 %3479
        %v3481 = vsel %vm971, %v3473, 0.0
        %3482 = vadd.xlane.f32.xlu0 %v3481
        %v3483 = vpop.xlane.xlu0 %3482
        %v3484 = vsel %vm971, %v3474, 0.0
        %3485 = vadd.xlane.f32.xlu0 %v3484
        %v3486 = vpop.xlane.xlu0 %3485
        %v3487 = vmul.f32 %v3477, %v3121
        %v3488 = vmul.f32 %v3480, %v3121
        %v3489 = vmul.f32 %v3483, %v3121
        %v3490 = vmul.f32 %v3486, %v3121
        %v3491 = vadd.f32 %v3487, 1e-05
        %v3492 = vadd.f32 %v3488, 1e-05
        %v3493 = vadd.f32 %v3489, 1e-05
        %v3494 = vadd.f32 %v3490, 1e-05
        %v3495 = vrsqrt.pop %v3491
        %v3496 = vrsqrt.pop %v3492
        %v3497 = vrsqrt.pop %v3493
        %v3498 = vrsqrt.pop %v3494
        %v3499 = vmul.f32 %v3467, %v3495
        %v3500 = vmul.f32 %v3468, %v3496
        %v3501 = vmul.f32 %v3469, %v3497
        %v3502 = vmul.f32 %v3470, %v3498
        %v3504 = vlaneseq
        %v3505 = vshrl.u32 %v3504, 7
        %v3506 = vsub.s32 0, %v3505
        %v3507 = vrot.slane %v3449, %v3506
        %v3509 = vmul.f32 %v3499, %v3507
        %v3510 = vmul.f32 %v3500, %v3507
        %v3511 = vmul.f32 %v3501, %v3507
        %v3512 = vmul.f32 %v3502, %v3507
        %v3514 = vlaneseq
        %v3515 = vshrl.u32 %v3514, 7
        %v3516 = vsub.s32 0, %v3515
        %v3517 = vrot.slane %v3450, %v3516
        %v3519 = vadd.f32 %v3509, %v3517
        %v3520 = vadd.f32 %v3510, %v3517
        %v3521 = vadd.f32 %v3511, %v3517
        %v3522 = vadd.f32 %v3512, %v3517
        %3523 = vst.msk [vmem:[%s922] sm:$0xff] %vm971, %v3519
        %3524 = vst.msk [vmem:[%s922 + $0x8] sm:$0xff] %vm971, %v3520
        %3525 = vst.msk [vmem:[%s922 + $0x10] sm:$0xff] %vm971, %v3521
        %3526 = vst.msk [vmem:[%s922 + $0x18] sm:$0xff] %vm971, %v3522
      $region108: #{vivit_forward.5} parent=99 // pred_fallthru
        _
      %s3527 = smul.u32 4, %s35
      %p3528 = scmp.lt.s32.totalorder %s3527, 3
      %s3529 = scalar_select %p3528, %s3527, 3
      %s3530 = smul.addr %s3529, 8
      %s3531 = scalar_lea.vmem %s20, %s3530
      // Predicated region
      $region109: #{vivit_forward.5} parent=99 // pred_check
        %p3532 = pneg %p571
      $region110: #{vivit_forward.5} parent=99 // pred_check_branch
        %3534 = sbr.rel (%p3532) target = $region112
      $region111: #{vivit_forward.5} parent=99 // pred_region
        %s3535 = smul.u32 4, %s35
      $region112: #{vivit_forward.5} parent=99 // pred_fallthru
        _
      // Predicated region
      $region113: #{vivit_forward.5} parent=99 // pred_check
        %p3536 = pneg %p571
      $region114: #{vivit_forward.5} parent=99 // pred_check_branch
        %3538 = sbr.rel (%p3536) target = $region116
      $region115: #{vivit_forward.5} parent=99 // pred_region
        %s3539 = smul.u32 4, %s35
        %p3540 = scmp.lt.s32.totalorder %s3539, 3
        %s3541 = scalar_select %p3540, %s3539, 3
        %s3542 = smul.addr %s3541, 8
        %s3543 = scalar_lea.vmem %s20, %s3542
      $region116: #{vivit_forward.5} parent=99 // pred_fallthru
        _
    $region100: #{vivit_forward.5} parent=5 // pred_fallthru
      _
    %p3544 = scmp.le.s32.totalorder 2, %s26
    // Predicated region
    $region117: #{vivit_forward.5} parent=5 // pred_check
      %p3545 = pneg %p3544
    $region118: #{vivit_forward.5} parent=5 // pred_check_branch
      %3547 = sbr.rel (%p3545) target = $region120
    $region119: #{vivit_forward.5} parent=5 // pred_region
      %s3548 = ssub.s32 %s26, 2
    $region120: #{vivit_forward.5} parent=5 // pred_fallthru
      _
  $region6: #{vivit_forward.5} parent=0 // loop_footer
    %s30 = sadd.s32 1, %s26
  $region7: #{vivit_forward.5} parent=0 // loop_footer_branch
    %25 = sbr.rel target = $region3
  $region8: #{vivit_forward.5} parent=0 // loop_exit
    _

// kernel: vivit_forward.7
$region0: #{vivit_forward.7}
  #allocation0 [shape = 'u32[]', space=smem, size = 0x4, offset = 0x4, fixed_abs, tag = 'smem constant byte address 0x4 - core index']
  #allocation1 [shape = 'u32[144,128]{1,0:T(1,128)}', space=vmem, size = 0x12000, scoped, tag = 'internal scratch']
  %s0 = inlined_call_operand.vmem [shape: bf16[8,32], index: 0, kind: input, shape index: {}]
  %s1 = inlined_call_operand.vmem [shape: bf16[32,128], index: 1, kind: input, shape index: {}]
  %s2 = inlined_call_operand.vmem [shape: f32[1,128], index: 2, kind: input, shape index: {}]
  %s3 = inlined_call_operand.vmem [shape: f32[8,128], index: 3, kind: output, shape index: {}]
  %s4 = sld [smem:[#allocation0]]
  $region22: #{vivit_forward.7} parent=0
    _
  %s6 = ssub.s32 1, %s4
  %s7 = scalar_select 0, %s6, %s4
  // Predicated region
  $region2: #{vivit_forward.7} parent=0 // pred_check
    _
  $region3: #{vivit_forward.7} parent=0 // pred_check_branch
    %9 = sbr.rel (0) target = $region5
  $region4: #{vivit_forward.7} parent=0 // pred_region
    _
  $region5: #{vivit_forward.7} parent=0 // pred_fallthru
    _
  // Predicated region
  $region6: #{vivit_forward.7} parent=0 // pred_check
    _
  $region7: #{vivit_forward.7} parent=0 // pred_check_branch
    %11 = sbr.rel (0) target = $region9
  $region8: #{vivit_forward.7} parent=0 // pred_region
    _
  $region9: #{vivit_forward.7} parent=0 // pred_fallthru
    _
  // Predicated region
  $region10: #{vivit_forward.7} parent=0 // pred_check
    _
  $region11: #{vivit_forward.7} parent=0 // pred_check_branch
    %13 = sbr.rel (0) target = $region13
  $region12: #{vivit_forward.7} parent=0 // pred_region
    _
  $region13: #{vivit_forward.7} parent=0 // pred_fallthru
    _
  %v15 = vld [vmem:[%s0] sm:$0xf]
  %v16 = vld [vmem:[%s1] sm:$0xf]
  %v17 = vld [vmem:[%s1 + $0x4] sm:$0xf]
  %v18 = vld [vmem:[%s1 + $0x8] sm:$0xf]
  %v19 = vld [vmem:[%s1 + $0xc] sm:$0xf]
  %v20 = vld [vmem:[%s2] sm:$0x1]
  %v22 = vlaneseq
  %v23 = vshrl.u32 %v22, 7
  %v24 = vsub.s32 0, %v23
  %v25 = vrot.slane %v20, %v24
  %v31 = vunpack.c.l.b16 %v16
  %v32 = vunpack.c.l.b16 %v17
  %v33 = vunpack.c.l.b16 %v18
  %v34 = vunpack.c.l.b16 %v19
  %v35 = vpack.c.b16 %v32, %v31
  %v36 = vpack.c.b16 %v34, %v33
  %vm39 = vcmask 261120
  %v41 = vsel %vm39, %v15, 0
  %43 = vmatprep.subr.bf16.mxu0 0
  %44 = vmatpush1.bf16.msra.mxu0 %v35
  %45 = vmatprep.subr.bf16.mxu0 0
  %46 = vmatpush1.bf16.msra.mxu0 %v36
  %47 = vmatprep.subr.bf16.mxu0 0
  %48 = vmatpush1.bf16.msra.mxu0 0
  %49 = vmatprep.subr.bf16.mxu0 0
  %50 = vmatpush1.bf16.msra.mxu0 0
  %51 = vmatprep.subr.bf16.mxu0 0
  %52 = vmatpush1.bf16.msra.mxu0 0
  %53 = vmatprep.subr.bf16.mxu0 0
  %54 = vmatpush1.bf16.msra.mxu0 0
  %55 = vmatprep.subr.bf16.mxu0 0
  %56 = vmatpush1.bf16.msra.mxu0 0
  %57 = vmatprep.subr.bf16.mxu0 0
  %58 = vmatpush1.bf16.msra.mxu0 0
  %59 = vmatprep.subr.bf16.mxu0 0
  %60 = vmatpush1.bf16.msra.mxu0 0
  %61 = vmatprep.subr.bf16.mxu0 0
  %62 = vmatpush1.bf16.msra.mxu0 0
  %63 = vmatprep.subr.bf16.mxu0 0
  %64 = vmatpush1.bf16.msra.mxu0 0
  %65 = vmatprep.subr.bf16.mxu0 0
  %66 = vmatpush1.bf16.msra.mxu0 0
  %67 = vmatprep.subr.bf16.mxu0 0
  %68 = vmatpush1.bf16.msra.mxu0 0
  %69 = vmatprep.subr.bf16.mxu0 0
  %70 = vmatpush1.bf16.msra.mxu0 0
  %71 = vmatprep.subr.bf16.mxu0 0
  %72 = vmatpush1.bf16.msra.mxu0 0
  %73 = vmatprep.subr.bf16.mxu0 0
  %74 = vmatpush1.bf16.msra.mxu0 0
  %75 = vmatprep.mubr.bf16.mxu0 0
  %76 = vmatmul.mubr.bf16.gmra.mrb[0].mxu0 %v41
  %v77 = vpop.f32.mrb[0].mxu0
  %v78 = vadd.f32 %v25, %v77
  %v79 = vpop.f32.mrb[0].mxu0
  %v80 = vpop.f32.mrb[0].mxu0
  %v81 = vpop.f32.mrb[0].mxu0
  %82 = vdwg.mxu0
  %83 = vst [vmem:[%s3] sm:$0xff] %v78
  // Predicated region
  $region14: #{vivit_forward.7} parent=0 // pred_check
    _
  $region15: #{vivit_forward.7} parent=0 // pred_check_branch
    %85 = sbr.rel (0) target = $region17
  $region16: #{vivit_forward.7} parent=0 // pred_region
    _
  $region17: #{vivit_forward.7} parent=0 // pred_fallthru
    _
  // Predicated region
  $region18: #{vivit_forward.7} parent=0 // pred_check
    _
  $region19: #{vivit_forward.7} parent=0 // pred_check_branch
    %87 = sbr.rel (0) target = $region21
  $region20: #{vivit_forward.7} parent=0 // pred_region
    _
  $region21: #{vivit_forward.7} parent=0 // pred_fallthru
    _

// kernel: vivit_forward.6
$region0: #{vivit_forward.6}
  #allocation0 [shape = 'u32[]', space=smem, size = 0x4, offset = 0x4, fixed_abs, tag = 'smem constant byte address 0x4 - core index']
  #allocation1 [shape = 'u32[144,128]{1,0:T(1,128)}', space=vmem, size = 0x12000, scoped, tag = 'internal scratch']
  #allocation2 [shape = 'f32[2,8,32]{2,1,0:T(8,128)}', space=vmem, size = 0x2000, scoped, tag = 'scratch operand']
  %s0 = inlined_call_operand.vmem [shape: f32[2,8,32], index: 0, kind: input, shape index: {}]
  %s1 = inlined_call_operand.vmem [shape: f32[2,1,8], index: 1, kind: input, shape index: {}]
  %s2 = inlined_call_operand.vmem [shape: bf16[2,32,32], index: 2, kind: input, shape index: {}]
  %s3 = inlined_call_operand.vmem [shape: f32[2,1,32], index: 3, kind: input, shape index: {}]
  %s4 = inlined_call_operand.vmem [shape: bf16[2,32,32], index: 4, kind: input, shape index: {}]
  %s5 = inlined_call_operand.vmem [shape: f32[2,1,32], index: 5, kind: input, shape index: {}]
  %s6 = inlined_call_operand.vmem [shape: bf16[2,32,32], index: 6, kind: input, shape index: {}]
  %s7 = inlined_call_operand.vmem [shape: f32[2,1,32], index: 7, kind: input, shape index: {}]
  %s8 = inlined_call_operand.vmem [shape: bf16[2,32,32], index: 8, kind: input, shape index: {}]
  %s9 = inlined_call_operand.vmem [shape: f32[2,1,32], index: 9, kind: input, shape index: {}]
  %s10 = inlined_call_operand.vmem [shape: f32[2,1,32], index: 10, kind: input, shape index: {}]
  %s11 = inlined_call_operand.vmem [shape: f32[2,1,32], index: 11, kind: input, shape index: {}]
  %s12 = inlined_call_operand.vmem [shape: bf16[2,32,64], index: 12, kind: input, shape index: {}]
  %s13 = inlined_call_operand.vmem [shape: f32[2,1,64], index: 13, kind: input, shape index: {}]
  %s14 = inlined_call_operand.vmem [shape: bf16[2,64,32], index: 14, kind: input, shape index: {}]
  %s15 = inlined_call_operand.vmem [shape: f32[2,1,32], index: 15, kind: input, shape index: {}]
  %s16 = inlined_call_operand.vmem [shape: f32[2,1,32], index: 16, kind: input, shape index: {}]
  %s17 = inlined_call_operand.vmem [shape: f32[2,1,32], index: 17, kind: input, shape index: {}]
  %s18 = inlined_call_operand.vmem [shape: f32[1,32], index: 18, kind: input, shape index: {}]
  %s19 = inlined_call_operand.vmem [shape: f32[1,32], index: 19, kind: input, shape index: {}]
  %s20 = inlined_call_operand.vmem [shape: f32[2,8,32], index: 20, kind: output, shape index: {}]
  %s21 = sld [smem:[#allocation0]]
  $region121: #{vivit_forward.6} parent=0
    _
  %s23 = ssub.s32 1, %s21
  %s24 = scalar_select 0, %s23, %s21
  loop: start=0, step=1, limit=4
  $region2: #{vivit_forward.6} parent=0 // loop_pre_header
    _
  $region3: #{vivit_forward.6} parent=0 // loop_header
    %s26 = sphi 0, %s30
    %p27 = scmp.ge.s32.totalorder %s26, 4
    %s33 = sphi 0, %s45
    %s34 = sphi 0, %s41
    %s35 = sphi 0, %s33
    %s36 = sphi 0, %s34
    %s37 = sphi 0, %s35
    %s38 = sphi 0, %s36
    %s48 = sphi 0, %s50
    %s51 = sphi 0, %s48
    %s52 = sphi 0, %s51
    %s68 = sphi 0, %s52
    %s74 = sphi 0, %s76
    %s77 = sphi 0, %s74
    %s78 = sphi 0, %s77
    %s94 = sphi 0, %s78
    %s100 = sphi 0, %s102
    %s103 = sphi 0, %s100
    %s104 = sphi 0, %s103
    %s120 = sphi 0, %s104
    %s126 = sphi 0, %s128
    %s129 = sphi 0, %s126
    %s130 = sphi 0, %s129
    %s146 = sphi 0, %s130
    %s152 = sphi 0, %s154
    %s155 = sphi 0, %s152
    %s156 = sphi 0, %s155
    %s172 = sphi 0, %s156
    %s178 = sphi 0, %s180
    %s181 = sphi 0, %s178
    %s182 = sphi 0, %s181
    %s198 = sphi 0, %s182
    %s204 = sphi 0, %s206
    %s207 = sphi 0, %s204
    %s208 = sphi 0, %s207
    %s224 = sphi 0, %s208
    %s230 = sphi 0, %s232
    %s233 = sphi 0, %s230
    %s234 = sphi 0, %s233
    %s250 = sphi 0, %s234
    %s256 = sphi 0, %s258
    %s259 = sphi 0, %s256
    %s260 = sphi 0, %s259
    %s276 = sphi 0, %s260
    %s282 = sphi 0, %s284
    %s285 = sphi 0, %s282
    %s286 = sphi 0, %s285
    %s302 = sphi 0, %s286
    %s308 = sphi 0, %s310
    %s311 = sphi 0, %s308
    %s312 = sphi 0, %s311
    %s328 = sphi 0, %s312
    %s334 = sphi 0, %s336
    %s337 = sphi 0, %s334
    %s338 = sphi 0, %s337
    %s354 = sphi 0, %s338
    %s360 = sphi 0, %s362
    %s363 = sphi 0, %s360
    %s364 = sphi 0, %s363
    %s380 = sphi 0, %s364
    %s386 = sphi 0, %s388
    %s389 = sphi 0, %s386
    %s390 = sphi 0, %s389
    %s406 = sphi 0, %s390
    %s412 = sphi 0, %s414
    %s415 = sphi 0, %s412
    %s416 = sphi 0, %s415
    %s432 = sphi 0, %s416
    %s438 = sphi 0, %s440
    %s441 = sphi 0, %s438
    %s442 = sphi 0, %s441
    %s458 = sphi 0, %s442
    %s464 = sphi 0, %s466
    %s467 = sphi 0, %s464
    %s468 = sphi 0, %s467
    %s484 = sphi 0, %s468
    %s490 = sphi 0, %s492
    %s493 = sphi 0, %s490
    %s494 = sphi 0, %s493
    %s510 = sphi 0, %s494
    %s514 = sphi 0, %s514
    %s516 = sphi 0, %s514
    %s517 = sphi 0, %s516
    %s531 = sphi 0, %s517
    %s535 = sphi 0, %s535
    %s537 = sphi 0, %s535
    %s538 = sphi 0, %s537
    %s552 = sphi 0, %s538
    %s558 = sphi 0, %s560
    %s561 = sphi 0, %s558
    %s562 = sphi 0, %s561
    %s578 = sphi 0, %s562
  $region4: #{vivit_forward.6} parent=0 // loop_header_branch
    %29 = sbr.rel (%p27) target = $region8
  $region5: #{vivit_forward.6} parent=0 // loop_body
    %s31 = ssub.s32 %s26, 1
    %s32 = ssub.s32 %s26, 2
    %s39 = sadd.s32 1, %s34
    %p40 = scmp.ge.s32.totalorder %s39, 2
    %s41 = scalar_select %p40, 0, %s39
    %s42 = sadd.s32 1, %s33
    %s43 = scalar_select %p40, %s42, %s33
    %p44 = scmp.ge.s32.totalorder %s43, 1
    %s45 = scalar_select %p44, 0, %s43
    %s46 = ssub.s32 %s33, %s45
    %p47 = scmp.eq.s32.totalorder %s46, 0
    %s49 = sadd.s32 %s48, 1
    %s50 = scalar_select %p47, %s48, %s49
    %p53 = pneg %p47
    %p54 = scmp.eq.s32.totalorder %s26, 1
    %p55 = por %p53, %p54
    %p56 = scmp.ne.s32.totalorder %s48, %s51
    %p57 = scmp.eq.s32.totalorder %s26, 0
    %p58 = por %p56, %p57
    %p59 = scmp.ne.s32.totalorder %s48, %s51
    %p60 = scmp.eq.s32.totalorder %s31, 1
    %p61 = por %p59, %p60
    %p62 = scmp.ne.s32.totalorder %s51, %s52
    %p63 = scmp.eq.s32.totalorder %s31, 0
    %p64 = por %p62, %p63
    %p65 = scmp.ne.s32.totalorder %s51, %s52
    %p66 = scmp.eq.s32.totalorder %s32, 1
    %p67 = por %p65, %p66
    %p69 = scmp.ne.s32.totalorder %s52, %s68
    %p70 = scmp.eq.s32.totalorder %s32, 0
    %p71 = por %p69, %p70
    %s72 = ssub.s32 %s33, %s45
    %p73 = scmp.eq.s32.totalorder %s72, 0
    %s75 = sadd.s32 %s74, 1
    %s76 = scalar_select %p73, %s74, %s75
    %p79 = pneg %p73
    %p80 = scmp.eq.s32.totalorder %s26, 1
    %p81 = por %p79, %p80
    %p82 = scmp.ne.s32.totalorder %s74, %s77
    %p83 = scmp.eq.s32.totalorder %s26, 0
    %p84 = por %p82, %p83
    %p85 = scmp.ne.s32.totalorder %s74, %s77
    %p86 = scmp.eq.s32.totalorder %s31, 1
    %p87 = por %p85, %p86
    %p88 = scmp.ne.s32.totalorder %s77, %s78
    %p89 = scmp.eq.s32.totalorder %s31, 0
    %p90 = por %p88, %p89
    %p91 = scmp.ne.s32.totalorder %s77, %s78
    %p92 = scmp.eq.s32.totalorder %s32, 1
    %p93 = por %p91, %p92
    %p95 = scmp.ne.s32.totalorder %s78, %s94
    %p96 = scmp.eq.s32.totalorder %s32, 0
    %p97 = por %p95, %p96
    %s98 = ssub.s32 %s34, %s41
    %p99 = scmp.eq.s32.totalorder %s98, 0
    %s101 = sadd.s32 %s100, 1
    %s102 = scalar_select %p99, %s100, %s101
    %p105 = pneg %p99
    %p106 = scmp.eq.s32.totalorder %s26, 1
    %p107 = por %p105, %p106
    %p108 = scmp.ne.s32.totalorder %s100, %s103
    %p109 = scmp.eq.s32.totalorder %s26, 0
    %p110 = por %p108, %p109
    %p111 = scmp.ne.s32.totalorder %s100, %s103
    %p112 = scmp.eq.s32.totalorder %s31, 1
    %p113 = por %p111, %p112
    %p114 = scmp.ne.s32.totalorder %s103, %s104
    %p115 = scmp.eq.s32.totalorder %s31, 0
    %p116 = por %p114, %p115
    %p117 = scmp.ne.s32.totalorder %s103, %s104
    %p118 = scmp.eq.s32.totalorder %s32, 1
    %p119 = por %p117, %p118
    %p121 = scmp.ne.s32.totalorder %s104, %s120
    %p122 = scmp.eq.s32.totalorder %s32, 0
    %p123 = por %p121, %p122
    %s124 = ssub.s32 %s34, %s41
    %p125 = scmp.eq.s32.totalorder %s124, 0
    %s127 = sadd.s32 %s126, 1
    %s128 = scalar_select %p125, %s126, %s127
    %p131 = pneg %p125
    %p132 = scmp.eq.s32.totalorder %s26, 1
    %p133 = por %p131, %p132
    %p134 = scmp.ne.s32.totalorder %s126, %s129
    %p135 = scmp.eq.s32.totalorder %s26, 0
    %p136 = por %p134, %p135
    %p137 = scmp.ne.s32.totalorder %s126, %s129
    %p138 = scmp.eq.s32.totalorder %s31, 1
    %p139 = por %p137, %p138
    %p140 = scmp.ne.s32.totalorder %s129, %s130
    %p141 = scmp.eq.s32.totalorder %s31, 0
    %p142 = por %p140, %p141
    %p143 = scmp.ne.s32.totalorder %s129, %s130
    %p144 = scmp.eq.s32.totalorder %s32, 1
    %p145 = por %p143, %p144
    %p147 = scmp.ne.s32.totalorder %s130, %s146
    %p148 = scmp.eq.s32.totalorder %s32, 0
    %p149 = por %p147, %p148
    %s150 = ssub.s32 %s34, %s41
    %p151 = scmp.eq.s32.totalorder %s150, 0
    %s153 = sadd.s32 %s152, 1
    %s154 = scalar_select %p151, %s152, %s153
    %p157 = pneg %p151
    %p158 = scmp.eq.s32.totalorder %s26, 1
    %p159 = por %p157, %p158
    %p160 = scmp.ne.s32.totalorder %s152, %s155
    %p161 = scmp.eq.s32.totalorder %s26, 0
    %p162 = por %p160, %p161
    %p163 = scmp.ne.s32.totalorder %s152, %s155
    %p164 = scmp.eq.s32.totalorder %s31, 1
    %p165 = por %p163, %p164
    %p166 = scmp.ne.s32.totalorder %s155, %s156
    %p167 = scmp.eq.s32.totalorder %s31, 0
    %p168 = por %p166, %p167
    %p169 = scmp.ne.s32.totalorder %s155, %s156
    %p170 = scmp.eq.s32.totalorder %s32, 1
    %p171 = por %p169, %p170
    %p173 = scmp.ne.s32.totalorder %s156, %s172
    %p174 = scmp.eq.s32.totalorder %s32, 0
    %p175 = por %p173, %p174
    %s176 = ssub.s32 %s34, %s41
    %p177 = scmp.eq.s32.totalorder %s176, 0
    %s179 = sadd.s32 %s178, 1
    %s180 = scalar_select %p177, %s178, %s179
    %p183 = pneg %p177
    %p184 = scmp.eq.s32.totalorder %s26, 1
    %p185 = por %p183, %p184
    %p186 = scmp.ne.s32.totalorder %s178, %s181
    %p187 = scmp.eq.s32.totalorder %s26, 0
    %p188 = por %p186, %p187
    %p189 = scmp.ne.s32.totalorder %s178, %s181
    %p190 = scmp.eq.s32.totalorder %s31, 1
    %p191 = por %p189, %p190
    %p192 = scmp.ne.s32.totalorder %s181, %s182
    %p193 = scmp.eq.s32.totalorder %s31, 0
    %p194 = por %p192, %p193
    %p195 = scmp.ne.s32.totalorder %s181, %s182
    %p196 = scmp.eq.s32.totalorder %s32, 1
    %p197 = por %p195, %p196
    %p199 = scmp.ne.s32.totalorder %s182, %s198
    %p200 = scmp.eq.s32.totalorder %s32, 0
    %p201 = por %p199, %p200
    %s202 = ssub.s32 %s34, %s41
    %p203 = scmp.eq.s32.totalorder %s202, 0
    %s205 = sadd.s32 %s204, 1
    %s206 = scalar_select %p203, %s204, %s205
    %p209 = pneg %p203
    %p210 = scmp.eq.s32.totalorder %s26, 1
    %p211 = por %p209, %p210
    %p212 = scmp.ne.s32.totalorder %s204, %s207
    %p213 = scmp.eq.s32.totalorder %s26, 0
    %p214 = por %p212, %p213
    %p215 = scmp.ne.s32.totalorder %s204, %s207
    %p216 = scmp.eq.s32.totalorder %s31, 1
    %p217 = por %p215, %p216
    %p218 = scmp.ne.s32.totalorder %s207, %s208
    %p219 = scmp.eq.s32.totalorder %s31, 0
    %p220 = por %p218, %p219
    %p221 = scmp.ne.s32.totalorder %s207, %s208
    %p222 = scmp.eq.s32.totalorder %s32, 1
    %p223 = por %p221, %p222
    %p225 = scmp.ne.s32.totalorder %s208, %s224
    %p226 = scmp.eq.s32.totalorder %s32, 0
    %p227 = por %p225, %p226
    %s228 = ssub.s32 %s34, %s41
    %p229 = scmp.eq.s32.totalorder %s228, 0
    %s231 = sadd.s32 %s230, 1
    %s232 = scalar_select %p229, %s230, %s231
    %p235 = pneg %p229
    %p236 = scmp.eq.s32.totalorder %s26, 1
    %p237 = por %p235, %p236
    %p238 = scmp.ne.s32.totalorder %s230, %s233
    %p239 = scmp.eq.s32.totalorder %s26, 0
    %p240 = por %p238, %p239
    %p241 = scmp.ne.s32.totalorder %s230, %s233
    %p242 = scmp.eq.s32.totalorder %s31, 1
    %p243 = por %p241, %p242
    %p244 = scmp.ne.s32.totalorder %s233, %s234
    %p245 = scmp.eq.s32.totalorder %s31, 0
    %p246 = por %p244, %p245
    %p247 = scmp.ne.s32.totalorder %s233, %s234
    %p248 = scmp.eq.s32.totalorder %s32, 1
    %p249 = por %p247, %p248
    %p251 = scmp.ne.s32.totalorder %s234, %s250
    %p252 = scmp.eq.s32.totalorder %s32, 0
    %p253 = por %p251, %p252
    %s254 = ssub.s32 %s34, %s41
    %p255 = scmp.eq.s32.totalorder %s254, 0
    %s257 = sadd.s32 %s256, 1
    %s258 = scalar_select %p255, %s256, %s257
    %p261 = pneg %p255
    %p262 = scmp.eq.s32.totalorder %s26, 1
    %p263 = por %p261, %p262
    %p264 = scmp.ne.s32.totalorder %s256, %s259
    %p265 = scmp.eq.s32.totalorder %s26, 0
    %p266 = por %p264, %p265
    %p267 = scmp.ne.s32.totalorder %s256, %s259
    %p268 = scmp.eq.s32.totalorder %s31, 1
    %p269 = por %p267, %p268
    %p270 = scmp.ne.s32.totalorder %s259, %s260
    %p271 = scmp.eq.s32.totalorder %s31, 0
    %p272 = por %p270, %p271
    %p273 = scmp.ne.s32.totalorder %s259, %s260
    %p274 = scmp.eq.s32.totalorder %s32, 1
    %p275 = por %p273, %p274
    %p277 = scmp.ne.s32.totalorder %s260, %s276
    %p278 = scmp.eq.s32.totalorder %s32, 0
    %p279 = por %p277, %p278
    %s280 = ssub.s32 %s34, %s41
    %p281 = scmp.eq.s32.totalorder %s280, 0
    %s283 = sadd.s32 %s282, 1
    %s284 = scalar_select %p281, %s282, %s283
    %p287 = pneg %p281
    %p288 = scmp.eq.s32.totalorder %s26, 1
    %p289 = por %p287, %p288
    %p290 = scmp.ne.s32.totalorder %s282, %s285
    %p291 = scmp.eq.s32.totalorder %s26, 0
    %p292 = por %p290, %p291
    %p293 = scmp.ne.s32.totalorder %s282, %s285
    %p294 = scmp.eq.s32.totalorder %s31, 1
    %p295 = por %p293, %p294
    %p296 = scmp.ne.s32.totalorder %s285, %s286
    %p297 = scmp.eq.s32.totalorder %s31, 0
    %p298 = por %p296, %p297
    %p299 = scmp.ne.s32.totalorder %s285, %s286
    %p300 = scmp.eq.s32.totalorder %s32, 1
    %p301 = por %p299, %p300
    %p303 = scmp.ne.s32.totalorder %s286, %s302
    %p304 = scmp.eq.s32.totalorder %s32, 0
    %p305 = por %p303, %p304
    %s306 = ssub.s32 %s34, %s41
    %p307 = scmp.eq.s32.totalorder %s306, 0
    %s309 = sadd.s32 %s308, 1
    %s310 = scalar_select %p307, %s308, %s309
    %p313 = pneg %p307
    %p314 = scmp.eq.s32.totalorder %s26, 1
    %p315 = por %p313, %p314
    %p316 = scmp.ne.s32.totalorder %s308, %s311
    %p317 = scmp.eq.s32.totalorder %s26, 0
    %p318 = por %p316, %p317
    %p319 = scmp.ne.s32.totalorder %s308, %s311
    %p320 = scmp.eq.s32.totalorder %s31, 1
    %p321 = por %p319, %p320
    %p322 = scmp.ne.s32.totalorder %s311, %s312
    %p323 = scmp.eq.s32.totalorder %s31, 0
    %p324 = por %p322, %p323
    %p325 = scmp.ne.s32.totalorder %s311, %s312
    %p326 = scmp.eq.s32.totalorder %s32, 1
    %p327 = por %p325, %p326
    %p329 = scmp.ne.s32.totalorder %s312, %s328
    %p330 = scmp.eq.s32.totalorder %s32, 0
    %p331 = por %p329, %p330
    %s332 = ssub.s32 %s34, %s41
    %p333 = scmp.eq.s32.totalorder %s332, 0
    %s335 = sadd.s32 %s334, 1
    %s336 = scalar_select %p333, %s334, %s335
    %p339 = pneg %p333
    %p340 = scmp.eq.s32.totalorder %s26, 1
    %p341 = por %p339, %p340
    %p342 = scmp.ne.s32.totalorder %s334, %s337
    %p343 = scmp.eq.s32.totalorder %s26, 0
    %p344 = por %p342, %p343
    %p345 = scmp.ne.s32.totalorder %s334, %s337
    %p346 = scmp.eq.s32.totalorder %s31, 1
    %p347 = por %p345, %p346
    %p348 = scmp.ne.s32.totalorder %s337, %s338
    %p349 = scmp.eq.s32.totalorder %s31, 0
    %p350 = por %p348, %p349
    %p351 = scmp.ne.s32.totalorder %s337, %s338
    %p352 = scmp.eq.s32.totalorder %s32, 1
    %p353 = por %p351, %p352
    %p355 = scmp.ne.s32.totalorder %s338, %s354
    %p356 = scmp.eq.s32.totalorder %s32, 0
    %p357 = por %p355, %p356
    %s358 = ssub.s32 %s34, %s41
    %p359 = scmp.eq.s32.totalorder %s358, 0
    %s361 = sadd.s32 %s360, 1
    %s362 = scalar_select %p359, %s360, %s361
    %p365 = pneg %p359
    %p366 = scmp.eq.s32.totalorder %s26, 1
    %p367 = por %p365, %p366
    %p368 = scmp.ne.s32.totalorder %s360, %s363
    %p369 = scmp.eq.s32.totalorder %s26, 0
    %p370 = por %p368, %p369
    %p371 = scmp.ne.s32.totalorder %s360, %s363
    %p372 = scmp.eq.s32.totalorder %s31, 1
    %p373 = por %p371, %p372
    %p374 = scmp.ne.s32.totalorder %s363, %s364
    %p375 = scmp.eq.s32.totalorder %s31, 0
    %p376 = por %p374, %p375
    %p377 = scmp.ne.s32.totalorder %s363, %s364
    %p378 = scmp.eq.s32.totalorder %s32, 1
    %p379 = por %p377, %p378
    %p381 = scmp.ne.s32.totalorder %s364, %s380
    %p382 = scmp.eq.s32.totalorder %s32, 0
    %p383 = por %p381, %p382
    %s384 = ssub.s32 %s34, %s41
    %p385 = scmp.eq.s32.totalorder %s384, 0
    %s387 = sadd.s32 %s386, 1
    %s388 = scalar_select %p385, %s386, %s387
    %p391 = pneg %p385
    %p392 = scmp.eq.s32.totalorder %s26, 1
    %p393 = por %p391, %p392
    %p394 = scmp.ne.s32.totalorder %s386, %s389
    %p395 = scmp.eq.s32.totalorder %s26, 0
    %p396 = por %p394, %p395
    %p397 = scmp.ne.s32.totalorder %s386, %s389
    %p398 = scmp.eq.s32.totalorder %s31, 1
    %p399 = por %p397, %p398
    %p400 = scmp.ne.s32.totalorder %s389, %s390
    %p401 = scmp.eq.s32.totalorder %s31, 0
    %p402 = por %p400, %p401
    %p403 = scmp.ne.s32.totalorder %s389, %s390
    %p404 = scmp.eq.s32.totalorder %s32, 1
    %p405 = por %p403, %p404
    %p407 = scmp.ne.s32.totalorder %s390, %s406
    %p408 = scmp.eq.s32.totalorder %s32, 0
    %p409 = por %p407, %p408
    %s410 = ssub.s32 %s34, %s41
    %p411 = scmp.eq.s32.totalorder %s410, 0
    %s413 = sadd.s32 %s412, 1
    %s414 = scalar_select %p411, %s412, %s413
    %p417 = pneg %p411
    %p418 = scmp.eq.s32.totalorder %s26, 1
    %p419 = por %p417, %p418
    %p420 = scmp.ne.s32.totalorder %s412, %s415
    %p421 = scmp.eq.s32.totalorder %s26, 0
    %p422 = por %p420, %p421
    %p423 = scmp.ne.s32.totalorder %s412, %s415
    %p424 = scmp.eq.s32.totalorder %s31, 1
    %p425 = por %p423, %p424
    %p426 = scmp.ne.s32.totalorder %s415, %s416
    %p427 = scmp.eq.s32.totalorder %s31, 0
    %p428 = por %p426, %p427
    %p429 = scmp.ne.s32.totalorder %s415, %s416
    %p430 = scmp.eq.s32.totalorder %s32, 1
    %p431 = por %p429, %p430
    %p433 = scmp.ne.s32.totalorder %s416, %s432
    %p434 = scmp.eq.s32.totalorder %s32, 0
    %p435 = por %p433, %p434
    %s436 = ssub.s32 %s34, %s41
    %p437 = scmp.eq.s32.totalorder %s436, 0
    %s439 = sadd.s32 %s438, 1
    %s440 = scalar_select %p437, %s438, %s439
    %p443 = pneg %p437
    %p444 = scmp.eq.s32.totalorder %s26, 1
    %p445 = por %p443, %p444
    %p446 = scmp.ne.s32.totalorder %s438, %s441
    %p447 = scmp.eq.s32.totalorder %s26, 0
    %p448 = por %p446, %p447
    %p449 = scmp.ne.s32.totalorder %s438, %s441
    %p450 = scmp.eq.s32.totalorder %s31, 1
    %p451 = por %p449, %p450
    %p452 = scmp.ne.s32.totalorder %s441, %s442
    %p453 = scmp.eq.s32.totalorder %s31, 0
    %p454 = por %p452, %p453
    %p455 = scmp.ne.s32.totalorder %s441, %s442
    %p456 = scmp.eq.s32.totalorder %s32, 1
    %p457 = por %p455, %p456
    %p459 = scmp.ne.s32.totalorder %s442, %s458
    %p460 = scmp.eq.s32.totalorder %s32, 0
    %p461 = por %p459, %p460
    %s462 = ssub.s32 %s34, %s41
    %p463 = scmp.eq.s32.totalorder %s462, 0
    %s465 = sadd.s32 %s464, 1
    %s466 = scalar_select %p463, %s464, %s465
    %p469 = pneg %p463
    %p470 = scmp.eq.s32.totalorder %s26, 1
    %p471 = por %p469, %p470
    %p472 = scmp.ne.s32.totalorder %s464, %s467
    %p473 = scmp.eq.s32.totalorder %s26, 0
    %p474 = por %p472, %p473
    %p475 = scmp.ne.s32.totalorder %s464, %s467
    %p476 = scmp.eq.s32.totalorder %s31, 1
    %p477 = por %p475, %p476
    %p478 = scmp.ne.s32.totalorder %s467, %s468
    %p479 = scmp.eq.s32.totalorder %s31, 0
    %p480 = por %p478, %p479
    %p481 = scmp.ne.s32.totalorder %s467, %s468
    %p482 = scmp.eq.s32.totalorder %s32, 1
    %p483 = por %p481, %p482
    %p485 = scmp.ne.s32.totalorder %s468, %s484
    %p486 = scmp.eq.s32.totalorder %s32, 0
    %p487 = por %p485, %p486
    %s488 = ssub.s32 %s34, %s41
    %p489 = scmp.eq.s32.totalorder %s488, 0
    %s491 = sadd.s32 %s490, 1
    %s492 = scalar_select %p489, %s490, %s491
    %p495 = pneg %p489
    %p496 = scmp.eq.s32.totalorder %s26, 1
    %p497 = por %p495, %p496
    %p498 = scmp.ne.s32.totalorder %s490, %s493
    %p499 = scmp.eq.s32.totalorder %s26, 0
    %p500 = por %p498, %p499
    %p501 = scmp.ne.s32.totalorder %s490, %s493
    %p502 = scmp.eq.s32.totalorder %s31, 1
    %p503 = por %p501, %p502
    %p504 = scmp.ne.s32.totalorder %s493, %s494
    %p505 = scmp.eq.s32.totalorder %s31, 0
    %p506 = por %p504, %p505
    %p507 = scmp.ne.s32.totalorder %s493, %s494
    %p508 = scmp.eq.s32.totalorder %s32, 1
    %p509 = por %p507, %p508
    %p511 = scmp.ne.s32.totalorder %s494, %s510
    %p512 = scmp.eq.s32.totalorder %s32, 0
    %p513 = por %p511, %p512
    %s515 = sadd.s32 %s514, 1
    %p518 = scmp.eq.s32.totalorder %s26, 1
    %p519 = scmp.ne.s32.totalorder %s514, %s516
    %p520 = scmp.eq.s32.totalorder %s26, 0
    %p521 = por %p519, %p520
    %p522 = scmp.ne.s32.totalorder %s514, %s516
    %p523 = scmp.eq.s32.totalorder %s31, 1
    %p524 = por %p522, %p523
    %p525 = scmp.ne.s32.totalorder %s516, %s517
    %p526 = scmp.eq.s32.totalorder %s31, 0
    %p527 = por %p525, %p526
    %p528 = scmp.ne.s32.totalorder %s516, %s517
    %p529 = scmp.eq.s32.totalorder %s32, 1
    %p530 = por %p528, %p529
    %p532 = scmp.ne.s32.totalorder %s517, %s531
    %p533 = scmp.eq.s32.totalorder %s32, 0
    %p534 = por %p532, %p533
    %s536 = sadd.s32 %s535, 1
    %p539 = scmp.eq.s32.totalorder %s26, 1
    %p540 = scmp.ne.s32.totalorder %s535, %s537
    %p541 = scmp.eq.s32.totalorder %s26, 0
    %p542 = por %p540, %p541
    %p543 = scmp.ne.s32.totalorder %s535, %s537
    %p544 = scmp.eq.s32.totalorder %s31, 1
    %p545 = por %p543, %p544
    %p546 = scmp.ne.s32.totalorder %s537, %s538
    %p547 = scmp.eq.s32.totalorder %s31, 0
    %p548 = por %p546, %p547
    %p549 = scmp.ne.s32.totalorder %s537, %s538
    %p550 = scmp.eq.s32.totalorder %s32, 1
    %p551 = por %p549, %p550
    %p553 = scmp.ne.s32.totalorder %s538, %s552
    %p554 = scmp.eq.s32.totalorder %s32, 0
    %p555 = por %p553, %p554
    %s556 = ssub.s32 %s33, %s45
    %p557 = scmp.eq.s32.totalorder %s556, 0
    %s559 = sadd.s32 %s558, 1
    %s560 = scalar_select %p557, %s558, %s559
    %p563 = pneg %p557
    %p564 = scmp.eq.s32.totalorder %s26, 1
    %p565 = por %p563, %p564
    %p566 = scmp.ne.s32.totalorder %s558, %s561
    %p567 = scmp.eq.s32.totalorder %s26, 0
    %p568 = por %p566, %p567
    %p569 = scmp.ne.s32.totalorder %s558, %s561
    %p570 = scmp.eq.s32.totalorder %s31, 1
    %p571 = por %p569, %p570
    %p572 = scmp.ne.s32.totalorder %s561, %s562
    %p573 = scmp.eq.s32.totalorder %s31, 0
    %p574 = por %p572, %p573
    %p575 = scmp.ne.s32.totalorder %s561, %s562
    %p576 = scmp.eq.s32.totalorder %s32, 1
    %p577 = por %p575, %p576
    %p579 = scmp.ne.s32.totalorder %s562, %s578
    %p580 = scmp.eq.s32.totalorder %s32, 0
    %p581 = por %p579, %p580
    %p582 = scmp.le.s32.totalorder 1, %s26
    %p583 = scmp.lt.s32.totalorder %s26, 3
    %p584 = pnand %p582, %p583
    %p585 = pneg %p584
    // Predicated region
    $region9: #{vivit_forward.6} parent=5 // pred_check
      _
    $region10: #{vivit_forward.6} parent=5 // pred_check_branch
      %587 = sbr.rel (%p584) target = $region12
    $region11: #{vivit_forward.6} parent=5 // pred_region
      %s588 = ssub.s32 %s26, 1
      // Predicated region
      $region13: #{vivit_forward.6} parent=11 // pred_check
        %p589 = pneg %p64
      $region14: #{vivit_forward.6} parent=11 // pred_check_branch
        %591 = sbr.rel (%p589) target = $region16
      $region15: #{vivit_forward.6} parent=11 // pred_region
        %s592 = smul.u32 2, %s35
        %p593 = scmp.lt.s32.totalorder %s592, 1
        %s594 = scalar_select %p593, %s592, 1
        %s595 = smul.addr %s594, 8
        %s596 = scalar_lea.vmem %s0, %s595
        %s597 = smul.u32 2, %s35
      $region16: #{vivit_forward.6} parent=11 // pred_fallthru
        _
      // Predicated region
      $region17: #{vivit_forward.6} parent=11 // pred_check
        %p598 = pneg %p90
      $region18: #{vivit_forward.6} parent=11 // pred_check_branch
        %600 = sbr.rel (%p598) target = $region20
      $region19: #{vivit_forward.6} parent=11 // pred_region
        %s601 = smul.u32 2, %s35
        %p602 = scmp.lt.s32.totalorder %s601, 1
        %s603 = scalar_select %p602, %s601, 1
        %s604 = scalar_lea.vmem %s1, %s603
        %s605 = smul.u32 2, %s35
      $region20: #{vivit_forward.6} parent=11 // pred_fallthru
        _
      // Predicated region
      $region21: #{vivit_forward.6} parent=11 // pred_check
        %p606 = pneg %p527
      $region22: #{vivit_forward.6} parent=11 // pred_check_branch
        %608 = sbr.rel (%p606) target = $region24
      $region23: #{vivit_forward.6} parent=11 // pred_region
        _
      $region24: #{vivit_forward.6} parent=11 // pred_fallthru
        _
      // Predicated region
      $region25: #{vivit_forward.6} parent=11 // pred_check
        %p609 = pneg %p548
      $region26: #{vivit_forward.6} parent=11 // pred_check_branch
        %611 = sbr.rel (%p609) target = $region28
      $region27: #{vivit_forward.6} parent=11 // pred_region
        _
      $region28: #{vivit_forward.6} parent=11 // pred_fallthru
        _
    $region12: #{vivit_forward.6} parent=5 // pred_fallthru
      _
    %p612 = scmp.lt.s32.totalorder %s26, 2
    // Predicated region
    $region29: #{vivit_forward.6} parent=5 // pred_check
      %p613 = pneg %p612
    $region30: #{vivit_forward.6} parent=5 // pred_check_branch
      %615 = sbr.rel (%p613) target = $region32
    $region31: #{vivit_forward.6} parent=5 // pred_region
      // Predicated region
      $region33: #{vivit_forward.6} parent=31 // pred_check
        %p616 = pneg %p110
      $region34: #{vivit_forward.6} parent=31 // pred_check_branch
        %618 = sbr.rel (%p616) target = $region36
      $region35: #{vivit_forward.6} parent=31 // pred_region
        %p619 = scmp.lt.s32.totalorder %s34, 1
        %s620 = scalar_select %p619, %s34, 1
        %s621 = smul.addr %s620, 4
        %s622 = smul.addr %s621, 4
        %s623 = scalar_lea.vmem %s2, %s622
      $region36: #{vivit_forward.6} parent=31 // pred_fallthru
        _
      // Predicated region
      $region37: #{vivit_forward.6} parent=31 // pred_check
        %p624 = pneg %p136
      $region38: #{vivit_forward.6} parent=31 // pred_check_branch
        %626 = sbr.rel (%p624) target = $region40
      $region39: #{vivit_forward.6} parent=31 // pred_region
        %p627 = scmp.lt.s32.totalorder %s34, 1
        %s628 = scalar_select %p627, %s34, 1
        %s629 = scalar_lea.vmem %s3, %s628
      $region40: #{vivit_forward.6} parent=31 // pred_fallthru
        _
      // Predicated region
      $region41: #{vivit_forward.6} parent=31 // pred_check
        %p630 = pneg %p162
      $region42: #{vivit_forward.6} parent=31 // pred_check_branch
        %632 = sbr.rel (%p630) target = $region44
      $region43: #{vivit_forward.6} parent=31 // pred_region
        %p633 = scmp.lt.s32.totalorder %s34, 1
        %s634 = scalar_select %p633, %s34, 1
        %s635 = smul.addr %s634, 4
        %s636 = smul.addr %s635, 4
        %s637 = scalar_lea.vmem %s4, %s636
      $region44: #{vivit_forward.6} parent=31 // pred_fallthru
        _
      // Predicated region
      $region45: #{vivit_forward.6} parent=31 // pred_check
        %p638 = pneg %p188
      $region46: #{vivit_forward.6} parent=31 // pred_check_branch
        %640 = sbr.rel (%p638) target = $region48
      $region47: #{vivit_forward.6} parent=31 // pred_region
        %p641 = scmp.lt.s32.totalorder %s34, 1
        %s642 = scalar_select %p641, %s34, 1
        %s643 = scalar_lea.vmem %s5, %s642
      $region48: #{vivit_forward.6} parent=31 // pred_fallthru
        _
      // Predicated region
      $region49: #{vivit_forward.6} parent=31 // pred_check
        %p644 = pneg %p214
      $region50: #{vivit_forward.6} parent=31 // pred_check_branch
        %646 = sbr.rel (%p644) target = $region52
      $region51: #{vivit_forward.6} parent=31 // pred_region
        %p647 = scmp.lt.s32.totalorder %s34, 1
        %s648 = scalar_select %p647, %s34, 1
        %s649 = smul.addr %s648, 4
        %s650 = smul.addr %s649, 4
        %s651 = scalar_lea.vmem %s6, %s650
      $region52: #{vivit_forward.6} parent=31 // pred_fallthru
        _
      // Predicated region
      $region53: #{vivit_forward.6} parent=31 // pred_check
        %p652 = pneg %p240
      $region54: #{vivit_forward.6} parent=31 // pred_check_branch
        %654 = sbr.rel (%p652) target = $region56
      $region55: #{vivit_forward.6} parent=31 // pred_region
        %p655 = scmp.lt.s32.totalorder %s34, 1
        %s656 = scalar_select %p655, %s34, 1
        %s657 = scalar_lea.vmem %s7, %s656
      $region56: #{vivit_forward.6} parent=31 // pred_fallthru
        _
      // Predicated region
      $region57: #{vivit_forward.6} parent=31 // pred_check
        %p658 = pneg %p266
      $region58: #{vivit_forward.6} parent=31 // pred_check_branch
        %660 = sbr.rel (%p658) target = $region60
      $region59: #{vivit_forward.6} parent=31 // pred_region
        %p661 = scmp.lt.s32.totalorder %s34, 1
        %s662 = scalar_select %p661, %s34, 1
        %s663 = smul.addr %s662, 4
        %s664 = smul.addr %s663, 4
        %s665 = scalar_lea.vmem %s8, %s664
      $region60: #{vivit_forward.6} parent=31 // pred_fallthru
        _
      // Predicated region
      $region61: #{vivit_forward.6} parent=31 // pred_check
        %p666 = pneg %p292
      $region62: #{vivit_forward.6} parent=31 // pred_check_branch
        %668 = sbr.rel (%p666) target = $region64
      $region63: #{vivit_forward.6} parent=31 // pred_region
        %p669 = scmp.lt.s32.totalorder %s34, 1
        %s670 = scalar_select %p669, %s34, 1
        %s671 = scalar_lea.vmem %s9, %s670
      $region64: #{vivit_forward.6} parent=31 // pred_fallthru
        _
      // Predicated region
      $region65: #{vivit_forward.6} parent=31 // pred_check
        %p672 = pneg %p318
      $region66: #{vivit_forward.6} parent=31 // pred_check_branch
        %674 = sbr.rel (%p672) target = $region68
      $region67: #{vivit_forward.6} parent=31 // pred_region
        %p675 = scmp.lt.s32.totalorder %s34, 1
        %s676 = scalar_select %p675, %s34, 1
        %s677 = scalar_lea.vmem %s10, %s676
      $region68: #{vivit_forward.6} parent=31 // pred_fallthru
        _
      // Predicated region
      $region69: #{vivit_forward.6} parent=31 // pred_check
        %p678 = pneg %p344
      $region70: #{vivit_forward.6} parent=31 // pred_check_branch
        %680 = sbr.rel (%p678) target = $region72
      $region71: #{vivit_forward.6} parent=31 // pred_region
        %p681 = scmp.lt.s32.totalorder %s34, 1
        %s682 = scalar_select %p681, %s34, 1
        %s683 = scalar_lea.vmem %s11, %s682
      $region72: #{vivit_forward.6} parent=31 // pred_fallthru
        _
      // Predicated region
      $region73: #{vivit_forward.6} parent=31 // pred_check
        %p684 = pneg %p370
      $region74: #{vivit_forward.6} parent=31 // pred_check_branch
        %686 = sbr.rel (%p684) target = $region76
      $region75: #{vivit_forward.6} parent=31 // pred_region
        %p687 = scmp.lt.s32.totalorder %s34, 1
        %s688 = scalar_select %p687, %s34, 1
        %s689 = smul.addr %s688, 4
        %s690 = smul.addr %s689, 4
        %s691 = scalar_lea.vmem %s12, %s690
      $region76: #{vivit_forward.6} parent=31 // pred_fallthru
        _
      // Predicated region
      $region77: #{vivit_forward.6} parent=31 // pred_check
        %p692 = pneg %p396
      $region78: #{vivit_forward.6} parent=31 // pred_check_branch
        %694 = sbr.rel (%p692) target = $region80
      $region79: #{vivit_forward.6} parent=31 // pred_region
        %p695 = scmp.lt.s32.totalorder %s34, 1
        %s696 = scalar_select %p695, %s34, 1
        %s697 = scalar_lea.vmem %s13, %s696
      $region80: #{vivit_forward.6} parent=31 // pred_fallthru
        _
      // Predicated region
      $region81: #{vivit_forward.6} parent=31 // pred_check
        %p698 = pneg %p422
      $region82: #{vivit_forward.6} parent=31 // pred_check_branch
        %700 = sbr.rel (%p698) target = $region84
      $region83: #{vivit_forward.6} parent=31 // pred_region
        %p701 = scmp.lt.s32.totalorder %s34, 1
        %s702 = scalar_select %p701, %s34, 1
        %s703 = smul.addr %s702, 8
        %s704 = smul.addr %s703, 4
        %s705 = scalar_lea.vmem %s14, %s704
      $region84: #{vivit_forward.6} parent=31 // pred_fallthru
        _
      // Predicated region
      $region85: #{vivit_forward.6} parent=31 // pred_check
        %p706 = pneg %p448
      $region86: #{vivit_forward.6} parent=31 // pred_check_branch
        %708 = sbr.rel (%p706) target = $region88
      $region87: #{vivit_forward.6} parent=31 // pred_region
        %p709 = scmp.lt.s32.totalorder %s34, 1
        %s710 = scalar_select %p709, %s34, 1
        %s711 = scalar_lea.vmem %s15, %s710
      $region88: #{vivit_forward.6} parent=31 // pred_fallthru
        _
      // Predicated region
      $region89: #{vivit_forward.6} parent=31 // pred_check
        %p712 = pneg %p474
      $region90: #{vivit_forward.6} parent=31 // pred_check_branch
        %714 = sbr.rel (%p712) target = $region92
      $region91: #{vivit_forward.6} parent=31 // pred_region
        %p715 = scmp.lt.s32.totalorder %s34, 1
        %s716 = scalar_select %p715, %s34, 1
        %s717 = scalar_lea.vmem %s16, %s716
      $region92: #{vivit_forward.6} parent=31 // pred_fallthru
        _
      // Predicated region
      $region93: #{vivit_forward.6} parent=31 // pred_check
        %p718 = pneg %p500
      $region94: #{vivit_forward.6} parent=31 // pred_check_branch
        %720 = sbr.rel (%p718) target = $region96
      $region95: #{vivit_forward.6} parent=31 // pred_region
        %p721 = scmp.lt.s32.totalorder %s34, 1
        %s722 = scalar_select %p721, %s34, 1
        %s723 = scalar_lea.vmem %s17, %s722
      $region96: #{vivit_forward.6} parent=31 // pred_fallthru
        _
    $region32: #{vivit_forward.6} parent=5 // pred_fallthru
      _
    %p724 = scmp.le.s32.totalorder 1, %s26
    %p725 = scmp.lt.s32.totalorder %s26, 3
    %p726 = pnand %p724, %p725
    %p727 = pneg %p726
    // Predicated region
    $region97: #{vivit_forward.6} parent=5 // pred_check
      _
    $region98: #{vivit_forward.6} parent=5 // pred_check_branch
      %729 = sbr.rel (%p726) target = $region100
    $region99: #{vivit_forward.6} parent=5 // pred_region
      %s730 = ssub.s32 %s26, 1
      %s731 = smul.u32 2, %s35
      %p732 = scmp.lt.s32.totalorder %s731, 1
      %s733 = scalar_select %p732, %s731, 1
      %s734 = smul.addr %s733, 8
      %s735 = scalar_lea.vmem %s0, %s734
      %p736 = pneg %p64
      %p737 = pneg %p61
      %s738 = smul.u32 2, %s35
      %p739 = scmp.lt.s32.totalorder %s738, 1
      %s740 = scalar_select %p739, %s738, 1
      %s741 = scalar_lea.vmem %s1, %s740
      %p742 = pneg %p90
      %p743 = pneg %p87
      %p744 = scmp.lt.s32.totalorder %s36, 1
      %s745 = scalar_select %p744, %s36, 1
      %s746 = smul.addr %s745, 4
      %s747 = smul.addr %s746, 4
      %s748 = scalar_lea.vmem %s2, %s747
      %p749 = pneg %p116
      %p750 = pneg %p113
      %p751 = scmp.lt.s32.totalorder %s36, 1
      %s752 = scalar_select %p751, %s36, 1
      %s753 = scalar_lea.vmem %s3, %s752
      %p754 = pneg %p142
      %p755 = pneg %p139
      %p756 = scmp.lt.s32.totalorder %s36, 1
      %s757 = scalar_select %p756, %s36, 1
      %s758 = smul.addr %s757, 4
      %s759 = smul.addr %s758, 4
      %s760 = scalar_lea.vmem %s4, %s759
      %p761 = pneg %p168
      %p762 = pneg %p165
      %p763 = scmp.lt.s32.totalorder %s36, 1
      %s764 = scalar_select %p763, %s36, 1
      %s765 = scalar_lea.vmem %s5, %s764
      %p766 = pneg %p194
      %p767 = pneg %p191
      %p768 = scmp.lt.s32.totalorder %s36, 1
      %s769 = scalar_select %p768, %s36, 1
      %s770 = smul.addr %s769, 4
      %s771 = smul.addr %s770, 4
      %s772 = scalar_lea.vmem %s6, %s771
      %p773 = pneg %p220
      %p774 = pneg %p217
      %p775 = scmp.lt.s32.totalorder %s36, 1
      %s776 = scalar_select %p775, %s36, 1
      %s777 = scalar_lea.vmem %s7, %s776
      %p778 = pneg %p246
      %p779 = pneg %p243
      %p780 = scmp.lt.s32.totalorder %s36, 1
      %s781 = scalar_select %p780, %s36, 1
      %s782 = smul.addr %s781, 4
      %s783 = smul.addr %s782, 4
      %s784 = scalar_lea.vmem %s8, %s783
      %p785 = pneg %p272
      %p786 = pneg %p269
      %p787 = scmp.lt.s32.totalorder %s36, 1
      %s788 = scalar_select %p787, %s36, 1
      %s789 = scalar_lea.vmem %s9, %s788
      %p790 = pneg %p298
      %p791 = pneg %p295
      %p792 = scmp.lt.s32.totalorder %s36, 1
      %s793 = scalar_select %p792, %s36, 1
      %s794 = scalar_lea.vmem %s10, %s793
      %p795 = pneg %p324
      %p796 = pneg %p321
      %p797 = scmp.lt.s32.totalorder %s36, 1
      %s798 = scalar_select %p797, %s36, 1
      %s799 = scalar_lea.vmem %s11, %s798
      %p800 = pneg %p350
      %p801 = pneg %p347
      %p802 = scmp.lt.s32.totalorder %s36, 1
      %s803 = scalar_select %p802, %s36, 1
      %s804 = smul.addr %s803, 4
      %s805 = smul.addr %s804, 4
      %s806 = scalar_lea.vmem %s12, %s805
      %p807 = pneg %p376
      %p808 = pneg %p373
      %p809 = scmp.lt.s32.totalorder %s36, 1
      %s810 = scalar_select %p809, %s36, 1
      %s811 = scalar_lea.vmem %s13, %s810
      %p812 = pneg %p402
      %p813 = pneg %p399
      %p814 = scmp.lt.s32.totalorder %s36, 1
      %s815 = scalar_select %p814, %s36, 1
      %s816 = smul.addr %s815, 8
      %s817 = smul.addr %s816, 4
      %s818 = scalar_lea.vmem %s14, %s817
      %p819 = pneg %p428
      %p820 = pneg %p425
      %p821 = scmp.lt.s32.totalorder %s36, 1
      %s822 = scalar_select %p821, %s36, 1
      %s823 = scalar_lea.vmem %s15, %s822
      %p824 = pneg %p454
      %p825 = pneg %p451
      %p826 = scmp.lt.s32.totalorder %s36, 1
      %s827 = scalar_select %p826, %s36, 1
      %s828 = scalar_lea.vmem %s16, %s827
      %p829 = pneg %p480
      %p830 = pneg %p477
      %p831 = scmp.lt.s32.totalorder %s36, 1
      %s832 = scalar_select %p831, %s36, 1
      %s833 = scalar_lea.vmem %s17, %s832
      %p834 = pneg %p506
      %p835 = pneg %p503
      %p836 = pneg %p527
      %p837 = pneg %p524
      %p838 = pneg %p548
      %p839 = pneg %p545
      %p840 = pneg %p574
      %p841 = pneg %p571
      %s842 = smul.u32 2, %s35
      %p843 = scmp.lt.s32.totalorder %s842, 1
      %s844 = scalar_select %p843, %s842, 1
      %s845 = smul.addr %s844, 8
      %s846 = scalar_lea.vmem %s20, %s845
      %s847 = smul.u32 2, %s35
      %p848 = scmp.lt.s32.totalorder %s847, 1
      %s849 = scalar_select %p848, %s847, 1
      %s850 = smul.addr %s849, 8
      %s851 = scalar_lea.vmem %s0, %s850
      %s852 = smul.u32 2, %s35
      %s853 = smul.u32 2, %s35
      %p854 = scmp.lt.s32.totalorder %s853, 1
      %s855 = scalar_select %p854, %s853, 1
      %s856 = scalar_lea.vmem %s1, %s855
      %s857 = smul.u32 2, %s35
      %p858 = scmp.lt.s32.totalorder %s36, 1
      %s859 = scalar_select %p858, %s36, 1
      %s860 = smul.addr %s859, 4
      %s861 = smul.addr %s860, 4
      %s862 = scalar_lea.vmem %s2, %s861
      %p863 = scmp.lt.s32.totalorder %s36, 1
      %s864 = scalar_select %p863, %s36, 1
      %s865 = scalar_lea.vmem %s3, %s864
      %p866 = scmp.lt.s32.totalorder %s36, 1
      %s867 = scalar_select %p866, %s36, 1
      %s868 = smul.addr %s867, 4
      %s869 = smul.addr %s868, 4
      %s870 = scalar_lea.vmem %s4, %s869
      %p871 = scmp.lt.s32.totalorder %s36, 1
      %s872 = scalar_select %p871, %s36, 1
      %s873 = scalar_lea.vmem %s5, %s872
      %p874 = scmp.lt.s32.totalorder %s36, 1
      %s875 = scalar_select %p874, %s36, 1
      %s876 = smul.addr %s875, 4
      %s877 = smul.addr %s876, 4
      %s878 = scalar_lea.vmem %s6, %s877
      %p879 = scmp.lt.s32.totalorder %s36, 1
      %s880 = scalar_select %p879, %s36, 1
      %s881 = scalar_lea.vmem %s7, %s880
      %p882 = scmp.lt.s32.totalorder %s36, 1
      %s883 = scalar_select %p882, %s36, 1
      %s884 = smul.addr %s883, 4
      %s885 = smul.addr %s884, 4
      %s886 = scalar_lea.vmem %s8, %s885
      %p887 = scmp.lt.s32.totalorder %s36, 1
      %s888 = scalar_select %p887, %s36, 1
      %s889 = scalar_lea.vmem %s9, %s888
      %p890 = scmp.lt.s32.totalorder %s36, 1
      %s891 = scalar_select %p890, %s36, 1
      %s892 = scalar_lea.vmem %s10, %s891
      %p893 = scmp.lt.s32.totalorder %s36, 1
      %s894 = scalar_select %p893, %s36, 1
      %s895 = scalar_lea.vmem %s11, %s894
      %p896 = scmp.lt.s32.totalorder %s36, 1
      %s897 = scalar_select %p896, %s36, 1
      %s898 = smul.addr %s897, 4
      %s899 = smul.addr %s898, 4
      %s900 = scalar_lea.vmem %s12, %s899
      %p901 = scmp.lt.s32.totalorder %s36, 1
      %s902 = scalar_select %p901, %s36, 1
      %s903 = scalar_lea.vmem %s13, %s902
      %p904 = scmp.lt.s32.totalorder %s36, 1
      %s905 = scalar_select %p904, %s36, 1
      %s906 = smul.addr %s905, 8
      %s907 = smul.addr %s906, 4
      %s908 = scalar_lea.vmem %s14, %s907
      %p909 = scmp.lt.s32.totalorder %s36, 1
      %s910 = scalar_select %p909, %s36, 1
      %s911 = scalar_lea.vmem %s15, %s910
      %p912 = scmp.lt.s32.totalorder %s36, 1
      %s913 = scalar_select %p912, %s36, 1
      %s914 = scalar_lea.vmem %s16, %s913
      %p915 = scmp.lt.s32.totalorder %s36, 1
      %s916 = scalar_select %p915, %s36, 1
      %s917 = scalar_lea.vmem %s17, %s916
      %s918 = smul.u32 2, %s35
      %p919 = scmp.lt.s32.totalorder %s918, 1
      %s920 = scalar_select %p919, %s918, 1
      %s921 = smul.addr %s920, 8
      %s922 = scalar_lea.vmem %s20, %s921
      %s923 = smul.u32 2, %s35
      %p925 = scmp.eq.s32.totalorder %s36, 0
      // Predicated region
      $region101: #{vivit_forward.6} parent=99 // pred_check
        %p926 = pneg %p925
      $region102: #{vivit_forward.6} parent=99 // pred_check_branch
        %928 = sbr.rel (%p926) target = $region104
      $region103: #{vivit_forward.6} parent=99 // pred_region
        %v929 = vld [vmem:[%s851] sm:$0xff]
        %v930 = vld [vmem:[%s851 + $0x8] sm:$0xff]
        %vm931 = vcmask 261120
        %932 = vst.msk [vmem:[#allocation2] sm:$0xff] %vm931, %v929
        %933 = vst.msk [vmem:[#allocation2 + $0x8] sm:$0xff] %vm931, %v930
      $region104: #{vivit_forward.6} parent=99 // pred_fallthru
        _
      %v934 = vld [vmem:[#allocation2] sm:$0xff]
      %v935 = vld [vmem:[#allocation2 + $0x8] sm:$0xff]
      %v936 = vpack.c.bf16 %v935, %v934
      %v937 = vld [vmem:[%s856] sm:$0x1]
      %v938 = vld [vmem:[%s856 + $0x1] sm:$0x1]
      %v939 = vld [vmem:[%s862] sm:$0xf]
      %v940 = vld [vmem:[%s862 + $0x4] sm:$0xf]
      %v941 = vld [vmem:[%s862 + $0x8] sm:$0xf]
      %v942 = vld [vmem:[%s862 + $0xc] sm:$0xf]
      %v943 = vld [vmem:[%s865] sm:$0x1]
      %v945 = vlaneseq
      %v946 = vshrl.u32 %v945, 7
      %v947 = vsub.s32 0, %v946
      %v948 = vrot.slane %v943, %v947
      %v954 = vunpack.c.l.b16 %v939
      %v955 = vunpack.c.l.b16 %v940
      %v956 = vunpack.c.l.b16 %v941
      %v957 = vunpack.c.l.b16 %v942
      %v958 = vpack.c.b16 %v955, %v954
      %v959 = vpack.c.b16 %v957, %v956
      %vm962 = vcmask 261120
      %v964 = vsel %vm962, %v936, 0
      %966 = vmatprep.subr.bf16.mxu0 0
      %967 = vmatpush1.bf16.msra.mxu0 %v958
      %968 = vmatprep.subr.bf16.mxu0 0
      %969 = vmatpush1.bf16.msra.mxu0 %v959
      %970 = vmatprep.subr.bf16.mxu0 0
      %971 = vmatpush1.bf16.msra.mxu0 0
      %972 = vmatprep.subr.bf16.mxu0 0
      %973 = vmatpush1.bf16.msra.mxu0 0
      %974 = vmatprep.subr.bf16.mxu0 0
      %975 = vmatpush1.bf16.msra.mxu0 0
      %976 = vmatprep.subr.bf16.mxu0 0
      %977 = vmatpush1.bf16.msra.mxu0 0
      %978 = vmatprep.subr.bf16.mxu0 0
      %979 = vmatpush1.bf16.msra.mxu0 0
      %980 = vmatprep.subr.bf16.mxu0 0
      %981 = vmatpush1.bf16.msra.mxu0 0
      %982 = vmatprep.subr.bf16.mxu0 0
      %983 = vmatpush1.bf16.msra.mxu0 0
      %984 = vmatprep.subr.bf16.mxu0 0
      %985 = vmatpush1.bf16.msra.mxu0 0
      %986 = vmatprep.subr.bf16.mxu0 0
      %987 = vmatpush1.bf16.msra.mxu0 0
      %988 = vmatprep.subr.bf16.mxu0 0
      %989 = vmatpush1.bf16.msra.mxu0 0
      %990 = vmatprep.subr.bf16.mxu0 0
      %991 = vmatpush1.bf16.msra.mxu0 0
      %992 = vmatprep.subr.bf16.mxu0 0
      %993 = vmatpush1.bf16.msra.mxu0 0
      %994 = vmatprep.subr.bf16.mxu0 0
      %995 = vmatpush1.bf16.msra.mxu0 0
      %996 = vmatprep.subr.bf16.mxu0 0
      %997 = vmatpush1.bf16.msra.mxu0 0
      %998 = vmatprep.mubr.bf16.mxu0 0
      %999 = vmatmul.mubr.bf16.gmra.mrb[0].mxu0 %v964
      %v1000 = vpop.f32.mrb[0].mxu0
      %v1001 = vadd.f32 %v948, %v1000
      %v1002 = vpop.f32.mrb[0].mxu0
      %v1003 = vpop.f32.mrb[0].mxu0
      %v1004 = vadd.f32 %v948, %v1003
      %v1005 = vpop.f32.mrb[0].mxu0
      %1006 = vdwg.mxu0
      %v1007 = vld [vmem:[%s870] sm:$0xf]
      %v1008 = vld [vmem:[%s870 + $0x4] sm:$0xf]
      %v1009 = vld [vmem:[%s870 + $0x8] sm:$0xf]
      %v1010 = vld [vmem:[%s870 + $0xc] sm:$0xf]
      %v1011 = vld [vmem:[%s873] sm:$0x1]
      %v1013 = vlaneseq
      %v1014 = vshrl.u32 %v1013, 7
      %v1015 = vsub.s32 0, %v1014
      %v1016 = vrot.slane %v1011, %v1015
      %v1022 = vunpack.c.l.b16 %v1007
      %v1023 = vunpack.c.l.b16 %v1008
      %v1024 = vunpack.c.l.b16 %v1009
      %v1025 = vunpack.c.l.b16 %v1010
      %v1026 = vpack.c.b16 %v1023, %v1022
      %v1027 = vpack.c.b16 %v1025, %v1024
      %1030 = vmatprep.subr.bf16.mxu0 0
      %1031 = vmatpush1.bf16.msra.mxu0 %v1026
      %1032 = vmatprep.subr.bf16.mxu0 0
      %1033 = vmatpush1.bf16.msra.mxu0 %v1027
      %1034 = vmatprep.subr.bf16.mxu0 0
      %1035 = vmatpush1.bf16.msra.mxu0 0
      %1036 = vmatprep.subr.bf16.mxu0 0
      %1037 = vmatpush1.bf16.msra.mxu0 0
      %1038 = vmatprep.subr.bf16.mxu0 0
      %1039 = vmatpush1.bf16.msra.mxu0 0
      %1040 = vmatprep.subr.bf16.mxu0 0
      %1041 = vmatpush1.bf16.msra.mxu0 0
      %1042 = vmatprep.subr.bf16.mxu0 0
      %1043 = vmatpush1.bf16.msra.mxu0 0
      %1044 = vmatprep.subr.bf16.mxu0 0
      %1045 = vmatpush1.bf16.msra.mxu0 0
      %1046 = vmatprep.subr.bf16.mxu0 0
      %1047 = vmatpush1.bf16.msra.mxu0 0
      %1048 = vmatprep.subr.bf16.mxu0 0
      %1049 = vmatpush1.bf16.msra.mxu0 0
      %1050 = vmatprep.subr.bf16.mxu0 0
      %1051 = vmatpush1.bf16.msra.mxu0 0
      %1052 = vmatprep.subr.bf16.mxu0 0
      %1053 = vmatpush1.bf16.msra.mxu0 0
      %1054 = vmatprep.subr.bf16.mxu0 0
      %1055 = vmatpush1.bf16.msra.mxu0 0
      %1056 = vmatprep.subr.bf16.mxu0 0
      %1057 = vmatpush1.bf16.msra.mxu0 0
      %1058 = vmatprep.subr.bf16.mxu0 0
      %1059 = vmatpush1.bf16.msra.mxu0 0
      %1060 = vmatprep.subr.bf16.mxu0 0
      %1061 = vmatpush1.bf16.msra.mxu0 0
      %1062 = vmatprep.mubr.bf16.mxu0 0
      %1063 = vmatmul.mubr.bf16.gmra.mrb[0].mxu0 %v964
      %v1064 = vpop.f32.mrb[0].mxu0
      %v1065 = vadd.f32 %v1016, %v1064
      %v1066 = vpop.f32.mrb[0].mxu0
      %v1067 = vpop.f32.mrb[0].mxu0
      %v1068 = vadd.f32 %v1016, %v1067
      %v1069 = vpop.f32.mrb[0].mxu0
      %1070 = vdwg.mxu0
      %v1071 = vld [vmem:[%s878] sm:$0xf]
      %v1072 = vld [vmem:[%s878 + $0x4] sm:$0xf]
      %v1073 = vld [vmem:[%s878 + $0x8] sm:$0xf]
      %v1074 = vld [vmem:[%s878 + $0xc] sm:$0xf]
      %v1075 = vld [vmem:[%s881] sm:$0x1]
      %v1077 = vlaneseq
      %v1078 = vshrl.u32 %v1077, 7
      %v1079 = vsub.s32 0, %v1078
      %v1080 = vrot.slane %v1075, %v1079
      %v1086 = vunpack.c.l.b16 %v1071
      %v1087 = vunpack.c.l.b16 %v1072
      %v1088 = vunpack.c.l.b16 %v1073
      %v1089 = vunpack.c.l.b16 %v1074
      %v1090 = vpack.c.b16 %v1087, %v1086
      %v1091 = vpack.c.b16 %v1089, %v1088
      %1094 = vmatprep.subr.bf16.mxu0 0
      %1095 = vmatpush1.bf16.msra.mxu0 %v1090
      %1096 = vmatprep.subr.bf16.mxu0 0
      %1097 = vmatpush1.bf16.msra.mxu0 %v1091
      %1098 = vmatprep.subr.bf16.mxu0 0
      %1099 = vmatpush1.bf16.msra.mxu0 0
      %1100 = vmatprep.subr.bf16.mxu0 0
      %1101 = vmatpush1.bf16.msra.mxu0 0
      %1102 = vmatprep.subr.bf16.mxu0 0
      %1103 = vmatpush1.bf16.msra.mxu0 0
      %1104 = vmatprep.subr.bf16.mxu0 0
      %1105 = vmatpush1.bf16.msra.mxu0 0
      %1106 = vmatprep.subr.bf16.mxu0 0
      %1107 = vmatpush1.bf16.msra.mxu0 0
      %1108 = vmatprep.subr.bf16.mxu0 0
      %1109 = vmatpush1.bf16.msra.mxu0 0
      %1110 = vmatprep.subr.bf16.mxu0 0
      %1111 = vmatpush1.bf16.msra.mxu0 0
      %1112 = vmatprep.subr.bf16.mxu0 0
      %1113 = vmatpush1.bf16.msra.mxu0 0
      %1114 = vmatprep.subr.bf16.mxu0 0
      %1115 = vmatpush1.bf16.msra.mxu0 0
      %1116 = vmatprep.subr.bf16.mxu0 0
      %1117 = vmatpush1.bf16.msra.mxu0 0
      %1118 = vmatprep.subr.bf16.mxu0 0
      %1119 = vmatpush1.bf16.msra.mxu0 0
      %1120 = vmatprep.subr.bf16.mxu0 0
      %1121 = vmatpush1.bf16.msra.mxu0 0
      %1122 = vmatprep.subr.bf16.mxu0 0
      %1123 = vmatpush1.bf16.msra.mxu0 0
      %1124 = vmatprep.subr.bf16.mxu0 0
      %1125 = vmatpush1.bf16.msra.mxu0 0
      %1126 = vmatprep.mubr.bf16.mxu0 0
      %1127 = vmatmul.mubr.bf16.gmra.mrb[0].mxu0 %v964
      %v1128 = vpop.f32.mrb[0].mxu0
      %v1129 = vadd.f32 %v1080, %v1128
      %v1130 = vpop.f32.mrb[0].mxu0
      %v1131 = vpop.f32.mrb[0].mxu0
      %v1132 = vadd.f32 %v1080, %v1131
      %v1133 = vpop.f32.mrb[0].mxu0
      %1134 = vdwg.mxu0
      %v1135 = vmul.f32 %v1001, 0.35355338
      %v1136 = vmul.f32 %v1004, 0.35355338
      %v1137 = vpack.c.bf16 %v1135, %v1135
      %v1138 = vpack.c.bf16 %v1136, %v1136
      %v1139 = vpack.c.bf16 %v1065, %v1065
      %v1140 = vpack.c.bf16 %v1068, %v1068
      %v1141 = vpack.c.bf16 %v1129, %v1129
      %v1142 = vpack.c.bf16 %v1132, %v1132
      %v1145 = vlaneseq
      %v1146 = vshrl.u32 %v1145, 7
      %v1147 = vsub.s32 0, %v1146
      %v1148 = vrot.slane %v937, %v1147
      %v1149 = vlaneseq
      %v1150 = vshrl.u32 %v1149, 7
      %v1151 = vsub.s32 0, %v1150
      %v1152 = vrot.slane %v938, %v1151
      %vm1155 = vcmask 64512
      %v1157 = vsel %vm1155, %v1137, 0
      %v1160 = vsel %vm1155, %v1139, 0
      %1162 = vmatprep.subr.bf16.mxu0 0
      %1163 = vmatpush1.bf16.xpose.msra.mxu0 %v1160
      %1164 = vmatprep.subr.bf16.mxu0 0
      %1165 = vmatpush1.bf16.xpose.msra.mxu0 0
      %1166 = vmatprep.subr.bf16.mxu0 0
      %1167 = vmatpush1.bf16.xpose.msra.mxu0 0
      %1168 = vmatprep.subr.bf16.mxu0 0
      %1169 = vmatpush1.bf16.xpose.msra.mxu0 0
      %1170 = vmatprep.subr.bf16.mxu0 0
      %1171 = vmatpush1.bf16.xpose.msra.mxu0 0
      %1172 = vmatprep.subr.bf16.mxu0 0
      %1173 = vmatpush1.bf16.xpose.msra.mxu0 0
      %1174 = vmatprep.subr.bf16.mxu0 0
      %1175 = vmatpush1.bf16.xpose.msra.mxu0 0
      %1176 = vmatprep.subr.bf16.mxu0 0
      %1177 = vmatpush1.bf16.xpose.msra.mxu0 0
      %1178 = vmatprep.subr.bf16.mxu0 0
      %1179 = vmatpush1.bf16.xpose.msra.mxu0 0
      %1180 = vmatprep.subr.bf16.mxu0 0
      %1181 = vmatpush1.bf16.xpose.msra.mxu0 0
      %1182 = vmatprep.subr.bf16.mxu0 0
      %1183 = vmatpush1.bf16.xpose.msra.mxu0 0
      %1184 = vmatprep.subr.bf16.mxu0 0
      %1185 = vmatpush1.bf16.xpose.msra.mxu0 0
      %1186 = vmatprep.subr.bf16.mxu0 0
      %1187 = vmatpush1.bf16.xpose.msra.mxu0 0
      %1188 = vmatprep.subr.bf16.mxu0 0
      %1189 = vmatpush1.bf16.xpose.msra.mxu0 0
      %1190 = vmatprep.subr.bf16.mxu0 0
      %1191 = vmatpush1.bf16.xpose.msra.mxu0 0
      %1192 = vmatprep.subr.bf16.mxu0 0
      %1193 = vmatpush1.bf16.xpose.msra.mxu0 0
      %1194 = vmatprep.mubr.bf16.mxu0 0
      %1195 = vmatmul.mubr.bf16.gmra.mrb[0].mxu0 %v1157
      %v1196 = vpop.f32.mrb[0].mxu0
      %v1197 = vadd.f32 %v1148, %v1196
      %v1198 = vpop.f32.mrb[0].mxu0
      %v1199 = vpop.f32.mrb[0].mxu0
      %v1200 = vpop.f32.mrb[0].mxu0
      %1201 = vdwg.mxu0
      %v1203 = vsel %vm1155, %v1138, 0
      %v1206 = vsel %vm1155, %v1140, 0
      %1208 = vmatprep.subr.bf16.mxu0 0
      %1209 = vmatpush1.bf16.xpose.msra.mxu0 %v1206
      %1210 = vmatprep.subr.bf16.mxu0 0
      %1211 = vmatpush1.bf16.xpose.msra.mxu0 0
      %1212 = vmatprep.subr.bf16.mxu0 0
      %1213 = vmatpush1.bf16.xpose.msra.mxu0 0
      %1214 = vmatprep.subr.bf16.mxu0 0
      %1215 = vmatpush1.bf16.xpose.msra.mxu0 0
      %1216 = vmatprep.subr.bf16.mxu0 0
      %1217 = vmatpush1.bf16.xpose.msra.mxu0 0
      %1218 = vmatprep.subr.bf16.mxu0 0
      %1219 = vmatpush1.bf16.xpose.msra.mxu0 0
      %1220 = vmatprep.subr.bf16.mxu0 0
      %1221 = vmatpush1.bf16.xpose.msra.mxu0 0
      %1222 = vmatprep.subr.bf16.mxu0 0
      %1223 = vmatpush1.bf16.xpose.msra.mxu0 0
      %1224 = vmatprep.subr.bf16.mxu0 0
      %1225 = vmatpush1.bf16.xpose.msra.mxu0 0
      %1226 = vmatprep.subr.bf16.mxu0 0
      %1227 = vmatpush1.bf16.xpose.msra.mxu0 0
      %1228 = vmatprep.subr.bf16.mxu0 0
      %1229 = vmatpush1.bf16.xpose.msra.mxu0 0
      %1230 = vmatprep.subr.bf16.mxu0 0
      %1231 = vmatpush1.bf16.xpose.msra.mxu0 0
      %1232 = vmatprep.subr.bf16.mxu0 0
      %1233 = vmatpush1.bf16.xpose.msra.mxu0 0
      %1234 = vmatprep.subr.bf16.mxu0 0
      %1235 = vmatpush1.bf16.xpose.msra.mxu0 0
      %1236 = vmatprep.subr.bf16.mxu0 0
      %1237 = vmatpush1.bf16.xpose.msra.mxu0 0
      %1238 = vmatprep.subr.bf16.mxu0 0
      %1239 = vmatpush1.bf16.xpose.msra.mxu0 0
      %1240 = vmatprep.mubr.bf16.mxu0 0
      %1241 = vmatmul.mubr.bf16.gmra.mrb[0].mxu0 %v1203
      %v1242 = vpop.f32.mrb[0].mxu0
      %v1243 = vadd.f32 %v1152, %v1242
      %v1244 = vpop.f32.mrb[0].mxu0
      %v1245 = vpop.f32.mrb[0].mxu0
      %v1246 = vpop.f32.mrb[0].mxu0
      %1247 = vdwg.mxu0
      %v1248 = vsel %vm1155, %v1197, -inf
      %1249 = vmax.xlane.f32.xlu0 %v1248
      %v1250 = vpop.xlane.xlu0 %1249
      %v1251 = vsel %vm1155, %v1243, -inf
      %1252 = vmax.xlane.f32.xlu0 %v1251
      %v1253 = vpop.xlane.xlu0 %1252
      %v1254 = vsub.f32 %v1197, %v1250
      %v1255 = vsub.f32 %v1243, %v1253
      %v1256 = vmul.f32 %v1254, 1.442695
      %v1257 = vpow.pop %v1256
      %v1258 = vmul.f32 %v1255, 1.442695
      %v1259 = vpow.pop %v1258
      %v1260 = vsel %vm1155, %v1257, 0.0
      %1261 = vadd.xlane.f32.xlu0 %v1260
      %v1262 = vpop.xlane.xlu0 %1261
      %v1263 = vsel %vm1155, %v1259, 0.0
      %1264 = vadd.xlane.f32.xlu0 %v1263
      %v1265 = vpop.xlane.xlu0 %1264
      %v1266 = vrcp.pop %v1262
      %v1267 = vrcp.pop %v1265
      %v1268 = vmul.f32 %v1257, %v1266
      %v1269 = vmul.f32 %v1259, %v1267
      %v1270 = vpack.c.bf16 %v1268, %v1268
      %v1271 = vpack.c.bf16 %v1269, %v1269
      %v1273 = vsel %vm1155, %v1270, 0
      %vm1275 = vcmask 1043456
      %v1277 = vsel %vm1275, %v1141, 0
      %1279 = vmatprep.subr.bf16.mxu0 0
      %1280 = vmatpush1.bf16.msra.mxu0 %v1277
      %1281 = vmatprep.subr.bf16.mxu0 0
      %1282 = vmatpush1.bf16.msra.mxu0 0
      %1283 = vmatprep.subr.bf16.mxu0 0
      %1284 = vmatpush1.bf16.msra.mxu0 0
      %1285 = vmatprep.subr.bf16.mxu0 0
      %1286 = vmatpush1.bf16.msra.mxu0 0
      %1287 = vmatprep.subr.bf16.mxu0 0
      %1288 = vmatpush1.bf16.msra.mxu0 0
      %1289 = vmatprep.subr.bf16.mxu0 0
      %1290 = vmatpush1.bf16.msra.mxu0 0
      %1291 = vmatprep.subr.bf16.mxu0 0
      %1292 = vmatpush1.bf16.msra.mxu0 0
      %1293 = vmatprep.subr.bf16.mxu0 0
      %1294 = vmatpush1.bf16.msra.mxu0 0
      %1295 = vmatprep.subr.bf16.mxu0 0
      %1296 = vmatpush1.bf16.msra.mxu0 0
      %1297 = vmatprep.subr.bf16.mxu0 0
      %1298 = vmatpush1.bf16.msra.mxu0 0
      %1299 = vmatprep.subr.bf16.mxu0 0
      %1300 = vmatpush1.bf16.msra.mxu0 0
      %1301 = vmatprep.subr.bf16.mxu0 0
      %1302 = vmatpush1.bf16.msra.mxu0 0
      %1303 = vmatprep.subr.bf16.mxu0 0
      %1304 = vmatpush1.bf16.msra.mxu0 0
      %1305 = vmatprep.subr.bf16.mxu0 0
      %1306 = vmatpush1.bf16.msra.mxu0 0
      %1307 = vmatprep.subr.bf16.mxu0 0
      %1308 = vmatpush1.bf16.msra.mxu0 0
      %1309 = vmatprep.subr.bf16.mxu0 0
      %1310 = vmatpush1.bf16.msra.mxu0 0
      %1311 = vmatprep.mubr.bf16.mxu0 0
      %1312 = vmatmul.mubr.bf16.gmra.mrb[0].mxu0 %v1273
      %v1313 = vpop.f32.mrb[0].mxu0
      %v1314 = vadd.f32 0.0, %v1313
      %v1315 = vpop.f32.mrb[0].mxu0
      %v1316 = vpop.f32.mrb[0].mxu0
      %v1317 = vpop.f32.mrb[0].mxu0
      %1318 = vdwg.mxu0
      %v1320 = vsel %vm1155, %v1271, 0
      %v1323 = vsel %vm1275, %v1142, 0
      %1325 = vmatprep.subr.bf16.mxu0 0
      %1326 = vmatpush1.bf16.msra.mxu0 %v1323
      %1327 = vmatprep.subr.bf16.mxu0 0
      %1328 = vmatpush1.bf16.msra.mxu0 0
      %1329 = vmatprep.subr.bf16.mxu0 0
      %1330 = vmatpush1.bf16.msra.mxu0 0
      %1331 = vmatprep.subr.bf16.mxu0 0
      %1332 = vmatpush1.bf16.msra.mxu0 0
      %1333 = vmatprep.subr.bf16.mxu0 0
      %1334 = vmatpush1.bf16.msra.mxu0 0
      %1335 = vmatprep.subr.bf16.mxu0 0
      %1336 = vmatpush1.bf16.msra.mxu0 0
      %1337 = vmatprep.subr.bf16.mxu0 0
      %1338 = vmatpush1.bf16.msra.mxu0 0
      %1339 = vmatprep.subr.bf16.mxu0 0
      %1340 = vmatpush1.bf16.msra.mxu0 0
      %1341 = vmatprep.subr.bf16.mxu0 0
      %1342 = vmatpush1.bf16.msra.mxu0 0
      %1343 = vmatprep.subr.bf16.mxu0 0
      %1344 = vmatpush1.bf16.msra.mxu0 0
      %1345 = vmatprep.subr.bf16.mxu0 0
      %1346 = vmatpush1.bf16.msra.mxu0 0
      %1347 = vmatprep.subr.bf16.mxu0 0
      %1348 = vmatpush1.bf16.msra.mxu0 0
      %1349 = vmatprep.subr.bf16.mxu0 0
      %1350 = vmatpush1.bf16.msra.mxu0 0
      %1351 = vmatprep.subr.bf16.mxu0 0
      %1352 = vmatpush1.bf16.msra.mxu0 0
      %1353 = vmatprep.subr.bf16.mxu0 0
      %1354 = vmatpush1.bf16.msra.mxu0 0
      %1355 = vmatprep.subr.bf16.mxu0 0
      %1356 = vmatpush1.bf16.msra.mxu0 0
      %1357 = vmatprep.mubr.bf16.mxu0 0
      %1358 = vmatmul.mubr.bf16.gmra.mrb[0].mxu0 %v1320
      %v1359 = vpop.f32.mrb[0].mxu0
      %v1360 = vadd.f32 0.0, %v1359
      %v1361 = vpop.f32.mrb[0].mxu0
      %v1362 = vpop.f32.mrb[0].mxu0
      %v1363 = vpop.f32.mrb[0].mxu0
      %1364 = vdwg.mxu0
      %1366 = vrot.lane.b32.xlu0 %v1137, 120
      %v1367 = vpop.permute.xlu0 %1366
      %1369 = vrot.lane.b32.xlu0 %v1139, 120
      %v1370 = vpop.permute.xlu0 %1369
      %v1372 = vsel %vm1155, %v1367, 0
      %v1375 = vsel %vm1155, %v1370, 0
      %1377 = vmatprep.subr.bf16.mxu0 0
      %1378 = vmatpush1.bf16.xpose.msra.mxu0 %v1375
      %1379 = vmatprep.subr.bf16.mxu0 0
      %1380 = vmatpush1.bf16.xpose.msra.mxu0 0
      %1381 = vmatprep.subr.bf16.mxu0 0
      %1382 = vmatpush1.bf16.xpose.msra.mxu0 0
      %1383 = vmatprep.subr.bf16.mxu0 0
      %1384 = vmatpush1.bf16.xpose.msra.mxu0 0
      %1385 = vmatprep.subr.bf16.mxu0 0
      %1386 = vmatpush1.bf16.xpose.msra.mxu0 0
      %1387 = vmatprep.subr.bf16.mxu0 0
      %1388 = vmatpush1.bf16.xpose.msra.mxu0 0
      %1389 = vmatprep.subr.bf16.mxu0 0
      %1390 = vmatpush1.bf16.xpose.msra.mxu0 0
      %1391 = vmatprep.subr.bf16.mxu0 0
      %1392 = vmatpush1.bf16.xpose.msra.mxu0 0
      %1393 = vmatprep.subr.bf16.mxu0 0
      %1394 = vmatpush1.bf16.xpose.msra.mxu0 0
      %1395 = vmatprep.subr.bf16.mxu0 0
      %1396 = vmatpush1.bf16.xpose.msra.mxu0 0
      %1397 = vmatprep.subr.bf16.mxu0 0
      %1398 = vmatpush1.bf16.xpose.msra.mxu0 0
      %1399 = vmatprep.subr.bf16.mxu0 0
      %1400 = vmatpush1.bf16.xpose.msra.mxu0 0
      %1401 = vmatprep.subr.bf16.mxu0 0
      %1402 = vmatpush1.bf16.xpose.msra.mxu0 0
      %1403 = vmatprep.subr.bf16.mxu0 0
      %1404 = vmatpush1.bf16.xpose.msra.mxu0 0
      %1405 = vmatprep.subr.bf16.mxu0 0
      %1406 = vmatpush1.bf16.xpose.msra.mxu0 0
      %1407 = vmatprep.subr.bf16.mxu0 0
      %1408 = vmatpush1.bf16.xpose.msra.mxu0 0
      %1409 = vmatprep.mubr.bf16.mxu0 0
      %1410 = vmatmul.mubr.bf16.gmra.mrb[0].mxu0 %v1372
      %v1411 = vpop.f32.mrb[0].mxu0
      %v1412 = vadd.f32 %v1148, %v1411
      %v1413 = vpop.f32.mrb[0].mxu0
      %v1414 = vpop.f32.mrb[0].mxu0
      %v1415 = vpop.f32.mrb[0].mxu0
      %1416 = vdwg.mxu0
      %1418 = vrot.lane.b32.xlu0 %v1138, 120
      %v1419 = vpop.permute.xlu0 %1418
      %1421 = vrot.lane.b32.xlu0 %v1140, 120
      %v1422 = vpop.permute.xlu0 %1421
      %v1424 = vsel %vm1155, %v1419, 0
      %v1427 = vsel %vm1155, %v1422, 0
      %1429 = vmatprep.subr.bf16.mxu0 0
      %1430 = vmatpush1.bf16.xpose.msra.mxu0 %v1427
      %1431 = vmatprep.subr.bf16.mxu0 0
      %1432 = vmatpush1.bf16.xpose.msra.mxu0 0
      %1433 = vmatprep.subr.bf16.mxu0 0
      %1434 = vmatpush1.bf16.xpose.msra.mxu0 0
      %1435 = vmatprep.subr.bf16.mxu0 0
      %1436 = vmatpush1.bf16.xpose.msra.mxu0 0
      %1437 = vmatprep.subr.bf16.mxu0 0
      %1438 = vmatpush1.bf16.xpose.msra.mxu0 0
      %1439 = vmatprep.subr.bf16.mxu0 0
      %1440 = vmatpush1.bf16.xpose.msra.mxu0 0
      %1441 = vmatprep.subr.bf16.mxu0 0
      %1442 = vmatpush1.bf16.xpose.msra.mxu0 0
      %1443 = vmatprep.subr.bf16.mxu0 0
      %1444 = vmatpush1.bf16.xpose.msra.mxu0 0
      %1445 = vmatprep.subr.bf16.mxu0 0
      %1446 = vmatpush1.bf16.xpose.msra.mxu0 0
      %1447 = vmatprep.subr.bf16.mxu0 0
      %1448 = vmatpush1.bf16.xpose.msra.mxu0 0
      %1449 = vmatprep.subr.bf16.mxu0 0
      %1450 = vmatpush1.bf16.xpose.msra.mxu0 0
      %1451 = vmatprep.subr.bf16.mxu0 0
      %1452 = vmatpush1.bf16.xpose.msra.mxu0 0
      %1453 = vmatprep.subr.bf16.mxu0 0
      %1454 = vmatpush1.bf16.xpose.msra.mxu0 0
      %1455 = vmatprep.subr.bf16.mxu0 0
      %1456 = vmatpush1.bf16.xpose.msra.mxu0 0
      %1457 = vmatprep.subr.bf16.mxu0 0
      %1458 = vmatpush1.bf16.xpose.msra.mxu0 0
      %1459 = vmatprep.subr.bf16.mxu0 0
      %1460 = vmatpush1.bf16.xpose.msra.mxu0 0
      %1461 = vmatprep.mubr.bf16.mxu0 0
      %1462 = vmatmul.mubr.bf16.gmra.mrb[0].mxu0 %v1424
      %v1463 = vpop.f32.mrb[0].mxu0
      %v1464 = vadd.f32 %v1152, %v1463
      %v1465 = vpop.f32.mrb[0].mxu0
      %v1466 = vpop.f32.mrb[0].mxu0
      %v1467 = vpop.f32.mrb[0].mxu0
      %1468 = vdwg.mxu0
      %v1469 = vsel %vm1155, %v1412, -inf
      %1470 = vmax.xlane.f32.xlu0 %v1469
      %v1471 = vpop.xlane.xlu0 %1470
      %v1472 = vsel %vm1155, %v1464, -inf
      %1473 = vmax.xlane.f32.xlu0 %v1472
      %v1474 = vpop.xlane.xlu0 %1473
      %v1475 = vsub.f32 %v1412, %v1471
      %v1476 = vsub.f32 %v1464, %v1474
      %v1477 = vmul.f32 %v1475, 1.442695
      %v1478 = vpow.pop %v1477
      %v1479 = vmul.f32 %v1476, 1.442695
      %v1480 = vpow.pop %v1479
      %v1481 = vsel %vm1155, %v1478, 0.0
      %1482 = vadd.xlane.f32.xlu0 %v1481
      %v1483 = vpop.xlane.xlu0 %1482
      %v1484 = vsel %vm1155, %v1480, 0.0
      %1485 = vadd.xlane.f32.xlu0 %v1484
      %v1486 = vpop.xlane.xlu0 %1485
      %v1487 = vrcp.pop %v1483
      %v1488 = vrcp.pop %v1486
      %v1489 = vmul.f32 %v1478, %v1487
      %v1490 = vmul.f32 %v1480, %v1488
      %v1491 = vpack.c.bf16 %v1489, %v1489
      %v1492 = vpack.c.bf16 %v1490, %v1490
      %1494 = vrot.lane.b32.xlu0 %v1141, 120
      %v1495 = vpop.permute.xlu0 %1494
      %v1497 = vsel %vm1155, %v1491, 0
      %v1500 = vsel %vm1275, %v1495, 0
      %1502 = vmatprep.subr.bf16.mxu0 0
      %1503 = vmatpush1.bf16.msra.mxu0 %v1500
      %1504 = vmatprep.subr.bf16.mxu0 0
      %1505 = vmatpush1.bf16.msra.mxu0 0
      %1506 = vmatprep.subr.bf16.mxu0 0
      %1507 = vmatpush1.bf16.msra.mxu0 0
      %1508 = vmatprep.subr.bf16.mxu0 0
      %1509 = vmatpush1.bf16.msra.mxu0 0
      %1510 = vmatprep.subr.bf16.mxu0 0
      %1511 = vmatpush1.bf16.msra.mxu0 0
      %1512 = vmatprep.subr.bf16.mxu0 0
      %1513 = vmatpush1.bf16.msra.mxu0 0
      %1514 = vmatprep.subr.bf16.mxu0 0
      %1515 = vmatpush1.bf16.msra.mxu0 0
      %1516 = vmatprep.subr.bf16.mxu0 0
      %1517 = vmatpush1.bf16.msra.mxu0 0
      %1518 = vmatprep.subr.bf16.mxu0 0
      %1519 = vmatpush1.bf16.msra.mxu0 0
      %1520 = vmatprep.subr.bf16.mxu0 0
      %1521 = vmatpush1.bf16.msra.mxu0 0
      %1522 = vmatprep.subr.bf16.mxu0 0
      %1523 = vmatpush1.bf16.msra.mxu0 0
      %1524 = vmatprep.subr.bf16.mxu0 0
      %1525 = vmatpush1.bf16.msra.mxu0 0
      %1526 = vmatprep.subr.bf16.mxu0 0
      %1527 = vmatpush1.bf16.msra.mxu0 0
      %1528 = vmatprep.subr.bf16.mxu0 0
      %1529 = vmatpush1.bf16.msra.mxu0 0
      %1530 = vmatprep.subr.bf16.mxu0 0
      %1531 = vmatpush1.bf16.msra.mxu0 0
      %1532 = vmatprep.subr.bf16.mxu0 0
      %1533 = vmatpush1.bf16.msra.mxu0 0
      %1534 = vmatprep.mubr.bf16.mxu0 0
      %1535 = vmatmul.mubr.bf16.gmra.mrb[0].mxu0 %v1497
      %v1536 = vpop.f32.mrb[0].mxu0
      %v1537 = vadd.f32 0.0, %v1536
      %v1538 = vpop.f32.mrb[0].mxu0
      %v1539 = vpop.f32.mrb[0].mxu0
      %v1540 = vpop.f32.mrb[0].mxu0
      %1541 = vdwg.mxu0
      %1543 = vrot.lane.b32.xlu0 %v1142, 120
      %v1544 = vpop.permute.xlu0 %1543
      %v1546 = vsel %vm1155, %v1492, 0
      %v1549 = vsel %vm1275, %v1544, 0
      %1551 = vmatprep.subr.bf16.mxu0 0
      %1552 = vmatpush1.bf16.msra.mxu0 %v1549
      %1553 = vmatprep.subr.bf16.mxu0 0
      %1554 = vmatpush1.bf16.msra.mxu0 0
      %1555 = vmatprep.subr.bf16.mxu0 0
      %1556 = vmatpush1.bf16.msra.mxu0 0
      %1557 = vmatprep.subr.bf16.mxu0 0
      %1558 = vmatpush1.bf16.msra.mxu0 0
      %1559 = vmatprep.subr.bf16.mxu0 0
      %1560 = vmatpush1.bf16.msra.mxu0 0
      %1561 = vmatprep.subr.bf16.mxu0 0
      %1562 = vmatpush1.bf16.msra.mxu0 0
      %1563 = vmatprep.subr.bf16.mxu0 0
      %1564 = vmatpush1.bf16.msra.mxu0 0
      %1565 = vmatprep.subr.bf16.mxu0 0
      %1566 = vmatpush1.bf16.msra.mxu0 0
      %1567 = vmatprep.subr.bf16.mxu0 0
      %1568 = vmatpush1.bf16.msra.mxu0 0
      %1569 = vmatprep.subr.bf16.mxu0 0
      %1570 = vmatpush1.bf16.msra.mxu0 0
      %1571 = vmatprep.subr.bf16.mxu0 0
      %1572 = vmatpush1.bf16.msra.mxu0 0
      %1573 = vmatprep.subr.bf16.mxu0 0
      %1574 = vmatpush1.bf16.msra.mxu0 0
      %1575 = vmatprep.subr.bf16.mxu0 0
      %1576 = vmatpush1.bf16.msra.mxu0 0
      %1577 = vmatprep.subr.bf16.mxu0 0
      %1578 = vmatpush1.bf16.msra.mxu0 0
      %1579 = vmatprep.subr.bf16.mxu0 0
      %1580 = vmatpush1.bf16.msra.mxu0 0
      %1581 = vmatprep.subr.bf16.mxu0 0
      %1582 = vmatpush1.bf16.msra.mxu0 0
      %1583 = vmatprep.mubr.bf16.mxu0 0
      %1584 = vmatmul.mubr.bf16.gmra.mrb[0].mxu0 %v1546
      %v1585 = vpop.f32.mrb[0].mxu0
      %v1586 = vadd.f32 0.0, %v1585
      %v1587 = vpop.f32.mrb[0].mxu0
      %v1588 = vpop.f32.mrb[0].mxu0
      %v1589 = vpop.f32.mrb[0].mxu0
      %1590 = vdwg.mxu0
      %1591 = vrot.lane.b32.xlu0 %v1137, 112
      %v1592 = vpop.permute.xlu0 %1591
      %1593 = vrot.lane.b32.xlu0 %v1139, 112
      %v1594 = vpop.permute.xlu0 %1593
      %v1596 = vsel %vm1155, %v1592, 0
      %v1599 = vsel %vm1155, %v1594, 0
      %1601 = vmatprep.subr.bf16.mxu0 0
      %1602 = vmatpush1.bf16.xpose.msra.mxu0 %v1599
      %1603 = vmatprep.subr.bf16.mxu0 0
      %1604 = vmatpush1.bf16.xpose.msra.mxu0 0
      %1605 = vmatprep.subr.bf16.mxu0 0
      %1606 = vmatpush1.bf16.xpose.msra.mxu0 0
      %1607 = vmatprep.subr.bf16.mxu0 0
      %1608 = vmatpush1.bf16.xpose.msra.mxu0 0
      %1609 = vmatprep.subr.bf16.mxu0 0
      %1610 = vmatpush1.bf16.xpose.msra.mxu0 0
      %1611 = vmatprep.subr.bf16.mxu0 0
      %1612 = vmatpush1.bf16.xpose.msra.mxu0 0
      %1613 = vmatprep.subr.bf16.mxu0 0
      %1614 = vmatpush1.bf16.xpose.msra.mxu0 0
      %1615 = vmatprep.subr.bf16.mxu0 0
      %1616 = vmatpush1.bf16.xpose.msra.mxu0 0
      %1617 = vmatprep.subr.bf16.mxu0 0
      %1618 = vmatpush1.bf16.xpose.msra.mxu0 0
      %1619 = vmatprep.subr.bf16.mxu0 0
      %1620 = vmatpush1.bf16.xpose.msra.mxu0 0
      %1621 = vmatprep.subr.bf16.mxu0 0
      %1622 = vmatpush1.bf16.xpose.msra.mxu0 0
      %1623 = vmatprep.subr.bf16.mxu0 0
      %1624 = vmatpush1.bf16.xpose.msra.mxu0 0
      %1625 = vmatprep.subr.bf16.mxu0 0
      %1626 = vmatpush1.bf16.xpose.msra.mxu0 0
      %1627 = vmatprep.subr.bf16.mxu0 0
      %1628 = vmatpush1.bf16.xpose.msra.mxu0 0
      %1629 = vmatprep.subr.bf16.mxu0 0
      %1630 = vmatpush1.bf16.xpose.msra.mxu0 0
      %1631 = vmatprep.subr.bf16.mxu0 0
      %1632 = vmatpush1.bf16.xpose.msra.mxu0 0
      %1633 = vmatprep.mubr.bf16.mxu0 0
      %1634 = vmatmul.mubr.bf16.gmra.mrb[0].mxu0 %v1596
      %v1635 = vpop.f32.mrb[0].mxu0
      %v1636 = vadd.f32 %v1148, %v1635
      %v1637 = vpop.f32.mrb[0].mxu0
      %v1638 = vpop.f32.mrb[0].mxu0
      %v1639 = vpop.f32.mrb[0].mxu0
      %1640 = vdwg.mxu0
      %1641 = vrot.lane.b32.xlu0 %v1138, 112
      %v1642 = vpop.permute.xlu0 %1641
      %1643 = vrot.lane.b32.xlu0 %v1140, 112
      %v1644 = vpop.permute.xlu0 %1643
      %v1646 = vsel %vm1155, %v1642, 0
      %v1649 = vsel %vm1155, %v1644, 0
      %1651 = vmatprep.subr.bf16.mxu0 0
      %1652 = vmatpush1.bf16.xpose.msra.mxu0 %v1649
      %1653 = vmatprep.subr.bf16.mxu0 0
      %1654 = vmatpush1.bf16.xpose.msra.mxu0 0
      %1655 = vmatprep.subr.bf16.mxu0 0
      %1656 = vmatpush1.bf16.xpose.msra.mxu0 0
      %1657 = vmatprep.subr.bf16.mxu0 0
      %1658 = vmatpush1.bf16.xpose.msra.mxu0 0
      %1659 = vmatprep.subr.bf16.mxu0 0
      %1660 = vmatpush1.bf16.xpose.msra.mxu0 0
      %1661 = vmatprep.subr.bf16.mxu0 0
      %1662 = vmatpush1.bf16.xpose.msra.mxu0 0
      %1663 = vmatprep.subr.bf16.mxu0 0
      %1664 = vmatpush1.bf16.xpose.msra.mxu0 0
      %1665 = vmatprep.subr.bf16.mxu0 0
      %1666 = vmatpush1.bf16.xpose.msra.mxu0 0
      %1667 = vmatprep.subr.bf16.mxu0 0
      %1668 = vmatpush1.bf16.xpose.msra.mxu0 0
      %1669 = vmatprep.subr.bf16.mxu0 0
      %1670 = vmatpush1.bf16.xpose.msra.mxu0 0
      %1671 = vmatprep.subr.bf16.mxu0 0
      %1672 = vmatpush1.bf16.xpose.msra.mxu0 0
      %1673 = vmatprep.subr.bf16.mxu0 0
      %1674 = vmatpush1.bf16.xpose.msra.mxu0 0
      %1675 = vmatprep.subr.bf16.mxu0 0
      %1676 = vmatpush1.bf16.xpose.msra.mxu0 0
      %1677 = vmatprep.subr.bf16.mxu0 0
      %1678 = vmatpush1.bf16.xpose.msra.mxu0 0
      %1679 = vmatprep.subr.bf16.mxu0 0
      %1680 = vmatpush1.bf16.xpose.msra.mxu0 0
      %1681 = vmatprep.subr.bf16.mxu0 0
      %1682 = vmatpush1.bf16.xpose.msra.mxu0 0
      %1683 = vmatprep.mubr.bf16.mxu0 0
      %1684 = vmatmul.mubr.bf16.gmra.mrb[0].mxu0 %v1646
      %v1685 = vpop.f32.mrb[0].mxu0
      %v1686 = vadd.f32 %v1152, %v1685
      %v1687 = vpop.f32.mrb[0].mxu0
      %v1688 = vpop.f32.mrb[0].mxu0
      %v1689 = vpop.f32.mrb[0].mxu0
      %1690 = vdwg.mxu0
      %v1691 = vsel %vm1155, %v1636, -inf
      %1692 = vmax.xlane.f32.xlu0 %v1691
      %v1693 = vpop.xlane.xlu0 %1692
      %v1694 = vsel %vm1155, %v1686, -inf
      %1695 = vmax.xlane.f32.xlu0 %v1694
      %v1696 = vpop.xlane.xlu0 %1695
      %v1697 = vsub.f32 %v1636, %v1693
      %v1698 = vsub.f32 %v1686, %v1696
      %v1699 = vmul.f32 %v1697, 1.442695
      %v1700 = vpow.pop %v1699
      %v1701 = vmul.f32 %v1698, 1.442695
      %v1702 = vpow.pop %v1701
      %v1703 = vsel %vm1155, %v1700, 0.0
      %1704 = vadd.xlane.f32.xlu0 %v1703
      %v1705 = vpop.xlane.xlu0 %1704
      %v1706 = vsel %vm1155, %v1702, 0.0
      %1707 = vadd.xlane.f32.xlu0 %v1706
      %v1708 = vpop.xlane.xlu0 %1707
      %v1709 = vrcp.pop %v1705
      %v1710 = vrcp.pop %v1708
      %v1711 = vmul.f32 %v1700, %v1709
      %v1712 = vmul.f32 %v1702, %v1710
      %v1713 = vpack.c.bf16 %v1711, %v1711
      %v1714 = vpack.c.bf16 %v1712, %v1712
      %1715 = vrot.lane.b32.xlu0 %v1141, 112
      %v1716 = vpop.permute.xlu0 %1715
      %v1718 = vsel %vm1155, %v1713, 0
      %v1721 = vsel %vm1275, %v1716, 0
      %1723 = vmatprep.subr.bf16.mxu0 0
      %1724 = vmatpush1.bf16.msra.mxu0 %v1721
      %1725 = vmatprep.subr.bf16.mxu0 0
      %1726 = vmatpush1.bf16.msra.mxu0 0
      %1727 = vmatprep.subr.bf16.mxu0 0
      %1728 = vmatpush1.bf16.msra.mxu0 0
      %1729 = vmatprep.subr.bf16.mxu0 0
      %1730 = vmatpush1.bf16.msra.mxu0 0
      %1731 = vmatprep.subr.bf16.mxu0 0
      %1732 = vmatpush1.bf16.msra.mxu0 0
      %1733 = vmatprep.subr.bf16.mxu0 0
      %1734 = vmatpush1.bf16.msra.mxu0 0
      %1735 = vmatprep.subr.bf16.mxu0 0
      %1736 = vmatpush1.bf16.msra.mxu0 0
      %1737 = vmatprep.subr.bf16.mxu0 0
      %1738 = vmatpush1.bf16.msra.mxu0 0
      %1739 = vmatprep.subr.bf16.mxu0 0
      %1740 = vmatpush1.bf16.msra.mxu0 0
      %1741 = vmatprep.subr.bf16.mxu0 0
      %1742 = vmatpush1.bf16.msra.mxu0 0
      %1743 = vmatprep.subr.bf16.mxu0 0
      %1744 = vmatpush1.bf16.msra.mxu0 0
      %1745 = vmatprep.subr.bf16.mxu0 0
      %1746 = vmatpush1.bf16.msra.mxu0 0
      %1747 = vmatprep.subr.bf16.mxu0 0
      %1748 = vmatpush1.bf16.msra.mxu0 0
      %1749 = vmatprep.subr.bf16.mxu0 0
      %1750 = vmatpush1.bf16.msra.mxu0 0
      %1751 = vmatprep.subr.bf16.mxu0 0
      %1752 = vmatpush1.bf16.msra.mxu0 0
      %1753 = vmatprep.subr.bf16.mxu0 0
      %1754 = vmatpush1.bf16.msra.mxu0 0
      %1755 = vmatprep.mubr.bf16.mxu0 0
      %1756 = vmatmul.mubr.bf16.gmra.mrb[0].mxu0 %v1718
      %v1757 = vpop.f32.mrb[0].mxu0
      %v1758 = vadd.f32 0.0, %v1757
      %v1759 = vpop.f32.mrb[0].mxu0
      %v1760 = vpop.f32.mrb[0].mxu0
      %v1761 = vpop.f32.mrb[0].mxu0
      %1762 = vdwg.mxu0
      %1763 = vrot.lane.b32.xlu0 %v1142, 112
      %v1764 = vpop.permute.xlu0 %1763
      %v1766 = vsel %vm1155, %v1714, 0
      %v1769 = vsel %vm1275, %v1764, 0
      %1771 = vmatprep.subr.bf16.mxu0 0
      %1772 = vmatpush1.bf16.msra.mxu0 %v1769
      %1773 = vmatprep.subr.bf16.mxu0 0
      %1774 = vmatpush1.bf16.msra.mxu0 0
      %1775 = vmatprep.subr.bf16.mxu0 0
      %1776 = vmatpush1.bf16.msra.mxu0 0
      %1777 = vmatprep.subr.bf16.mxu0 0
      %1778 = vmatpush1.bf16.msra.mxu0 0
      %1779 = vmatprep.subr.bf16.mxu0 0
      %1780 = vmatpush1.bf16.msra.mxu0 0
      %1781 = vmatprep.subr.bf16.mxu0 0
      %1782 = vmatpush1.bf16.msra.mxu0 0
      %1783 = vmatprep.subr.bf16.mxu0 0
      %1784 = vmatpush1.bf16.msra.mxu0 0
      %1785 = vmatprep.subr.bf16.mxu0 0
      %1786 = vmatpush1.bf16.msra.mxu0 0
      %1787 = vmatprep.subr.bf16.mxu0 0
      %1788 = vmatpush1.bf16.msra.mxu0 0
      %1789 = vmatprep.subr.bf16.mxu0 0
      %1790 = vmatpush1.bf16.msra.mxu0 0
      %1791 = vmatprep.subr.bf16.mxu0 0
      %1792 = vmatpush1.bf16.msra.mxu0 0
      %1793 = vmatprep.subr.bf16.mxu0 0
      %1794 = vmatpush1.bf16.msra.mxu0 0
      %1795 = vmatprep.subr.bf16.mxu0 0
      %1796 = vmatpush1.bf16.msra.mxu0 0
      %1797 = vmatprep.subr.bf16.mxu0 0
      %1798 = vmatpush1.bf16.msra.mxu0 0
      %1799 = vmatprep.subr.bf16.mxu0 0
      %1800 = vmatpush1.bf16.msra.mxu0 0
      %1801 = vmatprep.subr.bf16.mxu0 0
      %1802 = vmatpush1.bf16.msra.mxu0 0
      %1803 = vmatprep.mubr.bf16.mxu0 0
      %1804 = vmatmul.mubr.bf16.gmra.mrb[0].mxu0 %v1766
      %v1805 = vpop.f32.mrb[0].mxu0
      %v1806 = vadd.f32 0.0, %v1805
      %v1807 = vpop.f32.mrb[0].mxu0
      %v1808 = vpop.f32.mrb[0].mxu0
      %v1809 = vpop.f32.mrb[0].mxu0
      %1810 = vdwg.mxu0
      %1811 = vrot.lane.b32.xlu0 %v1137, 104
      %v1812 = vpop.permute.xlu0 %1811
      %1813 = vrot.lane.b32.xlu0 %v1139, 104
      %v1814 = vpop.permute.xlu0 %1813
      %v1816 = vsel %vm1155, %v1812, 0
      %v1819 = vsel %vm1155, %v1814, 0
      %1821 = vmatprep.subr.bf16.mxu0 0
      %1822 = vmatpush1.bf16.xpose.msra.mxu0 %v1819
      %1823 = vmatprep.subr.bf16.mxu0 0
      %1824 = vmatpush1.bf16.xpose.msra.mxu0 0
      %1825 = vmatprep.subr.bf16.mxu0 0
      %1826 = vmatpush1.bf16.xpose.msra.mxu0 0
      %1827 = vmatprep.subr.bf16.mxu0 0
      %1828 = vmatpush1.bf16.xpose.msra.mxu0 0
      %1829 = vmatprep.subr.bf16.mxu0 0
      %1830 = vmatpush1.bf16.xpose.msra.mxu0 0
      %1831 = vmatprep.subr.bf16.mxu0 0
      %1832 = vmatpush1.bf16.xpose.msra.mxu0 0
      %1833 = vmatprep.subr.bf16.mxu0 0
      %1834 = vmatpush1.bf16.xpose.msra.mxu0 0
      %1835 = vmatprep.subr.bf16.mxu0 0
      %1836 = vmatpush1.bf16.xpose.msra.mxu0 0
      %1837 = vmatprep.subr.bf16.mxu0 0
      %1838 = vmatpush1.bf16.xpose.msra.mxu0 0
      %1839 = vmatprep.subr.bf16.mxu0 0
      %1840 = vmatpush1.bf16.xpose.msra.mxu0 0
      %1841 = vmatprep.subr.bf16.mxu0 0
      %1842 = vmatpush1.bf16.xpose.msra.mxu0 0
      %1843 = vmatprep.subr.bf16.mxu0 0
      %1844 = vmatpush1.bf16.xpose.msra.mxu0 0
      %1845 = vmatprep.subr.bf16.mxu0 0
      %1846 = vmatpush1.bf16.xpose.msra.mxu0 0
      %1847 = vmatprep.subr.bf16.mxu0 0
      %1848 = vmatpush1.bf16.xpose.msra.mxu0 0
      %1849 = vmatprep.subr.bf16.mxu0 0
      %1850 = vmatpush1.bf16.xpose.msra.mxu0 0
      %1851 = vmatprep.subr.bf16.mxu0 0
      %1852 = vmatpush1.bf16.xpose.msra.mxu0 0
      %1853 = vmatprep.mubr.bf16.mxu0 0
      %1854 = vmatmul.mubr.bf16.gmra.mrb[0].mxu0 %v1816
      %v1855 = vpop.f32.mrb[0].mxu0
      %v1856 = vadd.f32 %v1148, %v1855
      %v1857 = vpop.f32.mrb[0].mxu0
      %v1858 = vpop.f32.mrb[0].mxu0
      %v1859 = vpop.f32.mrb[0].mxu0
      %1860 = vdwg.mxu0
      %1861 = vrot.lane.b32.xlu0 %v1138, 104
      %v1862 = vpop.permute.xlu0 %1861
      %1863 = vrot.lane.b32.xlu0 %v1140, 104
      %v1864 = vpop.permute.xlu0 %1863
      %v1866 = vsel %vm1155, %v1862, 0
      %v1869 = vsel %vm1155, %v1864, 0
      %1871 = vmatprep.subr.bf16.mxu0 0
      %1872 = vmatpush1.bf16.xpose.msra.mxu0 %v1869
      %1873 = vmatprep.subr.bf16.mxu0 0
      %1874 = vmatpush1.bf16.xpose.msra.mxu0 0
      %1875 = vmatprep.subr.bf16.mxu0 0
      %1876 = vmatpush1.bf16.xpose.msra.mxu0 0
      %1877 = vmatprep.subr.bf16.mxu0 0
      %1878 = vmatpush1.bf16.xpose.msra.mxu0 0
      %1879 = vmatprep.subr.bf16.mxu0 0
      %1880 = vmatpush1.bf16.xpose.msra.mxu0 0
      %1881 = vmatprep.subr.bf16.mxu0 0
      %1882 = vmatpush1.bf16.xpose.msra.mxu0 0
      %1883 = vmatprep.subr.bf16.mxu0 0
      %1884 = vmatpush1.bf16.xpose.msra.mxu0 0
      %1885 = vmatprep.subr.bf16.mxu0 0
      %1886 = vmatpush1.bf16.xpose.msra.mxu0 0
      %1887 = vmatprep.subr.bf16.mxu0 0
      %1888 = vmatpush1.bf16.xpose.msra.mxu0 0
      %1889 = vmatprep.subr.bf16.mxu0 0
      %1890 = vmatpush1.bf16.xpose.msra.mxu0 0
      %1891 = vmatprep.subr.bf16.mxu0 0
      %1892 = vmatpush1.bf16.xpose.msra.mxu0 0
      %1893 = vmatprep.subr.bf16.mxu0 0
      %1894 = vmatpush1.bf16.xpose.msra.mxu0 0
      %1895 = vmatprep.subr.bf16.mxu0 0
      %1896 = vmatpush1.bf16.xpose.msra.mxu0 0
      %1897 = vmatprep.subr.bf16.mxu0 0
      %1898 = vmatpush1.bf16.xpose.msra.mxu0 0
      %1899 = vmatprep.subr.bf16.mxu0 0
      %1900 = vmatpush1.bf16.xpose.msra.mxu0 0
      %1901 = vmatprep.subr.bf16.mxu0 0
      %1902 = vmatpush1.bf16.xpose.msra.mxu0 0
      %1903 = vmatprep.mubr.bf16.mxu0 0
      %1904 = vmatmul.mubr.bf16.gmra.mrb[0].mxu0 %v1866
      %v1905 = vpop.f32.mrb[0].mxu0
      %v1906 = vadd.f32 %v1152, %v1905
      %v1907 = vpop.f32.mrb[0].mxu0
      %v1908 = vpop.f32.mrb[0].mxu0
      %v1909 = vpop.f32.mrb[0].mxu0
      %1910 = vdwg.mxu0
      %v1911 = vsel %vm1155, %v1856, -inf
      %1912 = vmax.xlane.f32.xlu0 %v1911
      %v1913 = vpop.xlane.xlu0 %1912
      %v1914 = vsel %vm1155, %v1906, -inf
      %1915 = vmax.xlane.f32.xlu0 %v1914
      %v1916 = vpop.xlane.xlu0 %1915
      %v1917 = vsub.f32 %v1856, %v1913
      %v1918 = vsub.f32 %v1906, %v1916
      %v1919 = vmul.f32 %v1917, 1.442695
      %v1920 = vpow.pop %v1919
      %v1921 = vmul.f32 %v1918, 1.442695
      %v1922 = vpow.pop %v1921
      %v1923 = vsel %vm1155, %v1920, 0.0
      %1924 = vadd.xlane.f32.xlu0 %v1923
      %v1925 = vpop.xlane.xlu0 %1924
      %v1926 = vsel %vm1155, %v1922, 0.0
      %1927 = vadd.xlane.f32.xlu0 %v1926
      %v1928 = vpop.xlane.xlu0 %1927
      %v1929 = vrcp.pop %v1925
      %v1930 = vrcp.pop %v1928
      %v1931 = vmul.f32 %v1920, %v1929
      %v1932 = vmul.f32 %v1922, %v1930
      %v1933 = vpack.c.bf16 %v1931, %v1931
      %v1934 = vpack.c.bf16 %v1932, %v1932
      %1935 = vrot.lane.b32.xlu0 %v1141, 104
      %v1936 = vpop.permute.xlu0 %1935
      %v1938 = vsel %vm1155, %v1933, 0
      %v1941 = vsel %vm1275, %v1936, 0
      %1943 = vmatprep.subr.bf16.mxu0 0
      %1944 = vmatpush1.bf16.msra.mxu0 %v1941
      %1945 = vmatprep.subr.bf16.mxu0 0
      %1946 = vmatpush1.bf16.msra.mxu0 0
      %1947 = vmatprep.subr.bf16.mxu0 0
      %1948 = vmatpush1.bf16.msra.mxu0 0
      %1949 = vmatprep.subr.bf16.mxu0 0
      %1950 = vmatpush1.bf16.msra.mxu0 0
      %1951 = vmatprep.subr.bf16.mxu0 0
      %1952 = vmatpush1.bf16.msra.mxu0 0
      %1953 = vmatprep.subr.bf16.mxu0 0
      %1954 = vmatpush1.bf16.msra.mxu0 0
      %1955 = vmatprep.subr.bf16.mxu0 0
      %1956 = vmatpush1.bf16.msra.mxu0 0
      %1957 = vmatprep.subr.bf16.mxu0 0
      %1958 = vmatpush1.bf16.msra.mxu0 0
      %1959 = vmatprep.subr.bf16.mxu0 0
      %1960 = vmatpush1.bf16.msra.mxu0 0
      %1961 = vmatprep.subr.bf16.mxu0 0
      %1962 = vmatpush1.bf16.msra.mxu0 0
      %1963 = vmatprep.subr.bf16.mxu0 0
      %1964 = vmatpush1.bf16.msra.mxu0 0
      %1965 = vmatprep.subr.bf16.mxu0 0
      %1966 = vmatpush1.bf16.msra.mxu0 0
      %1967 = vmatprep.subr.bf16.mxu0 0
      %1968 = vmatpush1.bf16.msra.mxu0 0
      %1969 = vmatprep.subr.bf16.mxu0 0
      %1970 = vmatpush1.bf16.msra.mxu0 0
      %1971 = vmatprep.subr.bf16.mxu0 0
      %1972 = vmatpush1.bf16.msra.mxu0 0
      %1973 = vmatprep.subr.bf16.mxu0 0
      %1974 = vmatpush1.bf16.msra.mxu0 0
      %1975 = vmatprep.mubr.bf16.mxu0 0
      %1976 = vmatmul.mubr.bf16.gmra.mrb[0].mxu0 %v1938
      %v1977 = vpop.f32.mrb[0].mxu0
      %v1978 = vadd.f32 0.0, %v1977
      %v1979 = vpop.f32.mrb[0].mxu0
      %v1980 = vpop.f32.mrb[0].mxu0
      %v1981 = vpop.f32.mrb[0].mxu0
      %1982 = vdwg.mxu0
      %1983 = vrot.lane.b32.xlu0 %v1142, 104
      %v1984 = vpop.permute.xlu0 %1983
      %v1986 = vsel %vm1155, %v1934, 0
      %v1989 = vsel %vm1275, %v1984, 0
      %1991 = vmatprep.subr.bf16.mxu0 0
      %1992 = vmatpush1.bf16.msra.mxu0 %v1989
      %1993 = vmatprep.subr.bf16.mxu0 0
      %1994 = vmatpush1.bf16.msra.mxu0 0
      %1995 = vmatprep.subr.bf16.mxu0 0
      %1996 = vmatpush1.bf16.msra.mxu0 0
      %1997 = vmatprep.subr.bf16.mxu0 0
      %1998 = vmatpush1.bf16.msra.mxu0 0
      %1999 = vmatprep.subr.bf16.mxu0 0
      %2000 = vmatpush1.bf16.msra.mxu0 0
      %2001 = vmatprep.subr.bf16.mxu0 0
      %2002 = vmatpush1.bf16.msra.mxu0 0
      %2003 = vmatprep.subr.bf16.mxu0 0
      %2004 = vmatpush1.bf16.msra.mxu0 0
      %2005 = vmatprep.subr.bf16.mxu0 0
      %2006 = vmatpush1.bf16.msra.mxu0 0
      %2007 = vmatprep.subr.bf16.mxu0 0
      %2008 = vmatpush1.bf16.msra.mxu0 0
      %2009 = vmatprep.subr.bf16.mxu0 0
      %2010 = vmatpush1.bf16.msra.mxu0 0
      %2011 = vmatprep.subr.bf16.mxu0 0
      %2012 = vmatpush1.bf16.msra.mxu0 0
      %2013 = vmatprep.subr.bf16.mxu0 0
      %2014 = vmatpush1.bf16.msra.mxu0 0
      %2015 = vmatprep.subr.bf16.mxu0 0
      %2016 = vmatpush1.bf16.msra.mxu0 0
      %2017 = vmatprep.subr.bf16.mxu0 0
      %2018 = vmatpush1.bf16.msra.mxu0 0
      %2019 = vmatprep.subr.bf16.mxu0 0
      %2020 = vmatpush1.bf16.msra.mxu0 0
      %2021 = vmatprep.subr.bf16.mxu0 0
      %2022 = vmatpush1.bf16.msra.mxu0 0
      %2023 = vmatprep.mubr.bf16.mxu0 0
      %2024 = vmatmul.mubr.bf16.gmra.mrb[0].mxu0 %v1986
      %v2025 = vpop.f32.mrb[0].mxu0
      %v2026 = vadd.f32 0.0, %v2025
      %v2027 = vpop.f32.mrb[0].mxu0
      %v2028 = vpop.f32.mrb[0].mxu0
      %v2029 = vpop.f32.mrb[0].mxu0
      %2030 = vdwg.mxu0
      %2033 = vrot.lane.b32.xlu0 %v1537, 8
      %v2034 = vpop.permute.xlu0 %2033
      %2035 = vrot.lane.b32.xlu0 %v1586, 8
      %v2036 = vpop.permute.xlu0 %2035
      %2041 = vrot.lane.b32.xlu0 %v1758, 16
      %v2042 = vpop.permute.xlu0 %2041
      %2043 = vrot.lane.b32.xlu0 %v1806, 16
      %v2044 = vpop.permute.xlu0 %2043
      %2049 = vrot.lane.b32.xlu0 %v1978, 24
      %v2050 = vpop.permute.xlu0 %2049
      %2051 = vrot.lane.b32.xlu0 %v2026, 24
      %v2052 = vpop.permute.xlu0 %2051
      %v2055 = vsel %vm1155, %v1314, %v2034
      %v2056 = vsel %vm1155, %v1360, %v2036
      %vm2057 = vcmask 130048
      %v2058 = vsel %vm2057, %v2055, %v2042
      %v2059 = vsel %vm2057, %v2056, %v2044
      %vm2060 = vcmask 195584
      %v2061 = vsel %vm2060, %v2058, %v2050
      %v2062 = vsel %vm2060, %v2059, %v2052
      %v2063 = vpack.c.bf16 %v2062, %v2061
      %v2064 = vld [vmem:[%s886] sm:$0xf]
      %v2065 = vld [vmem:[%s886 + $0x4] sm:$0xf]
      %v2066 = vld [vmem:[%s886 + $0x8] sm:$0xf]
      %v2067 = vld [vmem:[%s886 + $0xc] sm:$0xf]
      %v2068 = vld [vmem:[%s889] sm:$0x1]
      %v2070 = vlaneseq
      %v2071 = vshrl.u32 %v2070, 7
      %v2072 = vsub.s32 0, %v2071
      %v2073 = vrot.slane %v2068, %v2072
      %v2079 = vunpack.c.l.b16 %v2064
      %v2080 = vunpack.c.l.b16 %v2065
      %v2081 = vunpack.c.l.b16 %v2066
      %v2082 = vunpack.c.l.b16 %v2067
      %v2083 = vpack.c.b16 %v2080, %v2079
      %v2084 = vpack.c.b16 %v2082, %v2081
      %v2088 = vsel %vm962, %v2063, 0
      %2090 = vmatprep.subr.bf16.mxu0 0
      %2091 = vmatpush1.bf16.msra.mxu0 %v2083
      %2092 = vmatprep.subr.bf16.mxu0 0
      %2093 = vmatpush1.bf16.msra.mxu0 %v2084
      %2094 = vmatprep.subr.bf16.mxu0 0
      %2095 = vmatpush1.bf16.msra.mxu0 0
      %2096 = vmatprep.subr.bf16.mxu0 0
      %2097 = vmatpush1.bf16.msra.mxu0 0
      %2098 = vmatprep.subr.bf16.mxu0 0
      %2099 = vmatpush1.bf16.msra.mxu0 0
      %2100 = vmatprep.subr.bf16.mxu0 0
      %2101 = vmatpush1.bf16.msra.mxu0 0
      %2102 = vmatprep.subr.bf16.mxu0 0
      %2103 = vmatpush1.bf16.msra.mxu0 0
      %2104 = vmatprep.subr.bf16.mxu0 0
      %2105 = vmatpush1.bf16.msra.mxu0 0
      %2106 = vmatprep.subr.bf16.mxu0 0
      %2107 = vmatpush1.bf16.msra.mxu0 0
      %2108 = vmatprep.subr.bf16.mxu0 0
      %2109 = vmatpush1.bf16.msra.mxu0 0
      %2110 = vmatprep.subr.bf16.mxu0 0
      %2111 = vmatpush1.bf16.msra.mxu0 0
      %2112 = vmatprep.subr.bf16.mxu0 0
      %2113 = vmatpush1.bf16.msra.mxu0 0
      %2114 = vmatprep.subr.bf16.mxu0 0
      %2115 = vmatpush1.bf16.msra.mxu0 0
      %2116 = vmatprep.subr.bf16.mxu0 0
      %2117 = vmatpush1.bf16.msra.mxu0 0
      %2118 = vmatprep.subr.bf16.mxu0 0
      %2119 = vmatpush1.bf16.msra.mxu0 0
      %2120 = vmatprep.subr.bf16.mxu0 0
      %2121 = vmatpush1.bf16.msra.mxu0 0
      %2122 = vmatprep.mubr.bf16.mxu0 0
      %2123 = vmatmul.mubr.bf16.gmra.mrb[0].mxu0 %v2088
      %v2124 = vpop.f32.mrb[0].mxu0
      %v2125 = vadd.f32 %v2073, %v2124
      %v2126 = vpop.f32.mrb[0].mxu0
      %v2127 = vpop.f32.mrb[0].mxu0
      %v2128 = vadd.f32 %v2073, %v2127
      %v2129 = vpop.f32.mrb[0].mxu0
      %2130 = vdwg.mxu0
      %v2131 = vadd.f32 %v934, %v2125
      %v2132 = vadd.f32 %v935, %v2128
      %v2133 = vld [vmem:[%s892] sm:$0x1]
      %v2134 = vld [vmem:[%s895] sm:$0x1]
      %v2135 = vsel %vm962, %v2131, 0.0
      %2136 = vadd.xlane.f32.xlu0 %v2135
      %v2137 = vpop.xlane.xlu0 %2136
      %v2138 = vsel %vm962, %v2132, 0.0
      %2139 = vadd.xlane.f32.xlu0 %v2138
      %v2140 = vpop.xlane.xlu0 %2139
      %v2141 = vrcp.pop 32.0
      %v2142 = vmul.f32 %v2137, %v2141
      %v2143 = vmul.f32 %v2140, %v2141
      %v2144 = vsub.f32 %v2131, %v2142
      %v2145 = vsub.f32 %v2132, %v2143
      %v2146 = vmul.f32 %v2144, %v2144
      %v2147 = vmul.f32 %v2145, %v2145
      %v2148 = vsel %vm962, %v2146, 0.0
      %2149 = vadd.xlane.f32.xlu0 %v2148
      %v2150 = vpop.xlane.xlu0 %2149
      %v2151 = vsel %vm962, %v2147, 0.0
      %2152 = vadd.xlane.f32.xlu0 %v2151
      %v2153 = vpop.xlane.xlu0 %2152
      %v2154 = vmul.f32 %v2150, %v2141
      %v2155 = vmul.f32 %v2153, %v2141
      %v2156 = vadd.f32 %v2154, 1e-05
      %v2157 = vadd.f32 %v2155, 1e-05
      %v2158 = vrsqrt.pop %v2156
      %v2159 = vrsqrt.pop %v2157
      %v2160 = vmul.f32 %v2144, %v2158
      %v2161 = vmul.f32 %v2145, %v2159
      %v2163 = vlaneseq
      %v2164 = vshrl.u32 %v2163, 7
      %v2165 = vsub.s32 0, %v2164
      %v2166 = vrot.slane %v2133, %v2165
      %v2168 = vmul.f32 %v2160, %v2166
      %v2169 = vmul.f32 %v2161, %v2166
      %v2171 = vlaneseq
      %v2172 = vshrl.u32 %v2171, 7
      %v2173 = vsub.s32 0, %v2172
      %v2174 = vrot.slane %v2134, %v2173
      %v2176 = vadd.f32 %v2168, %v2174
      %v2177 = vadd.f32 %v2169, %v2174
      %v2178 = vpack.c.bf16 %v2177, %v2176
      %v2179 = vld [vmem:[%s900] sm:$0xf]
      %v2180 = vld [vmem:[%s900 + $0x4] sm:$0xf]
      %v2181 = vld [vmem:[%s900 + $0x8] sm:$0xf]
      %v2182 = vld [vmem:[%s900 + $0xc] sm:$0xf]
      %v2183 = vld [vmem:[%s903] sm:$0x1]
      %v2185 = vlaneseq
      %v2186 = vshrl.u32 %v2185, 7
      %v2187 = vsub.s32 0, %v2186
      %v2188 = vrot.slane %v2183, %v2187
      %v2194 = vunpack.c.l.b16 %v2179
      %v2195 = vunpack.c.l.b16 %v2180
      %v2196 = vunpack.c.l.b16 %v2181
      %v2197 = vunpack.c.l.b16 %v2182
      %v2198 = vpack.c.b16 %v2195, %v2194
      %v2199 = vpack.c.b16 %v2197, %v2196
      %v2203 = vsel %vm962, %v2178, 0
      %2205 = vmatprep.subr.bf16.mxu0 0
      %2206 = vmatpush1.bf16.msra.mxu0 %v2198
      %2207 = vmatprep.subr.bf16.mxu0 0
      %2208 = vmatpush1.bf16.msra.mxu0 %v2199
      %2209 = vmatprep.subr.bf16.mxu0 0
      %2210 = vmatpush1.bf16.msra.mxu0 0
      %2211 = vmatprep.subr.bf16.mxu0 0
      %2212 = vmatpush1.bf16.msra.mxu0 0
      %2213 = vmatprep.subr.bf16.mxu0 0
      %2214 = vmatpush1.bf16.msra.mxu0 0
      %2215 = vmatprep.subr.bf16.mxu0 0
      %2216 = vmatpush1.bf16.msra.mxu0 0
      %2217 = vmatprep.subr.bf16.mxu0 0
      %2218 = vmatpush1.bf16.msra.mxu0 0
      %2219 = vmatprep.subr.bf16.mxu0 0
      %2220 = vmatpush1.bf16.msra.mxu0 0
      %2221 = vmatprep.subr.bf16.mxu0 0
      %2222 = vmatpush1.bf16.msra.mxu0 0
      %2223 = vmatprep.subr.bf16.mxu0 0
      %2224 = vmatpush1.bf16.msra.mxu0 0
      %2225 = vmatprep.subr.bf16.mxu0 0
      %2226 = vmatpush1.bf16.msra.mxu0 0
      %2227 = vmatprep.subr.bf16.mxu0 0
      %2228 = vmatpush1.bf16.msra.mxu0 0
      %2229 = vmatprep.subr.bf16.mxu0 0
      %2230 = vmatpush1.bf16.msra.mxu0 0
      %2231 = vmatprep.subr.bf16.mxu0 0
      %2232 = vmatpush1.bf16.msra.mxu0 0
      %2233 = vmatprep.subr.bf16.mxu0 0
      %2234 = vmatpush1.bf16.msra.mxu0 0
      %2235 = vmatprep.subr.bf16.mxu0 0
      %2236 = vmatpush1.bf16.msra.mxu0 0
      %2237 = vmatprep.mubr.bf16.mxu0 0
      %2238 = vmatmul.mubr.bf16.gmra.mrb[0].mxu0 %v2203
      %v2239 = vpop.f32.mrb[0].mxu0
      %v2240 = vadd.f32 %v2188, %v2239
      %v2241 = vpop.f32.mrb[0].mxu0
      %v2242 = vpop.f32.mrb[0].mxu0
      %v2243 = vadd.f32 %v2188, %v2242
      %v2244 = vpop.f32.mrb[0].mxu0
      %2245 = vdwg.mxu0
      %v2246 = vmax.f32 %v2240, 0.0
      %v2247 = vmax.f32 %v2243, 0.0
      %v2248 = vpack.c.bf16 %v2247, %v2246
      %v2249 = vld [vmem:[%s908] sm:$0xf]
      %v2250 = vld [vmem:[%s908 + $0x4] sm:$0xf]
      %v2251 = vld [vmem:[%s908 + $0x8] sm:$0xf]
      %v2252 = vld [vmem:[%s908 + $0xc] sm:$0xf]
      %v2253 = vld [vmem:[%s908 + $0x10] sm:$0xf]
      %v2254 = vld [vmem:[%s908 + $0x14] sm:$0xf]
      %v2255 = vld [vmem:[%s908 + $0x18] sm:$0xf]
      %v2256 = vld [vmem:[%s908 + $0x1c] sm:$0xf]
      %v2257 = vld [vmem:[%s911] sm:$0x1]
      %v2259 = vlaneseq
      %v2260 = vshrl.u32 %v2259, 7
      %v2261 = vsub.s32 0, %v2260
      %v2262 = vrot.slane %v2257, %v2261
      %v2272 = vunpack.c.l.b16 %v2249
      %v2273 = vunpack.c.l.b16 %v2250
      %v2274 = vunpack.c.l.b16 %v2251
      %v2275 = vunpack.c.l.b16 %v2252
      %v2276 = vunpack.c.l.b16 %v2253
      %v2277 = vunpack.c.l.b16 %v2254
      %v2278 = vunpack.c.l.b16 %v2255
      %v2279 = vunpack.c.l.b16 %v2256
      %v2280 = vpack.c.b16 %v2273, %v2272
      %v2281 = vpack.c.b16 %v2275, %v2274
      %v2282 = vpack.c.b16 %v2277, %v2276
      %v2283 = vpack.c.b16 %v2279, %v2278
      %vm2288 = vcmask 523264
      %v2290 = vsel %vm2288, %v2248, 0
      %2292 = vmatprep.subr.bf16.mxu0 0
      %2293 = vmatpush1.bf16.msra.mxu0 %v2280
      %2294 = vmatprep.subr.bf16.mxu0 0
      %2295 = vmatpush1.bf16.msra.mxu0 %v2281
      %2296 = vmatprep.subr.bf16.mxu0 0
      %2297 = vmatpush1.bf16.msra.mxu0 %v2282
      %2298 = vmatprep.subr.bf16.mxu0 0
      %2299 = vmatpush1.bf16.msra.mxu0 %v2283
      %2300 = vmatprep.subr.bf16.mxu0 0
      %2301 = vmatpush1.bf16.msra.mxu0 0
      %2302 = vmatprep.subr.bf16.mxu0 0
      %2303 = vmatpush1.bf16.msra.mxu0 0
      %2304 = vmatprep.subr.bf16.mxu0 0
      %2305 = vmatpush1.bf16.msra.mxu0 0
      %2306 = vmatprep.subr.bf16.mxu0 0
      %2307 = vmatpush1.bf16.msra.mxu0 0
      %2308 = vmatprep.subr.bf16.mxu0 0
      %2309 = vmatpush1.bf16.msra.mxu0 0
      %2310 = vmatprep.subr.bf16.mxu0 0
      %2311 = vmatpush1.bf16.msra.mxu0 0
      %2312 = vmatprep.subr.bf16.mxu0 0
      %2313 = vmatpush1.bf16.msra.mxu0 0
      %2314 = vmatprep.subr.bf16.mxu0 0
      %2315 = vmatpush1.bf16.msra.mxu0 0
      %2316 = vmatprep.subr.bf16.mxu0 0
      %2317 = vmatpush1.bf16.msra.mxu0 0
      %2318 = vmatprep.subr.bf16.mxu0 0
      %2319 = vmatpush1.bf16.msra.mxu0 0
      %2320 = vmatprep.subr.bf16.mxu0 0
      %2321 = vmatpush1.bf16.msra.mxu0 0
      %2322 = vmatprep.subr.bf16.mxu0 0
      %2323 = vmatpush1.bf16.msra.mxu0 0
      %2324 = vmatprep.mubr.bf16.mxu0 0
      %2325 = vmatmul.mubr.bf16.gmra.mrb[0].mxu0 %v2290
      %v2326 = vpop.f32.mrb[0].mxu0
      %v2327 = vadd.f32 %v2262, %v2326
      %v2328 = vpop.f32.mrb[0].mxu0
      %v2329 = vpop.f32.mrb[0].mxu0
      %v2330 = vadd.f32 %v2262, %v2329
      %v2331 = vpop.f32.mrb[0].mxu0
      %2332 = vdwg.mxu0
      %v2333 = vadd.f32 %v2176, %v2327
      %v2334 = vadd.f32 %v2177, %v2330
      %v2335 = vld [vmem:[%s914] sm:$0x1]
      %v2336 = vld [vmem:[%s917] sm:$0x1]
      %v2337 = vsel %vm962, %v2333, 0.0
      %2338 = vadd.xlane.f32.xlu0 %v2337
      %v2339 = vpop.xlane.xlu0 %2338
      %v2340 = vsel %vm962, %v2334, 0.0
      %2341 = vadd.xlane.f32.xlu0 %v2340
      %v2342 = vpop.xlane.xlu0 %2341
      %v2343 = vmul.f32 %v2339, %v2141
      %v2344 = vmul.f32 %v2342, %v2141
      %v2345 = vsub.f32 %v2333, %v2343
      %v2346 = vsub.f32 %v2334, %v2344
      %v2347 = vmul.f32 %v2345, %v2345
      %v2348 = vmul.f32 %v2346, %v2346
      %v2349 = vsel %vm962, %v2347, 0.0
      %2350 = vadd.xlane.f32.xlu0 %v2349
      %v2351 = vpop.xlane.xlu0 %2350
      %v2352 = vsel %vm962, %v2348, 0.0
      %2353 = vadd.xlane.f32.xlu0 %v2352
      %v2354 = vpop.xlane.xlu0 %2353
      %v2355 = vmul.f32 %v2351, %v2141
      %v2356 = vmul.f32 %v2354, %v2141
      %v2357 = vadd.f32 %v2355, 1e-05
      %v2358 = vadd.f32 %v2356, 1e-05
      %v2359 = vrsqrt.pop %v2357
      %v2360 = vrsqrt.pop %v2358
      %v2361 = vmul.f32 %v2345, %v2359
      %v2362 = vmul.f32 %v2346, %v2360
      %v2364 = vlaneseq
      %v2365 = vshrl.u32 %v2364, 7
      %v2366 = vsub.s32 0, %v2365
      %v2367 = vrot.slane %v2335, %v2366
      %v2369 = vmul.f32 %v2361, %v2367
      %v2370 = vmul.f32 %v2362, %v2367
      %v2372 = vlaneseq
      %v2373 = vshrl.u32 %v2372, 7
      %v2374 = vsub.s32 0, %v2373
      %v2375 = vrot.slane %v2336, %v2374
      %v2377 = vadd.f32 %v2369, %v2375
      %v2378 = vadd.f32 %v2370, %v2375
      %2379 = vst.msk [vmem:[#allocation2] sm:$0xff] %vm962, %v2377
      %2380 = vst.msk [vmem:[#allocation2 + $0x8] sm:$0xff] %vm962, %v2378
      %p2381 = scmp.eq.s32.totalorder %s36, 1
      // Predicated region
      $region105: #{vivit_forward.6} parent=99 // pred_check
        %p2382 = pneg %p2381
      $region106: #{vivit_forward.6} parent=99 // pred_check_branch
        %2384 = sbr.rel (%p2382) target = $region108
      $region107: #{vivit_forward.6} parent=99 // pred_region
        %v2385 = vld [vmem:[%s18] sm:$0x1]
        %v2386 = vld [vmem:[%s19] sm:$0x1]
        %v2387 = vsel %vm962, %v2377, 0.0
        %2388 = vadd.xlane.f32.xlu0 %v2387
        %v2389 = vpop.xlane.xlu0 %2388
        %v2390 = vsel %vm962, %v2378, 0.0
        %2391 = vadd.xlane.f32.xlu0 %v2390
        %v2392 = vpop.xlane.xlu0 %2391
        %v2393 = vmul.f32 %v2389, %v2141
        %v2394 = vmul.f32 %v2392, %v2141
        %v2395 = vsub.f32 %v2377, %v2393
        %v2396 = vsub.f32 %v2378, %v2394
        %v2397 = vmul.f32 %v2395, %v2395
        %v2398 = vmul.f32 %v2396, %v2396
        %v2399 = vsel %vm962, %v2397, 0.0
        %2400 = vadd.xlane.f32.xlu0 %v2399
        %v2401 = vpop.xlane.xlu0 %2400
        %v2402 = vsel %vm962, %v2398, 0.0
        %2403 = vadd.xlane.f32.xlu0 %v2402
        %v2404 = vpop.xlane.xlu0 %2403
        %v2405 = vmul.f32 %v2401, %v2141
        %v2406 = vmul.f32 %v2404, %v2141
        %v2407 = vadd.f32 %v2405, 1e-05
        %v2408 = vadd.f32 %v2406, 1e-05
        %v2409 = vrsqrt.pop %v2407
        %v2410 = vrsqrt.pop %v2408
        %v2411 = vmul.f32 %v2395, %v2409
        %v2412 = vmul.f32 %v2396, %v2410
        %v2414 = vlaneseq
        %v2415 = vshrl.u32 %v2414, 7
        %v2416 = vsub.s32 0, %v2415
        %v2417 = vrot.slane %v2385, %v2416
        %v2419 = vmul.f32 %v2411, %v2417
        %v2420 = vmul.f32 %v2412, %v2417
        %v2422 = vlaneseq
        %v2423 = vshrl.u32 %v2422, 7
        %v2424 = vsub.s32 0, %v2423
        %v2425 = vrot.slane %v2386, %v2424
        %v2427 = vadd.f32 %v2419, %v2425
        %v2428 = vadd.f32 %v2420, %v2425
        %2429 = vst.msk [vmem:[%s922] sm:$0xff] %vm962, %v2427
        %2430 = vst.msk [vmem:[%s922 + $0x8] sm:$0xff] %vm962, %v2428
      $region108: #{vivit_forward.6} parent=99 // pred_fallthru
        _
      %s2431 = smul.u32 2, %s35
      %p2432 = scmp.lt.s32.totalorder %s2431, 1
      %s2433 = scalar_select %p2432, %s2431, 1
      %s2434 = smul.addr %s2433, 8
      %s2435 = scalar_lea.vmem %s20, %s2434
      // Predicated region
      $region109: #{vivit_forward.6} parent=99 // pred_check
        %p2436 = pneg %p571
      $region110: #{vivit_forward.6} parent=99 // pred_check_branch
        %2438 = sbr.rel (%p2436) target = $region112
      $region111: #{vivit_forward.6} parent=99 // pred_region
        %s2439 = smul.u32 2, %s35
      $region112: #{vivit_forward.6} parent=99 // pred_fallthru
        _
      // Predicated region
      $region113: #{vivit_forward.6} parent=99 // pred_check
        %p2440 = pneg %p571
      $region114: #{vivit_forward.6} parent=99 // pred_check_branch
        %2442 = sbr.rel (%p2440) target = $region116
      $region115: #{vivit_forward.6} parent=99 // pred_region
        %s2443 = smul.u32 2, %s35
        %p2444 = scmp.lt.s32.totalorder %s2443, 1
        %s2445 = scalar_select %p2444, %s2443, 1
        %s2446 = smul.addr %s2445, 8
        %s2447 = scalar_lea.vmem %s20, %s2446
      $region116: #{vivit_forward.6} parent=99 // pred_fallthru
        _
    $region100: #{vivit_forward.6} parent=5 // pred_fallthru
      _
    %p2448 = scmp.le.s32.totalorder 2, %s26
    // Predicated region
    $region117: #{vivit_forward.6} parent=5 // pred_check
      %p2449 = pneg %p2448
    $region118: #{vivit_forward.6} parent=5 // pred_check_branch
      %2451 = sbr.rel (%p2449) target = $region120
    $region119: #{vivit_forward.6} parent=5 // pred_region
      %s2452 = ssub.s32 %s26, 2
    $region120: #{vivit_forward.6} parent=5 // pred_fallthru
      _
  $region6: #{vivit_forward.6} parent=0 // loop_footer
    %s30 = sadd.s32 1, %s26
  $region7: #{vivit_forward.6} parent=0 // loop_footer_branch
    %25 = sbr.rel target = $region3
  $region8: #{vivit_forward.6} parent=0 // loop_exit
    _

</llo_original>
